<compile_context>
chip_gen: v7x
topology: tpu7x:2x2x1
jax: 0.10.0
libtpu: 0.0.40
codegen_flags: <defaults>
</compile_context>

<pallas_src>
import functools
import math

import jax
import jax.numpy as jnp
from jax.experimental import pallas as pl
from jax.experimental.pallas import tpu as pltpu


# ----------------------------- in-kernel helpers -----------------------------

def _layernorm(x, g, b, eps=1e-12):
    mu = jnp.mean(x, axis=-1, keepdims=True)
    var = jnp.mean((x - mu) ** 2, axis=-1, keepdims=True)
    return (x - mu) * jax.lax.rsqrt(var + eps) * g + b


def _gelu(x):
    # tanh approximation of GELU
    return 0.5 * x * (1.0 + jnp.tanh(0.7978845608028654 * (x + 0.044715 * x * x * x)))


# ----------------------------- fused Pallas kernel ----------------------------

def fused_encoder_kernel(x_ref, bias_ref, sel_ref,
                         wqkv_ref, bqkv_ref, wo_ref, bo_ref,
                         g1_ref, be1_ref, w1_ref, c1_ref,
                         w2_ref, c2_ref, g2_ref, be2_ref,
                         out_ref, *, n_layers, hidden):
    """All L post-LN transformer layers + last-4 mean + segment-mean selection for one
    batch element.  Activation stays resident in VMEM across layers; the last-4 sum is
    accumulated in-kernel (never written to HBM)."""
    H = hidden
    x = x_ref[0]                  # (S, H)  f32 activation
    bias = bias_ref[0]            # (1, S)  additive key-mask bias
    acc = jnp.zeros_like(x)       # running sum of the last-4 hidden states

    for l in range(n_layers):     # tiny static trip count -> fully unrolled
        xb = x.astype(jnp.bfloat16)
        # fused QKV projection: one (S,H)@(H,3H) MXU matmul, bf16 weights, f32 acc.
        qkv = jnp.dot(xb, wqkv_ref[l],
                      preferred_element_type=jnp.float32) + bqkv_ref[l]      # (S, 3H)
        q = qkv[:, :H].astype(jnp.bfloat16)       # 1/sqrt(H) already folded into wq/bq
        k = qkv[:, H:2 * H].astype(jnp.bfloat16)
        v = qkv[:, 2 * H:].astype(jnp.bfloat16)

        # contract the H axes directly (no explicit k.T / XLU transpose)
        s = jax.lax.dot_general(q, k, (((1,), (1,)), ((), ())),
                                preferred_element_type=jnp.float32) + bias   # (S, S)
        s = s - jnp.max(s, axis=-1, keepdims=True)
        p = jnp.exp(s)
        # EUP approximate reciprocal instead of a per-row VPU divide
        p = p * pl.reciprocal(jnp.sum(p, axis=-1, keepdims=True), approx=True)

        attn = jnp.dot(p.astype(jnp.bfloat16), v,
                       preferred_element_type=jnp.float32)
        attn = jnp.dot(attn.astype(jnp.bfloat16), wo_ref[l],
                       preferred_element_type=jnp.float32) + bo_ref[l]
        h = _layernorm(x + attn, g1_ref[l], be1_ref[l])                      # f32

        f = _gelu(jnp.dot(h.astype(jnp.bfloat16), w1_ref[l],
                          preferred_element_type=jnp.float32) + c1_ref[l])
        f = jnp.dot(f.astype(jnp.bfloat16), w2_ref[l],
                    preferred_element_type=jnp.float32) + c2_ref[l]
        x = _layernorm(h + f, g2_ref[l], be2_ref[l])                         # f32

        if l >= n_layers - 4:      # last-4 layer accumulation (mean(0) in torch)
            acc = acc + x

    mean_h = acc * (1.0 / float(min(4, n_layers)))                           # (S, H)
    # process_encoder_outputs: segment means as the epilogue (f32, tiny matmul)
    out_ref[0] = jnp.dot(sel_ref[0], mean_h, preferred_element_type=jnp.float32)


# ----------------------------- weight prep + pallas_call wrapper ---------------

def prepare_kernel_weights(params):
    """Stack per-layer weights along L, fuse QKV, fold the attention scale into the
    Q projection, and pre-cast matmul weights to bf16 (halves weight DMA bytes and
    removes in-kernel casts).  Biases / layernorm params stay f32."""
    H = params["layers"][0]["wq"].shape[0]
    inv = 1.0 / math.sqrt(H)

    def stack(fn, dtype=None):
        w = jnp.stack([fn(lp) for lp in params["layers"]], axis=0)
        return w.astype(dtype) if dtype is not None else w

    wqkv = stack(lambda lp: jnp.concatenate(
        [lp["wq"] * inv, lp["wk"], lp["wv"]], axis=-1), jnp.bfloat16)   # (L, H, 3H)
    bqkv = stack(lambda lp: jnp.concatenate(
        [lp["bq"] * inv, lp["bk"], lp["bv"]], axis=-1))                 # (L, 1, 3H)
    wo = stack(lambda lp: lp["wo"], jnp.bfloat16)
    bo = stack(lambda lp: lp["bo"])
    g1 = stack(lambda lp: lp["g1"]); be1 = stack(lambda lp: lp["be1"])
    w1 = stack(lambda lp: lp["w1"], jnp.bfloat16); c1 = stack(lambda lp: lp["c1"])
    w2 = stack(lambda lp: lp["w2"], jnp.bfloat16); c2 = stack(lambda lp: lp["c2"])
    g2 = stack(lambda lp: lp["g2"]); be2 = stack(lambda lp: lp["be2"])
    return (wqkv, bqkv, wo, bo, g1, be1, w1, c1, w2, c2, g2, be2)


def run_fused_encoder(emb, bias, sel, weights, n_layers):
    B, S, H = emb.shape
    F = weights[6].shape[-1]     # w1: (L, H, F)
    T = sel.shape[1]

    in_specs = ([pl.BlockSpec((1, S, H), lambda b: (b, 0, 0)),
                 pl.BlockSpec((1, 1, S), lambda b: (b, 0, 0)),
                 pl.BlockSpec((1, T, S), lambda b: (b, 0, 0))]
                # Constant index_map -> weights are DMA'd once and held resident
                # across grid steps (no per-step re-fetch).
                + [pl.BlockSpec(w.shape, lambda b: (0, 0, 0)) for w in weights])

    flops = (2 * B * n_layers * (4 * S * H * H + 2 * S * H * F + 2 * S * S * H)
             + 2 * B * T * S * H)
    transcendentals = B * n_layers * (S * S + S * F)
    bytes_accessed = int(4 * (emb.size + bias.size + sel.size + B * T * H)
                         + sum(int(w.size) * w.dtype.itemsize for w in weights))

    kern = functools.partial(fused_encoder_kernel, n_layers=n_layers, hidden=H)
    return pl.pallas_call(
        kern,
        out_shape=jax.ShapeDtypeStruct((B, T, H), jnp.float32),
        grid=(B,),
        in_specs=in_specs,
        out_specs=pl.BlockSpec((1, T, H), lambda b: (b, 0, 0)),
        compiler_params=pltpu.CompilerParams(
            dimension_semantics=("parallel",)),   # batch axis -> 2 TCs on v7x
        cost_estimate=pl.CostEstimate(flops=flops,
                                      transcendentals=transcendentals,
                                      bytes_accessed=bytes_accessed),
    )(emb, bias, sel, *weights)


# ----------------------------- model glue -------------------------------------

def init_params(key, vocab, seq, hidden, ffn, n_layers):
    kt, kp, kl = jax.random.split(key, 3)
    params = {
        "tok_emb": 0.02 * jax.random.normal(kt, (vocab, hidden), jnp.float32),
        "pos_emb": 0.02 * jax.random.normal(kp, (seq, hidden), jnp.float32),
        "layers": [],
    }
    for l in range(n_layers):
        ks = jax.random.split(jax.random.fold_in(kl, l), 6)
        lp = {
            "wq": 0.02 * jax.random.normal(ks[0], (hidden, hidden), jnp.float32),
            "bq": jnp.zeros((1, hidden), jnp.float32),
            "wk": 0.02 * jax.random.normal(ks[1], (hidden, hidden), jnp.float32),
            "bk": jnp.zeros((1, hidden), jnp.float32),
            "wv": 0.02 * jax.random.normal(ks[2], (hidden, hidden), jnp.float32),
            "bv": jnp.zeros((1, hidden), jnp.float32),
            "wo": 0.02 * jax.random.normal(ks[3], (hidden, hidden), jnp.float32),
            "bo": jnp.zeros((1, hidden), jnp.float32),
            "g1": jnp.ones((1, hidden), jnp.float32),
            "be1": jnp.zeros((1, hidden), jnp.float32),
            "w1": 0.02 * jax.random.normal(ks[4], (hidden, ffn), jnp.float32),
            "c1": jnp.zeros((1, ffn), jnp.float32),
            "w2": 0.02 * jax.random.normal(ks[5], (ffn, hidden), jnp.float32),
            "c2": jnp.zeros((1, hidden), jnp.float32),
            "g2": jnp.ones((1, hidden), jnp.float32),
            "be2": jnp.zeros((1, hidden), jnp.float32),
        }
        params["layers"].append(lp)
    return params


def build_selection_matrix(output_mask, num_targets):
    """process_encoder_outputs as a segment-mean matrix: sel[b, t, s] = 1/count_t."""
    T = num_targets
    onehot = (output_mask[:, None, :] == jnp.arange(T)[None, :, None]).astype(jnp.float32)
    counts = jnp.maximum(onehot.sum(-1, keepdims=True), 1.0)
    return onehot / counts       # (B, T, S)


def context_encoder_forward(params, input_ids, attn_mask, output_mask, num_targets):
    # glue: embedding gather + additive attention bias + selection matrix
    emb = params["tok_emb"][input_ids] + params["pos_emb"][None, :, :]        # (B, S, H)
    bias = (1.0 - attn_mask.astype(jnp.float32))[:, None, :] * (-1e9)         # (B, 1, S)
    sel = build_selection_matrix(output_mask, num_targets)                    # (B, T, S)
    weights = prepare_kernel_weights(params)     # once per call; cacheable across calls
    out = run_fused_encoder(emb, bias, sel, weights, len(params["layers"]))   # (B, T, H)
    # torch.cat(example_arr, dim=0) over examples
    return out.reshape(-1, out.shape[-1])                                     # (B*T, H)


# ----------------------------- pure-JAX reference ------------------------------

def _ref_layer(x, bias, p):
    dot = functools.partial(jnp.matmul, precision=jax.lax.Precision.HIGHEST)
    H = x.shape[-1]
    q = dot(x, p["wq"]) + p["bq"]
    k = dot(x, p["wk"]) + p["bk"]
    v = dot(x, p["wv"]) + p["bv"]
    s = dot(q, jnp.swapaxes(k, -1, -2)) / math.sqrt(H) + bias
    s = s - jnp.max(s, axis=-1, keepdims=True)
    pr = jnp.exp(s)
    pr = pr / jnp.sum(pr, axis=-1, keepdims=True)
    attn = dot(dot(pr, v), p["wo"]) + p["bo"]
    h = _layernorm(x + attn, p["g1"], p["be1"])
    f = _gelu(dot(h, p["w1"]) + p["c1"])
    f = dot(f, p["w2"]) + p["c2"]
    return _layernorm(h + f, p["g2"], p["be2"])


def reference_forward(params, input_ids, attn_mask, output_mask, num_targets):
    emb = params["tok_emb"][input_ids] + params["pos_emb"][None, :, :]
    bias = (1.0 - attn_mask.astype(jnp.float32))[:, None, :] * (-1e9)
    hiddens = []
    x = emb
    for lp in params["layers"]:
        x = _ref_layer(x, bias, lp)
        hiddens.append(x)
    mean_h = jnp.mean(jnp.stack(hiddens[-4:], axis=0), axis=0)                # (B, S, H)
    sel = build_selection_matrix(output_mask, num_targets)
    out = jnp.einsum("bts,bsh->bth", sel, mean_h,
                     precision=jax.lax.Precision.HIGHEST)
    return out.reshape(-1, out.shape[-1])


# ----------------------------- main --------------------------------------------

if __name__ == "__main__":
    # Lane-dense demo shapes: S and H are multiples of 128 so all blocks and the
    # output last dim fill whole vregs (no masked vst.msk partial stores).
    B, S, H, F, V, L = 2, 128, 128, 256, 128, 4
    T = 3   # target words per example in the synthetic output_mask

    key = jax.random.PRNGKey(0)
    kparams, kids = jax.random.split(key)
    params = init_params(kparams, V, S, H, F, L)

    input_ids = jax.random.randint(kids, (B, S), 0, V, dtype=jnp.int32)
    # example 0 fully valid; example 1 has the last 32 positions padded
    attn_mask = jnp.ones((B, S), jnp.int32).at[1, 96:].set(0)
    # -1 = unlabeled token, otherwise target-word ids (sub-word groups)
    output_mask = jnp.full((B, S), -1, jnp.int32)
    output_mask = (output_mask
                   .at[0, 1:3].set(0).at[0, 3].set(1).at[0, 4:7].set(2)
                   .at[1, 2].set(0).at[1, 3:6].set(1).at[1, 10:12].set(2))

    out = context_encoder_forward(params, input_ids, attn_mask, output_mask, T)
    out = jax.block_until_ready(out)

    ref = reference_forward(params, input_ids, attn_mask, output_mask, T)
    assert out.shape == (B * T, H), out.shape
    max_err = float(jnp.max(jnp.abs(out - ref)))
    if not (math.isfinite(max_err) and max_err < 5e-2):
        raise AssertionError(f"kernel/reference mismatch: max |diff| = {max_err}")

    print("KERNEL_OK")
</pallas_src>

<mosaic_0001>
module attributes {stable_mosaic.version = 11 : i64} {
  func.func @fused_encoder_kernel(%arg0: i32, %arg1: memref<1x128x128xf32, #tpu.memory_space<vmem>>, %arg2: memref<1x1x128xf32, #tpu.memory_space<vmem>>, %arg3: memref<1x3x128xf32, #tpu.memory_space<vmem>>, %arg4: memref<4x128x384xbf16, #tpu.memory_space<vmem>>, %arg5: memref<4x1x384xf32, #tpu.memory_space<vmem>>, %arg6: memref<4x128x128xbf16, #tpu.memory_space<vmem>>, %arg7: memref<4x1x128xf32, #tpu.memory_space<vmem>>, %arg8: memref<4x1x128xf32, #tpu.memory_space<vmem>>, %arg9: memref<4x1x128xf32, #tpu.memory_space<vmem>>, %arg10: memref<4x128x256xbf16, #tpu.memory_space<vmem>>, %arg11: memref<4x1x256xf32, #tpu.memory_space<vmem>>, %arg12: memref<4x256x128xbf16, #tpu.memory_space<vmem>>, %arg13: memref<4x1x128xf32, #tpu.memory_space<vmem>>, %arg14: memref<4x1x128xf32, #tpu.memory_space<vmem>>, %arg15: memref<4x1x128xf32, #tpu.memory_space<vmem>>, %arg16: memref<1x3x128xf32, #tpu.memory_space<vmem>>) attributes {dimension_semantics = [#tpu.dimension_semantics<parallel>], iteration_bounds = array<i64: 2>, scalar_prefetch = 0 : i64, scratch_operands = 0 : i64, tpu.core_type = #tpu.core_type<tc>, window_params = [{transform_indices = @transform_0, window_bounds = array<i64: 1, 128, 128>}, {transform_indices = @transform_1, window_bounds = array<i64: 1, 1, 128>}, {transform_indices = @transform_2, window_bounds = array<i64: 1, 3, 128>}, {pipeline_mode = #tpu.pipeline_mode<synchronous>, transform_indices = @transform_3, window_bounds = array<i64: 4, 128, 384>}, {pipeline_mode = #tpu.pipeline_mode<synchronous>, transform_indices = @transform_4, window_bounds = array<i64: 4, 1, 384>}, {pipeline_mode = #tpu.pipeline_mode<synchronous>, transform_indices = @transform_5, window_bounds = array<i64: 4, 128, 128>}, {pipeline_mode = #tpu.pipeline_mode<synchronous>, transform_indices = @transform_6, window_bounds = array<i64: 4, 1, 128>}, {pipeline_mode = #tpu.pipeline_mode<synchronous>, transform_indices = @transform_7, window_bounds = array<i64: 4, 1, 128>}, {pipeline_mode = #tpu.pipeline_mode<synchronous>, transform_indices = @transform_8, window_bounds = array<i64: 4, 1, 128>}, {pipeline_mode = #tpu.pipeline_mode<synchronous>, transform_indices = @transform_9, window_bounds = array<i64: 4, 128, 256>}, {pipeline_mode = #tpu.pipeline_mode<synchronous>, transform_indices = @transform_10, window_bounds = array<i64: 4, 1, 256>}, {pipeline_mode = #tpu.pipeline_mode<synchronous>, transform_indices = @transform_11, window_bounds = array<i64: 4, 256, 128>}, {pipeline_mode = #tpu.pipeline_mode<synchronous>, transform_indices = @transform_12, window_bounds = array<i64: 4, 1, 128>}, {pipeline_mode = #tpu.pipeline_mode<synchronous>, transform_indices = @transform_13, window_bounds = array<i64: 4, 1, 128>}, {pipeline_mode = #tpu.pipeline_mode<synchronous>, transform_indices = @transform_14, window_bounds = array<i64: 4, 1, 128>}, {transform_indices = @transform_15, window_bounds = array<i64: 1, 3, 128>}]} {
    %c0 = arith.constant 0 : index
    %c0_0 = arith.constant 0 : index
    %c0_1 = arith.constant 0 : index
    %0 = vector.load %arg1[%c0, %c0_0, %c0_1] : memref<1x128x128xf32, #tpu.memory_space<vmem>>, vector<1x128x128xf32>
    %1 = vector.shape_cast %0 : vector<1x128x128xf32> to vector<128x128xf32>
    %c0_2 = arith.constant 0 : index
    %c0_3 = arith.constant 0 : index
    %c0_4 = arith.constant 0 : index
    %2 = vector.load %arg2[%c0_2, %c0_3, %c0_4] : memref<1x1x128xf32, #tpu.memory_space<vmem>>, vector<1x1x128xf32>
    %3 = vector.shape_cast %2 : vector<1x1x128xf32> to vector<1x128xf32>
    %cst = arith.constant 0.000000e+00 : f32
    %4 = vector.broadcast %cst : f32 to vector<128x128xf32>
    %5 = arith.truncf %1 : vector<128x128xf32> to vector<128x128xbf16>
    %c0_5 = arith.constant 0 : index
    %c0_6 = arith.constant 0 : index
    %c0_7 = arith.constant 0 : index
    %6 = vector.load %arg4[%c0_5, %c0_6, %c0_7] : memref<4x128x384xbf16, #tpu.memory_space<vmem>>, vector<1x128x384xbf16>
    %7 = vector.shape_cast %6 : vector<1x128x384xbf16> to vector<128x384xbf16>
    %cst_8 = arith.constant dense<0.000000e+00> : vector<128x384xf32>
    %8 = tpu.matmul %5, %7, %cst_8 {dimension_numbers = #tpu.dot_dimension_numbers<[1], [0], [0], [1], [0, 0, 1, 1], [], []>} : vector<128x128xbf16>, vector<128x384xbf16>, vector<128x384xf32> -> vector<128x384xf32>
    %c0_9 = arith.constant 0 : index
    %c0_10 = arith.constant 0 : index
    %c0_11 = arith.constant 0 : index
    %9 = vector.load %arg5[%c0_9, %c0_10, %c0_11] : memref<4x1x384xf32, #tpu.memory_space<vmem>>, vector<1x1x384xf32>
    %10 = vector.shape_cast %9 : vector<1x1x384xf32> to vector<1x384xf32>
    %11 = vector.broadcast %10 : vector<1x384xf32> to vector<128x384xf32>
    %12 = arith.addf %8, %11 : vector<128x384xf32>
    %13 = vector.extract_strided_slice %12 {offsets = [0, 0], sizes = [128, 128], strides = [1, 1]} : vector<128x384xf32> to vector<128x128xf32>
    %14 = arith.truncf %13 : vector<128x128xf32> to vector<128x128xbf16>
    %15 = vector.extract_strided_slice %12 {offsets = [0, 128], sizes = [128, 128], strides = [1, 1]} : vector<128x384xf32> to vector<128x128xf32>
    %16 = arith.truncf %15 : vector<128x128xf32> to vector<128x128xbf16>
    %17 = vector.extract_strided_slice %12 {offsets = [0, 256], sizes = [128, 128], strides = [1, 1]} : vector<128x384xf32> to vector<128x128xf32>
    %18 = arith.truncf %17 : vector<128x128xf32> to vector<128x128xbf16>
    %cst_12 = arith.constant dense<0.000000e+00> : vector<128x128xf32>
    %19 = tpu.matmul %14, %16, %cst_12 {dimension_numbers = #tpu.dot_dimension_numbers<[1], [1], [0], [0], [0, 0, 1, 0], [], []>} : vector<128x128xbf16>, vector<128x128xbf16>, vector<128x128xf32> -> vector<128x128xf32>
    %20 = vector.broadcast %3 : vector<1x128xf32> to vector<128x128xf32>
    %21 = arith.addf %19, %20 : vector<128x128xf32>
    %cst_13 = arith.constant dense<0xFF800000> : vector<128xf32>
    %22 = vector.multi_reduction <maximumf>, %21, %cst_13 [1] : vector<128x128xf32> to vector<128xf32>
    %23 = vector.shape_cast %22 : vector<128xf32> to vector<128x1xf32>
    %24 = vector.broadcast %23 : vector<128x1xf32> to vector<128x128xf32>
    %25 = arith.subf %21, %24 : vector<128x128xf32>
    %26 = math.exp %25 : vector<128x128xf32>
    %cst_14 = arith.constant dense<0.000000e+00> : vector<128xf32>
    %27 = vector.multi_reduction <add>, %26, %cst_14 [1] : vector<128x128xf32> to vector<128xf32>
    %28 = vector.shape_cast %27 : vector<128xf32> to vector<128x1xf32>
    %29 = tpu.reciprocal %28 {approx = true} : vector<128x1xf32> -> vector<128x1xf32>
    %30 = vector.broadcast %29 : vector<128x1xf32> to vector<128x128xf32>
    %31 = arith.mulf %26, %30 : vector<128x128xf32>
    %32 = arith.truncf %31 : vector<128x128xf32> to vector<128x128xbf16>
    %cst_15 = arith.constant dense<0.000000e+00> : vector<128x128xf32>
    %33 = tpu.matmul %32, %18, %cst_15 {dimension_numbers = #tpu.dot_dimension_numbers<[1], [0], [0], [1], [0, 0, 1, 1], [], []>} : vector<128x128xbf16>, vector<128x128xbf16>, vector<128x128xf32> -> vector<128x128xf32>
    %34 = arith.truncf %33 : vector<128x128xf32> to vector<128x128xbf16>
    %c0_16 = arith.constant 0 : index
    %c0_17 = arith.constant 0 : index
    %c0_18 = arith.constant 0 : index
    %35 = vector.load %arg6[%c0_16, %c0_17, %c0_18] : memref<4x128x128xbf16, #tpu.memory_space<vmem>>, vector<1x128x128xbf16>
    %36 = vector.shape_cast %35 : vector<1x128x128xbf16> to vector<128x128xbf16>
    %cst_19 = arith.constant dense<0.000000e+00> : vector<128x128xf32>
    %37 = tpu.matmul %34, %36, %cst_19 {dimension_numbers = #tpu.dot_dimension_numbers<[1], [0], [0], [1], [0, 0, 1, 1], [], []>} : vector<128x128xbf16>, vector<128x128xbf16>, vector<128x128xf32> -> vector<128x128xf32>
    %c0_20 = arith.constant 0 : index
    %c0_21 = arith.constant 0 : index
    %c0_22 = arith.constant 0 : index
    %38 = vector.load %arg7[%c0_20, %c0_21, %c0_22] : memref<4x1x128xf32, #tpu.memory_space<vmem>>, vector<1x1x128xf32>
    %39 = vector.shape_cast %38 : vector<1x1x128xf32> to vector<1x128xf32>
    %40 = vector.broadcast %39 : vector<1x128xf32> to vector<128x128xf32>
    %41 = arith.addf %37, %40 : vector<128x128xf32>
    %42 = arith.addf %1, %41 : vector<128x128xf32>
    %c0_23 = arith.constant 0 : index
    %c0_24 = arith.constant 0 : index
    %c0_25 = arith.constant 0 : index
    %43 = vector.load %arg8[%c0_23, %c0_24, %c0_25] : memref<4x1x128xf32, #tpu.memory_space<vmem>>, vector<1x1x128xf32>
    %44 = vector.shape_cast %43 : vector<1x1x128xf32> to vector<1x128xf32>
    %c0_26 = arith.constant 0 : index
    %c0_27 = arith.constant 0 : index
    %c0_28 = arith.constant 0 : index
    %45 = vector.load %arg9[%c0_26, %c0_27, %c0_28] : memref<4x1x128xf32, #tpu.memory_space<vmem>>, vector<1x1x128xf32>
    %46 = vector.shape_cast %45 : vector<1x1x128xf32> to vector<1x128xf32>
    %cst_29 = arith.constant dense<0.000000e+00> : vector<128xf32>
    %47 = vector.multi_reduction <add>, %42, %cst_29 [1] : vector<128x128xf32> to vector<128xf32>
    %48 = vector.shape_cast %47 : vector<128xf32> to vector<128x1xf32>
    %cst_30 = arith.constant 1.280000e+02 : f32
    %49 = vector.broadcast %cst_30 : f32 to vector<128x1xf32>
    %50 = arith.divf %48, %49 : vector<128x1xf32>
    %51 = vector.broadcast %50 : vector<128x1xf32> to vector<128x128xf32>
    %52 = arith.subf %42, %51 : vector<128x128xf32>
    %53 = arith.mulf %52, %52 : vector<128x128xf32>
    %cst_31 = arith.constant dense<0.000000e+00> : vector<128xf32>
    %54 = vector.multi_reduction <add>, %53, %cst_31 [1] : vector<128x128xf32> to vector<128xf32>
    %55 = vector.shape_cast %54 : vector<128xf32> to vector<128x1xf32>
    %cst_32 = arith.constant 1.280000e+02 : f32
    %56 = vector.broadcast %cst_32 : f32 to vector<128x1xf32>
    %57 = arith.divf %55, %56 : vector<128x1xf32>
    %58 = vector.broadcast %50 : vector<128x1xf32> to vector<128x128xf32>
    %59 = arith.subf %42, %58 : vector<128x128xf32>
    %cst_33 = arith.constant 9.99999996E-13 : f32
    %60 = vector.broadcast %cst_33 : f32 to vector<128x1xf32>
    %61 = arith.addf %57, %60 : vector<128x1xf32>
    %62 = math.rsqrt %61 : vector<128x1xf32>
    %63 = vector.broadcast %62 : vector<128x1xf32> to vector<128x128xf32>
    %64 = arith.mulf %59, %63 : vector<128x128xf32>
    %65 = vector.broadcast %44 : vector<1x128xf32> to vector<128x128xf32>
    %66 = arith.mulf %64, %65 : vector<128x128xf32>
    %67 = vector.broadcast %46 : vector<1x128xf32> to vector<128x128xf32>
    %68 = arith.addf %66, %67 : vector<128x128xf32>
    %69 = arith.truncf %68 : vector<128x128xf32> to vector<128x128xbf16>
    %c0_34 = arith.constant 0 : index
    %c0_35 = arith.constant 0 : index
    %c0_36 = arith.constant 0 : index
    %70 = vector.load %arg10[%c0_34, %c0_35, %c0_36] : memref<4x128x256xbf16, #tpu.memory_space<vmem>>, vector<1x128x256xbf16>
    %71 = vector.shape_cast %70 : vector<1x128x256xbf16> to vector<128x256xbf16>
    %cst_37 = arith.constant dense<0.000000e+00> : vector<128x256xf32>
    %72 = tpu.matmul %69, %71, %cst_37 {dimension_numbers = #tpu.dot_dimension_numbers<[1], [0], [0], [1], [0, 0, 1, 1], [], []>} : vector<128x128xbf16>, vector<128x256xbf16>, vector<128x256xf32> -> vector<128x256xf32>
    %c0_38 = arith.constant 0 : index
    %c0_39 = arith.constant 0 : index
    %c0_40 = arith.constant 0 : index
    %73 = vector.load %arg11[%c0_38, %c0_39, %c0_40] : memref<4x1x256xf32, #tpu.memory_space<vmem>>, vector<1x1x256xf32>
    %74 = vector.shape_cast %73 : vector<1x1x256xf32> to vector<1x256xf32>
    %75 = vector.broadcast %74 : vector<1x256xf32> to vector<128x256xf32>
    %76 = arith.addf %72, %75 : vector<128x256xf32>
    %cst_41 = arith.constant 5.000000e-01 : f32
    %77 = vector.broadcast %cst_41 : f32 to vector<128x256xf32>
    %78 = arith.mulf %77, %76 : vector<128x256xf32>
    %cst_42 = arith.constant 4.471500e-02 : f32
    %79 = vector.broadcast %cst_42 : f32 to vector<128x256xf32>
    %80 = arith.mulf %79, %76 : vector<128x256xf32>
    %81 = arith.mulf %80, %76 : vector<128x256xf32>
    %82 = arith.mulf %81, %76 : vector<128x256xf32>
    %83 = arith.addf %76, %82 : vector<128x256xf32>
    %cst_43 = arith.constant 0.797884583 : f32
    %84 = vector.broadcast %cst_43 : f32 to vector<128x256xf32>
    %85 = arith.mulf %84, %83 : vector<128x256xf32>
    %86 = math.tanh %85 : vector<128x256xf32>
    %cst_44 = arith.constant 1.000000e+00 : f32
    %87 = vector.broadcast %cst_44 : f32 to vector<128x256xf32>
    %88 = arith.addf %87, %86 : vector<128x256xf32>
    %89 = arith.mulf %78, %88 : vector<128x256xf32>
    %90 = arith.truncf %89 : vector<128x256xf32> to vector<128x256xbf16>
    %c0_45 = arith.constant 0 : index
    %c0_46 = arith.constant 0 : index
    %c0_47 = arith.constant 0 : index
    %91 = vector.load %arg12[%c0_45, %c0_46, %c0_47] : memref<4x256x128xbf16, #tpu.memory_space<vmem>>, vector<1x256x128xbf16>
    %92 = vector.shape_cast %91 : vector<1x256x128xbf16> to vector<256x128xbf16>
    %cst_48 = arith.constant dense<0.000000e+00> : vector<128x128xf32>
    %93 = tpu.matmul %90, %92, %cst_48 {dimension_numbers = #tpu.dot_dimension_numbers<[1], [0], [0], [1], [0, 0, 1, 1], [], []>} : vector<128x256xbf16>, vector<256x128xbf16>, vector<128x128xf32> -> vector<128x128xf32>
    %c0_49 = arith.constant 0 : index
    %c0_50 = arith.constant 0 : index
    %c0_51 = arith.constant 0 : index
    %94 = vector.load %arg13[%c0_49, %c0_50, %c0_51] : memref<4x1x128xf32, #tpu.memory_space<vmem>>, vector<1x1x128xf32>
    %95 = vector.shape_cast %94 : vector<1x1x128xf32> to vector<1x128xf32>
    %96 = vector.broadcast %95 : vector<1x128xf32> to vector<128x128xf32>
    %97 = arith.addf %93, %96 : vector<128x128xf32>
    %98 = arith.addf %68, %97 : vector<128x128xf32>
    %c0_52 = arith.constant 0 : index
    %c0_53 = arith.constant 0 : index
    %c0_54 = arith.constant 0 : index
    %99 = vector.load %arg14[%c0_52, %c0_53, %c0_54] : memref<4x1x128xf32, #tpu.memory_space<vmem>>, vector<1x1x128xf32>
    %100 = vector.shape_cast %99 : vector<1x1x128xf32> to vector<1x128xf32>
    %c0_55 = arith.constant 0 : index
    %c0_56 = arith.constant 0 : index
    %c0_57 = arith.constant 0 : index
    %101 = vector.load %arg15[%c0_55, %c0_56, %c0_57] : memref<4x1x128xf32, #tpu.memory_space<vmem>>, vector<1x1x128xf32>
    %102 = vector.shape_cast %101 : vector<1x1x128xf32> to vector<1x128xf32>
    %cst_58 = arith.constant dense<0.000000e+00> : vector<128xf32>
    %103 = vector.multi_reduction <add>, %98, %cst_58 [1] : vector<128x128xf32> to vector<128xf32>
    %104 = vector.shape_cast %103 : vector<128xf32> to vector<128x1xf32>
    %cst_59 = arith.constant 1.280000e+02 : f32
    %105 = vector.broadcast %cst_59 : f32 to vector<128x1xf32>
    %106 = arith.divf %104, %105 : vector<128x1xf32>
    %107 = vector.broadcast %106 : vector<128x1xf32> to vector<128x128xf32>
    %108 = arith.subf %98, %107 : vector<128x128xf32>
    %109 = arith.mulf %108, %108 : vector<128x128xf32>
    %cst_60 = arith.constant dense<0.000000e+00> : vector<128xf32>
    %110 = vector.multi_reduction <add>, %109, %cst_60 [1] : vector<128x128xf32> to vector<128xf32>
    %111 = vector.shape_cast %110 : vector<128xf32> to vector<128x1xf32>
    %cst_61 = arith.constant 1.280000e+02 : f32
    %112 = vector.broadcast %cst_61 : f32 to vector<128x1xf32>
    %113 = arith.divf %111, %112 : vector<128x1xf32>
    %114 = vector.broadcast %106 : vector<128x1xf32> to vector<128x128xf32>
    %115 = arith.subf %98, %114 : vector<128x128xf32>
    %cst_62 = arith.constant 9.99999996E-13 : f32
    %116 = vector.broadcast %cst_62 : f32 to vector<128x1xf32>
    %117 = arith.addf %113, %116 : vector<128x1xf32>
    %118 = math.rsqrt %117 : vector<128x1xf32>
    %119 = vector.broadcast %118 : vector<128x1xf32> to vector<128x128xf32>
    %120 = arith.mulf %115, %119 : vector<128x128xf32>
    %121 = vector.broadcast %100 : vector<1x128xf32> to vector<128x128xf32>
    %122 = arith.mulf %120, %121 : vector<128x128xf32>
    %123 = vector.broadcast %102 : vector<1x128xf32> to vector<128x128xf32>
    %124 = arith.addf %122, %123 : vector<128x128xf32>
    %125 = arith.addf %4, %124 : vector<128x128xf32>
    %126 = arith.truncf %124 : vector<128x128xf32> to vector<128x128xbf16>
    %c1 = arith.constant 1 : index
    %c0_63 = arith.constant 0 : index
    %c0_64 = arith.constant 0 : index
    %127 = vector.load %arg4[%c1, %c0_63, %c0_64] : memref<4x128x384xbf16, #tpu.memory_space<vmem>>, vector<1x128x384xbf16>
    %128 = vector.shape_cast %127 : vector<1x128x384xbf16> to vector<128x384xbf16>
    %cst_65 = arith.constant dense<0.000000e+00> : vector<128x384xf32>
    %129 = tpu.matmul %126, %128, %cst_65 {dimension_numbers = #tpu.dot_dimension_numbers<[1], [0], [0], [1], [0, 0, 1, 1], [], []>} : vector<128x128xbf16>, vector<128x384xbf16>, vector<128x384xf32> -> vector<128x384xf32>
    %c1_66 = arith.constant 1 : index
    %c0_67 = arith.constant 0 : index
    %c0_68 = arith.constant 0 : index
    %130 = vector.load %arg5[%c1_66, %c0_67, %c0_68] : memref<4x1x384xf32, #tpu.memory_space<vmem>>, vector<1x1x384xf32>
    %131 = vector.shape_cast %130 : vector<1x1x384xf32> to vector<1x384xf32>
    %132 = vector.broadcast %131 : vector<1x384xf32> to vector<128x384xf32>
    %133 = arith.addf %129, %132 : vector<128x384xf32>
    %134 = vector.extract_strided_slice %133 {offsets = [0, 0], sizes = [128, 128], strides = [1, 1]} : vector<128x384xf32> to vector<128x128xf32>
    %135 = arith.truncf %134 : vector<128x128xf32> to vector<128x128xbf16>
    %136 = vector.extract_strided_slice %133 {offsets = [0, 128], sizes = [128, 128], strides = [1, 1]} : vector<128x384xf32> to vector<128x128xf32>
    %137 = arith.truncf %136 : vector<128x128xf32> to vector<128x128xbf16>
    %138 = vector.extract_strided_slice %133 {offsets = [0, 256], sizes = [128, 128], strides = [1, 1]} : vector<128x384xf32> to vector<128x128xf32>
    %139 = arith.truncf %138 : vector<128x128xf32> to vector<128x128xbf16>
    %cst_69 = arith.constant dense<0.000000e+00> : vector<128x128xf32>
    %140 = tpu.matmul %135, %137, %cst_69 {dimension_numbers = #tpu.dot_dimension_numbers<[1], [1], [0], [0], [0, 0, 1, 0], [], []>} : vector<128x128xbf16>, vector<128x128xbf16>, vector<128x128xf32> -> vector<128x128xf32>
    %141 = vector.broadcast %3 : vector<1x128xf32> to vector<128x128xf32>
    %142 = arith.addf %140, %141 : vector<128x128xf32>
    %cst_70 = arith.constant dense<0xFF800000> : vector<128xf32>
    %143 = vector.multi_reduction <maximumf>, %142, %cst_70 [1] : vector<128x128xf32> to vector<128xf32>
    %144 = vector.shape_cast %143 : vector<128xf32> to vector<128x1xf32>
    %145 = vector.broadcast %144 : vector<128x1xf32> to vector<128x128xf32>
    %146 = arith.subf %142, %145 : vector<128x128xf32>
    %147 = math.exp %146 : vector<128x128xf32>
    %cst_71 = arith.constant dense<0.000000e+00> : vector<128xf32>
    %148 = vector.multi_reduction <add>, %147, %cst_71 [1] : vector<128x128xf32> to vector<128xf32>
    %149 = vector.shape_cast %148 : vector<128xf32> to vector<128x1xf32>
    %150 = tpu.reciprocal %149 {approx = true} : vector<128x1xf32> -> vector<128x1xf32>
    %151 = vector.broadcast %150 : vector<128x1xf32> to vector<128x128xf32>
    %152 = arith.mulf %147, %151 : vector<128x128xf32>
    %153 = arith.truncf %152 : vector<128x128xf32> to vector<128x128xbf16>
    %cst_72 = arith.constant dense<0.000000e+00> : vector<128x128xf32>
    %154 = tpu.matmul %153, %139, %cst_72 {dimension_numbers = #tpu.dot_dimension_numbers<[1], [0], [0], [1], [0, 0, 1, 1], [], []>} : vector<128x128xbf16>, vector<128x128xbf16>, vector<128x128xf32> -> vector<128x128xf32>
    %155 = arith.truncf %154 : vector<128x128xf32> to vector<128x128xbf16>
    %c1_73 = arith.constant 1 : index
    %c0_74 = arith.constant 0 : index
    %c0_75 = arith.constant 0 : index
    %156 = vector.load %arg6[%c1_73, %c0_74, %c0_75] : memref<4x128x128xbf16, #tpu.memory_space<vmem>>, vector<1x128x128xbf16>
    %157 = vector.shape_cast %156 : vector<1x128x128xbf16> to vector<128x128xbf16>
    %cst_76 = arith.constant dense<0.000000e+00> : vector<128x128xf32>
    %158 = tpu.matmul %155, %157, %cst_76 {dimension_numbers = #tpu.dot_dimension_numbers<[1], [0], [0], [1], [0, 0, 1, 1], [], []>} : vector<128x128xbf16>, vector<128x128xbf16>, vector<128x128xf32> -> vector<128x128xf32>
    %c1_77 = arith.constant 1 : index
    %c0_78 = arith.constant 0 : index
    %c0_79 = arith.constant 0 : index
    %159 = vector.load %arg7[%c1_77, %c0_78, %c0_79] : memref<4x1x128xf32, #tpu.memory_space<vmem>>, vector<1x1x128xf32>
    %160 = vector.shape_cast %159 : vector<1x1x128xf32> to vector<1x128xf32>
    %161 = vector.broadcast %160 : vector<1x128xf32> to vector<128x128xf32>
    %162 = arith.addf %158, %161 : vector<128x128xf32>
    %163 = arith.addf %124, %162 : vector<128x128xf32>
    %c1_80 = arith.constant 1 : index
    %c0_81 = arith.constant 0 : index
    %c0_82 = arith.constant 0 : index
    %164 = vector.load %arg8[%c1_80, %c0_81, %c0_82] : memref<4x1x128xf32, #tpu.memory_space<vmem>>, vector<1x1x128xf32>
    %165 = vector.shape_cast %164 : vector<1x1x128xf32> to vector<1x128xf32>
    %c1_83 = arith.constant 1 : index
    %c0_84 = arith.constant 0 : index
    %c0_85 = arith.constant 0 : index
    %166 = vector.load %arg9[%c1_83, %c0_84, %c0_85] : memref<4x1x128xf32, #tpu.memory_space<vmem>>, vector<1x1x128xf32>
    %167 = vector.shape_cast %166 : vector<1x1x128xf32> to vector<1x128xf32>
    %cst_86 = arith.constant dense<0.000000e+00> : vector<128xf32>
    %168 = vector.multi_reduction <add>, %163, %cst_86 [1] : vector<128x128xf32> to vector<128xf32>
    %169 = vector.shape_cast %168 : vector<128xf32> to vector<128x1xf32>
    %cst_87 = arith.constant 1.280000e+02 : f32
    %170 = vector.broadcast %cst_87 : f32 to vector<128x1xf32>
    %171 = arith.divf %169, %170 : vector<128x1xf32>
    %172 = vector.broadcast %171 : vector<128x1xf32> to vector<128x128xf32>
    %173 = arith.subf %163, %172 : vector<128x128xf32>
    %174 = arith.mulf %173, %173 : vector<128x128xf32>
    %cst_88 = arith.constant dense<0.000000e+00> : vector<128xf32>
    %175 = vector.multi_reduction <add>, %174, %cst_88 [1] : vector<128x128xf32> to vector<128xf32>
    %176 = vector.shape_cast %175 : vector<128xf32> to vector<128x1xf32>
    %cst_89 = arith.constant 1.280000e+02 : f32
    %177 = vector.broadcast %cst_89 : f32 to vector<128x1xf32>
    %178 = arith.divf %176, %177 : vector<128x1xf32>
    %179 = vector.broadcast %171 : vector<128x1xf32> to vector<128x128xf32>
    %180 = arith.subf %163, %179 : vector<128x128xf32>
    %cst_90 = arith.constant 9.99999996E-13 : f32
    %181 = vector.broadcast %cst_90 : f32 to vector<128x1xf32>
    %182 = arith.addf %178, %181 : vector<128x1xf32>
    %183 = math.rsqrt %182 : vector<128x1xf32>
    %184 = vector.broadcast %183 : vector<128x1xf32> to vector<128x128xf32>
    %185 = arith.mulf %180, %184 : vector<128x128xf32>
    %186 = vector.broadcast %165 : vector<1x128xf32> to vector<128x128xf32>
    %187 = arith.mulf %185, %186 : vector<128x128xf32>
    %188 = vector.broadcast %167 : vector<1x128xf32> to vector<128x128xf32>
    %189 = arith.addf %187, %188 : vector<128x128xf32>
    %190 = arith.truncf %189 : vector<128x128xf32> to vector<128x128xbf16>
    %c1_91 = arith.constant 1 : index
    %c0_92 = arith.constant 0 : index
    %c0_93 = arith.constant 0 : index
    %191 = vector.load %arg10[%c1_91, %c0_92, %c0_93] : memref<4x128x256xbf16, #tpu.memory_space<vmem>>, vector<1x128x256xbf16>
    %192 = vector.shape_cast %191 : vector<1x128x256xbf16> to vector<128x256xbf16>
    %cst_94 = arith.constant dense<0.000000e+00> : vector<128x256xf32>
    %193 = tpu.matmul %190, %192, %cst_94 {dimension_numbers = #tpu.dot_dimension_numbers<[1], [0], [0], [1], [0, 0, 1, 1], [], []>} : vector<128x128xbf16>, vector<128x256xbf16>, vector<128x256xf32> -> vector<128x256xf32>
    %c1_95 = arith.constant 1 : index
    %c0_96 = arith.constant 0 : index
    %c0_97 = arith.constant 0 : index
    %194 = vector.load %arg11[%c1_95, %c0_96, %c0_97] : memref<4x1x256xf32, #tpu.memory_space<vmem>>, vector<1x1x256xf32>
    %195 = vector.shape_cast %194 : vector<1x1x256xf32> to vector<1x256xf32>
    %196 = vector.broadcast %195 : vector<1x256xf32> to vector<128x256xf32>
    %197 = arith.addf %193, %196 : vector<128x256xf32>
    %cst_98 = arith.constant 5.000000e-01 : f32
    %198 = vector.broadcast %cst_98 : f32 to vector<128x256xf32>
    %199 = arith.mulf %198, %197 : vector<128x256xf32>
    %cst_99 = arith.constant 4.471500e-02 : f32
    %200 = vector.broadcast %cst_99 : f32 to vector<128x256xf32>
    %201 = arith.mulf %200, %197 : vector<128x256xf32>
    %202 = arith.mulf %201, %197 : vector<128x256xf32>
    %203 = arith.mulf %202, %197 : vector<128x256xf32>
    %204 = arith.addf %197, %203 : vector<128x256xf32>
    %cst_100 = arith.constant 0.797884583 : f32
    %205 = vector.broadcast %cst_100 : f32 to vector<128x256xf32>
    %206 = arith.mulf %205, %204 : vector<128x256xf32>
    %207 = math.tanh %206 : vector<128x256xf32>
    %cst_101 = arith.constant 1.000000e+00 : f32
    %208 = vector.broadcast %cst_101 : f32 to vector<128x256xf32>
    %209 = arith.addf %208, %207 : vector<128x256xf32>
    %210 = arith.mulf %199, %209 : vector<128x256xf32>
    %211 = arith.truncf %210 : vector<128x256xf32> to vector<128x256xbf16>
    %c1_102 = arith.constant 1 : index
    %c0_103 = arith.constant 0 : index
    %c0_104 = arith.constant 0 : index
    %212 = vector.load %arg12[%c1_102, %c0_103, %c0_104] : memref<4x256x128xbf16, #tpu.memory_space<vmem>>, vector<1x256x128xbf16>
    %213 = vector.shape_cast %212 : vector<1x256x128xbf16> to vector<256x128xbf16>
    %cst_105 = arith.constant dense<0.000000e+00> : vector<128x128xf32>
    %214 = tpu.matmul %211, %213, %cst_105 {dimension_numbers = #tpu.dot_dimension_numbers<[1], [0], [0], [1], [0, 0, 1, 1], [], []>} : vector<128x256xbf16>, vector<256x128xbf16>, vector<128x128xf32> -> vector<128x128xf32>
    %c1_106 = arith.constant 1 : index
    %c0_107 = arith.constant 0 : index
    %c0_108 = arith.constant 0 : index
    %215 = vector.load %arg13[%c1_106, %c0_107, %c0_108] : memref<4x1x128xf32, #tpu.memory_space<vmem>>, vector<1x1x128xf32>
    %216 = vector.shape_cast %215 : vector<1x1x128xf32> to vector<1x128xf32>
    %217 = vector.broadcast %216 : vector<1x128xf32> to vector<128x128xf32>
    %218 = arith.addf %214, %217 : vector<128x128xf32>
    %219 = arith.addf %189, %218 : vector<128x128xf32>
    %c1_109 = arith.constant 1 : index
    %c0_110 = arith.constant 0 : index
    %c0_111 = arith.constant 0 : index
    %220 = vector.load %arg14[%c1_109, %c0_110, %c0_111] : memref<4x1x128xf32, #tpu.memory_space<vmem>>, vector<1x1x128xf32>
    %221 = vector.shape_cast %220 : vector<1x1x128xf32> to vector<1x128xf32>
    %c1_112 = arith.constant 1 : index
    %c0_113 = arith.constant 0 : index
    %c0_114 = arith.constant 0 : index
    %222 = vector.load %arg15[%c1_112, %c0_113, %c0_114] : memref<4x1x128xf32, #tpu.memory_space<vmem>>, vector<1x1x128xf32>
    %223 = vector.shape_cast %222 : vector<1x1x128xf32> to vector<1x128xf32>
    %cst_115 = arith.constant dense<0.000000e+00> : vector<128xf32>
    %224 = vector.multi_reduction <add>, %219, %cst_115 [1] : vector<128x128xf32> to vector<128xf32>
    %225 = vector.shape_cast %224 : vector<128xf32> to vector<128x1xf32>
    %cst_116 = arith.constant 1.280000e+02 : f32
    %226 = vector.broadcast %cst_116 : f32 to vector<128x1xf32>
    %227 = arith.divf %225, %226 : vector<128x1xf32>
    %228 = vector.broadcast %227 : vector<128x1xf32> to vector<128x128xf32>
    %229 = arith.subf %219, %228 : vector<128x128xf32>
    %230 = arith.mulf %229, %229 : vector<128x128xf32>
    %cst_117 = arith.constant dense<0.000000e+00> : vector<128xf32>
    %231 = vector.multi_reduction <add>, %230, %cst_117 [1] : vector<128x128xf32> to vector<128xf32>
    %232 = vector.shape_cast %231 : vector<128xf32> to vector<128x1xf32>
    %cst_118 = arith.constant 1.280000e+02 : f32
    %233 = vector.broadcast %cst_118 : f32 to vector<128x1xf32>
    %234 = arith.divf %232, %233 : vector<128x1xf32>
    %235 = vector.broadcast %227 : vector<128x1xf32> to vector<128x128xf32>
    %236 = arith.subf %219, %235 : vector<128x128xf32>
    %cst_119 = arith.constant 9.99999996E-13 : f32
    %237 = vector.broadcast %cst_119 : f32 to vector<128x1xf32>
    %238 = arith.addf %234, %237 : vector<128x1xf32>
    %239 = math.rsqrt %238 : vector<128x1xf32>
    %240 = vector.broadcast %239 : vector<128x1xf32> to vector<128x128xf32>
    %241 = arith.mulf %236, %240 : vector<128x128xf32>
    %242 = vector.broadcast %221 : vector<1x128xf32> to vector<128x128xf32>
    %243 = arith.mulf %241, %242 : vector<128x128xf32>
    %244 = vector.broadcast %223 : vector<1x128xf32> to vector<128x128xf32>
    %245 = arith.addf %243, %244 : vector<128x128xf32>
    %246 = arith.addf %125, %245 : vector<128x128xf32>
    %247 = arith.truncf %245 : vector<128x128xf32> to vector<128x128xbf16>
    %c2 = arith.constant 2 : index
    %c0_120 = arith.constant 0 : index
    %c0_121 = arith.constant 0 : index
    %248 = vector.load %arg4[%c2, %c0_120, %c0_121] : memref<4x128x384xbf16, #tpu.memory_space<vmem>>, vector<1x128x384xbf16>
    %249 = vector.shape_cast %248 : vector<1x128x384xbf16> to vector<128x384xbf16>
    %cst_122 = arith.constant dense<0.000000e+00> : vector<128x384xf32>
    %250 = tpu.matmul %247, %249, %cst_122 {dimension_numbers = #tpu.dot_dimension_numbers<[1], [0], [0], [1], [0, 0, 1, 1], [], []>} : vector<128x128xbf16>, vector<128x384xbf16>, vector<128x384xf32> -> vector<128x384xf32>
    %c2_123 = arith.constant 2 : index
    %c0_124 = arith.constant 0 : index
    %c0_125 = arith.constant 0 : index
    %251 = vector.load %arg5[%c2_123, %c0_124, %c0_125] : memref<4x1x384xf32, #tpu.memory_space<vmem>>, vector<1x1x384xf32>
    %252 = vector.shape_cast %251 : vector<1x1x384xf32> to vector<1x384xf32>
    %253 = vector.broadcast %252 : vector<1x384xf32> to vector<128x384xf32>
    %254 = arith.addf %250, %253 : vector<128x384xf32>
    %255 = vector.extract_strided_slice %254 {offsets = [0, 0], sizes = [128, 128], strides = [1, 1]} : vector<128x384xf32> to vector<128x128xf32>
    %256 = arith.truncf %255 : vector<128x128xf32> to vector<128x128xbf16>
    %257 = vector.extract_strided_slice %254 {offsets = [0, 128], sizes = [128, 128], strides = [1, 1]} : vector<128x384xf32> to vector<128x128xf32>
    %258 = arith.truncf %257 : vector<128x128xf32> to vector<128x128xbf16>
    %259 = vector.extract_strided_slice %254 {offsets = [0, 256], sizes = [128, 128], strides = [1, 1]} : vector<128x384xf32> to vector<128x128xf32>
    %260 = arith.truncf %259 : vector<128x128xf32> to vector<128x128xbf16>
    %cst_126 = arith.constant dense<0.000000e+00> : vector<128x128xf32>
    %261 = tpu.matmul %256, %258, %cst_126 {dimension_numbers = #tpu.dot_dimension_numbers<[1], [1], [0], [0], [0, 0, 1, 0], [], []>} : vector<128x128xbf16>, vector<128x128xbf16>, vector<128x128xf32> -> vector<128x128xf32>
    %262 = vector.broadcast %3 : vector<1x128xf32> to vector<128x128xf32>
    %263 = arith.addf %261, %262 : vector<128x128xf32>
    %cst_127 = arith.constant dense<0xFF800000> : vector<128xf32>
    %264 = vector.multi_reduction <maximumf>, %263, %cst_127 [1] : vector<128x128xf32> to vector<128xf32>
    %265 = vector.shape_cast %264 : vector<128xf32> to vector<128x1xf32>
    %266 = vector.broadcast %265 : vector<128x1xf32> to vector<128x128xf32>
    %267 = arith.subf %263, %266 : vector<128x128xf32>
    %268 = math.exp %267 : vector<128x128xf32>
    %cst_128 = arith.constant dense<0.000000e+00> : vector<128xf32>
    %269 = vector.multi_reduction <add>, %268, %cst_128 [1] : vector<128x128xf32> to vector<128xf32>
    %270 = vector.shape_cast %269 : vector<128xf32> to vector<128x1xf32>
    %271 = tpu.reciprocal %270 {approx = true} : vector<128x1xf32> -> vector<128x1xf32>
    %272 = vector.broadcast %271 : vector<128x1xf32> to vector<128x128xf32>
    %273 = arith.mulf %268, %272 : vector<128x128xf32>
    %274 = arith.truncf %273 : vector<128x128xf32> to vector<128x128xbf16>
    %cst_129 = arith.constant dense<0.000000e+00> : vector<128x128xf32>
    %275 = tpu.matmul %274, %260, %cst_129 {dimension_numbers = #tpu.dot_dimension_numbers<[1], [0], [0], [1], [0, 0, 1, 1], [], []>} : vector<128x128xbf16>, vector<128x128xbf16>, vector<128x128xf32> -> vector<128x128xf32>
    %276 = arith.truncf %275 : vector<128x128xf32> to vector<128x128xbf16>
    %c2_130 = arith.constant 2 : index
    %c0_131 = arith.constant 0 : index
    %c0_132 = arith.constant 0 : index
    %277 = vector.load %arg6[%c2_130, %c0_131, %c0_132] : memref<4x128x128xbf16, #tpu.memory_space<vmem>>, vector<1x128x128xbf16>
    %278 = vector.shape_cast %277 : vector<1x128x128xbf16> to vector<128x128xbf16>
    %cst_133 = arith.constant dense<0.000000e+00> : vector<128x128xf32>
    %279 = tpu.matmul %276, %278, %cst_133 {dimension_numbers = #tpu.dot_dimension_numbers<[1], [0], [0], [1], [0, 0, 1, 1], [], []>} : vector<128x128xbf16>, vector<128x128xbf16>, vector<128x128xf32> -> vector<128x128xf32>
    %c2_134 = arith.constant 2 : index
    %c0_135 = arith.constant 0 : index
    %c0_136 = arith.constant 0 : index
    %280 = vector.load %arg7[%c2_134, %c0_135, %c0_136] : memref<4x1x128xf32, #tpu.memory_space<vmem>>, vector<1x1x128xf32>
    %281 = vector.shape_cast %280 : vector<1x1x128xf32> to vector<1x128xf32>
    %282 = vector.broadcast %281 : vector<1x128xf32> to vector<128x128xf32>
    %283 = arith.addf %279, %282 : vector<128x128xf32>
    %284 = arith.addf %245, %283 : vector<128x128xf32>
    %c2_137 = arith.constant 2 : index
    %c0_138 = arith.constant 0 : index
    %c0_139 = arith.constant 0 : index
    %285 = vector.load %arg8[%c2_137, %c0_138, %c0_139] : memref<4x1x128xf32, #tpu.memory_space<vmem>>, vector<1x1x128xf32>
    %286 = vector.shape_cast %285 : vector<1x1x128xf32> to vector<1x128xf32>
    %c2_140 = arith.constant 2 : index
    %c0_141 = arith.constant 0 : index
    %c0_142 = arith.constant 0 : index
    %287 = vector.load %arg9[%c2_140, %c0_141, %c0_142] : memref<4x1x128xf32, #tpu.memory_space<vmem>>, vector<1x1x128xf32>
    %288 = vector.shape_cast %287 : vector<1x1x128xf32> to vector<1x128xf32>
    %cst_143 = arith.constant dense<0.000000e+00> : vector<128xf32>
    %289 = vector.multi_reduction <add>, %284, %cst_143 [1] : vector<128x128xf32> to vector<128xf32>
    %290 = vector.shape_cast %289 : vector<128xf32> to vector<128x1xf32>
    %cst_144 = arith.constant 1.280000e+02 : f32
    %291 = vector.broadcast %cst_144 : f32 to vector<128x1xf32>
    %292 = arith.divf %290, %291 : vector<128x1xf32>
    %293 = vector.broadcast %292 : vector<128x1xf32> to vector<128x128xf32>
    %294 = arith.subf %284, %293 : vector<128x128xf32>
    %295 = arith.mulf %294, %294 : vector<128x128xf32>
    %cst_145 = arith.constant dense<0.000000e+00> : vector<128xf32>
    %296 = vector.multi_reduction <add>, %295, %cst_145 [1] : vector<128x128xf32> to vector<128xf32>
    %297 = vector.shape_cast %296 : vector<128xf32> to vector<128x1xf32>
    %cst_146 = arith.constant 1.280000e+02 : f32
    %298 = vector.broadcast %cst_146 : f32 to vector<128x1xf32>
    %299 = arith.divf %297, %298 : vector<128x1xf32>
    %300 = vector.broadcast %292 : vector<128x1xf32> to vector<128x128xf32>
    %301 = arith.subf %284, %300 : vector<128x128xf32>
    %cst_147 = arith.constant 9.99999996E-13 : f32
    %302 = vector.broadcast %cst_147 : f32 to vector<128x1xf32>
    %303 = arith.addf %299, %302 : vector<128x1xf32>
    %304 = math.rsqrt %303 : vector<128x1xf32>
    %305 = vector.broadcast %304 : vector<128x1xf32> to vector<128x128xf32>
    %306 = arith.mulf %301, %305 : vector<128x128xf32>
    %307 = vector.broadcast %286 : vector<1x128xf32> to vector<128x128xf32>
    %308 = arith.mulf %306, %307 : vector<128x128xf32>
    %309 = vector.broadcast %288 : vector<1x128xf32> to vector<128x128xf32>
    %310 = arith.addf %308, %309 : vector<128x128xf32>
    %311 = arith.truncf %310 : vector<128x128xf32> to vector<128x128xbf16>
    %c2_148 = arith.constant 2 : index
    %c0_149 = arith.constant 0 : index
    %c0_150 = arith.constant 0 : index
    %312 = vector.load %arg10[%c2_148, %c0_149, %c0_150] : memref<4x128x256xbf16, #tpu.memory_space<vmem>>, vector<1x128x256xbf16>
    %313 = vector.shape_cast %312 : vector<1x128x256xbf16> to vector<128x256xbf16>
    %cst_151 = arith.constant dense<0.000000e+00> : vector<128x256xf32>
    %314 = tpu.matmul %311, %313, %cst_151 {dimension_numbers = #tpu.dot_dimension_numbers<[1], [0], [0], [1], [0, 0, 1, 1], [], []>} : vector<128x128xbf16>, vector<128x256xbf16>, vector<128x256xf32> -> vector<128x256xf32>
    %c2_152 = arith.constant 2 : index
    %c0_153 = arith.constant 0 : index
    %c0_154 = arith.constant 0 : index
    %315 = vector.load %arg11[%c2_152, %c0_153, %c0_154] : memref<4x1x256xf32, #tpu.memory_space<vmem>>, vector<1x1x256xf32>
    %316 = vector.shape_cast %315 : vector<1x1x256xf32> to vector<1x256xf32>
    %317 = vector.broadcast %316 : vector<1x256xf32> to vector<128x256xf32>
    %318 = arith.addf %314, %317 : vector<128x256xf32>
    %cst_155 = arith.constant 5.000000e-01 : f32
    %319 = vector.broadcast %cst_155 : f32 to vector<128x256xf32>
    %320 = arith.mulf %319, %318 : vector<128x256xf32>
    %cst_156 = arith.constant 4.471500e-02 : f32
    %321 = vector.broadcast %cst_156 : f32 to vector<128x256xf32>
    %322 = arith.mulf %321, %318 : vector<128x256xf32>
    %323 = arith.mulf %322, %318 : vector<128x256xf32>
    %324 = arith.mulf %323, %318 : vector<128x256xf32>
    %325 = arith.addf %318, %324 : vector<128x256xf32>
    %cst_157 = arith.constant 0.797884583 : f32
    %326 = vector.broadcast %cst_157 : f32 to vector<128x256xf32>
    %327 = arith.mulf %326, %325 : vector<128x256xf32>
    %328 = math.tanh %327 : vector<128x256xf32>
    %cst_158 = arith.constant 1.000000e+00 : f32
    %329 = vector.broadcast %cst_158 : f32 to vector<128x256xf32>
    %330 = arith.addf %329, %328 : vector<128x256xf32>
    %331 = arith.mulf %320, %330 : vector<128x256xf32>
    %332 = arith.truncf %331 : vector<128x256xf32> to vector<128x256xbf16>
    %c2_159 = arith.constant 2 : index
    %c0_160 = arith.constant 0 : index
    %c0_161 = arith.constant 0 : index
    %333 = vector.load %arg12[%c2_159, %c0_160, %c0_161] : memref<4x256x128xbf16, #tpu.memory_space<vmem>>, vector<1x256x128xbf16>
    %334 = vector.shape_cast %333 : vector<1x256x128xbf16> to vector<256x128xbf16>
    %cst_162 = arith.constant dense<0.000000e+00> : vector<128x128xf32>
    %335 = tpu.matmul %332, %334, %cst_162 {dimension_numbers = #tpu.dot_dimension_numbers<[1], [0], [0], [1], [0, 0, 1, 1], [], []>} : vector<128x256xbf16>, vector<256x128xbf16>, vector<128x128xf32> -> vector<128x128xf32>
    %c2_163 = arith.constant 2 : index
    %c0_164 = arith.constant 0 : index
    %c0_165 = arith.constant 0 : index
    %336 = vector.load %arg13[%c2_163, %c0_164, %c0_165] : memref<4x1x128xf32, #tpu.memory_space<vmem>>, vector<1x1x128xf32>
    %337 = vector.shape_cast %336 : vector<1x1x128xf32> to vector<1x128xf32>
    %338 = vector.broadcast %337 : vector<1x128xf32> to vector<128x128xf32>
    %339 = arith.addf %335, %338 : vector<128x128xf32>
    %340 = arith.addf %310, %339 : vector<128x128xf32>
    %c2_166 = arith.constant 2 : index
    %c0_167 = arith.constant 0 : index
    %c0_168 = arith.constant 0 : index
    %341 = vector.load %arg14[%c2_166, %c0_167, %c0_168] : memref<4x1x128xf32, #tpu.memory_space<vmem>>, vector<1x1x128xf32>
    %342 = vector.shape_cast %341 : vector<1x1x128xf32> to vector<1x128xf32>
    %c2_169 = arith.constant 2 : index
    %c0_170 = arith.constant 0 : index
    %c0_171 = arith.constant 0 : index
    %343 = vector.load %arg15[%c2_169, %c0_170, %c0_171] : memref<4x1x128xf32, #tpu.memory_space<vmem>>, vector<1x1x128xf32>
    %344 = vector.shape_cast %343 : vector<1x1x128xf32> to vector<1x128xf32>
    %cst_172 = arith.constant dense<0.000000e+00> : vector<128xf32>
    %345 = vector.multi_reduction <add>, %340, %cst_172 [1] : vector<128x128xf32> to vector<128xf32>
    %346 = vector.shape_cast %345 : vector<128xf32> to vector<128x1xf32>
    %cst_173 = arith.constant 1.280000e+02 : f32
    %347 = vector.broadcast %cst_173 : f32 to vector<128x1xf32>
    %348 = arith.divf %346, %347 : vector<128x1xf32>
    %349 = vector.broadcast %348 : vector<128x1xf32> to vector<128x128xf32>
    %350 = arith.subf %340, %349 : vector<128x128xf32>
    %351 = arith.mulf %350, %350 : vector<128x128xf32>
    %cst_174 = arith.constant dense<0.000000e+00> : vector<128xf32>
    %352 = vector.multi_reduction <add>, %351, %cst_174 [1] : vector<128x128xf32> to vector<128xf32>
    %353 = vector.shape_cast %352 : vector<128xf32> to vector<128x1xf32>
    %cst_175 = arith.constant 1.280000e+02 : f32
    %354 = vector.broadcast %cst_175 : f32 to vector<128x1xf32>
    %355 = arith.divf %353, %354 : vector<128x1xf32>
    %356 = vector.broadcast %348 : vector<128x1xf32> to vector<128x128xf32>
    %357 = arith.subf %340, %356 : vector<128x128xf32>
    %cst_176 = arith.constant 9.99999996E-13 : f32
    %358 = vector.broadcast %cst_176 : f32 to vector<128x1xf32>
    %359 = arith.addf %355, %358 : vector<128x1xf32>
    %360 = math.rsqrt %359 : vector<128x1xf32>
    %361 = vector.broadcast %360 : vector<128x1xf32> to vector<128x128xf32>
    %362 = arith.mulf %357, %361 : vector<128x128xf32>
    %363 = vector.broadcast %342 : vector<1x128xf32> to vector<128x128xf32>
    %364 = arith.mulf %362, %363 : vector<128x128xf32>
    %365 = vector.broadcast %344 : vector<1x128xf32> to vector<128x128xf32>
    %366 = arith.addf %364, %365 : vector<128x128xf32>
    %367 = arith.addf %246, %366 : vector<128x128xf32>
    %368 = arith.truncf %366 : vector<128x128xf32> to vector<128x128xbf16>
    %c3 = arith.constant 3 : index
    %c0_177 = arith.constant 0 : index
    %c0_178 = arith.constant 0 : index
    %369 = vector.load %arg4[%c3, %c0_177, %c0_178] : memref<4x128x384xbf16, #tpu.memory_space<vmem>>, vector<1x128x384xbf16>
    %370 = vector.shape_cast %369 : vector<1x128x384xbf16> to vector<128x384xbf16>
    %cst_179 = arith.constant dense<0.000000e+00> : vector<128x384xf32>
    %371 = tpu.matmul %368, %370, %cst_179 {dimension_numbers = #tpu.dot_dimension_numbers<[1], [0], [0], [1], [0, 0, 1, 1], [], []>} : vector<128x128xbf16>, vector<128x384xbf16>, vector<128x384xf32> -> vector<128x384xf32>
    %c3_180 = arith.constant 3 : index
    %c0_181 = arith.constant 0 : index
    %c0_182 = arith.constant 0 : index
    %372 = vector.load %arg5[%c3_180, %c0_181, %c0_182] : memref<4x1x384xf32, #tpu.memory_space<vmem>>, vector<1x1x384xf32>
    %373 = vector.shape_cast %372 : vector<1x1x384xf32> to vector<1x384xf32>
    %374 = vector.broadcast %373 : vector<1x384xf32> to vector<128x384xf32>
    %375 = arith.addf %371, %374 : vector<128x384xf32>
    %376 = vector.extract_strided_slice %375 {offsets = [0, 0], sizes = [128, 128], strides = [1, 1]} : vector<128x384xf32> to vector<128x128xf32>
    %377 = arith.truncf %376 : vector<128x128xf32> to vector<128x128xbf16>
    %378 = vector.extract_strided_slice %375 {offsets = [0, 128], sizes = [128, 128], strides = [1, 1]} : vector<128x384xf32> to vector<128x128xf32>
    %379 = arith.truncf %378 : vector<128x128xf32> to vector<128x128xbf16>
    %380 = vector.extract_strided_slice %375 {offsets = [0, 256], sizes = [128, 128], strides = [1, 1]} : vector<128x384xf32> to vector<128x128xf32>
    %381 = arith.truncf %380 : vector<128x128xf32> to vector<128x128xbf16>
    %cst_183 = arith.constant dense<0.000000e+00> : vector<128x128xf32>
    %382 = tpu.matmul %377, %379, %cst_183 {dimension_numbers = #tpu.dot_dimension_numbers<[1], [1], [0], [0], [0, 0, 1, 0], [], []>} : vector<128x128xbf16>, vector<128x128xbf16>, vector<128x128xf32> -> vector<128x128xf32>
    %383 = vector.broadcast %3 : vector<1x128xf32> to vector<128x128xf32>
    %384 = arith.addf %382, %383 : vector<128x128xf32>
    %cst_184 = arith.constant dense<0xFF800000> : vector<128xf32>
    %385 = vector.multi_reduction <maximumf>, %384, %cst_184 [1] : vector<128x128xf32> to vector<128xf32>
    %386 = vector.shape_cast %385 : vector<128xf32> to vector<128x1xf32>
    %387 = vector.broadcast %386 : vector<128x1xf32> to vector<128x128xf32>
    %388 = arith.subf %384, %387 : vector<128x128xf32>
    %389 = math.exp %388 : vector<128x128xf32>
    %cst_185 = arith.constant dense<0.000000e+00> : vector<128xf32>
    %390 = vector.multi_reduction <add>, %389, %cst_185 [1] : vector<128x128xf32> to vector<128xf32>
    %391 = vector.shape_cast %390 : vector<128xf32> to vector<128x1xf32>
    %392 = tpu.reciprocal %391 {approx = true} : vector<128x1xf32> -> vector<128x1xf32>
    %393 = vector.broadcast %392 : vector<128x1xf32> to vector<128x128xf32>
    %394 = arith.mulf %389, %393 : vector<128x128xf32>
    %395 = arith.truncf %394 : vector<128x128xf32> to vector<128x128xbf16>
    %cst_186 = arith.constant dense<0.000000e+00> : vector<128x128xf32>
    %396 = tpu.matmul %395, %381, %cst_186 {dimension_numbers = #tpu.dot_dimension_numbers<[1], [0], [0], [1], [0, 0, 1, 1], [], []>} : vector<128x128xbf16>, vector<128x128xbf16>, vector<128x128xf32> -> vector<128x128xf32>
    %397 = arith.truncf %396 : vector<128x128xf32> to vector<128x128xbf16>
    %c3_187 = arith.constant 3 : index
    %c0_188 = arith.constant 0 : index
    %c0_189 = arith.constant 0 : index
    %398 = vector.load %arg6[%c3_187, %c0_188, %c0_189] : memref<4x128x128xbf16, #tpu.memory_space<vmem>>, vector<1x128x128xbf16>
    %399 = vector.shape_cast %398 : vector<1x128x128xbf16> to vector<128x128xbf16>
    %cst_190 = arith.constant dense<0.000000e+00> : vector<128x128xf32>
    %400 = tpu.matmul %397, %399, %cst_190 {dimension_numbers = #tpu.dot_dimension_numbers<[1], [0], [0], [1], [0, 0, 1, 1], [], []>} : vector<128x128xbf16>, vector<128x128xbf16>, vector<128x128xf32> -> vector<128x128xf32>
    %c3_191 = arith.constant 3 : index
    %c0_192 = arith.constant 0 : index
    %c0_193 = arith.constant 0 : index
    %401 = vector.load %arg7[%c3_191, %c0_192, %c0_193] : memref<4x1x128xf32, #tpu.memory_space<vmem>>, vector<1x1x128xf32>
    %402 = vector.shape_cast %401 : vector<1x1x128xf32> to vector<1x128xf32>
    %403 = vector.broadcast %402 : vector<1x128xf32> to vector<128x128xf32>
    %404 = arith.addf %400, %403 : vector<128x128xf32>
    %405 = arith.addf %366, %404 : vector<128x128xf32>
    %c3_194 = arith.constant 3 : index
    %c0_195 = arith.constant 0 : index
    %c0_196 = arith.constant 0 : index
    %406 = vector.load %arg8[%c3_194, %c0_195, %c0_196] : memref<4x1x128xf32, #tpu.memory_space<vmem>>, vector<1x1x128xf32>
    %407 = vector.shape_cast %406 : vector<1x1x128xf32> to vector<1x128xf32>
    %c3_197 = arith.constant 3 : index
    %c0_198 = arith.constant 0 : index
    %c0_199 = arith.constant 0 : index
    %408 = vector.load %arg9[%c3_197, %c0_198, %c0_199] : memref<4x1x128xf32, #tpu.memory_space<vmem>>, vector<1x1x128xf32>
    %409 = vector.shape_cast %408 : vector<1x1x128xf32> to vector<1x128xf32>
    %cst_200 = arith.constant dense<0.000000e+00> : vector<128xf32>
    %410 = vector.multi_reduction <add>, %405, %cst_200 [1] : vector<128x128xf32> to vector<128xf32>
    %411 = vector.shape_cast %410 : vector<128xf32> to vector<128x1xf32>
    %cst_201 = arith.constant 1.280000e+02 : f32
    %412 = vector.broadcast %cst_201 : f32 to vector<128x1xf32>
    %413 = arith.divf %411, %412 : vector<128x1xf32>
    %414 = vector.broadcast %413 : vector<128x1xf32> to vector<128x128xf32>
    %415 = arith.subf %405, %414 : vector<128x128xf32>
    %416 = arith.mulf %415, %415 : vector<128x128xf32>
    %cst_202 = arith.constant dense<0.000000e+00> : vector<128xf32>
    %417 = vector.multi_reduction <add>, %416, %cst_202 [1] : vector<128x128xf32> to vector<128xf32>
    %418 = vector.shape_cast %417 : vector<128xf32> to vector<128x1xf32>
    %cst_203 = arith.constant 1.280000e+02 : f32
    %419 = vector.broadcast %cst_203 : f32 to vector<128x1xf32>
    %420 = arith.divf %418, %419 : vector<128x1xf32>
    %421 = vector.broadcast %413 : vector<128x1xf32> to vector<128x128xf32>
    %422 = arith.subf %405, %421 : vector<128x128xf32>
    %cst_204 = arith.constant 9.99999996E-13 : f32
    %423 = vector.broadcast %cst_204 : f32 to vector<128x1xf32>
    %424 = arith.addf %420, %423 : vector<128x1xf32>
    %425 = math.rsqrt %424 : vector<128x1xf32>
    %426 = vector.broadcast %425 : vector<128x1xf32> to vector<128x128xf32>
    %427 = arith.mulf %422, %426 : vector<128x128xf32>
    %428 = vector.broadcast %407 : vector<1x128xf32> to vector<128x128xf32>
    %429 = arith.mulf %427, %428 : vector<128x128xf32>
    %430 = vector.broadcast %409 : vector<1x128xf32> to vector<128x128xf32>
    %431 = arith.addf %429, %430 : vector<128x128xf32>
    %432 = arith.truncf %431 : vector<128x128xf32> to vector<128x128xbf16>
    %c3_205 = arith.constant 3 : index
    %c0_206 = arith.constant 0 : index
    %c0_207 = arith.constant 0 : index
    %433 = vector.load %arg10[%c3_205, %c0_206, %c0_207] : memref<4x128x256xbf16, #tpu.memory_space<vmem>>, vector<1x128x256xbf16>
    %434 = vector.shape_cast %433 : vector<1x128x256xbf16> to vector<128x256xbf16>
    %cst_208 = arith.constant dense<0.000000e+00> : vector<128x256xf32>
    %435 = tpu.matmul %432, %434, %cst_208 {dimension_numbers = #tpu.dot_dimension_numbers<[1], [0], [0], [1], [0, 0, 1, 1], [], []>} : vector<128x128xbf16>, vector<128x256xbf16>, vector<128x256xf32> -> vector<128x256xf32>
    %c3_209 = arith.constant 3 : index
    %c0_210 = arith.constant 0 : index
    %c0_211 = arith.constant 0 : index
    %436 = vector.load %arg11[%c3_209, %c0_210, %c0_211] : memref<4x1x256xf32, #tpu.memory_space<vmem>>, vector<1x1x256xf32>
    %437 = vector.shape_cast %436 : vector<1x1x256xf32> to vector<1x256xf32>
    %438 = vector.broadcast %437 : vector<1x256xf32> to vector<128x256xf32>
    %439 = arith.addf %435, %438 : vector<128x256xf32>
    %cst_212 = arith.constant 5.000000e-01 : f32
    %440 = vector.broadcast %cst_212 : f32 to vector<128x256xf32>
    %441 = arith.mulf %440, %439 : vector<128x256xf32>
    %cst_213 = arith.constant 4.471500e-02 : f32
    %442 = vector.broadcast %cst_213 : f32 to vector<128x256xf32>
    %443 = arith.mulf %442, %439 : vector<128x256xf32>
    %444 = arith.mulf %443, %439 : vector<128x256xf32>
    %445 = arith.mulf %444, %439 : vector<128x256xf32>
    %446 = arith.addf %439, %445 : vector<128x256xf32>
    %cst_214 = arith.constant 0.797884583 : f32
    %447 = vector.broadcast %cst_214 : f32 to vector<128x256xf32>
    %448 = arith.mulf %447, %446 : vector<128x256xf32>
    %449 = math.tanh %448 : vector<128x256xf32>
    %cst_215 = arith.constant 1.000000e+00 : f32
    %450 = vector.broadcast %cst_215 : f32 to vector<128x256xf32>
    %451 = arith.addf %450, %449 : vector<128x256xf32>
    %452 = arith.mulf %441, %451 : vector<128x256xf32>
    %453 = arith.truncf %452 : vector<128x256xf32> to vector<128x256xbf16>
    %c3_216 = arith.constant 3 : index
    %c0_217 = arith.constant 0 : index
    %c0_218 = arith.constant 0 : index
    %454 = vector.load %arg12[%c3_216, %c0_217, %c0_218] : memref<4x256x128xbf16, #tpu.memory_space<vmem>>, vector<1x256x128xbf16>
    %455 = vector.shape_cast %454 : vector<1x256x128xbf16> to vector<256x128xbf16>
    %cst_219 = arith.constant dense<0.000000e+00> : vector<128x128xf32>
    %456 = tpu.matmul %453, %455, %cst_219 {dimension_numbers = #tpu.dot_dimension_numbers<[1], [0], [0], [1], [0, 0, 1, 1], [], []>} : vector<128x256xbf16>, vector<256x128xbf16>, vector<128x128xf32> -> vector<128x128xf32>
    %c3_220 = arith.constant 3 : index
    %c0_221 = arith.constant 0 : index
    %c0_222 = arith.constant 0 : index
    %457 = vector.load %arg13[%c3_220, %c0_221, %c0_222] : memref<4x1x128xf32, #tpu.memory_space<vmem>>, vector<1x1x128xf32>
    %458 = vector.shape_cast %457 : vector<1x1x128xf32> to vector<1x128xf32>
    %459 = vector.broadcast %458 : vector<1x128xf32> to vector<128x128xf32>
    %460 = arith.addf %456, %459 : vector<128x128xf32>
    %461 = arith.addf %431, %460 : vector<128x128xf32>
    %c3_223 = arith.constant 3 : index
    %c0_224 = arith.constant 0 : index
    %c0_225 = arith.constant 0 : index
    %462 = vector.load %arg14[%c3_223, %c0_224, %c0_225] : memref<4x1x128xf32, #tpu.memory_space<vmem>>, vector<1x1x128xf32>
    %463 = vector.shape_cast %462 : vector<1x1x128xf32> to vector<1x128xf32>
    %c3_226 = arith.constant 3 : index
    %c0_227 = arith.constant 0 : index
    %c0_228 = arith.constant 0 : index
    %464 = vector.load %arg15[%c3_226, %c0_227, %c0_228] : memref<4x1x128xf32, #tpu.memory_space<vmem>>, vector<1x1x128xf32>
    %465 = vector.shape_cast %464 : vector<1x1x128xf32> to vector<1x128xf32>
    %cst_229 = arith.constant dense<0.000000e+00> : vector<128xf32>
    %466 = vector.multi_reduction <add>, %461, %cst_229 [1] : vector<128x128xf32> to vector<128xf32>
    %467 = vector.shape_cast %466 : vector<128xf32> to vector<128x1xf32>
    %cst_230 = arith.constant 1.280000e+02 : f32
    %468 = vector.broadcast %cst_230 : f32 to vector<128x1xf32>
    %469 = arith.divf %467, %468 : vector<128x1xf32>
    %470 = vector.broadcast %469 : vector<128x1xf32> to vector<128x128xf32>
    %471 = arith.subf %461, %470 : vector<128x128xf32>
    %472 = arith.mulf %471, %471 : vector<128x128xf32>
    %cst_231 = arith.constant dense<0.000000e+00> : vector<128xf32>
    %473 = vector.multi_reduction <add>, %472, %cst_231 [1] : vector<128x128xf32> to vector<128xf32>
    %474 = vector.shape_cast %473 : vector<128xf32> to vector<128x1xf32>
    %cst_232 = arith.constant 1.280000e+02 : f32
    %475 = vector.broadcast %cst_232 : f32 to vector<128x1xf32>
    %476 = arith.divf %474, %475 : vector<128x1xf32>
    %477 = vector.broadcast %469 : vector<128x1xf32> to vector<128x128xf32>
    %478 = arith.subf %461, %477 : vector<128x128xf32>
    %cst_233 = arith.constant 9.99999996E-13 : f32
    %479 = vector.broadcast %cst_233 : f32 to vector<128x1xf32>
    %480 = arith.addf %476, %479 : vector<128x1xf32>
    %481 = math.rsqrt %480 : vector<128x1xf32>
    %482 = vector.broadcast %481 : vector<128x1xf32> to vector<128x128xf32>
    %483 = arith.mulf %478, %482 : vector<128x128xf32>
    %484 = vector.broadcast %463 : vector<1x128xf32> to vector<128x128xf32>
    %485 = arith.mulf %483, %484 : vector<128x128xf32>
    %486 = vector.broadcast %465 : vector<1x128xf32> to vector<128x128xf32>
    %487 = arith.addf %485, %486 : vector<128x128xf32>
    %488 = arith.addf %367, %487 : vector<128x128xf32>
    %cst_234 = arith.constant 2.500000e-01 : f32
    %489 = vector.broadcast %cst_234 : f32 to vector<128x128xf32>
    %490 = arith.mulf %488, %489 : vector<128x128xf32>
    %c0_235 = arith.constant 0 : index
    %c0_236 = arith.constant 0 : index
    %c0_237 = arith.constant 0 : index
    %491 = vector.load %arg3[%c0_235, %c0_236, %c0_237] : memref<1x3x128xf32, #tpu.memory_space<vmem>>, vector<1x3x128xf32>
    %492 = vector.shape_cast %491 : vector<1x3x128xf32> to vector<3x128xf32>
    %cst_238 = arith.constant dense<0.000000e+00> : vector<3x128xf32>
    %493 = tpu.matmul %492, %490, %cst_238 {dimension_numbers = #tpu.dot_dimension_numbers<[1], [0], [0], [1], [0, 0, 1, 1], [], []>} : vector<3x128xf32>, vector<128x128xf32>, vector<3x128xf32> -> vector<3x128xf32>
    %c0_239 = arith.constant 0 : index
    %c0_240 = arith.constant 0 : index
    %c0_241 = arith.constant 0 : index
    %494 = vector.load %arg16[%c0_239, %c0_240, %c0_241] : memref<1x3x128xf32, #tpu.memory_space<vmem>>, vector<1x3x128xf32>
    %495 = vector.shape_cast %494 : vector<1x3x128xf32> to vector<3x128xf32>
    %496 = vector.shape_cast %493 : vector<3x128xf32> to vector<1x3x128xf32>
    tpu.vector_store %arg16[%c0_239, %c0_240, %c0_241], %496 {strides = array<i32>} : memref<1x3x128xf32, #tpu.memory_space<vmem>>, vector<1x3x128xf32>,
    return
  }
  func.func @transform_0(%arg0: i32) -> (i32, i32, i32) {
    %c0_i32 = arith.constant 0 : i32
    %c0_i32_0 = arith.constant 0 : i32
    %c0_i32_1 = arith.constant 0 : i32
    return %arg0, %c0_i32, %c0_i32_0 : i32, i32, i32
  }
  func.func @transform_1(%arg0: i32) -> (i32, i32, i32) {
    %c0_i32 = arith.constant 0 : i32
    %c0_i32_0 = arith.constant 0 : i32
    %c0_i32_1 = arith.constant 0 : i32
    return %arg0, %c0_i32, %c0_i32_0 : i32, i32, i32
  }
  func.func @transform_2(%arg0: i32) -> (i32, i32, i32) {
    %c0_i32 = arith.constant 0 : i32
    %c0_i32_0 = arith.constant 0 : i32
    %c0_i32_1 = arith.constant 0 : i32
    return %arg0, %c0_i32, %c0_i32_0 : i32, i32, i32
  }
  func.func @transform_3(%arg0: i32) -> (i32, i32, i32) {
    %c0_i32 = arith.constant 0 : i32
    %c0_i32_0 = arith.constant 0 : i32
    %c0_i32_1 = arith.constant 0 : i32
    %c0_i32_2 = arith.constant 0 : i32
    return %c0_i32, %c0_i32_0, %c0_i32_1 : i32, i32, i32
  }
  func.func @transform_4(%arg0: i32) -> (i32, i32, i32) {
    %c0_i32 = arith.constant 0 : i32
    %c0_i32_0 = arith.constant 0 : i32
    %c0_i32_1 = arith.constant 0 : i32
    %c0_i32_2 = arith.constant 0 : i32
    return %c0_i32, %c0_i32_0, %c0_i32_1 : i32, i32, i32
  }
  func.func @transform_5(%arg0: i32) -> (i32, i32, i32) {
    %c0_i32 = arith.constant 0 : i32
    %c0_i32_0 = arith.constant 0 : i32
    %c0_i32_1 = arith.constant 0 : i32
    %c0_i32_2 = arith.constant 0 : i32
    return %c0_i32, %c0_i32_0, %c0_i32_1 : i32, i32, i32
  }
  func.func @transform_6(%arg0: i32) -> (i32, i32, i32) {
    %c0_i32 = arith.constant 0 : i32
    %c0_i32_0 = arith.constant 0 : i32
    %c0_i32_1 = arith.constant 0 : i32
    %c0_i32_2 = arith.constant 0 : i32
    return %c0_i32, %c0_i32_0, %c0_i32_1 : i32, i32, i32
  }
  func.func @transform_7(%arg0: i32) -> (i32, i32, i32) {
    %c0_i32 = arith.constant 0 : i32
    %c0_i32_0 = arith.constant 0 : i32
    %c0_i32_1 = arith.constant 0 : i32
    %c0_i32_2 = arith.constant 0 : i32
    return %c0_i32, %c0_i32_0, %c0_i32_1 : i32, i32, i32
  }
  func.func @transform_8(%arg0: i32) -> (i32, i32, i32) {
    %c0_i32 = arith.constant 0 : i32
    %c0_i32_0 = arith.constant 0 : i32
    %c0_i32_1 = arith.constant 0 : i32
    %c0_i32_2 = arith.constant 0 : i32
    return %c0_i32, %c0_i32_0, %c0_i32_1 : i32, i32, i32
  }
  func.func @transform_9(%arg0: i32) -> (i32, i32, i32) {
    %c0_i32 = arith.constant 0 : i32
    %c0_i32_0 = arith.constant 0 : i32
    %c0_i32_1 = arith.constant 0 : i32
    %c0_i32_2 = arith.constant 0 : i32
    return %c0_i32, %c0_i32_0, %c0_i32_1 : i32, i32, i32
  }
  func.func @transform_10(%arg0: i32) -> (i32, i32, i32) {
    %c0_i32 = arith.constant 0 : i32
    %c0_i32_0 = arith.constant 0 : i32
    %c0_i32_1 = arith.constant 0 : i32
    %c0_i32_2 = arith.constant 0 : i32
    return %c0_i32, %c0_i32_0, %c0_i32_1 : i32, i32, i32
  }
  func.func @transform_11(%arg0: i32) -> (i32, i32, i32) {
    %c0_i32 = arith.constant 0 : i32
    %c0_i32_0 = arith.constant 0 : i32
    %c0_i32_1 = arith.constant 0 : i32
    %c0_i32_2 = arith.constant 0 : i32
    return %c0_i32, %c0_i32_0, %c0_i32_1 : i32, i32, i32
  }
  func.func @transform_12(%arg0: i32) -> (i32, i32, i32) {
    %c0_i32 = arith.constant 0 : i32
    %c0_i32_0 = arith.constant 0 : i32
    %c0_i32_1 = arith.constant 0 : i32
    %c0_i32_2 = arith.constant 0 : i32
    return %c0_i32, %c0_i32_0, %c0_i32_1 : i32, i32, i32
  }
  func.func @transform_13(%arg0: i32) -> (i32, i32, i32) {
    %c0_i32 = arith.constant 0 : i32
    %c0_i32_0 = arith.constant 0 : i32
    %c0_i32_1 = arith.constant 0 : i32
    %c0_i32_2 = arith.constant 0 : i32
    return %c0_i32, %c0_i32_0, %c0_i32_1 : i32, i32, i32
  }
  func.func @transform_14(%arg0: i32) -> (i32, i32, i32) {
    %c0_i32 = arith.constant 0 : i32
    %c0_i32_0 = arith.constant 0 : i32
    %c0_i32_1 = arith.constant 0 : i32
    %c0_i32_2 = arith.constant 0 : i32
    return %c0_i32, %c0_i32_0, %c0_i32_1 : i32, i32, i32
  }
  func.func @transform_15(%arg0: i32) -> (i32, i32, i32) {
    %c0_i32 = arith.constant 0 : i32
    %c0_i32_0 = arith.constant 0 : i32
    %c0_i32_1 = arith.constant 0 : i32
    return %arg0, %c0_i32, %c0_i32_0 : i32, i32, i32
  }
}

</mosaic_0001>

<llo_original>
// kernel: tpu_custom_call.1
$region0: #{tpu_custom_call.1}
  #allocation0 [shape = 'u32[]', space=smem, size = 0x4, offset = 0x4, fixed_abs, tag = 'smem constant byte address 0x4 - core index']
  #allocation1 [shape = 'u32[144,128]{1,0:T(1,128)}', space=vmem, size = 0x12000, scoped, tag = 'internal scratch']
  %s0 = inlined_call_operand.hbm [shape: f32[2,128,128], index: 0, kind: input, shape index: {}]
  %s1 = inlined_call_operand.vmem [shape: f32[2,1,128], index: 1, kind: input, shape index: {}]
  %s2 = inlined_call_operand.vmem [shape: f32[2,3,128], index: 2, kind: input, shape index: {}]
  %s3 = inlined_call_operand.hbm [shape: bf16[4,128,384], index: 3, kind: input, shape index: {}]
  %s4 = inlined_call_operand.vmem [shape: f32[4,1,384], index: 4, kind: input, shape index: {}]
  %s5 = inlined_call_operand.hbm [shape: bf16[4,128,128], index: 5, kind: input, shape index: {}]
  %s6 = inlined_call_operand.vmem [shape: f32[4,1,128], index: 6, kind: input, shape index: {}]
  %s7 = inlined_call_operand.vmem [shape: f32[4,1,128], index: 7, kind: input, shape index: {}]
  %s8 = inlined_call_operand.vmem [shape: f32[4,1,128], index: 8, kind: input, shape index: {}]
  %s9 = inlined_call_operand.hbm [shape: bf16[4,128,256], index: 9, kind: input, shape index: {}]
  %s10 = inlined_call_operand.vmem [shape: f32[4,1,256], index: 10, kind: input, shape index: {}]
  %s11 = inlined_call_operand.hbm [shape: bf16[4,256,128], index: 11, kind: input, shape index: {}]
  %s12 = inlined_call_operand.vmem [shape: f32[4,1,128], index: 12, kind: input, shape index: {}]
  %s13 = inlined_call_operand.vmem [shape: f32[4,1,128], index: 13, kind: input, shape index: {}]
  %s14 = inlined_call_operand.vmem [shape: f32[4,1,128], index: 14, kind: input, shape index: {}]
  %s15 = inlined_call_operand.vmem [shape: f32[2,3,128], index: 15, kind: output, shape index: {}]
  %s16 = sld [smem:[#allocation0]]
  $region113: #{tpu_custom_call.1} parent=0
    _
  %s18 = ssub.s32 1, %s16
  %s19 = scalar_select 0, %s18, %s16
  $region1: #{tpu_custom_call.1} parent=0
    #allocation2 [shape = 'u8[131072]{0}', space=vmem, size = 0x20000, scoped, tag = 'input window, operand 0']
    #allocation3 [shape = 's32[2]{0}', space=sflag, size = 0x8, scoped, tag = 'scoped memory for tpu_custom_call.1']
    #allocation4 [shape = 'u8[393216]{0}', space=vmem, size = 0x60000, scoped, tag = 'input window, operand 3, single buffered']
    #allocation5 [shape = 's32[1]{0}', space=sflag, size = 0x4, scoped, tag = 'scoped memory for tpu_custom_call.1']
    #allocation6 [shape = 'u8[131072]{0}', space=vmem, size = 0x20000, scoped, tag = 'input window, operand 5, single buffered']
    #allocation7 [shape = 'u8[262144]{0}', space=vmem, size = 0x40000, scoped, tag = 'input window, operand 9, single buffered']
    #allocation8 [shape = 's32[1]{0}', space=sflag, size = 0x4, scoped, tag = 'scoped memory for tpu_custom_call.1']
    #allocation9 [shape = 'u8[262144]{0}', space=vmem, size = 0x40000, scoped, tag = 'input window, operand 11, single buffered']
    %20 = vsyncpa [#allocation3], 0
    %s21 = scalar_lea.sflag [#allocation3], 1
    %22 = vsyncpa %s21, 0
    %23 = vsyncpa [#allocation5], 0
    %24 = vsyncpa [#allocation8], 0
    loop: start=0, step=1, limit=4
    $region2: #{tpu_custom_call.1} parent=1 // loop_pre_header
      _
    $region3: #{tpu_custom_call.1} parent=1 // loop_header
      %s26 = sphi 0, %s30
      %p27 = scmp.ge.s32.totalorder %s26, 4
      %s36 = sphi 0, %s38
      %s39 = sphi 0, %s36
      %s40 = sphi 0, %s39
      %s56 = sphi 0, %s40
      %s62 = sphi 0, %s64
      %s65 = sphi 0, %s62
      %s66 = sphi 0, %s65
      %s82 = sphi 0, %s66
      %s88 = sphi 0, %s90
      %s91 = sphi 0, %s88
      %s92 = sphi 0, %s91
      %s108 = sphi 0, %s92
      %s112 = sphi 0, %s112
      %s114 = sphi 0, %s112
      %s115 = sphi 0, %s114
      %s129 = sphi 0, %s115
      %s133 = sphi 0, %s133
      %s135 = sphi 0, %s133
      %s136 = sphi 0, %s135
      %s150 = sphi 0, %s136
      %s154 = sphi 0, %s154
      %s156 = sphi 0, %s154
      %s157 = sphi 0, %s156
      %s171 = sphi 0, %s157
      %s175 = sphi 0, %s175
      %s177 = sphi 0, %s175
      %s178 = sphi 0, %s177
      %s192 = sphi 0, %s178
      %s196 = sphi 0, %s196
      %s198 = sphi 0, %s196
      %s199 = sphi 0, %s198
      %s213 = sphi 0, %s199
      %s217 = sphi 0, %s217
      %s219 = sphi 0, %s217
      %s220 = sphi 0, %s219
      %s234 = sphi 0, %s220
      %s238 = sphi 0, %s238
      %s240 = sphi 0, %s238
      %s241 = sphi 0, %s240
      %s255 = sphi 0, %s241
      %s259 = sphi 0, %s259
      %s261 = sphi 0, %s259
      %s262 = sphi 0, %s261
      %s276 = sphi 0, %s262
      %s280 = sphi 0, %s280
      %s282 = sphi 0, %s280
      %s283 = sphi 0, %s282
      %s297 = sphi 0, %s283
      %s301 = sphi 0, %s301
      %s303 = sphi 0, %s301
      %s304 = sphi 0, %s303
      %s318 = sphi 0, %s304
      %s322 = sphi 0, %s322
      %s324 = sphi 0, %s322
      %s325 = sphi 0, %s324
      %s339 = sphi 0, %s325
      %s343 = sphi 0, %s343
      %s345 = sphi 0, %s343
      %s346 = sphi 0, %s345
      %s360 = sphi 0, %s346
      %s366 = sphi 0, %s368
      %s369 = sphi 0, %s366
      %s370 = sphi 0, %s369
      %s386 = sphi 0, %s370
    $region4: #{tpu_custom_call.1} parent=1 // loop_header_branch
      %29 = sbr.rel (%p27) target = $region8
    $region5: #{tpu_custom_call.1} parent=1 // loop_body
      %s31 = ssub.s32 %s26, 1
      %s32 = ssub.s32 %s26, 2
      %s33 = sadd.s32 %s26, 1
      %s34 = ssub.s32 %s26, %s33
      %p35 = scmp.eq.s32.totalorder %s34, 0
      %s37 = sadd.s32 %s36, 1
      %s38 = scalar_select %p35, %s36, %s37
      %p41 = pneg %p35
      %p42 = scmp.eq.s32.totalorder %s26, 1
      %p43 = por %p41, %p42
      %p44 = scmp.ne.s32.totalorder %s36, %s39
      %p45 = scmp.eq.s32.totalorder %s26, 0
      %p46 = por %p44, %p45
      %p47 = scmp.ne.s32.totalorder %s36, %s39
      %p48 = scmp.eq.s32.totalorder %s31, 1
      %p49 = por %p47, %p48
      %p50 = scmp.ne.s32.totalorder %s39, %s40
      %p51 = scmp.eq.s32.totalorder %s31, 0
      %p52 = por %p50, %p51
      %p53 = scmp.ne.s32.totalorder %s39, %s40
      %p54 = scmp.eq.s32.totalorder %s32, 1
      %p55 = por %p53, %p54
      %p57 = scmp.ne.s32.totalorder %s40, %s56
      %p58 = scmp.eq.s32.totalorder %s32, 0
      %p59 = por %p57, %p58
      %s60 = ssub.s32 %s26, %s33
      %p61 = scmp.eq.s32.totalorder %s60, 0
      %s63 = sadd.s32 %s62, 1
      %s64 = scalar_select %p61, %s62, %s63
      %p67 = pneg %p61
      %p68 = scmp.eq.s32.totalorder %s26, 1
      %p69 = por %p67, %p68
      %p70 = scmp.ne.s32.totalorder %s62, %s65
      %p71 = scmp.eq.s32.totalorder %s26, 0
      %p72 = por %p70, %p71
      %p73 = scmp.ne.s32.totalorder %s62, %s65
      %p74 = scmp.eq.s32.totalorder %s31, 1
      %p75 = por %p73, %p74
      %p76 = scmp.ne.s32.totalorder %s65, %s66
      %p77 = scmp.eq.s32.totalorder %s31, 0
      %p78 = por %p76, %p77
      %p79 = scmp.ne.s32.totalorder %s65, %s66
      %p80 = scmp.eq.s32.totalorder %s32, 1
      %p81 = por %p79, %p80
      %p83 = scmp.ne.s32.totalorder %s66, %s82
      %p84 = scmp.eq.s32.totalorder %s32, 0
      %p85 = por %p83, %p84
      %s86 = ssub.s32 %s26, %s33
      %p87 = scmp.eq.s32.totalorder %s86, 0
      %s89 = sadd.s32 %s88, 1
      %s90 = scalar_select %p87, %s88, %s89
      %p93 = pneg %p87
      %p94 = scmp.eq.s32.totalorder %s26, 1
      %p95 = por %p93, %p94
      %p96 = scmp.ne.s32.totalorder %s88, %s91
      %p97 = scmp.eq.s32.totalorder %s26, 0
      %p98 = por %p96, %p97
      %p99 = scmp.ne.s32.totalorder %s88, %s91
      %p100 = scmp.eq.s32.totalorder %s31, 1
      %p101 = por %p99, %p100
      %p102 = scmp.ne.s32.totalorder %s91, %s92
      %p103 = scmp.eq.s32.totalorder %s31, 0
      %p104 = por %p102, %p103
      %p105 = scmp.ne.s32.totalorder %s91, %s92
      %p106 = scmp.eq.s32.totalorder %s32, 1
      %p107 = por %p105, %p106
      %p109 = scmp.ne.s32.totalorder %s92, %s108
      %p110 = scmp.eq.s32.totalorder %s32, 0
      %p111 = por %p109, %p110
      %s113 = sadd.s32 %s112, 1
      %p116 = scmp.eq.s32.totalorder %s26, 1
      %p117 = scmp.ne.s32.totalorder %s112, %s114
      %p118 = scmp.eq.s32.totalorder %s26, 0
      %p119 = por %p117, %p118
      %p120 = scmp.ne.s32.totalorder %s112, %s114
      %p121 = scmp.eq.s32.totalorder %s31, 1
      %p122 = por %p120, %p121
      %p123 = scmp.ne.s32.totalorder %s114, %s115
      %p124 = scmp.eq.s32.totalorder %s31, 0
      %p125 = por %p123, %p124
      %p126 = scmp.ne.s32.totalorder %s114, %s115
      %p127 = scmp.eq.s32.totalorder %s32, 1
      %p128 = por %p126, %p127
      %p130 = scmp.ne.s32.totalorder %s115, %s129
      %p131 = scmp.eq.s32.totalorder %s32, 0
      %p132 = por %p130, %p131
      %s134 = sadd.s32 %s133, 1
      %p137 = scmp.eq.s32.totalorder %s26, 1
      %p138 = scmp.ne.s32.totalorder %s133, %s135
      %p139 = scmp.eq.s32.totalorder %s26, 0
      %p140 = por %p138, %p139
      %p141 = scmp.ne.s32.totalorder %s133, %s135
      %p142 = scmp.eq.s32.totalorder %s31, 1
      %p143 = por %p141, %p142
      %p144 = scmp.ne.s32.totalorder %s135, %s136
      %p145 = scmp.eq.s32.totalorder %s31, 0
      %p146 = por %p144, %p145
      %p147 = scmp.ne.s32.totalorder %s135, %s136
      %p148 = scmp.eq.s32.totalorder %s32, 1
      %p149 = por %p147, %p148
      %p151 = scmp.ne.s32.totalorder %s136, %s150
      %p152 = scmp.eq.s32.totalorder %s32, 0
      %p153 = por %p151, %p152
      %s155 = sadd.s32 %s154, 1
      %p158 = scmp.eq.s32.totalorder %s26, 1
      %p159 = scmp.ne.s32.totalorder %s154, %s156
      %p160 = scmp.eq.s32.totalorder %s26, 0
      %p161 = por %p159, %p160
      %p162 = scmp.ne.s32.totalorder %s154, %s156
      %p163 = scmp.eq.s32.totalorder %s31, 1
      %p164 = por %p162, %p163
      %p165 = scmp.ne.s32.totalorder %s156, %s157
      %p166 = scmp.eq.s32.totalorder %s31, 0
      %p167 = por %p165, %p166
      %p168 = scmp.ne.s32.totalorder %s156, %s157
      %p169 = scmp.eq.s32.totalorder %s32, 1
      %p170 = por %p168, %p169
      %p172 = scmp.ne.s32.totalorder %s157, %s171
      %p173 = scmp.eq.s32.totalorder %s32, 0
      %p174 = por %p172, %p173
      %s176 = sadd.s32 %s175, 1
      %p179 = scmp.eq.s32.totalorder %s26, 1
      %p180 = scmp.ne.s32.totalorder %s175, %s177
      %p181 = scmp.eq.s32.totalorder %s26, 0
      %p182 = por %p180, %p181
      %p183 = scmp.ne.s32.totalorder %s175, %s177
      %p184 = scmp.eq.s32.totalorder %s31, 1
      %p185 = por %p183, %p184
      %p186 = scmp.ne.s32.totalorder %s177, %s178
      %p187 = scmp.eq.s32.totalorder %s31, 0
      %p188 = por %p186, %p187
      %p189 = scmp.ne.s32.totalorder %s177, %s178
      %p190 = scmp.eq.s32.totalorder %s32, 1
      %p191 = por %p189, %p190
      %p193 = scmp.ne.s32.totalorder %s178, %s192
      %p194 = scmp.eq.s32.totalorder %s32, 0
      %p195 = por %p193, %p194
      %s197 = sadd.s32 %s196, 1
      %p200 = scmp.eq.s32.totalorder %s26, 1
      %p201 = scmp.ne.s32.totalorder %s196, %s198
      %p202 = scmp.eq.s32.totalorder %s26, 0
      %p203 = por %p201, %p202
      %p204 = scmp.ne.s32.totalorder %s196, %s198
      %p205 = scmp.eq.s32.totalorder %s31, 1
      %p206 = por %p204, %p205
      %p207 = scmp.ne.s32.totalorder %s198, %s199
      %p208 = scmp.eq.s32.totalorder %s31, 0
      %p209 = por %p207, %p208
      %p210 = scmp.ne.s32.totalorder %s198, %s199
      %p211 = scmp.eq.s32.totalorder %s32, 1
      %p212 = por %p210, %p211
      %p214 = scmp.ne.s32.totalorder %s199, %s213
      %p215 = scmp.eq.s32.totalorder %s32, 0
      %p216 = por %p214, %p215
      %s218 = sadd.s32 %s217, 1
      %p221 = scmp.eq.s32.totalorder %s26, 1
      %p222 = scmp.ne.s32.totalorder %s217, %s219
      %p223 = scmp.eq.s32.totalorder %s26, 0
      %p224 = por %p222, %p223
      %p225 = scmp.ne.s32.totalorder %s217, %s219
      %p226 = scmp.eq.s32.totalorder %s31, 1
      %p227 = por %p225, %p226
      %p228 = scmp.ne.s32.totalorder %s219, %s220
      %p229 = scmp.eq.s32.totalorder %s31, 0
      %p230 = por %p228, %p229
      %p231 = scmp.ne.s32.totalorder %s219, %s220
      %p232 = scmp.eq.s32.totalorder %s32, 1
      %p233 = por %p231, %p232
      %p235 = scmp.ne.s32.totalorder %s220, %s234
      %p236 = scmp.eq.s32.totalorder %s32, 0
      %p237 = por %p235, %p236
      %s239 = sadd.s32 %s238, 1
      %p242 = scmp.eq.s32.totalorder %s26, 1
      %p243 = scmp.ne.s32.totalorder %s238, %s240
      %p244 = scmp.eq.s32.totalorder %s26, 0
      %p245 = por %p243, %p244
      %p246 = scmp.ne.s32.totalorder %s238, %s240
      %p247 = scmp.eq.s32.totalorder %s31, 1
      %p248 = por %p246, %p247
      %p249 = scmp.ne.s32.totalorder %s240, %s241
      %p250 = scmp.eq.s32.totalorder %s31, 0
      %p251 = por %p249, %p250
      %p252 = scmp.ne.s32.totalorder %s240, %s241
      %p253 = scmp.eq.s32.totalorder %s32, 1
      %p254 = por %p252, %p253
      %p256 = scmp.ne.s32.totalorder %s241, %s255
      %p257 = scmp.eq.s32.totalorder %s32, 0
      %p258 = por %p256, %p257
      %s260 = sadd.s32 %s259, 1
      %p263 = scmp.eq.s32.totalorder %s26, 1
      %p264 = scmp.ne.s32.totalorder %s259, %s261
      %p265 = scmp.eq.s32.totalorder %s26, 0
      %p266 = por %p264, %p265
      %p267 = scmp.ne.s32.totalorder %s259, %s261
      %p268 = scmp.eq.s32.totalorder %s31, 1
      %p269 = por %p267, %p268
      %p270 = scmp.ne.s32.totalorder %s261, %s262
      %p271 = scmp.eq.s32.totalorder %s31, 0
      %p272 = por %p270, %p271
      %p273 = scmp.ne.s32.totalorder %s261, %s262
      %p274 = scmp.eq.s32.totalorder %s32, 1
      %p275 = por %p273, %p274
      %p277 = scmp.ne.s32.totalorder %s262, %s276
      %p278 = scmp.eq.s32.totalorder %s32, 0
      %p279 = por %p277, %p278
      %s281 = sadd.s32 %s280, 1
      %p284 = scmp.eq.s32.totalorder %s26, 1
      %p285 = scmp.ne.s32.totalorder %s280, %s282
      %p286 = scmp.eq.s32.totalorder %s26, 0
      %p287 = por %p285, %p286
      %p288 = scmp.ne.s32.totalorder %s280, %s282
      %p289 = scmp.eq.s32.totalorder %s31, 1
      %p290 = por %p288, %p289
      %p291 = scmp.ne.s32.totalorder %s282, %s283
      %p292 = scmp.eq.s32.totalorder %s31, 0
      %p293 = por %p291, %p292
      %p294 = scmp.ne.s32.totalorder %s282, %s283
      %p295 = scmp.eq.s32.totalorder %s32, 1
      %p296 = por %p294, %p295
      %p298 = scmp.ne.s32.totalorder %s283, %s297
      %p299 = scmp.eq.s32.totalorder %s32, 0
      %p300 = por %p298, %p299
      %s302 = sadd.s32 %s301, 1
      %p305 = scmp.eq.s32.totalorder %s26, 1
      %p306 = scmp.ne.s32.totalorder %s301, %s303
      %p307 = scmp.eq.s32.totalorder %s26, 0
      %p308 = por %p306, %p307
      %p309 = scmp.ne.s32.totalorder %s301, %s303
      %p310 = scmp.eq.s32.totalorder %s31, 1
      %p311 = por %p309, %p310
      %p312 = scmp.ne.s32.totalorder %s303, %s304
      %p313 = scmp.eq.s32.totalorder %s31, 0
      %p314 = por %p312, %p313
      %p315 = scmp.ne.s32.totalorder %s303, %s304
      %p316 = scmp.eq.s32.totalorder %s32, 1
      %p317 = por %p315, %p316
      %p319 = scmp.ne.s32.totalorder %s304, %s318
      %p320 = scmp.eq.s32.totalorder %s32, 0
      %p321 = por %p319, %p320
      %s323 = sadd.s32 %s322, 1
      %p326 = scmp.eq.s32.totalorder %s26, 1
      %p327 = scmp.ne.s32.totalorder %s322, %s324
      %p328 = scmp.eq.s32.totalorder %s26, 0
      %p329 = por %p327, %p328
      %p330 = scmp.ne.s32.totalorder %s322, %s324
      %p331 = scmp.eq.s32.totalorder %s31, 1
      %p332 = por %p330, %p331
      %p333 = scmp.ne.s32.totalorder %s324, %s325
      %p334 = scmp.eq.s32.totalorder %s31, 0
      %p335 = por %p333, %p334
      %p336 = scmp.ne.s32.totalorder %s324, %s325
      %p337 = scmp.eq.s32.totalorder %s32, 1
      %p338 = por %p336, %p337
      %p340 = scmp.ne.s32.totalorder %s325, %s339
      %p341 = scmp.eq.s32.totalorder %s32, 0
      %p342 = por %p340, %p341
      %s344 = sadd.s32 %s343, 1
      %p347 = scmp.eq.s32.totalorder %s26, 1
      %p348 = scmp.ne.s32.totalorder %s343, %s345
      %p349 = scmp.eq.s32.totalorder %s26, 0
      %p350 = por %p348, %p349
      %p351 = scmp.ne.s32.totalorder %s343, %s345
      %p352 = scmp.eq.s32.totalorder %s31, 1
      %p353 = por %p351, %p352
      %p354 = scmp.ne.s32.totalorder %s345, %s346
      %p355 = scmp.eq.s32.totalorder %s31, 0
      %p356 = por %p354, %p355
      %p357 = scmp.ne.s32.totalorder %s345, %s346
      %p358 = scmp.eq.s32.totalorder %s32, 1
      %p359 = por %p357, %p358
      %p361 = scmp.ne.s32.totalorder %s346, %s360
      %p362 = scmp.eq.s32.totalorder %s32, 0
      %p363 = por %p361, %p362
      %s364 = ssub.s32 %s26, %s33
      %p365 = scmp.eq.s32.totalorder %s364, 0
      %s367 = sadd.s32 %s366, 1
      %s368 = scalar_select %p365, %s366, %s367
      %p371 = pneg %p365
      %p372 = scmp.eq.s32.totalorder %s26, 1
      %p373 = por %p371, %p372
      %p374 = scmp.ne.s32.totalorder %s366, %s369
      %p375 = scmp.eq.s32.totalorder %s26, 0
      %p376 = por %p374, %p375
      %p377 = scmp.ne.s32.totalorder %s366, %s369
      %p378 = scmp.eq.s32.totalorder %s31, 1
      %p379 = por %p377, %p378
      %p380 = scmp.ne.s32.totalorder %s369, %s370
      %p381 = scmp.eq.s32.totalorder %s31, 0
      %p382 = por %p380, %p381
      %p383 = scmp.ne.s32.totalorder %s369, %s370
      %p384 = scmp.eq.s32.totalorder %s32, 1
      %p385 = por %p383, %p384
      %p387 = scmp.ne.s32.totalorder %s370, %s386
      %p388 = scmp.eq.s32.totalorder %s32, 0
      %p389 = por %p387, %p388
      %p390 = scmp.le.s32.totalorder 1, %s26
      %p391 = scmp.lt.s32.totalorder %s26, 3
      %p392 = pnand %p390, %p391
      %p393 = pneg %p392
      // Predicated region
      $region9: #{tpu_custom_call.1} parent=5 // pred_check
        _
      $region10: #{tpu_custom_call.1} parent=5 // pred_check_branch
        %395 = sbr.rel (%p392) target = $region12
      $region11: #{tpu_custom_call.1} parent=5 // pred_region
        %s396 = ssub.s32 %s26, 1
        // Predicated region
        $region13: #{tpu_custom_call.1} parent=11 // pred_check
          %p397 = pneg %p125
        $region14: #{tpu_custom_call.1} parent=11 // pred_check_branch
          %399 = sbr.rel (%p397) target = $region16
        $region15: #{tpu_custom_call.1} parent=11 // pred_region
          %s401 = ssub.s32 12288, 12288
          %402 = vsyncadd [#allocation5], %s401
          %s403 = sshll.u32 [#allocation4], 4
          %s404 = int_to_ptr.vmem [resolvable:$true] %s403
          %409 = dma.hbm_to_vmem [thread:$0]  %s3, 12288, %s404, [#allocation5], 192, 192, 12
        $region16: #{tpu_custom_call.1} parent=11 // pred_fallthru
          _
        // Predicated region
        $region17: #{tpu_custom_call.1} parent=11 // pred_check
          %p410 = pneg %p146
        $region18: #{tpu_custom_call.1} parent=11 // pred_check_branch
          %412 = sbr.rel (%p410) target = $region20
        $region19: #{tpu_custom_call.1} parent=11 // pred_region
          _
        $region20: #{tpu_custom_call.1} parent=11 // pred_fallthru
          _
        // Predicated region
        $region21: #{tpu_custom_call.1} parent=11 // pred_check
          %p413 = pneg %p167
        $region22: #{tpu_custom_call.1} parent=11 // pred_check_branch
          %415 = sbr.rel (%p413) target = $region24
        $region23: #{tpu_custom_call.1} parent=11 // pred_region
          %s417 = ssub.s32 4096, 4096
          %418 = vsyncadd [#allocation5], %s417
          %s419 = sshll.u32 [#allocation6], 4
          %s420 = int_to_ptr.vmem [resolvable:$true] %s419
          %425 = dma.hbm_to_vmem [thread:$0]  %s5, 4096, %s420, [#allocation5], 64, 64, 4
        $region24: #{tpu_custom_call.1} parent=11 // pred_fallthru
          _
        // Predicated region
        $region25: #{tpu_custom_call.1} parent=11 // pred_check
          %p426 = pneg %p188
        $region26: #{tpu_custom_call.1} parent=11 // pred_check_branch
          %428 = sbr.rel (%p426) target = $region28
        $region27: #{tpu_custom_call.1} parent=11 // pred_region
          _
        $region28: #{tpu_custom_call.1} parent=11 // pred_fallthru
          _
        // Predicated region
        $region29: #{tpu_custom_call.1} parent=11 // pred_check
          %p429 = pneg %p209
        $region30: #{tpu_custom_call.1} parent=11 // pred_check_branch
          %431 = sbr.rel (%p429) target = $region32
        $region31: #{tpu_custom_call.1} parent=11 // pred_region
          _
        $region32: #{tpu_custom_call.1} parent=11 // pred_fallthru
          _
        // Predicated region
        $region33: #{tpu_custom_call.1} parent=11 // pred_check
          %p432 = pneg %p230
        $region34: #{tpu_custom_call.1} parent=11 // pred_check_branch
          %434 = sbr.rel (%p432) target = $region36
        $region35: #{tpu_custom_call.1} parent=11 // pred_region
          _
        $region36: #{tpu_custom_call.1} parent=11 // pred_fallthru
          _
        // Predicated region
        $region37: #{tpu_custom_call.1} parent=11 // pred_check
          %p435 = pneg %p251
        $region38: #{tpu_custom_call.1} parent=11 // pred_check_branch
          %437 = sbr.rel (%p435) target = $region40
        $region39: #{tpu_custom_call.1} parent=11 // pred_region
          %s439 = ssub.s32 8192, 8192
          %440 = vsyncadd [#allocation8], %s439
          %s441 = sshll.u32 [#allocation7], 4
          %s442 = int_to_ptr.vmem [resolvable:$true] %s441
          %447 = dma.hbm_to_vmem [thread:$0]  %s9, 8192, %s442, [#allocation8], 128, 128, 8
        $region40: #{tpu_custom_call.1} parent=11 // pred_fallthru
          _
        // Predicated region
        $region41: #{tpu_custom_call.1} parent=11 // pred_check
          %p448 = pneg %p272
        $region42: #{tpu_custom_call.1} parent=11 // pred_check_branch
          %450 = sbr.rel (%p448) target = $region44
        $region43: #{tpu_custom_call.1} parent=11 // pred_region
          _
        $region44: #{tpu_custom_call.1} parent=11 // pred_fallthru
          _
        // Predicated region
        $region45: #{tpu_custom_call.1} parent=11 // pred_check
          %p451 = pneg %p293
        $region46: #{tpu_custom_call.1} parent=11 // pred_check_branch
          %453 = sbr.rel (%p451) target = $region48
        $region47: #{tpu_custom_call.1} parent=11 // pred_region
          %s455 = ssub.s32 8192, 8192
          %456 = vsyncadd [#allocation8], %s455
          %s457 = sshll.u32 [#allocation9], 4
          %s458 = int_to_ptr.vmem [resolvable:$true] %s457
          %463 = dma.hbm_to_vmem [thread:$0]  %s11, 8192, %s458, [#allocation8], 64, 64, 4
        $region48: #{tpu_custom_call.1} parent=11 // pred_fallthru
          _
        // Predicated region
        $region49: #{tpu_custom_call.1} parent=11 // pred_check
          %p464 = pneg %p314
        $region50: #{tpu_custom_call.1} parent=11 // pred_check_branch
          %466 = sbr.rel (%p464) target = $region52
        $region51: #{tpu_custom_call.1} parent=11 // pred_region
          _
        $region52: #{tpu_custom_call.1} parent=11 // pred_fallthru
          _
        // Predicated region
        $region53: #{tpu_custom_call.1} parent=11 // pred_check
          %p467 = pneg %p335
        $region54: #{tpu_custom_call.1} parent=11 // pred_check_branch
          %469 = sbr.rel (%p467) target = $region56
        $region55: #{tpu_custom_call.1} parent=11 // pred_region
          _
        $region56: #{tpu_custom_call.1} parent=11 // pred_fallthru
          _
        // Predicated region
        $region57: #{tpu_custom_call.1} parent=11 // pred_check
          %p470 = pneg %p356
        $region58: #{tpu_custom_call.1} parent=11 // pred_check_branch
          %472 = sbr.rel (%p470) target = $region60
        $region59: #{tpu_custom_call.1} parent=11 // pred_region
          _
        $region60: #{tpu_custom_call.1} parent=11 // pred_fallthru
          _
      $region12: #{tpu_custom_call.1} parent=5 // pred_fallthru
        _
      %p473 = scmp.lt.s32.totalorder %s26, 2
      // Predicated region
      $region61: #{tpu_custom_call.1} parent=5 // pred_check
        %p474 = pneg %p473
      $region62: #{tpu_custom_call.1} parent=5 // pred_check_branch
        %476 = sbr.rel (%p474) target = $region64
      $region63: #{tpu_custom_call.1} parent=5 // pred_region
        // Predicated region
        $region65: #{tpu_custom_call.1} parent=63 // pred_check
          %p477 = pneg %p46
        $region66: #{tpu_custom_call.1} parent=63 // pred_check_branch
          %479 = sbr.rel (%p477) target = $region68
        $region67: #{tpu_custom_call.1} parent=63 // pred_region
          %s480 = sand.u32 %s36, 1
          %s481 = scalar_lea.sflag [#allocation3], %s480
          %s482 = sand.u32 %s36, 1
          %s483 = smul.addr %s482, 128
          %s484 = scalar_lea.vmem [#allocation2], %s483
          %s486 = ssub.s32 2048, 2048
          %487 = vsyncadd %s481, %s486
          %s488 = smul.addr %s26, 16
          %s489 = smul.addr %s488, 128
          %s490 = scalar_lea.hbm %s0, %s489
          %s491 = sshll.u32 %s484, 4
          %s492 = int_to_ptr.vmem [resolvable:$true] %s491
          %497 = dma.hbm_to_vmem [thread:$0]  %s490, 2048, %s492, %s481, 128, 128, 8
        $region68: #{tpu_custom_call.1} parent=63 // pred_fallthru
          _
        // Predicated region
        $region69: #{tpu_custom_call.1} parent=63 // pred_check
          %p498 = pneg %p72
        $region70: #{tpu_custom_call.1} parent=63 // pred_check_branch
          %500 = sbr.rel (%p498) target = $region72
        $region71: #{tpu_custom_call.1} parent=63 // pred_region
          %p501 = scmp.lt.s32.totalorder %s26, 1
          %s502 = scalar_select %p501, %s26, 1
          %s503 = scalar_lea.vmem %s1, %s502
        $region72: #{tpu_custom_call.1} parent=63 // pred_fallthru
          _
        // Predicated region
        $region73: #{tpu_custom_call.1} parent=63 // pred_check
          %p504 = pneg %p98
        $region74: #{tpu_custom_call.1} parent=63 // pred_check_branch
          %506 = sbr.rel (%p504) target = $region76
        $region75: #{tpu_custom_call.1} parent=63 // pred_region
          %p507 = scmp.lt.s32.totalorder %s26, 1
          %s508 = scalar_select %p507, %s26, 1
          %s509 = smul.addr %s508, 4
          %s510 = scalar_lea.vmem %s2, %s509
        $region76: #{tpu_custom_call.1} parent=63 // pred_fallthru
          _
      $region64: #{tpu_custom_call.1} parent=5 // pred_fallthru
        _
      %p511 = scmp.le.s32.totalorder 1, %s26
      %p512 = scmp.lt.s32.totalorder %s26, 3
      %p513 = pnand %p511, %p512
      %p514 = pneg %p513
      // Predicated region
      $region77: #{tpu_custom_call.1} parent=5 // pred_check
        _
      $region78: #{tpu_custom_call.1} parent=5 // pred_check_branch
        %516 = sbr.rel (%p513) target = $region80
      $region79: #{tpu_custom_call.1} parent=5 // pred_region
        %s517 = ssub.s32 %s26, 1
        %s518 = sand.u32 %s39, 1
        %s519 = scalar_lea.sflag [#allocation3], %s518
        %s520 = sand.u32 %s39, 1
        %s521 = smul.addr %s520, 128
        %s522 = scalar_lea.vmem [#allocation2], %s521
        // Predicated region
        $region81: #{tpu_custom_call.1} parent=79 // pred_check
          %p523 = pneg %p52
        $region82: #{tpu_custom_call.1} parent=79 // pred_check_branch
          %525 = sbr.rel (%p523) target = $region84
        $region83: #{tpu_custom_call.1} parent=79 // pred_region
          %526 = dma.done %s519, 2048
        $region84: #{tpu_custom_call.1} parent=79 // pred_fallthru
          _
        // Predicated region
        $region85: #{tpu_custom_call.1} parent=79 // pred_check
          %p527 = pneg %p125
        $region86: #{tpu_custom_call.1} parent=79 // pred_check_branch
          %529 = sbr.rel (%p527) target = $region88
        $region87: #{tpu_custom_call.1} parent=79 // pred_region
          %530 = dma.done [#allocation5], 12288
        $region88: #{tpu_custom_call.1} parent=79 // pred_fallthru
          _
        // Predicated region
        $region89: #{tpu_custom_call.1} parent=79 // pred_check
          %p531 = pneg %p167
        $region90: #{tpu_custom_call.1} parent=79 // pred_check_branch
          %533 = sbr.rel (%p531) target = $region92
        $region91: #{tpu_custom_call.1} parent=79 // pred_region
          %534 = dma.done [#allocation5], 4096
        $region92: #{tpu_custom_call.1} parent=79 // pred_fallthru
          _
        // Predicated region
        $region93: #{tpu_custom_call.1} parent=79 // pred_check
          %p535 = pneg %p251
        $region94: #{tpu_custom_call.1} parent=79 // pred_check_branch
          %537 = sbr.rel (%p535) target = $region96
        $region95: #{tpu_custom_call.1} parent=79 // pred_region
          %538 = dma.done [#allocation8], 8192
        $region96: #{tpu_custom_call.1} parent=79 // pred_fallthru
          _
        // Predicated region
        $region97: #{tpu_custom_call.1} parent=79 // pred_check
          %p539 = pneg %p293
        $region98: #{tpu_custom_call.1} parent=79 // pred_check_branch
          %541 = sbr.rel (%p539) target = $region100
        $region99: #{tpu_custom_call.1} parent=79 // pred_region
          %542 = dma.done [#allocation8], 8192
        $region100: #{tpu_custom_call.1} parent=79 // pred_fallthru
          _
        %s543 = sand.u32 %s39, 1
        %s544 = scalar_lea.sflag [#allocation3], %s543
        %s545 = sand.u32 %s39, 1
        %s546 = smul.addr %s545, 128
        %s547 = scalar_lea.vmem [#allocation2], %s546
        %p548 = pneg %p52
        %p549 = pneg %p49
        %p550 = scmp.lt.s32.totalorder %s31, 1
        %s551 = scalar_select %p550, %s31, 1
        %s552 = scalar_lea.vmem %s1, %s551
        %p553 = pneg %p78
        %p554 = pneg %p75
        %p555 = scmp.lt.s32.totalorder %s31, 1
        %s556 = scalar_select %p555, %s31, 1
        %s557 = smul.addr %s556, 4
        %s558 = scalar_lea.vmem %s2, %s557
        %p559 = pneg %p104
        %p560 = pneg %p101
        %p561 = pneg %p125
        %p562 = pneg %p122
        %p563 = pneg %p146
        %p564 = pneg %p143
        %p565 = pneg %p167
        %p566 = pneg %p164
        %p567 = pneg %p188
        %p568 = pneg %p185
        %p569 = pneg %p209
        %p570 = pneg %p206
        %p571 = pneg %p230
        %p572 = pneg %p227
        %p573 = pneg %p251
        %p574 = pneg %p248
        %p575 = pneg %p272
        %p576 = pneg %p269
        %p577 = pneg %p293
        %p578 = pneg %p290
        %p579 = pneg %p314
        %p580 = pneg %p311
        %p581 = pneg %p335
        %p582 = pneg %p332
        %p583 = pneg %p356
        %p584 = pneg %p353
        %p585 = pneg %p382
        %p586 = pneg %p379
        %p587 = scmp.lt.s32.totalorder %s31, 1
        %s588 = scalar_select %p587, %s31, 1
        %s589 = smul.addr %s588, 4
        %s590 = scalar_lea.vmem %s15, %s589
        %p591 = scmp.lt.s32.totalorder %s31, 1
        %s592 = scalar_select %p591, %s31, 1
        %s593 = scalar_lea.vmem %s1, %s592
        %p594 = scmp.lt.s32.totalorder %s31, 1
        %s595 = scalar_select %p594, %s31, 1
        %s596 = smul.addr %s595, 4
        %s597 = scalar_lea.vmem %s2, %s596
        %p598 = scmp.lt.s32.totalorder %s31, 1
        %s599 = scalar_select %p598, %s31, 1
        %s600 = smul.addr %s599, 4
        %s601 = scalar_lea.vmem %s15, %s600
        %v603 = vld [vmem:[%s522] sm:$0xff]
        %v604 = vld [vmem:[%s522 + $0x8] sm:$0xff]
        %v605 = vld [vmem:[%s522 + $0x10] sm:$0xff]
        %v606 = vld [vmem:[%s522 + $0x18] sm:$0xff]
        %v607 = vld [vmem:[%s522 + $0x20] sm:$0xff]
        %v608 = vld [vmem:[%s522 + $0x28] sm:$0xff]
        %v609 = vld [vmem:[%s522 + $0x30] sm:$0xff]
        %v610 = vld [vmem:[%s522 + $0x38] sm:$0xff]
        %v611 = vld [vmem:[%s522 + $0x40] sm:$0xff]
        %v612 = vld [vmem:[%s522 + $0x48] sm:$0xff]
        %v613 = vld [vmem:[%s522 + $0x50] sm:$0xff]
        %v614 = vld [vmem:[%s522 + $0x58] sm:$0xff]
        %v615 = vld [vmem:[%s522 + $0x60] sm:$0xff]
        %v616 = vld [vmem:[%s522 + $0x68] sm:$0xff]
        %v617 = vld [vmem:[%s522 + $0x70] sm:$0xff]
        %v618 = vld [vmem:[%s522 + $0x78] sm:$0xff]
        %v619 = vld [vmem:[%s593] sm:$0x1]
        %v620 = vpack.c.bf16 %v604, %v603
        %v621 = vpack.c.bf16 %v606, %v605
        %v622 = vpack.c.bf16 %v608, %v607
        %v623 = vpack.c.bf16 %v610, %v609
        %v624 = vpack.c.bf16 %v612, %v611
        %v625 = vpack.c.bf16 %v614, %v613
        %v626 = vpack.c.bf16 %v616, %v615
        %v627 = vpack.c.bf16 %v618, %v617
        %v628 = vld [vmem:[#allocation4] sm:$0xff]
        %v629 = vld [vmem:[#allocation4 + $0x8] sm:$0xf]
        %v630 = vld [vmem:[#allocation4 + $0xc] sm:$0xff]
        %v631 = vld [vmem:[#allocation4 + $0x14] sm:$0xf]
        %v632 = vld [vmem:[#allocation4 + $0x18] sm:$0xff]
        %v633 = vld [vmem:[#allocation4 + $0x20] sm:$0xf]
        %v634 = vld [vmem:[#allocation4 + $0x24] sm:$0xff]
        %v635 = vld [vmem:[#allocation4 + $0x2c] sm:$0xf]
        %v636 = vld [vmem:[#allocation4 + $0x30] sm:$0xff]
        %v637 = vld [vmem:[#allocation4 + $0x38] sm:$0xf]
        %v638 = vld [vmem:[#allocation4 + $0x3c] sm:$0xff]
        %v639 = vld [vmem:[#allocation4 + $0x44] sm:$0xf]
        %v640 = vld [vmem:[#allocation4 + $0x48] sm:$0xff]
        %v641 = vld [vmem:[#allocation4 + $0x50] sm:$0xf]
        %v642 = vld [vmem:[#allocation4 + $0x54] sm:$0xff]
        %v643 = vld [vmem:[#allocation4 + $0x5c] sm:$0xf]
        %v644 = vld [vmem:[#allocation4 + $0x60] sm:$0xff]
        %v645 = vld [vmem:[#allocation4 + $0x68] sm:$0xf]
        %v646 = vld [vmem:[#allocation4 + $0x6c] sm:$0xff]
        %v647 = vld [vmem:[#allocation4 + $0x74] sm:$0xf]
        %v648 = vld [vmem:[#allocation4 + $0x78] sm:$0xff]
        %v649 = vld [vmem:[#allocation4 + $0x80] sm:$0xf]
        %v650 = vld [vmem:[#allocation4 + $0x84] sm:$0xff]
        %v651 = vld [vmem:[#allocation4 + $0x8c] sm:$0xf]
        %v652 = vld [vmem:[#allocation4 + $0x90] sm:$0xff]
        %v653 = vld [vmem:[#allocation4 + $0x98] sm:$0xf]
        %v654 = vld [vmem:[#allocation4 + $0x9c] sm:$0xff]
        %v655 = vld [vmem:[#allocation4 + $0xa4] sm:$0xf]
        %v656 = vld [vmem:[#allocation4 + $0xa8] sm:$0xff]
        %v657 = vld [vmem:[#allocation4 + $0xb0] sm:$0xf]
        %v658 = vld [vmem:[#allocation4 + $0xb4] sm:$0xff]
        %v659 = vld [vmem:[#allocation4 + $0xbc] sm:$0xf]
        %v660 = vld [vmem:[%s4] sm:$0x7]
        %v662 = vlaneseq
        %v663 = vshrl.u32 %v662, 7
        %v664 = vsub.s32 0, %v663
        %v665 = vrot.slane %v660, %v664
        %v666 = vlaneseq
        %v667 = vshrl.u32 %v666, 7
        %v668 = vsub.s32 1, %v667
        %v669 = vrot.slane %v660, %v668
        %v670 = vlaneseq
        %v671 = vshrl.u32 %v670, 7
        %v672 = vsub.s32 2, %v671
        %v673 = vrot.slane %v660, %v672
        %v709 = vunpack.c.l.b16 %v628
        %v710 = vunpack.c.h.b16 %v628
        %v711 = vunpack.c.l.b16 %v629
        %v712 = vunpack.c.l.b16 %v630
        %v713 = vunpack.c.h.b16 %v630
        %v714 = vunpack.c.l.b16 %v631
        %v715 = vunpack.c.l.b16 %v632
        %v716 = vunpack.c.h.b16 %v632
        %v717 = vunpack.c.l.b16 %v633
        %v718 = vunpack.c.l.b16 %v634
        %v719 = vunpack.c.h.b16 %v634
        %v720 = vunpack.c.l.b16 %v635
        %v721 = vunpack.c.l.b16 %v636
        %v722 = vunpack.c.h.b16 %v636
        %v723 = vunpack.c.l.b16 %v637
        %v724 = vunpack.c.l.b16 %v638
        %v725 = vunpack.c.h.b16 %v638
        %v726 = vunpack.c.l.b16 %v639
        %v727 = vunpack.c.l.b16 %v640
        %v728 = vunpack.c.h.b16 %v640
        %v729 = vunpack.c.l.b16 %v641
        %v730 = vunpack.c.l.b16 %v642
        %v731 = vunpack.c.h.b16 %v642
        %v732 = vunpack.c.l.b16 %v643
        %v733 = vunpack.c.l.b16 %v644
        %v734 = vunpack.c.h.b16 %v644
        %v735 = vunpack.c.l.b16 %v645
        %v736 = vunpack.c.l.b16 %v646
        %v737 = vunpack.c.h.b16 %v646
        %v738 = vunpack.c.l.b16 %v647
        %v739 = vunpack.c.l.b16 %v648
        %v740 = vunpack.c.h.b16 %v648
        %v741 = vunpack.c.l.b16 %v649
        %v742 = vunpack.c.l.b16 %v650
        %v743 = vunpack.c.h.b16 %v650
        %v744 = vunpack.c.l.b16 %v651
        %v745 = vunpack.c.l.b16 %v652
        %v746 = vunpack.c.h.b16 %v652
        %v747 = vunpack.c.l.b16 %v653
        %v748 = vunpack.c.l.b16 %v654
        %v749 = vunpack.c.h.b16 %v654
        %v750 = vunpack.c.l.b16 %v655
        %v751 = vunpack.c.l.b16 %v656
        %v752 = vunpack.c.h.b16 %v656
        %v753 = vunpack.c.l.b16 %v657
        %v754 = vunpack.c.l.b16 %v658
        %v755 = vunpack.c.h.b16 %v658
        %v756 = vunpack.c.l.b16 %v659
        %v757 = vpack.c.b16 %v712, %v709
        %v758 = vpack.c.b16 %v713, %v710
        %v759 = vpack.c.b16 %v714, %v711
        %v760 = vpack.c.b16 %v718, %v715
        %v761 = vpack.c.b16 %v719, %v716
        %v762 = vpack.c.b16 %v720, %v717
        %v763 = vpack.c.b16 %v724, %v721
        %v764 = vpack.c.b16 %v725, %v722
        %v765 = vpack.c.b16 %v726, %v723
        %v766 = vpack.c.b16 %v730, %v727
        %v767 = vpack.c.b16 %v731, %v728
        %v768 = vpack.c.b16 %v732, %v729
        %v769 = vpack.c.b16 %v736, %v733
        %v770 = vpack.c.b16 %v737, %v734
        %v771 = vpack.c.b16 %v738, %v735
        %v772 = vpack.c.b16 %v742, %v739
        %v773 = vpack.c.b16 %v743, %v740
        %v774 = vpack.c.b16 %v744, %v741
        %v775 = vpack.c.b16 %v748, %v745
        %v776 = vpack.c.b16 %v749, %v746
        %v777 = vpack.c.b16 %v750, %v747
        %v778 = vpack.c.b16 %v754, %v751
        %v779 = vpack.c.b16 %v755, %v752
        %v780 = vpack.c.b16 %v756, %v753
        %805 = vmatprep.subr.bf16.mxu0 %v758
        %806 = vmatpush1.bf16.msra.mxu0 %v757
        %807 = vmatprep.subr.bf16.mxu0 %v761
        %808 = vmatpush1.bf16.msra.mxu0 %v760
        %809 = vmatprep.subr.bf16.mxu0 %v764
        %810 = vmatpush1.bf16.msra.mxu0 %v763
        %811 = vmatprep.subr.bf16.mxu0 %v767
        %812 = vmatpush1.bf16.msra.mxu0 %v766
        %813 = vmatprep.subr.bf16.mxu0 %v770
        %814 = vmatpush1.bf16.msra.mxu0 %v769
        %815 = vmatprep.subr.bf16.mxu0 %v773
        %816 = vmatpush1.bf16.msra.mxu0 %v772
        %817 = vmatprep.subr.bf16.mxu0 %v776
        %818 = vmatpush1.bf16.msra.mxu0 %v775
        %819 = vmatprep.subr.bf16.mxu0 %v779
        %820 = vmatpush1.bf16.msra.mxu0 %v778
        %821 = vmatprep.subr.bf16.mxu0 0
        %822 = vmatpush1.bf16.msra.mxu0 0
        %823 = vmatprep.subr.bf16.mxu0 0
        %824 = vmatpush1.bf16.msra.mxu0 0
        %825 = vmatprep.subr.bf16.mxu0 0
        %826 = vmatpush1.bf16.msra.mxu0 0
        %827 = vmatprep.subr.bf16.mxu0 0
        %828 = vmatpush1.bf16.msra.mxu0 0
        %829 = vmatprep.subr.bf16.mxu0 0
        %830 = vmatpush1.bf16.msra.mxu0 0
        %831 = vmatprep.subr.bf16.mxu0 0
        %832 = vmatpush1.bf16.msra.mxu0 0
        %833 = vmatprep.subr.bf16.mxu0 0
        %834 = vmatpush1.bf16.msra.mxu0 0
        %835 = vmatprep.subr.bf16.mxu0 0
        %836 = vmatpush1.bf16.msra.mxu0 0
        %837 = vmatprep.mubr.bf16.mxu0 0
        %838 = vmatmul.mubr.bf16.gmra.mrb[0].mxu0 %v620
        %v839 = vpop.f32.mrb[0].mxu0
        %v840 = vadd.f32 %v665, %v839
        %v841 = vpop.f32.mrb[0].mxu0
        %v842 = vadd.f32 %v669, %v841
        %v843 = vpop.f32.mrb[0].mxu0
        %v844 = vadd.f32 %v665, %v843
        %v845 = vpop.f32.mrb[0].mxu0
        %v846 = vadd.f32 %v669, %v845
        %847 = vmatprep.mubr.bf16.mxu0 0
        %848 = vmatmul.mubr.bf16.gmra.mrb[0].mxu0 %v621
        %v849 = vpop.f32.mrb[0].mxu0
        %v850 = vadd.f32 %v665, %v849
        %v851 = vpop.f32.mrb[0].mxu0
        %v852 = vadd.f32 %v669, %v851
        %v853 = vpop.f32.mrb[0].mxu0
        %v854 = vadd.f32 %v665, %v853
        %v855 = vpop.f32.mrb[0].mxu0
        %v856 = vadd.f32 %v669, %v855
        %857 = vmatprep.mubr.bf16.mxu0 0
        %858 = vmatmul.mubr.bf16.gmra.mrb[0].mxu0 %v622
        %v859 = vpop.f32.mrb[0].mxu0
        %v860 = vadd.f32 %v665, %v859
        %v861 = vpop.f32.mrb[0].mxu0
        %v862 = vadd.f32 %v669, %v861
        %v863 = vpop.f32.mrb[0].mxu0
        %v864 = vadd.f32 %v665, %v863
        %v865 = vpop.f32.mrb[0].mxu0
        %v866 = vadd.f32 %v669, %v865
        %867 = vmatprep.mubr.bf16.mxu0 0
        %868 = vmatmul.mubr.bf16.gmra.mrb[0].mxu0 %v623
        %v869 = vpop.f32.mrb[0].mxu0
        %v870 = vadd.f32 %v665, %v869
        %v871 = vpop.f32.mrb[0].mxu0
        %v872 = vadd.f32 %v669, %v871
        %v873 = vpop.f32.mrb[0].mxu0
        %v874 = vadd.f32 %v665, %v873
        %v875 = vpop.f32.mrb[0].mxu0
        %v876 = vadd.f32 %v669, %v875
        %877 = vmatprep.mubr.bf16.mxu0 0
        %878 = vmatmul.mubr.bf16.gmra.mrb[0].mxu0 %v624
        %v879 = vpop.f32.mrb[0].mxu0
        %v880 = vadd.f32 %v665, %v879
        %v881 = vpop.f32.mrb[0].mxu0
        %v882 = vadd.f32 %v669, %v881
        %v883 = vpop.f32.mrb[0].mxu0
        %v884 = vadd.f32 %v665, %v883
        %v885 = vpop.f32.mrb[0].mxu0
        %v886 = vadd.f32 %v669, %v885
        %887 = vmatprep.mubr.bf16.mxu0 0
        %888 = vmatmul.mubr.bf16.gmra.mrb[0].mxu0 %v625
        %v889 = vpop.f32.mrb[0].mxu0
        %v890 = vadd.f32 %v665, %v889
        %v891 = vpop.f32.mrb[0].mxu0
        %v892 = vadd.f32 %v669, %v891
        %v893 = vpop.f32.mrb[0].mxu0
        %v894 = vadd.f32 %v665, %v893
        %v895 = vpop.f32.mrb[0].mxu0
        %v896 = vadd.f32 %v669, %v895
        %897 = vmatprep.mubr.bf16.mxu0 0
        %898 = vmatmul.mubr.bf16.gmra.mrb[0].mxu0 %v626
        %v899 = vpop.f32.mrb[0].mxu0
        %v900 = vadd.f32 %v665, %v899
        %v901 = vpop.f32.mrb[0].mxu0
        %v902 = vadd.f32 %v669, %v901
        %v903 = vpop.f32.mrb[0].mxu0
        %v904 = vadd.f32 %v665, %v903
        %v905 = vpop.f32.mrb[0].mxu0
        %v906 = vadd.f32 %v669, %v905
        %907 = vmatprep.mubr.bf16.mxu0 0
        %908 = vmatmul.mubr.bf16.gmra.mrb[0].mxu0 %v627
        %v909 = vpop.f32.mrb[0].mxu0
        %v910 = vadd.f32 %v665, %v909
        %v911 = vpop.f32.mrb[0].mxu0
        %v912 = vadd.f32 %v669, %v911
        %v913 = vpop.f32.mrb[0].mxu0
        %v914 = vadd.f32 %v665, %v913
        %v915 = vpop.f32.mrb[0].mxu0
        %v916 = vadd.f32 %v669, %v915
        %917 = vdwg.mxu0
        %918 = vmatprep.subr.bf16.mxu0 0
        %919 = vmatpush1.bf16.msra.mxu0 %v759
        %920 = vmatprep.subr.bf16.mxu0 0
        %921 = vmatpush1.bf16.msra.mxu0 %v762
        %922 = vmatprep.subr.bf16.mxu0 0
        %923 = vmatpush1.bf16.msra.mxu0 %v765
        %924 = vmatprep.subr.bf16.mxu0 0
        %925 = vmatpush1.bf16.msra.mxu0 %v768
        %926 = vmatprep.subr.bf16.mxu0 0
        %927 = vmatpush1.bf16.msra.mxu0 %v771
        %928 = vmatprep.subr.bf16.mxu0 0
        %929 = vmatpush1.bf16.msra.mxu0 %v774
        %930 = vmatprep.subr.bf16.mxu0 0
        %931 = vmatpush1.bf16.msra.mxu0 %v777
        %932 = vmatprep.subr.bf16.mxu0 0
        %933 = vmatpush1.bf16.msra.mxu0 %v780
        %934 = vmatprep.subr.bf16.mxu0 0
        %935 = vmatpush1.bf16.msra.mxu0 0
        %936 = vmatprep.subr.bf16.mxu0 0
        %937 = vmatpush1.bf16.msra.mxu0 0
        %938 = vmatprep.subr.bf16.mxu0 0
        %939 = vmatpush1.bf16.msra.mxu0 0
        %940 = vmatprep.subr.bf16.mxu0 0
        %941 = vmatpush1.bf16.msra.mxu0 0
        %942 = vmatprep.subr.bf16.mxu0 0
        %943 = vmatpush1.bf16.msra.mxu0 0
        %944 = vmatprep.subr.bf16.mxu0 0
        %945 = vmatpush1.bf16.msra.mxu0 0
        %946 = vmatprep.subr.bf16.mxu0 0
        %947 = vmatpush1.bf16.msra.mxu0 0
        %948 = vmatprep.subr.bf16.mxu0 0
        %949 = vmatpush1.bf16.msra.mxu0 0
        %950 = vmatprep.mubr.bf16.mxu0 0
        %951 = vmatmul.mubr.bf16.gmra.mrb[0].mxu0 %v620
        %v952 = vpop.f32.mrb[0].mxu0
        %v953 = vadd.f32 %v673, %v952
        %v954 = vpop.f32.mrb[0].mxu0
        %v955 = vpop.f32.mrb[0].mxu0
        %v956 = vadd.f32 %v673, %v955
        %v957 = vpop.f32.mrb[0].mxu0
        %958 = vmatprep.mubr.bf16.mxu0 0
        %959 = vmatmul.mubr.bf16.gmra.mrb[0].mxu0 %v621
        %v960 = vpop.f32.mrb[0].mxu0
        %v961 = vadd.f32 %v673, %v960
        %v962 = vpop.f32.mrb[0].mxu0
        %v963 = vpop.f32.mrb[0].mxu0
        %v964 = vadd.f32 %v673, %v963
        %v965 = vpop.f32.mrb[0].mxu0
        %966 = vmatprep.mubr.bf16.mxu0 0
        %967 = vmatmul.mubr.bf16.gmra.mrb[0].mxu0 %v622
        %v968 = vpop.f32.mrb[0].mxu0
        %v969 = vadd.f32 %v673, %v968
        %v970 = vpop.f32.mrb[0].mxu0
        %v971 = vpop.f32.mrb[0].mxu0
        %v972 = vadd.f32 %v673, %v971
        %v973 = vpop.f32.mrb[0].mxu0
        %974 = vmatprep.mubr.bf16.mxu0 0
        %975 = vmatmul.mubr.bf16.gmra.mrb[0].mxu0 %v623
        %v976 = vpop.f32.mrb[0].mxu0
        %v977 = vadd.f32 %v673, %v976
        %v978 = vpop.f32.mrb[0].mxu0
        %v979 = vpop.f32.mrb[0].mxu0
        %v980 = vadd.f32 %v673, %v979
        %v981 = vpop.f32.mrb[0].mxu0
        %982 = vmatprep.mubr.bf16.mxu0 0
        %983 = vmatmul.mubr.bf16.gmra.mrb[0].mxu0 %v624
        %v984 = vpop.f32.mrb[0].mxu0
        %v985 = vadd.f32 %v673, %v984
        %v986 = vpop.f32.mrb[0].mxu0
        %v987 = vpop.f32.mrb[0].mxu0
        %v988 = vadd.f32 %v673, %v987
        %v989 = vpop.f32.mrb[0].mxu0
        %990 = vmatprep.mubr.bf16.mxu0 0
        %991 = vmatmul.mubr.bf16.gmra.mrb[0].mxu0 %v625
        %v992 = vpop.f32.mrb[0].mxu0
        %v993 = vadd.f32 %v673, %v992
        %v994 = vpop.f32.mrb[0].mxu0
        %v995 = vpop.f32.mrb[0].mxu0
        %v996 = vadd.f32 %v673, %v995
        %v997 = vpop.f32.mrb[0].mxu0
        %998 = vmatprep.mubr.bf16.mxu0 0
        %999 = vmatmul.mubr.bf16.gmra.mrb[0].mxu0 %v626
        %v1000 = vpop.f32.mrb[0].mxu0
        %v1001 = vadd.f32 %v673, %v1000
        %v1002 = vpop.f32.mrb[0].mxu0
        %v1003 = vpop.f32.mrb[0].mxu0
        %v1004 = vadd.f32 %v673, %v1003
        %v1005 = vpop.f32.mrb[0].mxu0
        %1006 = vmatprep.mubr.bf16.mxu0 0
        %1007 = vmatmul.mubr.bf16.gmra.mrb[0].mxu0 %v627
        %v1008 = vpop.f32.mrb[0].mxu0
        %v1009 = vadd.f32 %v673, %v1008
        %v1010 = vpop.f32.mrb[0].mxu0
        %v1011 = vpop.f32.mrb[0].mxu0
        %v1012 = vadd.f32 %v673, %v1011
        %v1013 = vpop.f32.mrb[0].mxu0
        %1014 = vdwg.mxu0
        %v1015 = vpack.c.bf16 %v844, %v840
        %v1016 = vpack.c.bf16 %v854, %v850
        %v1017 = vpack.c.bf16 %v864, %v860
        %v1018 = vpack.c.bf16 %v874, %v870
        %v1019 = vpack.c.bf16 %v884, %v880
        %v1020 = vpack.c.bf16 %v894, %v890
        %v1021 = vpack.c.bf16 %v904, %v900
        %v1022 = vpack.c.bf16 %v914, %v910
        %v1023 = vpack.c.bf16 %v846, %v842
        %v1024 = vpack.c.bf16 %v856, %v852
        %v1025 = vpack.c.bf16 %v866, %v862
        %v1026 = vpack.c.bf16 %v876, %v872
        %v1027 = vpack.c.bf16 %v886, %v882
        %v1028 = vpack.c.bf16 %v896, %v892
        %v1029 = vpack.c.bf16 %v906, %v902
        %v1030 = vpack.c.bf16 %v916, %v912
        %v1031 = vpack.c.bf16 %v956, %v953
        %v1032 = vpack.c.bf16 %v964, %v961
        %v1033 = vpack.c.bf16 %v972, %v969
        %v1034 = vpack.c.bf16 %v980, %v977
        %v1035 = vpack.c.bf16 %v988, %v985
        %v1036 = vpack.c.bf16 %v996, %v993
        %v1037 = vpack.c.bf16 %v1004, %v1001
        %v1038 = vpack.c.bf16 %v1012, %v1009
        %v1040 = vlaneseq
        %v1041 = vshrl.u32 %v1040, 7
        %v1042 = vsub.s32 0, %v1041
        %v1043 = vrot.slane %v619, %v1042
        %1045 = vmatprep.subr.bf16.mxu0 0
        %1046 = vmatpush1.bf16.xpose.msra.mxu0 %v1023
        %1047 = vmatprep.subr.bf16.mxu0 0
        %1048 = vmatpush1.bf16.xpose.msra.mxu0 %v1024
        %1049 = vmatprep.subr.bf16.mxu0 0
        %1050 = vmatpush1.bf16.xpose.msra.mxu0 %v1025
        %1051 = vmatprep.subr.bf16.mxu0 0
        %1052 = vmatpush1.bf16.xpose.msra.mxu0 %v1026
        %1053 = vmatprep.subr.bf16.mxu0 0
        %1054 = vmatpush1.bf16.xpose.msra.mxu0 %v1027
        %1055 = vmatprep.subr.bf16.mxu0 0
        %1056 = vmatpush1.bf16.xpose.msra.mxu0 %v1028
        %1057 = vmatprep.subr.bf16.mxu0 0
        %1058 = vmatpush1.bf16.xpose.msra.mxu0 %v1029
        %1059 = vmatprep.subr.bf16.mxu0 0
        %1060 = vmatpush1.bf16.xpose.msra.mxu0 %v1030
        %1061 = vmatprep.subr.bf16.mxu0 0
        %1062 = vmatpush1.bf16.xpose.msra.mxu0 0
        %1063 = vmatprep.subr.bf16.mxu0 0
        %1064 = vmatpush1.bf16.xpose.msra.mxu0 0
        %1065 = vmatprep.subr.bf16.mxu0 0
        %1066 = vmatpush1.bf16.xpose.msra.mxu0 0
        %1067 = vmatprep.subr.bf16.mxu0 0
        %1068 = vmatpush1.bf16.xpose.msra.mxu0 0
        %1069 = vmatprep.subr.bf16.mxu0 0
        %1070 = vmatpush1.bf16.xpose.msra.mxu0 0
        %1071 = vmatprep.subr.bf16.mxu0 0
        %1072 = vmatpush1.bf16.xpose.msra.mxu0 0
        %1073 = vmatprep.subr.bf16.mxu0 0
        %1074 = vmatpush1.bf16.xpose.msra.mxu0 0
        %1075 = vmatprep.subr.bf16.mxu0 0
        %1076 = vmatpush1.bf16.xpose.msra.mxu0 0
        %1077 = vmatprep.mubr.bf16.mxu0 0
        %1078 = vmatmul.mubr.bf16.gmra.mrb[0].mxu0 %v1015
        %v1079 = vpop.f32.mrb[0].mxu0
        %v1080 = vadd.f32 %v1043, %v1079
        %v1081 = vpop.f32.mrb[0].mxu0
        %v1082 = vpop.f32.mrb[0].mxu0
        %v1083 = vadd.f32 %v1043, %v1082
        %v1084 = vpop.f32.mrb[0].mxu0
        %1085 = vmatprep.mubr.bf16.mxu0 0
        %1086 = vmatmul.mubr.bf16.gmra.mrb[0].mxu0 %v1016
        %v1087 = vpop.f32.mrb[0].mxu0
        %v1088 = vadd.f32 %v1043, %v1087
        %v1089 = vpop.f32.mrb[0].mxu0
        %v1090 = vpop.f32.mrb[0].mxu0
        %v1091 = vadd.f32 %v1043, %v1090
        %v1092 = vpop.f32.mrb[0].mxu0
        %1093 = vmatprep.mubr.bf16.mxu0 0
        %1094 = vmatmul.mubr.bf16.gmra.mrb[0].mxu0 %v1017
        %v1095 = vpop.f32.mrb[0].mxu0
        %v1096 = vadd.f32 %v1043, %v1095
        %v1097 = vpop.f32.mrb[0].mxu0
        %v1098 = vpop.f32.mrb[0].mxu0
        %v1099 = vadd.f32 %v1043, %v1098
        %v1100 = vpop.f32.mrb[0].mxu0
        %1101 = vmatprep.mubr.bf16.mxu0 0
        %1102 = vmatmul.mubr.bf16.gmra.mrb[0].mxu0 %v1018
        %v1103 = vpop.f32.mrb[0].mxu0
        %v1104 = vadd.f32 %v1043, %v1103
        %v1105 = vpop.f32.mrb[0].mxu0
        %v1106 = vpop.f32.mrb[0].mxu0
        %v1107 = vadd.f32 %v1043, %v1106
        %v1108 = vpop.f32.mrb[0].mxu0
        %1109 = vmatprep.mubr.bf16.mxu0 0
        %1110 = vmatmul.mubr.bf16.gmra.mrb[0].mxu0 %v1019
        %v1111 = vpop.f32.mrb[0].mxu0
        %v1112 = vadd.f32 %v1043, %v1111
        %v1113 = vpop.f32.mrb[0].mxu0
        %v1114 = vpop.f32.mrb[0].mxu0
        %v1115 = vadd.f32 %v1043, %v1114
        %v1116 = vpop.f32.mrb[0].mxu0
        %1117 = vmatprep.mubr.bf16.mxu0 0
        %1118 = vmatmul.mubr.bf16.gmra.mrb[0].mxu0 %v1020
        %v1119 = vpop.f32.mrb[0].mxu0
        %v1120 = vadd.f32 %v1043, %v1119
        %v1121 = vpop.f32.mrb[0].mxu0
        %v1122 = vpop.f32.mrb[0].mxu0
        %v1123 = vadd.f32 %v1043, %v1122
        %v1124 = vpop.f32.mrb[0].mxu0
        %1125 = vmatprep.mubr.bf16.mxu0 0
        %1126 = vmatmul.mubr.bf16.gmra.mrb[0].mxu0 %v1021
        %v1127 = vpop.f32.mrb[0].mxu0
        %v1128 = vadd.f32 %v1043, %v1127
        %v1129 = vpop.f32.mrb[0].mxu0
        %v1130 = vpop.f32.mrb[0].mxu0
        %v1131 = vadd.f32 %v1043, %v1130
        %v1132 = vpop.f32.mrb[0].mxu0
        %1133 = vmatprep.mubr.bf16.mxu0 0
        %1134 = vmatmul.mubr.bf16.gmra.mrb[0].mxu0 %v1022
        %v1135 = vpop.f32.mrb[0].mxu0
        %v1136 = vadd.f32 %v1043, %v1135
        %v1137 = vpop.f32.mrb[0].mxu0
        %v1138 = vpop.f32.mrb[0].mxu0
        %v1139 = vadd.f32 %v1043, %v1138
        %v1140 = vpop.f32.mrb[0].mxu0
        %1141 = vdwg.mxu0
        %1142 = vmax.xlane.f32.xlu0 %v1080
        %v1143 = vpop.xlane.xlu0 %1142
        %1144 = vmax.xlane.f32.xlu0 %v1083
        %v1145 = vpop.xlane.xlu0 %1144
        %1146 = vmax.xlane.f32.xlu0 %v1088
        %v1147 = vpop.xlane.xlu0 %1146
        %1148 = vmax.xlane.f32.xlu0 %v1091
        %v1149 = vpop.xlane.xlu0 %1148
        %1150 = vmax.xlane.f32.xlu0 %v1096
        %v1151 = vpop.xlane.xlu0 %1150
        %1152 = vmax.xlane.f32.xlu0 %v1099
        %v1153 = vpop.xlane.xlu0 %1152
        %1154 = vmax.xlane.f32.xlu0 %v1104
        %v1155 = vpop.xlane.xlu0 %1154
        %1156 = vmax.xlane.f32.xlu0 %v1107
        %v1157 = vpop.xlane.xlu0 %1156
        %1158 = vmax.xlane.f32.xlu0 %v1112
        %v1159 = vpop.xlane.xlu0 %1158
        %1160 = vmax.xlane.f32.xlu0 %v1115
        %v1161 = vpop.xlane.xlu0 %1160
        %1162 = vmax.xlane.f32.xlu0 %v1120
        %v1163 = vpop.xlane.xlu0 %1162
        %1164 = vmax.xlane.f32.xlu0 %v1123
        %v1165 = vpop.xlane.xlu0 %1164
        %1166 = vmax.xlane.f32.xlu0 %v1128
        %v1167 = vpop.xlane.xlu0 %1166
        %1168 = vmax.xlane.f32.xlu0 %v1131
        %v1169 = vpop.xlane.xlu0 %1168
        %1170 = vmax.xlane.f32.xlu0 %v1136
        %v1171 = vpop.xlane.xlu0 %1170
        %1172 = vmax.xlane.f32.xlu0 %v1139
        %v1173 = vpop.xlane.xlu0 %1172
        %v1174 = vsub.f32 %v1080, %v1143
        %v1175 = vsub.f32 %v1083, %v1145
        %v1176 = vsub.f32 %v1088, %v1147
        %v1177 = vsub.f32 %v1091, %v1149
        %v1178 = vsub.f32 %v1096, %v1151
        %v1179 = vsub.f32 %v1099, %v1153
        %v1180 = vsub.f32 %v1104, %v1155
        %v1181 = vsub.f32 %v1107, %v1157
        %v1182 = vsub.f32 %v1112, %v1159
        %v1183 = vsub.f32 %v1115, %v1161
        %v1184 = vsub.f32 %v1120, %v1163
        %v1185 = vsub.f32 %v1123, %v1165
        %v1186 = vsub.f32 %v1128, %v1167
        %v1187 = vsub.f32 %v1131, %v1169
        %v1188 = vsub.f32 %v1136, %v1171
        %v1189 = vsub.f32 %v1139, %v1173
        %v1190 = vmul.f32 %v1174, 1.442695
        %v1191 = vpow.pop %v1190
        %v1192 = vmul.f32 %v1175, 1.442695
        %v1193 = vpow.pop %v1192
        %v1194 = vmul.f32 %v1176, 1.442695
        %v1195 = vpow.pop %v1194
        %v1196 = vmul.f32 %v1177, 1.442695
        %v1197 = vpow.pop %v1196
        %v1198 = vmul.f32 %v1178, 1.442695
        %v1199 = vpow.pop %v1198
        %v1200 = vmul.f32 %v1179, 1.442695
        %v1201 = vpow.pop %v1200
        %v1202 = vmul.f32 %v1180, 1.442695
        %v1203 = vpow.pop %v1202
        %v1204 = vmul.f32 %v1181, 1.442695
        %v1205 = vpow.pop %v1204
        %v1206 = vmul.f32 %v1182, 1.442695
        %v1207 = vpow.pop %v1206
        %v1208 = vmul.f32 %v1183, 1.442695
        %v1209 = vpow.pop %v1208
        %v1210 = vmul.f32 %v1184, 1.442695
        %v1211 = vpow.pop %v1210
        %v1212 = vmul.f32 %v1185, 1.442695
        %v1213 = vpow.pop %v1212
        %v1214 = vmul.f32 %v1186, 1.442695
        %v1215 = vpow.pop %v1214
        %v1216 = vmul.f32 %v1187, 1.442695
        %v1217 = vpow.pop %v1216
        %v1218 = vmul.f32 %v1188, 1.442695
        %v1219 = vpow.pop %v1218
        %v1220 = vmul.f32 %v1189, 1.442695
        %v1221 = vpow.pop %v1220
        %1222 = vadd.xlane.f32.xlu0 %v1191
        %v1223 = vpop.xlane.xlu0 %1222
        %1224 = vadd.xlane.f32.xlu0 %v1193
        %v1225 = vpop.xlane.xlu0 %1224
        %1226 = vadd.xlane.f32.xlu0 %v1195
        %v1227 = vpop.xlane.xlu0 %1226
        %1228 = vadd.xlane.f32.xlu0 %v1197
        %v1229 = vpop.xlane.xlu0 %1228
        %1230 = vadd.xlane.f32.xlu0 %v1199
        %v1231 = vpop.xlane.xlu0 %1230
        %1232 = vadd.xlane.f32.xlu0 %v1201
        %v1233 = vpop.xlane.xlu0 %1232
        %1234 = vadd.xlane.f32.xlu0 %v1203
        %v1235 = vpop.xlane.xlu0 %1234
        %1236 = vadd.xlane.f32.xlu0 %v1205
        %v1237 = vpop.xlane.xlu0 %1236
        %1238 = vadd.xlane.f32.xlu0 %v1207
        %v1239 = vpop.xlane.xlu0 %1238
        %1240 = vadd.xlane.f32.xlu0 %v1209
        %v1241 = vpop.xlane.xlu0 %1240
        %1242 = vadd.xlane.f32.xlu0 %v1211
        %v1243 = vpop.xlane.xlu0 %1242
        %1244 = vadd.xlane.f32.xlu0 %v1213
        %v1245 = vpop.xlane.xlu0 %1244
        %1246 = vadd.xlane.f32.xlu0 %v1215
        %v1247 = vpop.xlane.xlu0 %1246
        %1248 = vadd.xlane.f32.xlu0 %v1217
        %v1249 = vpop.xlane.xlu0 %1248
        %1250 = vadd.xlane.f32.xlu0 %v1219
        %v1251 = vpop.xlane.xlu0 %1250
        %1252 = vadd.xlane.f32.xlu0 %v1221
        %v1253 = vpop.xlane.xlu0 %1252
        %v1254 = vrcp.pop %v1223
        %v1255 = vrcp.pop %v1225
        %v1256 = vrcp.pop %v1227
        %v1257 = vrcp.pop %v1229
        %v1258 = vrcp.pop %v1231
        %v1259 = vrcp.pop %v1233
        %v1260 = vrcp.pop %v1235
        %v1261 = vrcp.pop %v1237
        %v1262 = vrcp.pop %v1239
        %v1263 = vrcp.pop %v1241
        %v1264 = vrcp.pop %v1243
        %v1265 = vrcp.pop %v1245
        %v1266 = vrcp.pop %v1247
        %v1267 = vrcp.pop %v1249
        %v1268 = vrcp.pop %v1251
        %v1269 = vrcp.pop %v1253
        %v1270 = vmul.f32 %v1191, %v1254
        %v1271 = vmul.f32 %v1193, %v1255
        %v1272 = vmul.f32 %v1195, %v1256
        %v1273 = vmul.f32 %v1197, %v1257
        %v1274 = vmul.f32 %v1199, %v1258
        %v1275 = vmul.f32 %v1201, %v1259
        %v1276 = vmul.f32 %v1203, %v1260
        %v1277 = vmul.f32 %v1205, %v1261
        %v1278 = vmul.f32 %v1207, %v1262
        %v1279 = vmul.f32 %v1209, %v1263
        %v1280 = vmul.f32 %v1211, %v1264
        %v1281 = vmul.f32 %v1213, %v1265
        %v1282 = vmul.f32 %v1215, %v1266
        %v1283 = vmul.f32 %v1217, %v1267
        %v1284 = vmul.f32 %v1219, %v1268
        %v1285 = vmul.f32 %v1221, %v1269
        %v1286 = vpack.c.bf16 %v1271, %v1270
        %v1287 = vpack.c.bf16 %v1273, %v1272
        %v1288 = vpack.c.bf16 %v1275, %v1274
        %v1289 = vpack.c.bf16 %v1277, %v1276
        %v1290 = vpack.c.bf16 %v1279, %v1278
        %v1291 = vpack.c.bf16 %v1281, %v1280
        %v1292 = vpack.c.bf16 %v1283, %v1282
        %v1293 = vpack.c.bf16 %v1285, %v1284
        %1294 = vmatprep.subr.bf16.mxu0 0
        %1295 = vmatpush1.bf16.msra.mxu0 %v1031
        %1296 = vmatprep.subr.bf16.mxu0 0
        %1297 = vmatpush1.bf16.msra.mxu0 %v1032
        %1298 = vmatprep.subr.bf16.mxu0 0
        %1299 = vmatpush1.bf16.msra.mxu0 %v1033
        %1300 = vmatprep.subr.bf16.mxu0 0
        %1301 = vmatpush1.bf16.msra.mxu0 %v1034
        %1302 = vmatprep.subr.bf16.mxu0 0
        %1303 = vmatpush1.bf16.msra.mxu0 %v1035
        %1304 = vmatprep.subr.bf16.mxu0 0
        %1305 = vmatpush1.bf16.msra.mxu0 %v1036
        %1306 = vmatprep.subr.bf16.mxu0 0
        %1307 = vmatpush1.bf16.msra.mxu0 %v1037
        %1308 = vmatprep.subr.bf16.mxu0 0
        %1309 = vmatpush1.bf16.msra.mxu0 %v1038
        %1310 = vmatprep.subr.bf16.mxu0 0
        %1311 = vmatpush1.bf16.msra.mxu0 0
        %1312 = vmatprep.subr.bf16.mxu0 0
        %1313 = vmatpush1.bf16.msra.mxu0 0
        %1314 = vmatprep.subr.bf16.mxu0 0
        %1315 = vmatpush1.bf16.msra.mxu0 0
        %1316 = vmatprep.subr.bf16.mxu0 0
        %1317 = vmatpush1.bf16.msra.mxu0 0
        %1318 = vmatprep.subr.bf16.mxu0 0
        %1319 = vmatpush1.bf16.msra.mxu0 0
        %1320 = vmatprep.subr.bf16.mxu0 0
        %1321 = vmatpush1.bf16.msra.mxu0 0
        %1322 = vmatprep.subr.bf16.mxu0 0
        %1323 = vmatpush1.bf16.msra.mxu0 0
        %1324 = vmatprep.subr.bf16.mxu0 0
        %1325 = vmatpush1.bf16.msra.mxu0 0
        %1326 = vmatprep.mubr.bf16.mxu0 0
        %1327 = vmatmul.mubr.bf16.gmra.mrb[0].mxu0 %v1286
        %v1328 = vpop.f32.mrb[0].mxu0
        %v1329 = vadd.f32 0.0, %v1328
        %v1330 = vpop.f32.mrb[0].mxu0
        %v1331 = vpop.f32.mrb[0].mxu0
        %v1332 = vadd.f32 0.0, %v1331
        %v1333 = vpop.f32.mrb[0].mxu0
        %1334 = vmatprep.mubr.bf16.mxu0 0
        %1335 = vmatmul.mubr.bf16.gmra.mrb[0].mxu0 %v1287
        %v1336 = vpop.f32.mrb[0].mxu0
        %v1337 = vadd.f32 0.0, %v1336
        %v1338 = vpop.f32.mrb[0].mxu0
        %v1339 = vpop.f32.mrb[0].mxu0
        %v1340 = vadd.f32 0.0, %v1339
        %v1341 = vpop.f32.mrb[0].mxu0
        %1342 = vmatprep.mubr.bf16.mxu0 0
        %1343 = vmatmul.mubr.bf16.gmra.mrb[0].mxu0 %v1288
        %v1344 = vpop.f32.mrb[0].mxu0
        %v1345 = vadd.f32 0.0, %v1344
        %v1346 = vpop.f32.mrb[0].mxu0
        %v1347 = vpop.f32.mrb[0].mxu0
        %v1348 = vadd.f32 0.0, %v1347
        %v1349 = vpop.f32.mrb[0].mxu0
        %1350 = vmatprep.mubr.bf16.mxu0 0
        %1351 = vmatmul.mubr.bf16.gmra.mrb[0].mxu0 %v1289
        %v1352 = vpop.f32.mrb[0].mxu0
        %v1353 = vadd.f32 0.0, %v1352
        %v1354 = vpop.f32.mrb[0].mxu0
        %v1355 = vpop.f32.mrb[0].mxu0
        %v1356 = vadd.f32 0.0, %v1355
        %v1357 = vpop.f32.mrb[0].mxu0
        %1358 = vmatprep.mubr.bf16.mxu0 0
        %1359 = vmatmul.mubr.bf16.gmra.mrb[0].mxu0 %v1290
        %v1360 = vpop.f32.mrb[0].mxu0
        %v1361 = vadd.f32 0.0, %v1360
        %v1362 = vpop.f32.mrb[0].mxu0
        %v1363 = vpop.f32.mrb[0].mxu0
        %v1364 = vadd.f32 0.0, %v1363
        %v1365 = vpop.f32.mrb[0].mxu0
        %1366 = vmatprep.mubr.bf16.mxu0 0
        %1367 = vmatmul.mubr.bf16.gmra.mrb[0].mxu0 %v1291
        %v1368 = vpop.f32.mrb[0].mxu0
        %v1369 = vadd.f32 0.0, %v1368
        %v1370 = vpop.f32.mrb[0].mxu0
        %v1371 = vpop.f32.mrb[0].mxu0
        %v1372 = vadd.f32 0.0, %v1371
        %v1373 = vpop.f32.mrb[0].mxu0
        %1374 = vmatprep.mubr.bf16.mxu0 0
        %1375 = vmatmul.mubr.bf16.gmra.mrb[0].mxu0 %v1292
        %v1376 = vpop.f32.mrb[0].mxu0
        %v1377 = vadd.f32 0.0, %v1376
        %v1378 = vpop.f32.mrb[0].mxu0
        %v1379 = vpop.f32.mrb[0].mxu0
        %v1380 = vadd.f32 0.0, %v1379
        %v1381 = vpop.f32.mrb[0].mxu0
        %1382 = vmatprep.mubr.bf16.mxu0 0
        %1383 = vmatmul.mubr.bf16.gmra.mrb[0].mxu0 %v1293
        %v1384 = vpop.f32.mrb[0].mxu0
        %v1385 = vadd.f32 0.0, %v1384
        %v1386 = vpop.f32.mrb[0].mxu0
        %v1387 = vpop.f32.mrb[0].mxu0
        %v1388 = vadd.f32 0.0, %v1387
        %v1389 = vpop.f32.mrb[0].mxu0
        %1390 = vdwg.mxu0
        %v1391 = vpack.c.bf16 %v1332, %v1329
        %v1392 = vpack.c.bf16 %v1340, %v1337
        %v1393 = vpack.c.bf16 %v1348, %v1345
        %v1394 = vpack.c.bf16 %v1356, %v1353
        %v1395 = vpack.c.bf16 %v1364, %v1361
        %v1396 = vpack.c.bf16 %v1372, %v1369
        %v1397 = vpack.c.bf16 %v1380, %v1377
        %v1398 = vpack.c.bf16 %v1388, %v1385
        %v1399 = vld [vmem:[#allocation6] sm:$0xf]
        %v1400 = vld [vmem:[#allocation6 + $0x4] sm:$0xf]
        %v1401 = vld [vmem:[#allocation6 + $0x8] sm:$0xf]
        %v1402 = vld [vmem:[#allocation6 + $0xc] sm:$0xf]
        %v1403 = vld [vmem:[#allocation6 + $0x10] sm:$0xf]
        %v1404 = vld [vmem:[#allocation6 + $0x14] sm:$0xf]
        %v1405 = vld [vmem:[#allocation6 + $0x18] sm:$0xf]
        %v1406 = vld [vmem:[#allocation6 + $0x1c] sm:$0xf]
        %v1407 = vld [vmem:[#allocation6 + $0x20] sm:$0xf]
        %v1408 = vld [vmem:[#allocation6 + $0x24] sm:$0xf]
        %v1409 = vld [vmem:[#allocation6 + $0x28] sm:$0xf]
        %v1410 = vld [vmem:[#allocation6 + $0x2c] sm:$0xf]
        %v1411 = vld [vmem:[#allocation6 + $0x30] sm:$0xf]
        %v1412 = vld [vmem:[#allocation6 + $0x34] sm:$0xf]
        %v1413 = vld [vmem:[#allocation6 + $0x38] sm:$0xf]
        %v1414 = vld [vmem:[#allocation6 + $0x3c] sm:$0xf]
        %v1415 = vld [vmem:[%s6] sm:$0x1]
        %v1417 = vlaneseq
        %v1418 = vshrl.u32 %v1417, 7
        %v1419 = vsub.s32 0, %v1418
        %v1420 = vrot.slane %v1415, %v1419
        %v1438 = vunpack.c.l.b16 %v1399
        %v1439 = vunpack.c.l.b16 %v1400
        %v1440 = vunpack.c.l.b16 %v1401
        %v1441 = vunpack.c.l.b16 %v1402
        %v1442 = vunpack.c.l.b16 %v1403
        %v1443 = vunpack.c.l.b16 %v1404
        %v1444 = vunpack.c.l.b16 %v1405
        %v1445 = vunpack.c.l.b16 %v1406
        %v1446 = vunpack.c.l.b16 %v1407
        %v1447 = vunpack.c.l.b16 %v1408
        %v1448 = vunpack.c.l.b16 %v1409
        %v1449 = vunpack.c.l.b16 %v1410
        %v1450 = vunpack.c.l.b16 %v1411
        %v1451 = vunpack.c.l.b16 %v1412
        %v1452 = vunpack.c.l.b16 %v1413
        %v1453 = vunpack.c.l.b16 %v1414
        %v1454 = vpack.c.b16 %v1439, %v1438
        %v1455 = vpack.c.b16 %v1441, %v1440
        %v1456 = vpack.c.b16 %v1443, %v1442
        %v1457 = vpack.c.b16 %v1445, %v1444
        %v1458 = vpack.c.b16 %v1447, %v1446
        %v1459 = vpack.c.b16 %v1449, %v1448
        %v1460 = vpack.c.b16 %v1451, %v1450
        %v1461 = vpack.c.b16 %v1453, %v1452
        %1470 = vmatprep.subr.bf16.mxu0 0
        %1471 = vmatpush1.bf16.msra.mxu0 %v1454
        %1472 = vmatprep.subr.bf16.mxu0 0
        %1473 = vmatpush1.bf16.msra.mxu0 %v1455
        %1474 = vmatprep.subr.bf16.mxu0 0
        %1475 = vmatpush1.bf16.msra.mxu0 %v1456
        %1476 = vmatprep.subr.bf16.mxu0 0
        %1477 = vmatpush1.bf16.msra.mxu0 %v1457
        %1478 = vmatprep.subr.bf16.mxu0 0
        %1479 = vmatpush1.bf16.msra.mxu0 %v1458
        %1480 = vmatprep.subr.bf16.mxu0 0
        %1481 = vmatpush1.bf16.msra.mxu0 %v1459
        %1482 = vmatprep.subr.bf16.mxu0 0
        %1483 = vmatpush1.bf16.msra.mxu0 %v1460
        %1484 = vmatprep.subr.bf16.mxu0 0
        %1485 = vmatpush1.bf16.msra.mxu0 %v1461
        %1486 = vmatprep.subr.bf16.mxu0 0
        %1487 = vmatpush1.bf16.msra.mxu0 0
        %1488 = vmatprep.subr.bf16.mxu0 0
        %1489 = vmatpush1.bf16.msra.mxu0 0
        %1490 = vmatprep.subr.bf16.mxu0 0
        %1491 = vmatpush1.bf16.msra.mxu0 0
        %1492 = vmatprep.subr.bf16.mxu0 0
        %1493 = vmatpush1.bf16.msra.mxu0 0
        %1494 = vmatprep.subr.bf16.mxu0 0
        %1495 = vmatpush1.bf16.msra.mxu0 0
        %1496 = vmatprep.subr.bf16.mxu0 0
        %1497 = vmatpush1.bf16.msra.mxu0 0
        %1498 = vmatprep.subr.bf16.mxu0 0
        %1499 = vmatpush1.bf16.msra.mxu0 0
        %1500 = vmatprep.subr.bf16.mxu0 0
        %1501 = vmatpush1.bf16.msra.mxu0 0
        %1502 = vmatprep.mubr.bf16.mxu0 0
        %1503 = vmatmul.mubr.bf16.gmra.mrb[0].mxu0 %v1391
        %v1504 = vpop.f32.mrb[0].mxu0
        %v1505 = vadd.f32 %v1420, %v1504
        %v1506 = vpop.f32.mrb[0].mxu0
        %v1507 = vpop.f32.mrb[0].mxu0
        %v1508 = vadd.f32 %v1420, %v1507
        %v1509 = vpop.f32.mrb[0].mxu0
        %1510 = vmatprep.mubr.bf16.mxu0 0
        %1511 = vmatmul.mubr.bf16.gmra.mrb[0].mxu0 %v1392
        %v1512 = vpop.f32.mrb[0].mxu0
        %v1513 = vadd.f32 %v1420, %v1512
        %v1514 = vpop.f32.mrb[0].mxu0
        %v1515 = vpop.f32.mrb[0].mxu0
        %v1516 = vadd.f32 %v1420, %v1515
        %v1517 = vpop.f32.mrb[0].mxu0
        %1518 = vmatprep.mubr.bf16.mxu0 0
        %1519 = vmatmul.mubr.bf16.gmra.mrb[0].mxu0 %v1393
        %v1520 = vpop.f32.mrb[0].mxu0
        %v1521 = vadd.f32 %v1420, %v1520
        %v1522 = vpop.f32.mrb[0].mxu0
        %v1523 = vpop.f32.mrb[0].mxu0
        %v1524 = vadd.f32 %v1420, %v1523
        %v1525 = vpop.f32.mrb[0].mxu0
        %1526 = vmatprep.mubr.bf16.mxu0 0
        %1527 = vmatmul.mubr.bf16.gmra.mrb[0].mxu0 %v1394
        %v1528 = vpop.f32.mrb[0].mxu0
        %v1529 = vadd.f32 %v1420, %v1528
        %v1530 = vpop.f32.mrb[0].mxu0
        %v1531 = vpop.f32.mrb[0].mxu0
        %v1532 = vadd.f32 %v1420, %v1531
        %v1533 = vpop.f32.mrb[0].mxu0
        %1534 = vmatprep.mubr.bf16.mxu0 0
        %1535 = vmatmul.mubr.bf16.gmra.mrb[0].mxu0 %v1395
        %v1536 = vpop.f32.mrb[0].mxu0
        %v1537 = vadd.f32 %v1420, %v1536
        %v1538 = vpop.f32.mrb[0].mxu0
        %v1539 = vpop.f32.mrb[0].mxu0
        %v1540 = vadd.f32 %v1420, %v1539
        %v1541 = vpop.f32.mrb[0].mxu0
        %1542 = vmatprep.mubr.bf16.mxu0 0
        %1543 = vmatmul.mubr.bf16.gmra.mrb[0].mxu0 %v1396
        %v1544 = vpop.f32.mrb[0].mxu0
        %v1545 = vadd.f32 %v1420, %v1544
        %v1546 = vpop.f32.mrb[0].mxu0
        %v1547 = vpop.f32.mrb[0].mxu0
        %v1548 = vadd.f32 %v1420, %v1547
        %v1549 = vpop.f32.mrb[0].mxu0
        %1550 = vmatprep.mubr.bf16.mxu0 0
        %1551 = vmatmul.mubr.bf16.gmra.mrb[0].mxu0 %v1397
        %v1552 = vpop.f32.mrb[0].mxu0
        %v1553 = vadd.f32 %v1420, %v1552
        %v1554 = vpop.f32.mrb[0].mxu0
        %v1555 = vpop.f32.mrb[0].mxu0
        %v1556 = vadd.f32 %v1420, %v1555
        %v1557 = vpop.f32.mrb[0].mxu0
        %1558 = vmatprep.mubr.bf16.mxu0 0
        %1559 = vmatmul.mubr.bf16.gmra.mrb[0].mxu0 %v1398
        %v1560 = vpop.f32.mrb[0].mxu0
        %v1561 = vadd.f32 %v1420, %v1560
        %v1562 = vpop.f32.mrb[0].mxu0
        %v1563 = vpop.f32.mrb[0].mxu0
        %v1564 = vadd.f32 %v1420, %v1563
        %v1565 = vpop.f32.mrb[0].mxu0
        %1566 = vdwg.mxu0
        %v1567 = vadd.f32 %v603, %v1505
        %v1568 = vadd.f32 %v604, %v1508
        %v1569 = vadd.f32 %v605, %v1513
        %v1570 = vadd.f32 %v606, %v1516
        %v1571 = vadd.f32 %v607, %v1521
        %v1572 = vadd.f32 %v608, %v1524
        %v1573 = vadd.f32 %v609, %v1529
        %v1574 = vadd.f32 %v610, %v1532
        %v1575 = vadd.f32 %v611, %v1537
        %v1576 = vadd.f32 %v612, %v1540
        %v1577 = vadd.f32 %v613, %v1545
        %v1578 = vadd.f32 %v614, %v1548
        %v1579 = vadd.f32 %v615, %v1553
        %v1580 = vadd.f32 %v616, %v1556
        %v1581 = vadd.f32 %v617, %v1561
        %v1582 = vadd.f32 %v618, %v1564
        %v1583 = vld [vmem:[%s7] sm:$0x1]
        %v1584 = vld [vmem:[%s8] sm:$0x1]
        %1585 = vadd.xlane.f32.xlu0 %v1567
        %v1586 = vpop.xlane.xlu0 %1585
        %1587 = vadd.xlane.f32.xlu0 %v1568
        %v1588 = vpop.xlane.xlu0 %1587
        %1589 = vadd.xlane.f32.xlu0 %v1569
        %v1590 = vpop.xlane.xlu0 %1589
        %1591 = vadd.xlane.f32.xlu0 %v1570
        %v1592 = vpop.xlane.xlu0 %1591
        %1593 = vadd.xlane.f32.xlu0 %v1571
        %v1594 = vpop.xlane.xlu0 %1593
        %1595 = vadd.xlane.f32.xlu0 %v1572
        %v1596 = vpop.xlane.xlu0 %1595
        %1597 = vadd.xlane.f32.xlu0 %v1573
        %v1598 = vpop.xlane.xlu0 %1597
        %1599 = vadd.xlane.f32.xlu0 %v1574
        %v1600 = vpop.xlane.xlu0 %1599
        %1601 = vadd.xlane.f32.xlu0 %v1575
        %v1602 = vpop.xlane.xlu0 %1601
        %1603 = vadd.xlane.f32.xlu0 %v1576
        %v1604 = vpop.xlane.xlu0 %1603
        %1605 = vadd.xlane.f32.xlu0 %v1577
        %v1606 = vpop.xlane.xlu0 %1605
        %1607 = vadd.xlane.f32.xlu0 %v1578
        %v1608 = vpop.xlane.xlu0 %1607
        %1609 = vadd.xlane.f32.xlu0 %v1579
        %v1610 = vpop.xlane.xlu0 %1609
        %1611 = vadd.xlane.f32.xlu0 %v1580
        %v1612 = vpop.xlane.xlu0 %1611
        %1613 = vadd.xlane.f32.xlu0 %v1581
        %v1614 = vpop.xlane.xlu0 %1613
        %1615 = vadd.xlane.f32.xlu0 %v1582
        %v1616 = vpop.xlane.xlu0 %1615
        %v1617 = vrcp.pop 128.0
        %v1618 = vmul.f32 %v1586, %v1617
        %v1619 = vmul.f32 %v1588, %v1617
        %v1620 = vmul.f32 %v1590, %v1617
        %v1621 = vmul.f32 %v1592, %v1617
        %v1622 = vmul.f32 %v1594, %v1617
        %v1623 = vmul.f32 %v1596, %v1617
        %v1624 = vmul.f32 %v1598, %v1617
        %v1625 = vmul.f32 %v1600, %v1617
        %v1626 = vmul.f32 %v1602, %v1617
        %v1627 = vmul.f32 %v1604, %v1617
        %v1628 = vmul.f32 %v1606, %v1617
        %v1629 = vmul.f32 %v1608, %v1617
        %v1630 = vmul.f32 %v1610, %v1617
        %v1631 = vmul.f32 %v1612, %v1617
        %v1632 = vmul.f32 %v1614, %v1617
        %v1633 = vmul.f32 %v1616, %v1617
        %v1634 = vsub.f32 %v1567, %v1618
        %v1635 = vsub.f32 %v1568, %v1619
        %v1636 = vsub.f32 %v1569, %v1620
        %v1637 = vsub.f32 %v1570, %v1621
        %v1638 = vsub.f32 %v1571, %v1622
        %v1639 = vsub.f32 %v1572, %v1623
        %v1640 = vsub.f32 %v1573, %v1624
        %v1641 = vsub.f32 %v1574, %v1625
        %v1642 = vsub.f32 %v1575, %v1626
        %v1643 = vsub.f32 %v1576, %v1627
        %v1644 = vsub.f32 %v1577, %v1628
        %v1645 = vsub.f32 %v1578, %v1629
        %v1646 = vsub.f32 %v1579, %v1630
        %v1647 = vsub.f32 %v1580, %v1631
        %v1648 = vsub.f32 %v1581, %v1632
        %v1649 = vsub.f32 %v1582, %v1633
        %v1650 = vmul.f32 %v1634, %v1634
        %v1651 = vmul.f32 %v1635, %v1635
        %v1652 = vmul.f32 %v1636, %v1636
        %v1653 = vmul.f32 %v1637, %v1637
        %v1654 = vmul.f32 %v1638, %v1638
        %v1655 = vmul.f32 %v1639, %v1639
        %v1656 = vmul.f32 %v1640, %v1640
        %v1657 = vmul.f32 %v1641, %v1641
        %v1658 = vmul.f32 %v1642, %v1642
        %v1659 = vmul.f32 %v1643, %v1643
        %v1660 = vmul.f32 %v1644, %v1644
        %v1661 = vmul.f32 %v1645, %v1645
        %v1662 = vmul.f32 %v1646, %v1646
        %v1663 = vmul.f32 %v1647, %v1647
        %v1664 = vmul.f32 %v1648, %v1648
        %v1665 = vmul.f32 %v1649, %v1649
        %1666 = vadd.xlane.f32.xlu0 %v1650
        %v1667 = vpop.xlane.xlu0 %1666
        %1668 = vadd.xlane.f32.xlu0 %v1651
        %v1669 = vpop.xlane.xlu0 %1668
        %1670 = vadd.xlane.f32.xlu0 %v1652
        %v1671 = vpop.xlane.xlu0 %1670
        %1672 = vadd.xlane.f32.xlu0 %v1653
        %v1673 = vpop.xlane.xlu0 %1672
        %1674 = vadd.xlane.f32.xlu0 %v1654
        %v1675 = vpop.xlane.xlu0 %1674
        %1676 = vadd.xlane.f32.xlu0 %v1655
        %v1677 = vpop.xlane.xlu0 %1676
        %1678 = vadd.xlane.f32.xlu0 %v1656
        %v1679 = vpop.xlane.xlu0 %1678
        %1680 = vadd.xlane.f32.xlu0 %v1657
        %v1681 = vpop.xlane.xlu0 %1680
        %1682 = vadd.xlane.f32.xlu0 %v1658
        %v1683 = vpop.xlane.xlu0 %1682
        %1684 = vadd.xlane.f32.xlu0 %v1659
        %v1685 = vpop.xlane.xlu0 %1684
        %1686 = vadd.xlane.f32.xlu0 %v1660
        %v1687 = vpop.xlane.xlu0 %1686
        %1688 = vadd.xlane.f32.xlu0 %v1661
        %v1689 = vpop.xlane.xlu0 %1688
        %1690 = vadd.xlane.f32.xlu0 %v1662
        %v1691 = vpop.xlane.xlu0 %1690
        %1692 = vadd.xlane.f32.xlu0 %v1663
        %v1693 = vpop.xlane.xlu0 %1692
        %1694 = vadd.xlane.f32.xlu0 %v1664
        %v1695 = vpop.xlane.xlu0 %1694
        %1696 = vadd.xlane.f32.xlu0 %v1665
        %v1697 = vpop.xlane.xlu0 %1696
        %v1698 = vmul.f32 %v1667, %v1617
        %v1699 = vmul.f32 %v1669, %v1617
        %v1700 = vmul.f32 %v1671, %v1617
        %v1701 = vmul.f32 %v1673, %v1617
        %v1702 = vmul.f32 %v1675, %v1617
        %v1703 = vmul.f32 %v1677, %v1617
        %v1704 = vmul.f32 %v1679, %v1617
        %v1705 = vmul.f32 %v1681, %v1617
        %v1706 = vmul.f32 %v1683, %v1617
        %v1707 = vmul.f32 %v1685, %v1617
        %v1708 = vmul.f32 %v1687, %v1617
        %v1709 = vmul.f32 %v1689, %v1617
        %v1710 = vmul.f32 %v1691, %v1617
        %v1711 = vmul.f32 %v1693, %v1617
        %v1712 = vmul.f32 %v1695, %v1617
        %v1713 = vmul.f32 %v1697, %v1617
        %v1714 = vadd.f32 %v1698, 1e-12
        %v1715 = vadd.f32 %v1699, 1e-12
        %v1716 = vadd.f32 %v1700, 1e-12
        %v1717 = vadd.f32 %v1701, 1e-12
        %v1718 = vadd.f32 %v1702, 1e-12
        %v1719 = vadd.f32 %v1703, 1e-12
        %v1720 = vadd.f32 %v1704, 1e-12
        %v1721 = vadd.f32 %v1705, 1e-12
        %v1722 = vadd.f32 %v1706, 1e-12
        %v1723 = vadd.f32 %v1707, 1e-12
        %v1724 = vadd.f32 %v1708, 1e-12
        %v1725 = vadd.f32 %v1709, 1e-12
        %v1726 = vadd.f32 %v1710, 1e-12
        %v1727 = vadd.f32 %v1711, 1e-12
        %v1728 = vadd.f32 %v1712, 1e-12
        %v1729 = vadd.f32 %v1713, 1e-12
        %v1730 = vrsqrt.pop %v1714
        %v1731 = vrsqrt.pop %v1715
        %v1732 = vrsqrt.pop %v1716
        %v1733 = vrsqrt.pop %v1717
        %v1734 = vrsqrt.pop %v1718
        %v1735 = vrsqrt.pop %v1719
        %v1736 = vrsqrt.pop %v1720
        %v1737 = vrsqrt.pop %v1721
        %v1738 = vrsqrt.pop %v1722
        %v1739 = vrsqrt.pop %v1723
        %v1740 = vrsqrt.pop %v1724
        %v1741 = vrsqrt.pop %v1725
        %v1742 = vrsqrt.pop %v1726
        %v1743 = vrsqrt.pop %v1727
        %v1744 = vrsqrt.pop %v1728
        %v1745 = vrsqrt.pop %v1729
        %v1746 = vmul.f32 %v1634, %v1730
        %v1747 = vmul.f32 %v1635, %v1731
        %v1748 = vmul.f32 %v1636, %v1732
        %v1749 = vmul.f32 %v1637, %v1733
        %v1750 = vmul.f32 %v1638, %v1734
        %v1751 = vmul.f32 %v1639, %v1735
        %v1752 = vmul.f32 %v1640, %v1736
        %v1753 = vmul.f32 %v1641, %v1737
        %v1754 = vmul.f32 %v1642, %v1738
        %v1755 = vmul.f32 %v1643, %v1739
        %v1756 = vmul.f32 %v1644, %v1740
        %v1757 = vmul.f32 %v1645, %v1741
        %v1758 = vmul.f32 %v1646, %v1742
        %v1759 = vmul.f32 %v1647, %v1743
        %v1760 = vmul.f32 %v1648, %v1744
        %v1761 = vmul.f32 %v1649, %v1745
        %v1763 = vlaneseq
        %v1764 = vshrl.u32 %v1763, 7
        %v1765 = vsub.s32 0, %v1764
        %v1766 = vrot.slane %v1583, %v1765
        %v1768 = vmul.f32 %v1746, %v1766
        %v1769 = vmul.f32 %v1747, %v1766
        %v1770 = vmul.f32 %v1748, %v1766
        %v1771 = vmul.f32 %v1749, %v1766
        %v1772 = vmul.f32 %v1750, %v1766
        %v1773 = vmul.f32 %v1751, %v1766
        %v1774 = vmul.f32 %v1752, %v1766
        %v1775 = vmul.f32 %v1753, %v1766
        %v1776 = vmul.f32 %v1754, %v1766
        %v1777 = vmul.f32 %v1755, %v1766
        %v1778 = vmul.f32 %v1756, %v1766
        %v1779 = vmul.f32 %v1757, %v1766
        %v1780 = vmul.f32 %v1758, %v1766
        %v1781 = vmul.f32 %v1759, %v1766
        %v1782 = vmul.f32 %v1760, %v1766
        %v1783 = vmul.f32 %v1761, %v1766
        %v1785 = vlaneseq
        %v1786 = vshrl.u32 %v1785, 7
        %v1787 = vsub.s32 0, %v1786
        %v1788 = vrot.slane %v1584, %v1787
        %v1790 = vadd.f32 %v1768, %v1788
        %v1791 = vadd.f32 %v1769, %v1788
        %v1792 = vadd.f32 %v1770, %v1788
        %v1793 = vadd.f32 %v1771, %v1788
        %v1794 = vadd.f32 %v1772, %v1788
        %v1795 = vadd.f32 %v1773, %v1788
        %v1796 = vadd.f32 %v1774, %v1788
        %v1797 = vadd.f32 %v1775, %v1788
        %v1798 = vadd.f32 %v1776, %v1788
        %v1799 = vadd.f32 %v1777, %v1788
        %v1800 = vadd.f32 %v1778, %v1788
        %v1801 = vadd.f32 %v1779, %v1788
        %v1802 = vadd.f32 %v1780, %v1788
        %v1803 = vadd.f32 %v1781, %v1788
        %v1804 = vadd.f32 %v1782, %v1788
        %v1805 = vadd.f32 %v1783, %v1788
        %v1806 = vpack.c.bf16 %v1791, %v1790
        %v1807 = vpack.c.bf16 %v1793, %v1792
        %v1808 = vpack.c.bf16 %v1795, %v1794
        %v1809 = vpack.c.bf16 %v1797, %v1796
        %v1810 = vpack.c.bf16 %v1799, %v1798
        %v1811 = vpack.c.bf16 %v1801, %v1800
        %v1812 = vpack.c.bf16 %v1803, %v1802
        %v1813 = vpack.c.bf16 %v1805, %v1804
        %v1814 = vld [vmem:[#allocation7] sm:$0xff]
        %v1815 = vld [vmem:[#allocation7 + $0x8] sm:$0xff]
        %v1816 = vld [vmem:[#allocation7 + $0x10] sm:$0xff]
        %v1817 = vld [vmem:[#allocation7 + $0x18] sm:$0xff]
        %v1818 = vld [vmem:[#allocation7 + $0x20] sm:$0xff]
        %v1819 = vld [vmem:[#allocation7 + $0x28] sm:$0xff]
        %v1820 = vld [vmem:[#allocation7 + $0x30] sm:$0xff]
        %v1821 = vld [vmem:[#allocation7 + $0x38] sm:$0xff]
        %v1822 = vld [vmem:[#allocation7 + $0x40] sm:$0xff]
        %v1823 = vld [vmem:[#allocation7 + $0x48] sm:$0xff]
        %v1824 = vld [vmem:[#allocation7 + $0x50] sm:$0xff]
        %v1825 = vld [vmem:[#allocation7 + $0x58] sm:$0xff]
        %v1826 = vld [vmem:[#allocation7 + $0x60] sm:$0xff]
        %v1827 = vld [vmem:[#allocation7 + $0x68] sm:$0xff]
        %v1828 = vld [vmem:[#allocation7 + $0x70] sm:$0xff]
        %v1829 = vld [vmem:[#allocation7 + $0x78] sm:$0xff]
        %v1830 = vld [vmem:[%s10] sm:$0x3]
        %v1832 = vlaneseq
        %v1833 = vshrl.u32 %v1832, 7
        %v1834 = vsub.s32 0, %v1833
        %v1835 = vrot.slane %v1830, %v1834
        %v1836 = vlaneseq
        %v1837 = vshrl.u32 %v1836, 7
        %v1838 = vsub.s32 1, %v1837
        %v1839 = vrot.slane %v1830, %v1838
        %v1858 = vunpack.c.l.b16 %v1814
        %v1859 = vunpack.c.h.b16 %v1814
        %v1860 = vunpack.c.l.b16 %v1815
        %v1861 = vunpack.c.h.b16 %v1815
        %v1862 = vunpack.c.l.b16 %v1816
        %v1863 = vunpack.c.h.b16 %v1816
        %v1864 = vunpack.c.l.b16 %v1817
        %v1865 = vunpack.c.h.b16 %v1817
        %v1866 = vunpack.c.l.b16 %v1818
        %v1867 = vunpack.c.h.b16 %v1818
        %v1868 = vunpack.c.l.b16 %v1819
        %v1869 = vunpack.c.h.b16 %v1819
        %v1870 = vunpack.c.l.b16 %v1820
        %v1871 = vunpack.c.h.b16 %v1820
        %v1872 = vunpack.c.l.b16 %v1821
        %v1873 = vunpack.c.h.b16 %v1821
        %v1874 = vunpack.c.l.b16 %v1822
        %v1875 = vunpack.c.h.b16 %v1822
        %v1876 = vunpack.c.l.b16 %v1823
        %v1877 = vunpack.c.h.b16 %v1823
        %v1878 = vunpack.c.l.b16 %v1824
        %v1879 = vunpack.c.h.b16 %v1824
        %v1880 = vunpack.c.l.b16 %v1825
        %v1881 = vunpack.c.h.b16 %v1825
        %v1882 = vunpack.c.l.b16 %v1826
        %v1883 = vunpack.c.h.b16 %v1826
        %v1884 = vunpack.c.l.b16 %v1827
        %v1885 = vunpack.c.h.b16 %v1827
        %v1886 = vunpack.c.l.b16 %v1828
        %v1887 = vunpack.c.h.b16 %v1828
        %v1888 = vunpack.c.l.b16 %v1829
        %v1889 = vunpack.c.h.b16 %v1829
        %v1890 = vpack.c.b16 %v1860, %v1858
        %v1891 = vpack.c.b16 %v1861, %v1859
        %v1892 = vpack.c.b16 %v1864, %v1862
        %v1893 = vpack.c.b16 %v1865, %v1863
        %v1894 = vpack.c.b16 %v1868, %v1866
        %v1895 = vpack.c.b16 %v1869, %v1867
        %v1896 = vpack.c.b16 %v1872, %v1870
        %v1897 = vpack.c.b16 %v1873, %v1871
        %v1898 = vpack.c.b16 %v1876, %v1874
        %v1899 = vpack.c.b16 %v1877, %v1875
        %v1900 = vpack.c.b16 %v1880, %v1878
        %v1901 = vpack.c.b16 %v1881, %v1879
        %v1902 = vpack.c.b16 %v1884, %v1882
        %v1903 = vpack.c.b16 %v1885, %v1883
        %v1904 = vpack.c.b16 %v1888, %v1886
        %v1905 = vpack.c.b16 %v1889, %v1887
        %1922 = vmatprep.subr.bf16.mxu0 %v1891
        %1923 = vmatpush1.bf16.msra.mxu0 %v1890
        %1924 = vmatprep.subr.bf16.mxu0 %v1893
        %1925 = vmatpush1.bf16.msra.mxu0 %v1892
        %1926 = vmatprep.subr.bf16.mxu0 %v1895
        %1927 = vmatpush1.bf16.msra.mxu0 %v1894
        %1928 = vmatprep.subr.bf16.mxu0 %v1897
        %1929 = vmatpush1.bf16.msra.mxu0 %v1896
        %1930 = vmatprep.subr.bf16.mxu0 %v1899
        %1931 = vmatpush1.bf16.msra.mxu0 %v1898
        %1932 = vmatprep.subr.bf16.mxu0 %v1901
        %1933 = vmatpush1.bf16.msra.mxu0 %v1900
        %1934 = vmatprep.subr.bf16.mxu0 %v1903
        %1935 = vmatpush1.bf16.msra.mxu0 %v1902
        %1936 = vmatprep.subr.bf16.mxu0 %v1905
        %1937 = vmatpush1.bf16.msra.mxu0 %v1904
        %1938 = vmatprep.subr.bf16.mxu0 0
        %1939 = vmatpush1.bf16.msra.mxu0 0
        %1940 = vmatprep.subr.bf16.mxu0 0
        %1941 = vmatpush1.bf16.msra.mxu0 0
        %1942 = vmatprep.subr.bf16.mxu0 0
        %1943 = vmatpush1.bf16.msra.mxu0 0
        %1944 = vmatprep.subr.bf16.mxu0 0
        %1945 = vmatpush1.bf16.msra.mxu0 0
        %1946 = vmatprep.subr.bf16.mxu0 0
        %1947 = vmatpush1.bf16.msra.mxu0 0
        %1948 = vmatprep.subr.bf16.mxu0 0
        %1949 = vmatpush1.bf16.msra.mxu0 0
        %1950 = vmatprep.subr.bf16.mxu0 0
        %1951 = vmatpush1.bf16.msra.mxu0 0
        %1952 = vmatprep.subr.bf16.mxu0 0
        %1953 = vmatpush1.bf16.msra.mxu0 0
        %1954 = vmatprep.mubr.bf16.mxu0 0
        %1955 = vmatmul.mubr.bf16.gmra.mrb[0].mxu0 %v1806
        %v1956 = vpop.f32.mrb[0].mxu0
        %v1957 = vadd.f32 %v1835, %v1956
        %v1958 = vpop.f32.mrb[0].mxu0
        %v1959 = vadd.f32 %v1839, %v1958
        %v1960 = vpop.f32.mrb[0].mxu0
        %v1961 = vadd.f32 %v1835, %v1960
        %v1962 = vpop.f32.mrb[0].mxu0
        %v1963 = vadd.f32 %v1839, %v1962
        %1964 = vmatprep.mubr.bf16.mxu0 0
        %1965 = vmatmul.mubr.bf16.gmra.mrb[0].mxu0 %v1807
        %v1966 = vpop.f32.mrb[0].mxu0
        %v1967 = vadd.f32 %v1835, %v1966
        %v1968 = vpop.f32.mrb[0].mxu0
        %v1969 = vadd.f32 %v1839, %v1968
        %v1970 = vpop.f32.mrb[0].mxu0
        %v1971 = vadd.f32 %v1835, %v1970
        %v1972 = vpop.f32.mrb[0].mxu0
        %v1973 = vadd.f32 %v1839, %v1972
        %1974 = vmatprep.mubr.bf16.mxu0 0
        %1975 = vmatmul.mubr.bf16.gmra.mrb[0].mxu0 %v1808
        %v1976 = vpop.f32.mrb[0].mxu0
        %v1977 = vadd.f32 %v1835, %v1976
        %v1978 = vpop.f32.mrb[0].mxu0
        %v1979 = vadd.f32 %v1839, %v1978
        %v1980 = vpop.f32.mrb[0].mxu0
        %v1981 = vadd.f32 %v1835, %v1980
        %v1982 = vpop.f32.mrb[0].mxu0
        %v1983 = vadd.f32 %v1839, %v1982
        %1984 = vmatprep.mubr.bf16.mxu0 0
        %1985 = vmatmul.mubr.bf16.gmra.mrb[0].mxu0 %v1809
        %v1986 = vpop.f32.mrb[0].mxu0
        %v1987 = vadd.f32 %v1835, %v1986
        %v1988 = vpop.f32.mrb[0].mxu0
        %v1989 = vadd.f32 %v1839, %v1988
        %v1990 = vpop.f32.mrb[0].mxu0
        %v1991 = vadd.f32 %v1835, %v1990
        %v1992 = vpop.f32.mrb[0].mxu0
        %v1993 = vadd.f32 %v1839, %v1992
        %1994 = vmatprep.mubr.bf16.mxu0 0
        %1995 = vmatmul.mubr.bf16.gmra.mrb[0].mxu0 %v1810
        %v1996 = vpop.f32.mrb[0].mxu0
        %v1997 = vadd.f32 %v1835, %v1996
        %v1998 = vpop.f32.mrb[0].mxu0
        %v1999 = vadd.f32 %v1839, %v1998
        %v2000 = vpop.f32.mrb[0].mxu0
        %v2001 = vadd.f32 %v1835, %v2000
        %v2002 = vpop.f32.mrb[0].mxu0
        %v2003 = vadd.f32 %v1839, %v2002
        %2004 = vmatprep.mubr.bf16.mxu0 0
        %2005 = vmatmul.mubr.bf16.gmra.mrb[0].mxu0 %v1811
        %v2006 = vpop.f32.mrb[0].mxu0
        %v2007 = vadd.f32 %v1835, %v2006
        %v2008 = vpop.f32.mrb[0].mxu0
        %v2009 = vadd.f32 %v1839, %v2008
        %v2010 = vpop.f32.mrb[0].mxu0
        %v2011 = vadd.f32 %v1835, %v2010
        %v2012 = vpop.f32.mrb[0].mxu0
        %v2013 = vadd.f32 %v1839, %v2012
        %2014 = vmatprep.mubr.bf16.mxu0 0
        %2015 = vmatmul.mubr.bf16.gmra.mrb[0].mxu0 %v1812
        %v2016 = vpop.f32.mrb[0].mxu0
        %v2017 = vadd.f32 %v1835, %v2016
        %v2018 = vpop.f32.mrb[0].mxu0
        %v2019 = vadd.f32 %v1839, %v2018
        %v2020 = vpop.f32.mrb[0].mxu0
        %v2021 = vadd.f32 %v1835, %v2020
        %v2022 = vpop.f32.mrb[0].mxu0
        %v2023 = vadd.f32 %v1839, %v2022
        %2024 = vmatprep.mubr.bf16.mxu0 0
        %2025 = vmatmul.mubr.bf16.gmra.mrb[0].mxu0 %v1813
        %v2026 = vpop.f32.mrb[0].mxu0
        %v2027 = vadd.f32 %v1835, %v2026
        %v2028 = vpop.f32.mrb[0].mxu0
        %v2029 = vadd.f32 %v1839, %v2028
        %v2030 = vpop.f32.mrb[0].mxu0
        %v2031 = vadd.f32 %v1835, %v2030
        %v2032 = vpop.f32.mrb[0].mxu0
        %v2033 = vadd.f32 %v1839, %v2032
        %2034 = vdwg.mxu0
        %v2035 = vmul.f32 %v1957, 0.5
        %v2036 = vmul.f32 %v1959, 0.5
        %v2037 = vmul.f32 %v1961, 0.5
        %v2038 = vmul.f32 %v1963, 0.5
        %v2039 = vmul.f32 %v1967, 0.5
        %v2040 = vmul.f32 %v1969, 0.5
        %v2041 = vmul.f32 %v1971, 0.5
        %v2042 = vmul.f32 %v1973, 0.5
        %v2043 = vmul.f32 %v1977, 0.5
        %v2044 = vmul.f32 %v1979, 0.5
        %v2045 = vmul.f32 %v1981, 0.5
        %v2046 = vmul.f32 %v1983, 0.5
        %v2047 = vmul.f32 %v1987, 0.5
        %v2048 = vmul.f32 %v1989, 0.5
        %v2049 = vmul.f32 %v1991, 0.5
        %v2050 = vmul.f32 %v1993, 0.5
        %v2051 = vmul.f32 %v1997, 0.5
        %v2052 = vmul.f32 %v1999, 0.5
        %v2053 = vmul.f32 %v2001, 0.5
        %v2054 = vmul.f32 %v2003, 0.5
        %v2055 = vmul.f32 %v2007, 0.5
        %v2056 = vmul.f32 %v2009, 0.5
        %v2057 = vmul.f32 %v2011, 0.5
        %v2058 = vmul.f32 %v2013, 0.5
        %v2059 = vmul.f32 %v2017, 0.5
        %v2060 = vmul.f32 %v2019, 0.5
        %v2061 = vmul.f32 %v2021, 0.5
        %v2062 = vmul.f32 %v2023, 0.5
        %v2063 = vmul.f32 %v2027, 0.5
        %v2064 = vmul.f32 %v2029, 0.5
        %v2065 = vmul.f32 %v2031, 0.5
        %v2066 = vmul.f32 %v2033, 0.5
        %v2067 = vmul.f32 %v1957, 0.044715
        %v2068 = vmul.f32 %v1959, 0.044715
        %v2069 = vmul.f32 %v1961, 0.044715
        %v2070 = vmul.f32 %v1963, 0.044715
        %v2071 = vmul.f32 %v1967, 0.044715
        %v2072 = vmul.f32 %v1969, 0.044715
        %v2073 = vmul.f32 %v1971, 0.044715
        %v2074 = vmul.f32 %v1973, 0.044715
        %v2075 = vmul.f32 %v1977, 0.044715
        %v2076 = vmul.f32 %v1979, 0.044715
        %v2077 = vmul.f32 %v1981, 0.044715
        %v2078 = vmul.f32 %v1983, 0.044715
        %v2079 = vmul.f32 %v1987, 0.044715
        %v2080 = vmul.f32 %v1989, 0.044715
        %v2081 = vmul.f32 %v1991, 0.044715
        %v2082 = vmul.f32 %v1993, 0.044715
        %v2083 = vmul.f32 %v1997, 0.044715
        %v2084 = vmul.f32 %v1999, 0.044715
        %v2085 = vmul.f32 %v2001, 0.044715
        %v2086 = vmul.f32 %v2003, 0.044715
        %v2087 = vmul.f32 %v2007, 0.044715
        %v2088 = vmul.f32 %v2009, 0.044715
        %v2089 = vmul.f32 %v2011, 0.044715
        %v2090 = vmul.f32 %v2013, 0.044715
        %v2091 = vmul.f32 %v2017, 0.044715
        %v2092 = vmul.f32 %v2019, 0.044715
        %v2093 = vmul.f32 %v2021, 0.044715
        %v2094 = vmul.f32 %v2023, 0.044715
        %v2095 = vmul.f32 %v2027, 0.044715
        %v2096 = vmul.f32 %v2029, 0.044715
        %v2097 = vmul.f32 %v2031, 0.044715
        %v2098 = vmul.f32 %v2033, 0.044715
        %v2099 = vmul.f32 %v2067, %v1957
        %v2100 = vmul.f32 %v2068, %v1959
        %v2101 = vmul.f32 %v2069, %v1961
        %v2102 = vmul.f32 %v2070, %v1963
        %v2103 = vmul.f32 %v2071, %v1967
        %v2104 = vmul.f32 %v2072, %v1969
        %v2105 = vmul.f32 %v2073, %v1971
        %v2106 = vmul.f32 %v2074, %v1973
        %v2107 = vmul.f32 %v2075, %v1977
        %v2108 = vmul.f32 %v2076, %v1979
        %v2109 = vmul.f32 %v2077, %v1981
        %v2110 = vmul.f32 %v2078, %v1983
        %v2111 = vmul.f32 %v2079, %v1987
        %v2112 = vmul.f32 %v2080, %v1989
        %v2113 = vmul.f32 %v2081, %v1991
        %v2114 = vmul.f32 %v2082, %v1993
        %v2115 = vmul.f32 %v2083, %v1997
        %v2116 = vmul.f32 %v2084, %v1999
        %v2117 = vmul.f32 %v2085, %v2001
        %v2118 = vmul.f32 %v2086, %v2003
        %v2119 = vmul.f32 %v2087, %v2007
        %v2120 = vmul.f32 %v2088, %v2009
        %v2121 = vmul.f32 %v2089, %v2011
        %v2122 = vmul.f32 %v2090, %v2013
        %v2123 = vmul.f32 %v2091, %v2017
        %v2124 = vmul.f32 %v2092, %v2019
        %v2125 = vmul.f32 %v2093, %v2021
        %v2126 = vmul.f32 %v2094, %v2023
        %v2127 = vmul.f32 %v2095, %v2027
        %v2128 = vmul.f32 %v2096, %v2029
        %v2129 = vmul.f32 %v2097, %v2031
        %v2130 = vmul.f32 %v2098, %v2033
        %v2131 = vmul.f32 %v2099, %v1957
        %v2132 = vmul.f32 %v2100, %v1959
        %v2133 = vmul.f32 %v2101, %v1961
        %v2134 = vmul.f32 %v2102, %v1963
        %v2135 = vmul.f32 %v2103, %v1967
        %v2136 = vmul.f32 %v2104, %v1969
        %v2137 = vmul.f32 %v2105, %v1971
        %v2138 = vmul.f32 %v2106, %v1973
        %v2139 = vmul.f32 %v2107, %v1977
        %v2140 = vmul.f32 %v2108, %v1979
        %v2141 = vmul.f32 %v2109, %v1981
        %v2142 = vmul.f32 %v2110, %v1983
        %v2143 = vmul.f32 %v2111, %v1987
        %v2144 = vmul.f32 %v2112, %v1989
        %v2145 = vmul.f32 %v2113, %v1991
        %v2146 = vmul.f32 %v2114, %v1993
        %v2147 = vmul.f32 %v2115, %v1997
        %v2148 = vmul.f32 %v2116, %v1999
        %v2149 = vmul.f32 %v2117, %v2001
        %v2150 = vmul.f32 %v2118, %v2003
        %v2151 = vmul.f32 %v2119, %v2007
        %v2152 = vmul.f32 %v2120, %v2009
        %v2153 = vmul.f32 %v2121, %v2011
        %v2154 = vmul.f32 %v2122, %v2013
        %v2155 = vmul.f32 %v2123, %v2017
        %v2156 = vmul.f32 %v2124, %v2019
        %v2157 = vmul.f32 %v2125, %v2021
        %v2158 = vmul.f32 %v2126, %v2023
        %v2159 = vmul.f32 %v2127, %v2027
        %v2160 = vmul.f32 %v2128, %v2029
        %v2161 = vmul.f32 %v2129, %v2031
        %v2162 = vmul.f32 %v2130, %v2033
        %v2163 = vadd.f32 %v1957, %v2131
        %v2164 = vadd.f32 %v1959, %v2132
        %v2165 = vadd.f32 %v1961, %v2133
        %v2166 = vadd.f32 %v1963, %v2134
        %v2167 = vadd.f32 %v1967, %v2135
        %v2168 = vadd.f32 %v1969, %v2136
        %v2169 = vadd.f32 %v1971, %v2137
        %v2170 = vadd.f32 %v1973, %v2138
        %v2171 = vadd.f32 %v1977, %v2139
        %v2172 = vadd.f32 %v1979, %v2140
        %v2173 = vadd.f32 %v1981, %v2141
        %v2174 = vadd.f32 %v1983, %v2142
        %v2175 = vadd.f32 %v1987, %v2143
        %v2176 = vadd.f32 %v1989, %v2144
        %v2177 = vadd.f32 %v1991, %v2145
        %v2178 = vadd.f32 %v1993, %v2146
        %v2179 = vadd.f32 %v1997, %v2147
        %v2180 = vadd.f32 %v1999, %v2148
        %v2181 = vadd.f32 %v2001, %v2149
        %v2182 = vadd.f32 %v2003, %v2150
        %v2183 = vadd.f32 %v2007, %v2151
        %v2184 = vadd.f32 %v2009, %v2152
        %v2185 = vadd.f32 %v2011, %v2153
        %v2186 = vadd.f32 %v2013, %v2154
        %v2187 = vadd.f32 %v2017, %v2155
        %v2188 = vadd.f32 %v2019, %v2156
        %v2189 = vadd.f32 %v2021, %v2157
        %v2190 = vadd.f32 %v2023, %v2158
        %v2191 = vadd.f32 %v2027, %v2159
        %v2192 = vadd.f32 %v2029, %v2160
        %v2193 = vadd.f32 %v2031, %v2161
        %v2194 = vadd.f32 %v2033, %v2162
        %v2195 = vmul.f32 %v2163, 0.7978846
        %v2196 = vmul.f32 %v2164, 0.7978846
        %v2197 = vmul.f32 %v2165, 0.7978846
        %v2198 = vmul.f32 %v2166, 0.7978846
        %v2199 = vmul.f32 %v2167, 0.7978846
        %v2200 = vmul.f32 %v2168, 0.7978846
        %v2201 = vmul.f32 %v2169, 0.7978846
        %v2202 = vmul.f32 %v2170, 0.7978846
        %v2203 = vmul.f32 %v2171, 0.7978846
        %v2204 = vmul.f32 %v2172, 0.7978846
        %v2205 = vmul.f32 %v2173, 0.7978846
        %v2206 = vmul.f32 %v2174, 0.7978846
        %v2207 = vmul.f32 %v2175, 0.7978846
        %v2208 = vmul.f32 %v2176, 0.7978846
        %v2209 = vmul.f32 %v2177, 0.7978846
        %v2210 = vmul.f32 %v2178, 0.7978846
        %v2211 = vmul.f32 %v2179, 0.7978846
        %v2212 = vmul.f32 %v2180, 0.7978846
        %v2213 = vmul.f32 %v2181, 0.7978846
        %v2214 = vmul.f32 %v2182, 0.7978846
        %v2215 = vmul.f32 %v2183, 0.7978846
        %v2216 = vmul.f32 %v2184, 0.7978846
        %v2217 = vmul.f32 %v2185, 0.7978846
        %v2218 = vmul.f32 %v2186, 0.7978846
        %v2219 = vmul.f32 %v2187, 0.7978846
        %v2220 = vmul.f32 %v2188, 0.7978846
        %v2221 = vmul.f32 %v2189, 0.7978846
        %v2222 = vmul.f32 %v2190, 0.7978846
        %v2223 = vmul.f32 %v2191, 0.7978846
        %v2224 = vmul.f32 %v2192, 0.7978846
        %v2225 = vmul.f32 %v2193, 0.7978846
        %v2226 = vmul.f32 %v2194, 0.7978846
        %v2227 = vtanh.pop %v2195
        %v2228 = vtanh.pop %v2196
        %v2229 = vtanh.pop %v2197
        %v2230 = vtanh.pop %v2198
        %v2231 = vtanh.pop %v2199
        %v2232 = vtanh.pop %v2200
        %v2233 = vtanh.pop %v2201
        %v2234 = vtanh.pop %v2202
        %v2235 = vtanh.pop %v2203
        %v2236 = vtanh.pop %v2204
        %v2237 = vtanh.pop %v2205
        %v2238 = vtanh.pop %v2206
        %v2239 = vtanh.pop %v2207
        %v2240 = vtanh.pop %v2208
        %v2241 = vtanh.pop %v2209
        %v2242 = vtanh.pop %v2210
        %v2243 = vtanh.pop %v2211
        %v2244 = vtanh.pop %v2212
        %v2245 = vtanh.pop %v2213
        %v2246 = vtanh.pop %v2214
        %v2247 = vtanh.pop %v2215
        %v2248 = vtanh.pop %v2216
        %v2249 = vtanh.pop %v2217
        %v2250 = vtanh.pop %v2218
        %v2251 = vtanh.pop %v2219
        %v2252 = vtanh.pop %v2220
        %v2253 = vtanh.pop %v2221
        %v2254 = vtanh.pop %v2222
        %v2255 = vtanh.pop %v2223
        %v2256 = vtanh.pop %v2224
        %v2257 = vtanh.pop %v2225
        %v2258 = vtanh.pop %v2226
        %v2259 = vadd.f32 %v2227, 1.0
        %v2260 = vadd.f32 %v2228, 1.0
        %v2261 = vadd.f32 %v2229, 1.0
        %v2262 = vadd.f32 %v2230, 1.0
        %v2263 = vadd.f32 %v2231, 1.0
        %v2264 = vadd.f32 %v2232, 1.0
        %v2265 = vadd.f32 %v2233, 1.0
        %v2266 = vadd.f32 %v2234, 1.0
        %v2267 = vadd.f32 %v2235, 1.0
        %v2268 = vadd.f32 %v2236, 1.0
        %v2269 = vadd.f32 %v2237, 1.0
        %v2270 = vadd.f32 %v2238, 1.0
        %v2271 = vadd.f32 %v2239, 1.0
        %v2272 = vadd.f32 %v2240, 1.0
        %v2273 = vadd.f32 %v2241, 1.0
        %v2274 = vadd.f32 %v2242, 1.0
        %v2275 = vadd.f32 %v2243, 1.0
        %v2276 = vadd.f32 %v2244, 1.0
        %v2277 = vadd.f32 %v2245, 1.0
        %v2278 = vadd.f32 %v2246, 1.0
        %v2279 = vadd.f32 %v2247, 1.0
        %v2280 = vadd.f32 %v2248, 1.0
        %v2281 = vadd.f32 %v2249, 1.0
        %v2282 = vadd.f32 %v2250, 1.0
        %v2283 = vadd.f32 %v2251, 1.0
        %v2284 = vadd.f32 %v2252, 1.0
        %v2285 = vadd.f32 %v2253, 1.0
        %v2286 = vadd.f32 %v2254, 1.0
        %v2287 = vadd.f32 %v2255, 1.0
        %v2288 = vadd.f32 %v2256, 1.0
        %v2289 = vadd.f32 %v2257, 1.0
        %v2290 = vadd.f32 %v2258, 1.0
        %v2291 = vmul.f32 %v2035, %v2259
        %v2292 = vmul.f32 %v2036, %v2260
        %v2293 = vmul.f32 %v2037, %v2261
        %v2294 = vmul.f32 %v2038, %v2262
        %v2295 = vmul.f32 %v2039, %v2263
        %v2296 = vmul.f32 %v2040, %v2264
        %v2297 = vmul.f32 %v2041, %v2265
        %v2298 = vmul.f32 %v2042, %v2266
        %v2299 = vmul.f32 %v2043, %v2267
        %v2300 = vmul.f32 %v2044, %v2268
        %v2301 = vmul.f32 %v2045, %v2269
        %v2302 = vmul.f32 %v2046, %v2270
        %v2303 = vmul.f32 %v2047, %v2271
        %v2304 = vmul.f32 %v2048, %v2272
        %v2305 = vmul.f32 %v2049, %v2273
        %v2306 = vmul.f32 %v2050, %v2274
        %v2307 = vmul.f32 %v2051, %v2275
        %v2308 = vmul.f32 %v2052, %v2276
        %v2309 = vmul.f32 %v2053, %v2277
        %v2310 = vmul.f32 %v2054, %v2278
        %v2311 = vmul.f32 %v2055, %v2279
        %v2312 = vmul.f32 %v2056, %v2280
        %v2313 = vmul.f32 %v2057, %v2281
        %v2314 = vmul.f32 %v2058, %v2282
        %v2315 = vmul.f32 %v2059, %v2283
        %v2316 = vmul.f32 %v2060, %v2284
        %v2317 = vmul.f32 %v2061, %v2285
        %v2318 = vmul.f32 %v2062, %v2286
        %v2319 = vmul.f32 %v2063, %v2287
        %v2320 = vmul.f32 %v2064, %v2288
        %v2321 = vmul.f32 %v2065, %v2289
        %v2322 = vmul.f32 %v2066, %v2290
        %v2323 = vpack.c.bf16 %v2293, %v2291
        %v2324 = vpack.c.bf16 %v2294, %v2292
        %v2325 = vpack.c.bf16 %v2297, %v2295
        %v2326 = vpack.c.bf16 %v2298, %v2296
        %v2327 = vpack.c.bf16 %v2301, %v2299
        %v2328 = vpack.c.bf16 %v2302, %v2300
        %v2329 = vpack.c.bf16 %v2305, %v2303
        %v2330 = vpack.c.bf16 %v2306, %v2304
        %v2331 = vpack.c.bf16 %v2309, %v2307
        %v2332 = vpack.c.bf16 %v2310, %v2308
        %v2333 = vpack.c.bf16 %v2313, %v2311
        %v2334 = vpack.c.bf16 %v2314, %v2312
        %v2335 = vpack.c.bf16 %v2317, %v2315
        %v2336 = vpack.c.bf16 %v2318, %v2316
        %v2337 = vpack.c.bf16 %v2321, %v2319
        %v2338 = vpack.c.bf16 %v2322, %v2320
        %v2339 = vld [vmem:[#allocation9] sm:$0xf]
        %v2340 = vld [vmem:[#allocation9 + $0x4] sm:$0xf]
        %v2341 = vld [vmem:[#allocation9 + $0x8] sm:$0xf]
        %v2342 = vld [vmem:[#allocation9 + $0xc] sm:$0xf]
        %v2343 = vld [vmem:[#allocation9 + $0x10] sm:$0xf]
        %v2344 = vld [vmem:[#allocation9 + $0x14] sm:$0xf]
        %v2345 = vld [vmem:[#allocation9 + $0x18] sm:$0xf]
        %v2346 = vld [vmem:[#allocation9 + $0x1c] sm:$0xf]
        %v2347 = vld [vmem:[#allocation9 + $0x20] sm:$0xf]
        %v2348 = vld [vmem:[#allocation9 + $0x24] sm:$0xf]
        %v2349 = vld [vmem:[#allocation9 + $0x28] sm:$0xf]
        %v2350 = vld [vmem:[#allocation9 + $0x2c] sm:$0xf]
        %v2351 = vld [vmem:[#allocation9 + $0x30] sm:$0xf]
        %v2352 = vld [vmem:[#allocation9 + $0x34] sm:$0xf]
        %v2353 = vld [vmem:[#allocation9 + $0x38] sm:$0xf]
        %v2354 = vld [vmem:[#allocation9 + $0x3c] sm:$0xf]
        %v2355 = vld [vmem:[#allocation9 + $0x40] sm:$0xf]
        %v2356 = vld [vmem:[#allocation9 + $0x44] sm:$0xf]
        %v2357 = vld [vmem:[#allocation9 + $0x48] sm:$0xf]
        %v2358 = vld [vmem:[#allocation9 + $0x4c] sm:$0xf]
        %v2359 = vld [vmem:[#allocation9 + $0x50] sm:$0xf]
        %v2360 = vld [vmem:[#allocation9 + $0x54] sm:$0xf]
        %v2361 = vld [vmem:[#allocation9 + $0x58] sm:$0xf]
        %v2362 = vld [vmem:[#allocation9 + $0x5c] sm:$0xf]
        %v2363 = vld [vmem:[#allocation9 + $0x60] sm:$0xf]
        %v2364 = vld [vmem:[#allocation9 + $0x64] sm:$0xf]
        %v2365 = vld [vmem:[#allocation9 + $0x68] sm:$0xf]
        %v2366 = vld [vmem:[#allocation9 + $0x6c] sm:$0xf]
        %v2367 = vld [vmem:[#allocation9 + $0x70] sm:$0xf]
        %v2368 = vld [vmem:[#allocation9 + $0x74] sm:$0xf]
        %v2369 = vld [vmem:[#allocation9 + $0x78] sm:$0xf]
        %v2370 = vld [vmem:[#allocation9 + $0x7c] sm:$0xf]
        %v2371 = vld [vmem:[%s12] sm:$0x1]
        %v2373 = vlaneseq
        %v2374 = vshrl.u32 %v2373, 7
        %v2375 = vsub.s32 0, %v2374
        %v2376 = vrot.slane %v2371, %v2375
        %v2410 = vunpack.c.l.b16 %v2339
        %v2411 = vunpack.c.l.b16 %v2340
        %v2412 = vunpack.c.l.b16 %v2341
        %v2413 = vunpack.c.l.b16 %v2342
        %v2414 = vunpack.c.l.b16 %v2343
        %v2415 = vunpack.c.l.b16 %v2344
        %v2416 = vunpack.c.l.b16 %v2345
        %v2417 = vunpack.c.l.b16 %v2346
        %v2418 = vunpack.c.l.b16 %v2347
        %v2419 = vunpack.c.l.b16 %v2348
        %v2420 = vunpack.c.l.b16 %v2349
        %v2421 = vunpack.c.l.b16 %v2350
        %v2422 = vunpack.c.l.b16 %v2351
        %v2423 = vunpack.c.l.b16 %v2352
        %v2424 = vunpack.c.l.b16 %v2353
        %v2425 = vunpack.c.l.b16 %v2354
        %v2426 = vunpack.c.l.b16 %v2355
        %v2427 = vunpack.c.l.b16 %v2356
        %v2428 = vunpack.c.l.b16 %v2357
        %v2429 = vunpack.c.l.b16 %v2358
        %v2430 = vunpack.c.l.b16 %v2359
        %v2431 = vunpack.c.l.b16 %v2360
        %v2432 = vunpack.c.l.b16 %v2361
        %v2433 = vunpack.c.l.b16 %v2362
        %v2434 = vunpack.c.l.b16 %v2363
        %v2435 = vunpack.c.l.b16 %v2364
        %v2436 = vunpack.c.l.b16 %v2365
        %v2437 = vunpack.c.l.b16 %v2366
        %v2438 = vunpack.c.l.b16 %v2367
        %v2439 = vunpack.c.l.b16 %v2368
        %v2440 = vunpack.c.l.b16 %v2369
        %v2441 = vunpack.c.l.b16 %v2370
        %v2442 = vpack.c.b16 %v2411, %v2410
        %v2443 = vpack.c.b16 %v2413, %v2412
        %v2444 = vpack.c.b16 %v2415, %v2414
        %v2445 = vpack.c.b16 %v2417, %v2416
        %v2446 = vpack.c.b16 %v2419, %v2418
        %v2447 = vpack.c.b16 %v2421, %v2420
        %v2448 = vpack.c.b16 %v2423, %v2422
        %v2449 = vpack.c.b16 %v2425, %v2424
        %v2450 = vpack.c.b16 %v2427, %v2426
        %v2451 = vpack.c.b16 %v2429, %v2428
        %v2452 = vpack.c.b16 %v2431, %v2430
        %v2453 = vpack.c.b16 %v2433, %v2432
        %v2454 = vpack.c.b16 %v2435, %v2434
        %v2455 = vpack.c.b16 %v2437, %v2436
        %v2456 = vpack.c.b16 %v2439, %v2438
        %v2457 = vpack.c.b16 %v2441, %v2440
        %2474 = vmatprep.subr.bf16.mxu0 0
        %2475 = vmatpush1.bf16.msra.mxu0 %v2442
        %2476 = vmatprep.subr.bf16.mxu0 0
        %2477 = vmatpush1.bf16.msra.mxu0 %v2443
        %2478 = vmatprep.subr.bf16.mxu0 0
        %2479 = vmatpush1.bf16.msra.mxu0 %v2444
        %2480 = vmatprep.subr.bf16.mxu0 0
        %2481 = vmatpush1.bf16.msra.mxu0 %v2445
        %2482 = vmatprep.subr.bf16.mxu0 0
        %2483 = vmatpush1.bf16.msra.mxu0 %v2446
        %2484 = vmatprep.subr.bf16.mxu0 0
        %2485 = vmatpush1.bf16.msra.mxu0 %v2447
        %2486 = vmatprep.subr.bf16.mxu0 0
        %2487 = vmatpush1.bf16.msra.mxu0 %v2448
        %2488 = vmatprep.subr.bf16.mxu0 0
        %2489 = vmatpush1.bf16.msra.mxu0 %v2449
        %2490 = vmatprep.subr.bf16.mxu0 0
        %2491 = vmatpush1.bf16.msra.mxu0 %v2450
        %2492 = vmatprep.subr.bf16.mxu0 0
        %2493 = vmatpush1.bf16.msra.mxu0 %v2451
        %2494 = vmatprep.subr.bf16.mxu0 0
        %2495 = vmatpush1.bf16.msra.mxu0 %v2452
        %2496 = vmatprep.subr.bf16.mxu0 0
        %2497 = vmatpush1.bf16.msra.mxu0 %v2453
        %2498 = vmatprep.subr.bf16.mxu0 0
        %2499 = vmatpush1.bf16.msra.mxu0 %v2454
        %2500 = vmatprep.subr.bf16.mxu0 0
        %2501 = vmatpush1.bf16.msra.mxu0 %v2455
        %2502 = vmatprep.subr.bf16.mxu0 0
        %2503 = vmatpush1.bf16.msra.mxu0 %v2456
        %2504 = vmatprep.subr.bf16.mxu0 0
        %2505 = vmatpush1.bf16.msra.mxu0 %v2457
        %2506 = vmatprep.mubr.bf16.mxu0 %v2324
        %2507 = vmatmul.mubr.bf16.gmra.mrb[0].mxu0 %v2323
        %v2508 = vpop.f32.mrb[0].mxu0
        %v2509 = vadd.f32 %v2376, %v2508
        %v2510 = vpop.f32.mrb[0].mxu0
        %v2511 = vpop.f32.mrb[0].mxu0
        %v2512 = vadd.f32 %v2376, %v2511
        %v2513 = vpop.f32.mrb[0].mxu0
        %2514 = vmatprep.mubr.bf16.mxu0 %v2326
        %2515 = vmatmul.mubr.bf16.gmra.mrb[0].mxu0 %v2325
        %v2516 = vpop.f32.mrb[0].mxu0
        %v2517 = vadd.f32 %v2376, %v2516
        %v2518 = vpop.f32.mrb[0].mxu0
        %v2519 = vpop.f32.mrb[0].mxu0
        %v2520 = vadd.f32 %v2376, %v2519
        %v2521 = vpop.f32.mrb[0].mxu0
        %2522 = vmatprep.mubr.bf16.mxu0 %v2328
        %2523 = vmatmul.mubr.bf16.gmra.mrb[0].mxu0 %v2327
        %v2524 = vpop.f32.mrb[0].mxu0
        %v2525 = vadd.f32 %v2376, %v2524
        %v2526 = vpop.f32.mrb[0].mxu0
        %v2527 = vpop.f32.mrb[0].mxu0
        %v2528 = vadd.f32 %v2376, %v2527
        %v2529 = vpop.f32.mrb[0].mxu0
        %2530 = vmatprep.mubr.bf16.mxu0 %v2330
        %2531 = vmatmul.mubr.bf16.gmra.mrb[0].mxu0 %v2329
        %v2532 = vpop.f32.mrb[0].mxu0
        %v2533 = vadd.f32 %v2376, %v2532
        %v2534 = vpop.f32.mrb[0].mxu0
        %v2535 = vpop.f32.mrb[0].mxu0
        %v2536 = vadd.f32 %v2376, %v2535
        %v2537 = vpop.f32.mrb[0].mxu0
        %2538 = vmatprep.mubr.bf16.mxu0 %v2332
        %2539 = vmatmul.mubr.bf16.gmra.mrb[0].mxu0 %v2331
        %v2540 = vpop.f32.mrb[0].mxu0
        %v2541 = vadd.f32 %v2376, %v2540
        %v2542 = vpop.f32.mrb[0].mxu0
        %v2543 = vpop.f32.mrb[0].mxu0
        %v2544 = vadd.f32 %v2376, %v2543
        %v2545 = vpop.f32.mrb[0].mxu0
        %2546 = vmatprep.mubr.bf16.mxu0 %v2334
        %2547 = vmatmul.mubr.bf16.gmra.mrb[0].mxu0 %v2333
        %v2548 = vpop.f32.mrb[0].mxu0
        %v2549 = vadd.f32 %v2376, %v2548
        %v2550 = vpop.f32.mrb[0].mxu0
        %v2551 = vpop.f32.mrb[0].mxu0
        %v2552 = vadd.f32 %v2376, %v2551
        %v2553 = vpop.f32.mrb[0].mxu0
        %2554 = vmatprep.mubr.bf16.mxu0 %v2336
        %2555 = vmatmul.mubr.bf16.gmra.mrb[0].mxu0 %v2335
        %v2556 = vpop.f32.mrb[0].mxu0
        %v2557 = vadd.f32 %v2376, %v2556
        %v2558 = vpop.f32.mrb[0].mxu0
        %v2559 = vpop.f32.mrb[0].mxu0
        %v2560 = vadd.f32 %v2376, %v2559
        %v2561 = vpop.f32.mrb[0].mxu0
        %2562 = vmatprep.mubr.bf16.mxu0 %v2338
        %2563 = vmatmul.mubr.bf16.gmra.mrb[0].mxu0 %v2337
        %v2564 = vpop.f32.mrb[0].mxu0
        %v2565 = vadd.f32 %v2376, %v2564
        %v2566 = vpop.f32.mrb[0].mxu0
        %v2567 = vpop.f32.mrb[0].mxu0
        %v2568 = vadd.f32 %v2376, %v2567
        %v2569 = vpop.f32.mrb[0].mxu0
        %2570 = vdwg.mxu0
        %v2571 = vadd.f32 %v1790, %v2509
        %v2572 = vadd.f32 %v1791, %v2512
        %v2573 = vadd.f32 %v1792, %v2517
        %v2574 = vadd.f32 %v1793, %v2520
        %v2575 = vadd.f32 %v1794, %v2525
        %v2576 = vadd.f32 %v1795, %v2528
        %v2577 = vadd.f32 %v1796, %v2533
        %v2578 = vadd.f32 %v1797, %v2536
        %v2579 = vadd.f32 %v1798, %v2541
        %v2580 = vadd.f32 %v1799, %v2544
        %v2581 = vadd.f32 %v1800, %v2549
        %v2582 = vadd.f32 %v1801, %v2552
        %v2583 = vadd.f32 %v1802, %v2557
        %v2584 = vadd.f32 %v1803, %v2560
        %v2585 = vadd.f32 %v1804, %v2565
        %v2586 = vadd.f32 %v1805, %v2568
        %v2587 = vld [vmem:[%s13] sm:$0x1]
        %v2588 = vld [vmem:[%s14] sm:$0x1]
        %2589 = vadd.xlane.f32.xlu0 %v2571
        %v2590 = vpop.xlane.xlu0 %2589
        %2591 = vadd.xlane.f32.xlu0 %v2572
        %v2592 = vpop.xlane.xlu0 %2591
        %2593 = vadd.xlane.f32.xlu0 %v2573
        %v2594 = vpop.xlane.xlu0 %2593
        %2595 = vadd.xlane.f32.xlu0 %v2574
        %v2596 = vpop.xlane.xlu0 %2595
        %2597 = vadd.xlane.f32.xlu0 %v2575
        %v2598 = vpop.xlane.xlu0 %2597
        %2599 = vadd.xlane.f32.xlu0 %v2576
        %v2600 = vpop.xlane.xlu0 %2599
        %2601 = vadd.xlane.f32.xlu0 %v2577
        %v2602 = vpop.xlane.xlu0 %2601
        %2603 = vadd.xlane.f32.xlu0 %v2578
        %v2604 = vpop.xlane.xlu0 %2603
        %2605 = vadd.xlane.f32.xlu0 %v2579
        %v2606 = vpop.xlane.xlu0 %2605
        %2607 = vadd.xlane.f32.xlu0 %v2580
        %v2608 = vpop.xlane.xlu0 %2607
        %2609 = vadd.xlane.f32.xlu0 %v2581
        %v2610 = vpop.xlane.xlu0 %2609
        %2611 = vadd.xlane.f32.xlu0 %v2582
        %v2612 = vpop.xlane.xlu0 %2611
        %2613 = vadd.xlane.f32.xlu0 %v2583
        %v2614 = vpop.xlane.xlu0 %2613
        %2615 = vadd.xlane.f32.xlu0 %v2584
        %v2616 = vpop.xlane.xlu0 %2615
        %2617 = vadd.xlane.f32.xlu0 %v2585
        %v2618 = vpop.xlane.xlu0 %2617
        %2619 = vadd.xlane.f32.xlu0 %v2586
        %v2620 = vpop.xlane.xlu0 %2619
        %v2621 = vmul.f32 %v2590, %v1617
        %v2622 = vmul.f32 %v2592, %v1617
        %v2623 = vmul.f32 %v2594, %v1617
        %v2624 = vmul.f32 %v2596, %v1617
        %v2625 = vmul.f32 %v2598, %v1617
        %v2626 = vmul.f32 %v2600, %v1617
        %v2627 = vmul.f32 %v2602, %v1617
        %v2628 = vmul.f32 %v2604, %v1617
        %v2629 = vmul.f32 %v2606, %v1617
        %v2630 = vmul.f32 %v2608, %v1617
        %v2631 = vmul.f32 %v2610, %v1617
        %v2632 = vmul.f32 %v2612, %v1617
        %v2633 = vmul.f32 %v2614, %v1617
        %v2634 = vmul.f32 %v2616, %v1617
        %v2635 = vmul.f32 %v2618, %v1617
        %v2636 = vmul.f32 %v2620, %v1617
        %v2637 = vsub.f32 %v2571, %v2621
        %v2638 = vsub.f32 %v2572, %v2622
        %v2639 = vsub.f32 %v2573, %v2623
        %v2640 = vsub.f32 %v2574, %v2624
        %v2641 = vsub.f32 %v2575, %v2625
        %v2642 = vsub.f32 %v2576, %v2626
        %v2643 = vsub.f32 %v2577, %v2627
        %v2644 = vsub.f32 %v2578, %v2628
        %v2645 = vsub.f32 %v2579, %v2629
        %v2646 = vsub.f32 %v2580, %v2630
        %v2647 = vsub.f32 %v2581, %v2631
        %v2648 = vsub.f32 %v2582, %v2632
        %v2649 = vsub.f32 %v2583, %v2633
        %v2650 = vsub.f32 %v2584, %v2634
        %v2651 = vsub.f32 %v2585, %v2635
        %v2652 = vsub.f32 %v2586, %v2636
        %v2653 = vmul.f32 %v2637, %v2637
        %v2654 = vmul.f32 %v2638, %v2638
        %v2655 = vmul.f32 %v2639, %v2639
        %v2656 = vmul.f32 %v2640, %v2640
        %v2657 = vmul.f32 %v2641, %v2641
        %v2658 = vmul.f32 %v2642, %v2642
        %v2659 = vmul.f32 %v2643, %v2643
        %v2660 = vmul.f32 %v2644, %v2644
        %v2661 = vmul.f32 %v2645, %v2645
        %v2662 = vmul.f32 %v2646, %v2646
        %v2663 = vmul.f32 %v2647, %v2647
        %v2664 = vmul.f32 %v2648, %v2648
        %v2665 = vmul.f32 %v2649, %v2649
        %v2666 = vmul.f32 %v2650, %v2650
        %v2667 = vmul.f32 %v2651, %v2651
        %v2668 = vmul.f32 %v2652, %v2652
        %2669 = vadd.xlane.f32.xlu0 %v2653
        %v2670 = vpop.xlane.xlu0 %2669
        %2671 = vadd.xlane.f32.xlu0 %v2654
        %v2672 = vpop.xlane.xlu0 %2671
        %2673 = vadd.xlane.f32.xlu0 %v2655
        %v2674 = vpop.xlane.xlu0 %2673
        %2675 = vadd.xlane.f32.xlu0 %v2656
        %v2676 = vpop.xlane.xlu0 %2675
        %2677 = vadd.xlane.f32.xlu0 %v2657
        %v2678 = vpop.xlane.xlu0 %2677
        %2679 = vadd.xlane.f32.xlu0 %v2658
        %v2680 = vpop.xlane.xlu0 %2679
        %2681 = vadd.xlane.f32.xlu0 %v2659
        %v2682 = vpop.xlane.xlu0 %2681
        %2683 = vadd.xlane.f32.xlu0 %v2660
        %v2684 = vpop.xlane.xlu0 %2683
        %2685 = vadd.xlane.f32.xlu0 %v2661
        %v2686 = vpop.xlane.xlu0 %2685
        %2687 = vadd.xlane.f32.xlu0 %v2662
        %v2688 = vpop.xlane.xlu0 %2687
        %2689 = vadd.xlane.f32.xlu0 %v2663
        %v2690 = vpop.xlane.xlu0 %2689
        %2691 = vadd.xlane.f32.xlu0 %v2664
        %v2692 = vpop.xlane.xlu0 %2691
        %2693 = vadd.xlane.f32.xlu0 %v2665
        %v2694 = vpop.xlane.xlu0 %2693
        %2695 = vadd.xlane.f32.xlu0 %v2666
        %v2696 = vpop.xlane.xlu0 %2695
        %2697 = vadd.xlane.f32.xlu0 %v2667
        %v2698 = vpop.xlane.xlu0 %2697
        %2699 = vadd.xlane.f32.xlu0 %v2668
        %v2700 = vpop.xlane.xlu0 %2699
        %v2701 = vmul.f32 %v2670, %v1617
        %v2702 = vmul.f32 %v2672, %v1617
        %v2703 = vmul.f32 %v2674, %v1617
        %v2704 = vmul.f32 %v2676, %v1617
        %v2705 = vmul.f32 %v2678, %v1617
        %v2706 = vmul.f32 %v2680, %v1617
        %v2707 = vmul.f32 %v2682, %v1617
        %v2708 = vmul.f32 %v2684, %v1617
        %v2709 = vmul.f32 %v2686, %v1617
        %v2710 = vmul.f32 %v2688, %v1617
        %v2711 = vmul.f32 %v2690, %v1617
        %v2712 = vmul.f32 %v2692, %v1617
        %v2713 = vmul.f32 %v2694, %v1617
        %v2714 = vmul.f32 %v2696, %v1617
        %v2715 = vmul.f32 %v2698, %v1617
        %v2716 = vmul.f32 %v2700, %v1617
        %v2717 = vadd.f32 %v2701, 1e-12
        %v2718 = vadd.f32 %v2702, 1e-12
        %v2719 = vadd.f32 %v2703, 1e-12
        %v2720 = vadd.f32 %v2704, 1e-12
        %v2721 = vadd.f32 %v2705, 1e-12
        %v2722 = vadd.f32 %v2706, 1e-12
        %v2723 = vadd.f32 %v2707, 1e-12
        %v2724 = vadd.f32 %v2708, 1e-12
        %v2725 = vadd.f32 %v2709, 1e-12
        %v2726 = vadd.f32 %v2710, 1e-12
        %v2727 = vadd.f32 %v2711, 1e-12
        %v2728 = vadd.f32 %v2712, 1e-12
        %v2729 = vadd.f32 %v2713, 1e-12
        %v2730 = vadd.f32 %v2714, 1e-12
        %v2731 = vadd.f32 %v2715, 1e-12
        %v2732 = vadd.f32 %v2716, 1e-12
        %v2733 = vrsqrt.pop %v2717
        %v2734 = vrsqrt.pop %v2718
        %v2735 = vrsqrt.pop %v2719
        %v2736 = vrsqrt.pop %v2720
        %v2737 = vrsqrt.pop %v2721
        %v2738 = vrsqrt.pop %v2722
        %v2739 = vrsqrt.pop %v2723
        %v2740 = vrsqrt.pop %v2724
        %v2741 = vrsqrt.pop %v2725
        %v2742 = vrsqrt.pop %v2726
        %v2743 = vrsqrt.pop %v2727
        %v2744 = vrsqrt.pop %v2728
        %v2745 = vrsqrt.pop %v2729
        %v2746 = vrsqrt.pop %v2730
        %v2747 = vrsqrt.pop %v2731
        %v2748 = vrsqrt.pop %v2732
        %v2749 = vmul.f32 %v2637, %v2733
        %v2750 = vmul.f32 %v2638, %v2734
        %v2751 = vmul.f32 %v2639, %v2735
        %v2752 = vmul.f32 %v2640, %v2736
        %v2753 = vmul.f32 %v2641, %v2737
        %v2754 = vmul.f32 %v2642, %v2738
        %v2755 = vmul.f32 %v2643, %v2739
        %v2756 = vmul.f32 %v2644, %v2740
        %v2757 = vmul.f32 %v2645, %v2741
        %v2758 = vmul.f32 %v2646, %v2742
        %v2759 = vmul.f32 %v2647, %v2743
        %v2760 = vmul.f32 %v2648, %v2744
        %v2761 = vmul.f32 %v2649, %v2745
        %v2762 = vmul.f32 %v2650, %v2746
        %v2763 = vmul.f32 %v2651, %v2747
        %v2764 = vmul.f32 %v2652, %v2748
        %v2766 = vlaneseq
        %v2767 = vshrl.u32 %v2766, 7
        %v2768 = vsub.s32 0, %v2767
        %v2769 = vrot.slane %v2587, %v2768
        %v2771 = vmul.f32 %v2749, %v2769
        %v2772 = vmul.f32 %v2750, %v2769
        %v2773 = vmul.f32 %v2751, %v2769
        %v2774 = vmul.f32 %v2752, %v2769
        %v2775 = vmul.f32 %v2753, %v2769
        %v2776 = vmul.f32 %v2754, %v2769
        %v2777 = vmul.f32 %v2755, %v2769
        %v2778 = vmul.f32 %v2756, %v2769
        %v2779 = vmul.f32 %v2757, %v2769
        %v2780 = vmul.f32 %v2758, %v2769
        %v2781 = vmul.f32 %v2759, %v2769
        %v2782 = vmul.f32 %v2760, %v2769
        %v2783 = vmul.f32 %v2761, %v2769
        %v2784 = vmul.f32 %v2762, %v2769
        %v2785 = vmul.f32 %v2763, %v2769
        %v2786 = vmul.f32 %v2764, %v2769
        %v2788 = vlaneseq
        %v2789 = vshrl.u32 %v2788, 7
        %v2790 = vsub.s32 0, %v2789
        %v2791 = vrot.slane %v2588, %v2790
        %v2793 = vadd.f32 %v2771, %v2791
        %v2794 = vadd.f32 %v2772, %v2791
        %v2795 = vadd.f32 %v2773, %v2791
        %v2796 = vadd.f32 %v2774, %v2791
        %v2797 = vadd.f32 %v2775, %v2791
        %v2798 = vadd.f32 %v2776, %v2791
        %v2799 = vadd.f32 %v2777, %v2791
        %v2800 = vadd.f32 %v2778, %v2791
        %v2801 = vadd.f32 %v2779, %v2791
        %v2802 = vadd.f32 %v2780, %v2791
        %v2803 = vadd.f32 %v2781, %v2791
        %v2804 = vadd.f32 %v2782, %v2791
        %v2805 = vadd.f32 %v2783, %v2791
        %v2806 = vadd.f32 %v2784, %v2791
        %v2807 = vadd.f32 %v2785, %v2791
        %v2808 = vadd.f32 %v2786, %v2791
        %v2809 = vadd.f32 %v2793, 0.0
        %v2810 = vadd.f32 %v2794, 0.0
        %v2811 = vadd.f32 %v2795, 0.0
        %v2812 = vadd.f32 %v2796, 0.0
        %v2813 = vadd.f32 %v2797, 0.0
        %v2814 = vadd.f32 %v2798, 0.0
        %v2815 = vadd.f32 %v2799, 0.0
        %v2816 = vadd.f32 %v2800, 0.0
        %v2817 = vadd.f32 %v2801, 0.0
        %v2818 = vadd.f32 %v2802, 0.0
        %v2819 = vadd.f32 %v2803, 0.0
        %v2820 = vadd.f32 %v2804, 0.0
        %v2821 = vadd.f32 %v2805, 0.0
        %v2822 = vadd.f32 %v2806, 0.0
        %v2823 = vadd.f32 %v2807, 0.0
        %v2824 = vadd.f32 %v2808, 0.0
        %v2825 = vpack.c.bf16 %v2794, %v2793
        %v2826 = vpack.c.bf16 %v2796, %v2795
        %v2827 = vpack.c.bf16 %v2798, %v2797
        %v2828 = vpack.c.bf16 %v2800, %v2799
        %v2829 = vpack.c.bf16 %v2802, %v2801
        %v2830 = vpack.c.bf16 %v2804, %v2803
        %v2831 = vpack.c.bf16 %v2806, %v2805
        %v2832 = vpack.c.bf16 %v2808, %v2807
        %s2833 = scalar_lea.vmem [#allocation4], 192
        %v2834 = vld [vmem:[%s2833] sm:$0xff]
        %v2835 = vld [vmem:[%s2833 + $0x8] sm:$0xf]
        %v2836 = vld [vmem:[%s2833 + $0xc] sm:$0xff]
        %v2837 = vld [vmem:[%s2833 + $0x14] sm:$0xf]
        %v2838 = vld [vmem:[%s2833 + $0x18] sm:$0xff]
        %v2839 = vld [vmem:[%s2833 + $0x20] sm:$0xf]
        %v2840 = vld [vmem:[%s2833 + $0x24] sm:$0xff]
        %v2841 = vld [vmem:[%s2833 + $0x2c] sm:$0xf]
        %v2842 = vld [vmem:[%s2833 + $0x30] sm:$0xff]
        %v2843 = vld [vmem:[%s2833 + $0x38] sm:$0xf]
        %v2844 = vld [vmem:[%s2833 + $0x3c] sm:$0xff]
        %v2845 = vld [vmem:[%s2833 + $0x44] sm:$0xf]
        %v2846 = vld [vmem:[%s2833 + $0x48] sm:$0xff]
        %v2847 = vld [vmem:[%s2833 + $0x50] sm:$0xf]
        %v2848 = vld [vmem:[%s2833 + $0x54] sm:$0xff]
        %v2849 = vld [vmem:[%s2833 + $0x5c] sm:$0xf]
        %v2850 = vld [vmem:[%s2833 + $0x60] sm:$0xff]
        %v2851 = vld [vmem:[%s2833 + $0x68] sm:$0xf]
        %v2852 = vld [vmem:[%s2833 + $0x6c] sm:$0xff]
        %v2853 = vld [vmem:[%s2833 + $0x74] sm:$0xf]
        %v2854 = vld [vmem:[%s2833 + $0x78] sm:$0xff]
        %v2855 = vld [vmem:[%s2833 + $0x80] sm:$0xf]
        %v2856 = vld [vmem:[%s2833 + $0x84] sm:$0xff]
        %v2857 = vld [vmem:[%s2833 + $0x8c] sm:$0xf]
        %v2858 = vld [vmem:[%s2833 + $0x90] sm:$0xff]
        %v2859 = vld [vmem:[%s2833 + $0x98] sm:$0xf]
        %v2860 = vld [vmem:[%s2833 + $0x9c] sm:$0xff]
        %v2861 = vld [vmem:[%s2833 + $0xa4] sm:$0xf]
        %v2862 = vld [vmem:[%s2833 + $0xa8] sm:$0xff]
        %v2863 = vld [vmem:[%s2833 + $0xb0] sm:$0xf]
        %v2864 = vld [vmem:[%s2833 + $0xb4] sm:$0xff]
        %v2865 = vld [vmem:[%s2833 + $0xbc] sm:$0xf]
        %s2866 = scalar_lea.vmem %s4, 3
        %v2867 = vld [vmem:[%s2866] sm:$0x7]
        %v2869 = vlaneseq
        %v2870 = vshrl.u32 %v2869, 7
        %v2871 = vsub.s32 0, %v2870
        %v2872 = vrot.slane %v2867, %v2871
        %v2873 = vlaneseq
        %v2874 = vshrl.u32 %v2873, 7
        %v2875 = vsub.s32 1, %v2874
        %v2876 = vrot.slane %v2867, %v2875
        %v2877 = vlaneseq
        %v2878 = vshrl.u32 %v2877, 7
        %v2879 = vsub.s32 2, %v2878
        %v2880 = vrot.slane %v2867, %v2879
        %v2916 = vunpack.c.l.b16 %v2834
        %v2917 = vunpack.c.h.b16 %v2834
        %v2918 = vunpack.c.l.b16 %v2835
        %v2919 = vunpack.c.l.b16 %v2836
        %v2920 = vunpack.c.h.b16 %v2836
        %v2921 = vunpack.c.l.b16 %v2837
        %v2922 = vunpack.c.l.b16 %v2838
        %v2923 = vunpack.c.h.b16 %v2838
        %v2924 = vunpack.c.l.b16 %v2839
        %v2925 = vunpack.c.l.b16 %v2840
        %v2926 = vunpack.c.h.b16 %v2840
        %v2927 = vunpack.c.l.b16 %v2841
        %v2928 = vunpack.c.l.b16 %v2842
        %v2929 = vunpack.c.h.b16 %v2842
        %v2930 = vunpack.c.l.b16 %v2843
        %v2931 = vunpack.c.l.b16 %v2844
        %v2932 = vunpack.c.h.b16 %v2844
        %v2933 = vunpack.c.l.b16 %v2845
        %v2934 = vunpack.c.l.b16 %v2846
        %v2935 = vunpack.c.h.b16 %v2846
        %v2936 = vunpack.c.l.b16 %v2847
        %v2937 = vunpack.c.l.b16 %v2848
        %v2938 = vunpack.c.h.b16 %v2848
        %v2939 = vunpack.c.l.b16 %v2849
        %v2940 = vunpack.c.l.b16 %v2850
        %v2941 = vunpack.c.h.b16 %v2850
        %v2942 = vunpack.c.l.b16 %v2851
        %v2943 = vunpack.c.l.b16 %v2852
        %v2944 = vunpack.c.h.b16 %v2852
        %v2945 = vunpack.c.l.b16 %v2853
        %v2946 = vunpack.c.l.b16 %v2854
        %v2947 = vunpack.c.h.b16 %v2854
        %v2948 = vunpack.c.l.b16 %v2855
        %v2949 = vunpack.c.l.b16 %v2856
        %v2950 = vunpack.c.h.b16 %v2856
        %v2951 = vunpack.c.l.b16 %v2857
        %v2952 = vunpack.c.l.b16 %v2858
        %v2953 = vunpack.c.h.b16 %v2858
        %v2954 = vunpack.c.l.b16 %v2859
        %v2955 = vunpack.c.l.b16 %v2860
        %v2956 = vunpack.c.h.b16 %v2860
        %v2957 = vunpack.c.l.b16 %v2861
        %v2958 = vunpack.c.l.b16 %v2862
        %v2959 = vunpack.c.h.b16 %v2862
        %v2960 = vunpack.c.l.b16 %v2863
        %v2961 = vunpack.c.l.b16 %v2864
        %v2962 = vunpack.c.h.b16 %v2864
        %v2963 = vunpack.c.l.b16 %v2865
        %v2964 = vpack.c.b16 %v2919, %v2916
        %v2965 = vpack.c.b16 %v2920, %v2917
        %v2966 = vpack.c.b16 %v2921, %v2918
        %v2967 = vpack.c.b16 %v2925, %v2922
        %v2968 = vpack.c.b16 %v2926, %v2923
        %v2969 = vpack.c.b16 %v2927, %v2924
        %v2970 = vpack.c.b16 %v2931, %v2928
        %v2971 = vpack.c.b16 %v2932, %v2929
        %v2972 = vpack.c.b16 %v2933, %v2930
        %v2973 = vpack.c.b16 %v2937, %v2934
        %v2974 = vpack.c.b16 %v2938, %v2935
        %v2975 = vpack.c.b16 %v2939, %v2936
        %v2976 = vpack.c.b16 %v2943, %v2940
        %v2977 = vpack.c.b16 %v2944, %v2941
        %v2978 = vpack.c.b16 %v2945, %v2942
        %v2979 = vpack.c.b16 %v2949, %v2946
        %v2980 = vpack.c.b16 %v2950, %v2947
        %v2981 = vpack.c.b16 %v2951, %v2948
        %v2982 = vpack.c.b16 %v2955, %v2952
        %v2983 = vpack.c.b16 %v2956, %v2953
        %v2984 = vpack.c.b16 %v2957, %v2954
        %v2985 = vpack.c.b16 %v2961, %v2958
        %v2986 = vpack.c.b16 %v2962, %v2959
        %v2987 = vpack.c.b16 %v2963, %v2960
        %3012 = vmatprep.subr.bf16.mxu0 %v2965
        %3013 = vmatpush1.bf16.msra.mxu0 %v2964
        %3014 = vmatprep.subr.bf16.mxu0 %v2968
        %3015 = vmatpush1.bf16.msra.mxu0 %v2967
        %3016 = vmatprep.subr.bf16.mxu0 %v2971
        %3017 = vmatpush1.bf16.msra.mxu0 %v2970
        %3018 = vmatprep.subr.bf16.mxu0 %v2974
        %3019 = vmatpush1.bf16.msra.mxu0 %v2973
        %3020 = vmatprep.subr.bf16.mxu0 %v2977
        %3021 = vmatpush1.bf16.msra.mxu0 %v2976
        %3022 = vmatprep.subr.bf16.mxu0 %v2980
        %3023 = vmatpush1.bf16.msra.mxu0 %v2979
        %3024 = vmatprep.subr.bf16.mxu0 %v2983
        %3025 = vmatpush1.bf16.msra.mxu0 %v2982
        %3026 = vmatprep.subr.bf16.mxu0 %v2986
        %3027 = vmatpush1.bf16.msra.mxu0 %v2985
        %3028 = vmatprep.subr.bf16.mxu0 0
        %3029 = vmatpush1.bf16.msra.mxu0 0
        %3030 = vmatprep.subr.bf16.mxu0 0
        %3031 = vmatpush1.bf16.msra.mxu0 0
        %3032 = vmatprep.subr.bf16.mxu0 0
        %3033 = vmatpush1.bf16.msra.mxu0 0
        %3034 = vmatprep.subr.bf16.mxu0 0
        %3035 = vmatpush1.bf16.msra.mxu0 0
        %3036 = vmatprep.subr.bf16.mxu0 0
        %3037 = vmatpush1.bf16.msra.mxu0 0
        %3038 = vmatprep.subr.bf16.mxu0 0
        %3039 = vmatpush1.bf16.msra.mxu0 0
        %3040 = vmatprep.subr.bf16.mxu0 0
        %3041 = vmatpush1.bf16.msra.mxu0 0
        %3042 = vmatprep.subr.bf16.mxu0 0
        %3043 = vmatpush1.bf16.msra.mxu0 0
        %3044 = vmatprep.mubr.bf16.mxu0 0
        %3045 = vmatmul.mubr.bf16.gmra.mrb[0].mxu0 %v2825
        %v3046 = vpop.f32.mrb[0].mxu0
        %v3047 = vadd.f32 %v2872, %v3046
        %v3048 = vpop.f32.mrb[0].mxu0
        %v3049 = vadd.f32 %v2876, %v3048
        %v3050 = vpop.f32.mrb[0].mxu0
        %v3051 = vadd.f32 %v2872, %v3050
        %v3052 = vpop.f32.mrb[0].mxu0
        %v3053 = vadd.f32 %v2876, %v3052
        %3054 = vmatprep.mubr.bf16.mxu0 0
        %3055 = vmatmul.mubr.bf16.gmra.mrb[0].mxu0 %v2826
        %v3056 = vpop.f32.mrb[0].mxu0
        %v3057 = vadd.f32 %v2872, %v3056
        %v3058 = vpop.f32.mrb[0].mxu0
        %v3059 = vadd.f32 %v2876, %v3058
        %v3060 = vpop.f32.mrb[0].mxu0
        %v3061 = vadd.f32 %v2872, %v3060
        %v3062 = vpop.f32.mrb[0].mxu0
        %v3063 = vadd.f32 %v2876, %v3062
        %3064 = vmatprep.mubr.bf16.mxu0 0
        %3065 = vmatmul.mubr.bf16.gmra.mrb[0].mxu0 %v2827
        %v3066 = vpop.f32.mrb[0].mxu0
        %v3067 = vadd.f32 %v2872, %v3066
        %v3068 = vpop.f32.mrb[0].mxu0
        %v3069 = vadd.f32 %v2876, %v3068
        %v3070 = vpop.f32.mrb[0].mxu0
        %v3071 = vadd.f32 %v2872, %v3070
        %v3072 = vpop.f32.mrb[0].mxu0
        %v3073 = vadd.f32 %v2876, %v3072
        %3074 = vmatprep.mubr.bf16.mxu0 0
        %3075 = vmatmul.mubr.bf16.gmra.mrb[0].mxu0 %v2828
        %v3076 = vpop.f32.mrb[0].mxu0
        %v3077 = vadd.f32 %v2872, %v3076
        %v3078 = vpop.f32.mrb[0].mxu0
        %v3079 = vadd.f32 %v2876, %v3078
        %v3080 = vpop.f32.mrb[0].mxu0
        %v3081 = vadd.f32 %v2872, %v3080
        %v3082 = vpop.f32.mrb[0].mxu0
        %v3083 = vadd.f32 %v2876, %v3082
        %3084 = vmatprep.mubr.bf16.mxu0 0
        %3085 = vmatmul.mubr.bf16.gmra.mrb[0].mxu0 %v2829
        %v3086 = vpop.f32.mrb[0].mxu0
        %v3087 = vadd.f32 %v2872, %v3086
        %v3088 = vpop.f32.mrb[0].mxu0
        %v3089 = vadd.f32 %v2876, %v3088
        %v3090 = vpop.f32.mrb[0].mxu0
        %v3091 = vadd.f32 %v2872, %v3090
        %v3092 = vpop.f32.mrb[0].mxu0
        %v3093 = vadd.f32 %v2876, %v3092
        %3094 = vmatprep.mubr.bf16.mxu0 0
        %3095 = vmatmul.mubr.bf16.gmra.mrb[0].mxu0 %v2830
        %v3096 = vpop.f32.mrb[0].mxu0
        %v3097 = vadd.f32 %v2872, %v3096
        %v3098 = vpop.f32.mrb[0].mxu0
        %v3099 = vadd.f32 %v2876, %v3098
        %v3100 = vpop.f32.mrb[0].mxu0
        %v3101 = vadd.f32 %v2872, %v3100
        %v3102 = vpop.f32.mrb[0].mxu0
        %v3103 = vadd.f32 %v2876, %v3102
        %3104 = vmatprep.mubr.bf16.mxu0 0
        %3105 = vmatmul.mubr.bf16.gmra.mrb[0].mxu0 %v2831
        %v3106 = vpop.f32.mrb[0].mxu0
        %v3107 = vadd.f32 %v2872, %v3106
        %v3108 = vpop.f32.mrb[0].mxu0
        %v3109 = vadd.f32 %v2876, %v3108
        %v3110 = vpop.f32.mrb[0].mxu0
        %v3111 = vadd.f32 %v2872, %v3110
        %v3112 = vpop.f32.mrb[0].mxu0
        %v3113 = vadd.f32 %v2876, %v3112
        %3114 = vmatprep.mubr.bf16.mxu0 0
        %3115 = vmatmul.mubr.bf16.gmra.mrb[0].mxu0 %v2832
        %v3116 = vpop.f32.mrb[0].mxu0
        %v3117 = vadd.f32 %v2872, %v3116
        %v3118 = vpop.f32.mrb[0].mxu0
        %v3119 = vadd.f32 %v2876, %v3118
        %v3120 = vpop.f32.mrb[0].mxu0
        %v3121 = vadd.f32 %v2872, %v3120
        %v3122 = vpop.f32.mrb[0].mxu0
        %v3123 = vadd.f32 %v2876, %v3122
        %3124 = vdwg.mxu0
        %3125 = vmatprep.subr.bf16.mxu0 0
        %3126 = vmatpush1.bf16.msra.mxu0 %v2966
        %3127 = vmatprep.subr.bf16.mxu0 0
        %3128 = vmatpush1.bf16.msra.mxu0 %v2969
        %3129 = vmatprep.subr.bf16.mxu0 0
        %3130 = vmatpush1.bf16.msra.mxu0 %v2972
        %3131 = vmatprep.subr.bf16.mxu0 0
        %3132 = vmatpush1.bf16.msra.mxu0 %v2975
        %3133 = vmatprep.subr.bf16.mxu0 0
        %3134 = vmatpush1.bf16.msra.mxu0 %v2978
        %3135 = vmatprep.subr.bf16.mxu0 0
        %3136 = vmatpush1.bf16.msra.mxu0 %v2981
        %3137 = vmatprep.subr.bf16.mxu0 0
        %3138 = vmatpush1.bf16.msra.mxu0 %v2984
        %3139 = vmatprep.subr.bf16.mxu0 0
        %3140 = vmatpush1.bf16.msra.mxu0 %v2987
        %3141 = vmatprep.subr.bf16.mxu0 0
        %3142 = vmatpush1.bf16.msra.mxu0 0
        %3143 = vmatprep.subr.bf16.mxu0 0
        %3144 = vmatpush1.bf16.msra.mxu0 0
        %3145 = vmatprep.subr.bf16.mxu0 0
        %3146 = vmatpush1.bf16.msra.mxu0 0
        %3147 = vmatprep.subr.bf16.mxu0 0
        %3148 = vmatpush1.bf16.msra.mxu0 0
        %3149 = vmatprep.subr.bf16.mxu0 0
        %3150 = vmatpush1.bf16.msra.mxu0 0
        %3151 = vmatprep.subr.bf16.mxu0 0
        %3152 = vmatpush1.bf16.msra.mxu0 0
        %3153 = vmatprep.subr.bf16.mxu0 0
        %3154 = vmatpush1.bf16.msra.mxu0 0
        %3155 = vmatprep.subr.bf16.mxu0 0
        %3156 = vmatpush1.bf16.msra.mxu0 0
        %3157 = vmatprep.mubr.bf16.mxu0 0
        %3158 = vmatmul.mubr.bf16.gmra.mrb[0].mxu0 %v2825
        %v3159 = vpop.f32.mrb[0].mxu0
        %v3160 = vadd.f32 %v2880, %v3159
        %v3161 = vpop.f32.mrb[0].mxu0
        %v3162 = vpop.f32.mrb[0].mxu0
        %v3163 = vadd.f32 %v2880, %v3162
        %v3164 = vpop.f32.mrb[0].mxu0
        %3165 = vmatprep.mubr.bf16.mxu0 0
        %3166 = vmatmul.mubr.bf16.gmra.mrb[0].mxu0 %v2826
        %v3167 = vpop.f32.mrb[0].mxu0
        %v3168 = vadd.f32 %v2880, %v3167
        %v3169 = vpop.f32.mrb[0].mxu0
        %v3170 = vpop.f32.mrb[0].mxu0
        %v3171 = vadd.f32 %v2880, %v3170
        %v3172 = vpop.f32.mrb[0].mxu0
        %3173 = vmatprep.mubr.bf16.mxu0 0
        %3174 = vmatmul.mubr.bf16.gmra.mrb[0].mxu0 %v2827
        %v3175 = vpop.f32.mrb[0].mxu0
        %v3176 = vadd.f32 %v2880, %v3175
        %v3177 = vpop.f32.mrb[0].mxu0
        %v3178 = vpop.f32.mrb[0].mxu0
        %v3179 = vadd.f32 %v2880, %v3178
        %v3180 = vpop.f32.mrb[0].mxu0
        %3181 = vmatprep.mubr.bf16.mxu0 0
        %3182 = vmatmul.mubr.bf16.gmra.mrb[0].mxu0 %v2828
        %v3183 = vpop.f32.mrb[0].mxu0
        %v3184 = vadd.f32 %v2880, %v3183
        %v3185 = vpop.f32.mrb[0].mxu0
        %v3186 = vpop.f32.mrb[0].mxu0
        %v3187 = vadd.f32 %v2880, %v3186
        %v3188 = vpop.f32.mrb[0].mxu0
        %3189 = vmatprep.mubr.bf16.mxu0 0
        %3190 = vmatmul.mubr.bf16.gmra.mrb[0].mxu0 %v2829
        %v3191 = vpop.f32.mrb[0].mxu0
        %v3192 = vadd.f32 %v2880, %v3191
        %v3193 = vpop.f32.mrb[0].mxu0
        %v3194 = vpop.f32.mrb[0].mxu0
        %v3195 = vadd.f32 %v2880, %v3194
        %v3196 = vpop.f32.mrb[0].mxu0
        %3197 = vmatprep.mubr.bf16.mxu0 0
        %3198 = vmatmul.mubr.bf16.gmra.mrb[0].mxu0 %v2830
        %v3199 = vpop.f32.mrb[0].mxu0
        %v3200 = vadd.f32 %v2880, %v3199
        %v3201 = vpop.f32.mrb[0].mxu0
        %v3202 = vpop.f32.mrb[0].mxu0
        %v3203 = vadd.f32 %v2880, %v3202
        %v3204 = vpop.f32.mrb[0].mxu0
        %3205 = vmatprep.mubr.bf16.mxu0 0
        %3206 = vmatmul.mubr.bf16.gmra.mrb[0].mxu0 %v2831
        %v3207 = vpop.f32.mrb[0].mxu0
        %v3208 = vadd.f32 %v2880, %v3207
        %v3209 = vpop.f32.mrb[0].mxu0
        %v3210 = vpop.f32.mrb[0].mxu0
        %v3211 = vadd.f32 %v2880, %v3210
        %v3212 = vpop.f32.mrb[0].mxu0
        %3213 = vmatprep.mubr.bf16.mxu0 0
        %3214 = vmatmul.mubr.bf16.gmra.mrb[0].mxu0 %v2832
        %v3215 = vpop.f32.mrb[0].mxu0
        %v3216 = vadd.f32 %v2880, %v3215
        %v3217 = vpop.f32.mrb[0].mxu0
        %v3218 = vpop.f32.mrb[0].mxu0
        %v3219 = vadd.f32 %v2880, %v3218
        %v3220 = vpop.f32.mrb[0].mxu0
        %3221 = vdwg.mxu0
        %v3222 = vpack.c.bf16 %v3051, %v3047
        %v3223 = vpack.c.bf16 %v3061, %v3057
        %v3224 = vpack.c.bf16 %v3071, %v3067
        %v3225 = vpack.c.bf16 %v3081, %v3077
        %v3226 = vpack.c.bf16 %v3091, %v3087
        %v3227 = vpack.c.bf16 %v3101, %v3097
        %v3228 = vpack.c.bf16 %v3111, %v3107
        %v3229 = vpack.c.bf16 %v3121, %v3117
        %v3230 = vpack.c.bf16 %v3053, %v3049
        %v3231 = vpack.c.bf16 %v3063, %v3059
        %v3232 = vpack.c.bf16 %v3073, %v3069
        %v3233 = vpack.c.bf16 %v3083, %v3079
        %v3234 = vpack.c.bf16 %v3093, %v3089
        %v3235 = vpack.c.bf16 %v3103, %v3099
        %v3236 = vpack.c.bf16 %v3113, %v3109
        %v3237 = vpack.c.bf16 %v3123, %v3119
        %v3238 = vpack.c.bf16 %v3163, %v3160
        %v3239 = vpack.c.bf16 %v3171, %v3168
        %v3240 = vpack.c.bf16 %v3179, %v3176
        %v3241 = vpack.c.bf16 %v3187, %v3184
        %v3242 = vpack.c.bf16 %v3195, %v3192
        %v3243 = vpack.c.bf16 %v3203, %v3200
        %v3244 = vpack.c.bf16 %v3211, %v3208
        %v3245 = vpack.c.bf16 %v3219, %v3216
        %3246 = vmatprep.subr.bf16.mxu0 0
        %3247 = vmatpush1.bf16.xpose.msra.mxu0 %v3230
        %3248 = vmatprep.subr.bf16.mxu0 0
        %3249 = vmatpush1.bf16.xpose.msra.mxu0 %v3231
        %3250 = vmatprep.subr.bf16.mxu0 0
        %3251 = vmatpush1.bf16.xpose.msra.mxu0 %v3232
        %3252 = vmatprep.subr.bf16.mxu0 0
        %3253 = vmatpush1.bf16.xpose.msra.mxu0 %v3233
        %3254 = vmatprep.subr.bf16.mxu0 0
        %3255 = vmatpush1.bf16.xpose.msra.mxu0 %v3234
        %3256 = vmatprep.subr.bf16.mxu0 0
        %3257 = vmatpush1.bf16.xpose.msra.mxu0 %v3235
        %3258 = vmatprep.subr.bf16.mxu0 0
        %3259 = vmatpush1.bf16.xpose.msra.mxu0 %v3236
        %3260 = vmatprep.subr.bf16.mxu0 0
        %3261 = vmatpush1.bf16.xpose.msra.mxu0 %v3237
        %3262 = vmatprep.subr.bf16.mxu0 0
        %3263 = vmatpush1.bf16.xpose.msra.mxu0 0
        %3264 = vmatprep.subr.bf16.mxu0 0
        %3265 = vmatpush1.bf16.xpose.msra.mxu0 0
        %3266 = vmatprep.subr.bf16.mxu0 0
        %3267 = vmatpush1.bf16.xpose.msra.mxu0 0
        %3268 = vmatprep.subr.bf16.mxu0 0
        %3269 = vmatpush1.bf16.xpose.msra.mxu0 0
        %3270 = vmatprep.subr.bf16.mxu0 0
        %3271 = vmatpush1.bf16.xpose.msra.mxu0 0
        %3272 = vmatprep.subr.bf16.mxu0 0
        %3273 = vmatpush1.bf16.xpose.msra.mxu0 0
        %3274 = vmatprep.subr.bf16.mxu0 0
        %3275 = vmatpush1.bf16.xpose.msra.mxu0 0
        %3276 = vmatprep.subr.bf16.mxu0 0
        %3277 = vmatpush1.bf16.xpose.msra.mxu0 0
        %3278 = vmatprep.mubr.bf16.mxu0 0
        %3279 = vmatmul.mubr.bf16.gmra.mrb[0].mxu0 %v3222
        %v3280 = vpop.f32.mrb[0].mxu0
        %v3281 = vadd.f32 %v1043, %v3280
        %v3282 = vpop.f32.mrb[0].mxu0
        %v3283 = vpop.f32.mrb[0].mxu0
        %v3284 = vadd.f32 %v1043, %v3283
        %v3285 = vpop.f32.mrb[0].mxu0
        %3286 = vmatprep.mubr.bf16.mxu0 0
        %3287 = vmatmul.mubr.bf16.gmra.mrb[0].mxu0 %v3223
        %v3288 = vpop.f32.mrb[0].mxu0
        %v3289 = vadd.f32 %v1043, %v3288
        %v3290 = vpop.f32.mrb[0].mxu0
        %v3291 = vpop.f32.mrb[0].mxu0
        %v3292 = vadd.f32 %v1043, %v3291
        %v3293 = vpop.f32.mrb[0].mxu0
        %3294 = vmatprep.mubr.bf16.mxu0 0
        %3295 = vmatmul.mubr.bf16.gmra.mrb[0].mxu0 %v3224
        %v3296 = vpop.f32.mrb[0].mxu0
        %v3297 = vadd.f32 %v1043, %v3296
        %v3298 = vpop.f32.mrb[0].mxu0
        %v3299 = vpop.f32.mrb[0].mxu0
        %v3300 = vadd.f32 %v1043, %v3299
        %v3301 = vpop.f32.mrb[0].mxu0
        %3302 = vmatprep.mubr.bf16.mxu0 0
        %3303 = vmatmul.mubr.bf16.gmra.mrb[0].mxu0 %v3225
        %v3304 = vpop.f32.mrb[0].mxu0
        %v3305 = vadd.f32 %v1043, %v3304
        %v3306 = vpop.f32.mrb[0].mxu0
        %v3307 = vpop.f32.mrb[0].mxu0
        %v3308 = vadd.f32 %v1043, %v3307
        %v3309 = vpop.f32.mrb[0].mxu0
        %3310 = vmatprep.mubr.bf16.mxu0 0
        %3311 = vmatmul.mubr.bf16.gmra.mrb[0].mxu0 %v3226
        %v3312 = vpop.f32.mrb[0].mxu0
        %v3313 = vadd.f32 %v1043, %v3312
        %v3314 = vpop.f32.mrb[0].mxu0
        %v3315 = vpop.f32.mrb[0].mxu0
        %v3316 = vadd.f32 %v1043, %v3315
        %v3317 = vpop.f32.mrb[0].mxu0
        %3318 = vmatprep.mubr.bf16.mxu0 0
        %3319 = vmatmul.mubr.bf16.gmra.mrb[0].mxu0 %v3227
        %v3320 = vpop.f32.mrb[0].mxu0
        %v3321 = vadd.f32 %v1043, %v3320
        %v3322 = vpop.f32.mrb[0].mxu0
        %v3323 = vpop.f32.mrb[0].mxu0
        %v3324 = vadd.f32 %v1043, %v3323
        %v3325 = vpop.f32.mrb[0].mxu0
        %3326 = vmatprep.mubr.bf16.mxu0 0
        %3327 = vmatmul.mubr.bf16.gmra.mrb[0].mxu0 %v3228
        %v3328 = vpop.f32.mrb[0].mxu0
        %v3329 = vadd.f32 %v1043, %v3328
        %v3330 = vpop.f32.mrb[0].mxu0
        %v3331 = vpop.f32.mrb[0].mxu0
        %v3332 = vadd.f32 %v1043, %v3331
        %v3333 = vpop.f32.mrb[0].mxu0
        %3334 = vmatprep.mubr.bf16.mxu0 0
        %3335 = vmatmul.mubr.bf16.gmra.mrb[0].mxu0 %v3229
        %v3336 = vpop.f32.mrb[0].mxu0
        %v3337 = vadd.f32 %v1043, %v3336
        %v3338 = vpop.f32.mrb[0].mxu0
        %v3339 = vpop.f32.mrb[0].mxu0
        %v3340 = vadd.f32 %v1043, %v3339
        %v3341 = vpop.f32.mrb[0].mxu0
        %3342 = vdwg.mxu0
        %3343 = vmax.xlane.f32.xlu0 %v3281
        %v3344 = vpop.xlane.xlu0 %3343
        %3345 = vmax.xlane.f32.xlu0 %v3284
        %v3346 = vpop.xlane.xlu0 %3345
        %3347 = vmax.xlane.f32.xlu0 %v3289
        %v3348 = vpop.xlane.xlu0 %3347
        %3349 = vmax.xlane.f32.xlu0 %v3292
        %v3350 = vpop.xlane.xlu0 %3349
        %3351 = vmax.xlane.f32.xlu0 %v3297
        %v3352 = vpop.xlane.xlu0 %3351
        %3353 = vmax.xlane.f32.xlu0 %v3300
        %v3354 = vpop.xlane.xlu0 %3353
        %3355 = vmax.xlane.f32.xlu0 %v3305
        %v3356 = vpop.xlane.xlu0 %3355
        %3357 = vmax.xlane.f32.xlu0 %v3308
        %v3358 = vpop.xlane.xlu0 %3357
        %3359 = vmax.xlane.f32.xlu0 %v3313
        %v3360 = vpop.xlane.xlu0 %3359
        %3361 = vmax.xlane.f32.xlu0 %v3316
        %v3362 = vpop.xlane.xlu0 %3361
        %3363 = vmax.xlane.f32.xlu0 %v3321
        %v3364 = vpop.xlane.xlu0 %3363
        %3365 = vmax.xlane.f32.xlu0 %v3324
        %v3366 = vpop.xlane.xlu0 %3365
        %3367 = vmax.xlane.f32.xlu0 %v3329
        %v3368 = vpop.xlane.xlu0 %3367
        %3369 = vmax.xlane.f32.xlu0 %v3332
        %v3370 = vpop.xlane.xlu0 %3369
        %3371 = vmax.xlane.f32.xlu0 %v3337
        %v3372 = vpop.xlane.xlu0 %3371
        %3373 = vmax.xlane.f32.xlu0 %v3340
        %v3374 = vpop.xlane.xlu0 %3373
        %v3375 = vsub.f32 %v3281, %v3344
        %v3376 = vsub.f32 %v3284, %v3346
        %v3377 = vsub.f32 %v3289, %v3348
        %v3378 = vsub.f32 %v3292, %v3350
        %v3379 = vsub.f32 %v3297, %v3352
        %v3380 = vsub.f32 %v3300, %v3354
        %v3381 = vsub.f32 %v3305, %v3356
        %v3382 = vsub.f32 %v3308, %v3358
        %v3383 = vsub.f32 %v3313, %v3360
        %v3384 = vsub.f32 %v3316, %v3362
        %v3385 = vsub.f32 %v3321, %v3364
        %v3386 = vsub.f32 %v3324, %v3366
        %v3387 = vsub.f32 %v3329, %v3368
        %v3388 = vsub.f32 %v3332, %v3370
        %v3389 = vsub.f32 %v3337, %v3372
        %v3390 = vsub.f32 %v3340, %v3374
        %v3391 = vmul.f32 %v3375, 1.442695
        %v3392 = vpow.pop %v3391
        %v3393 = vmul.f32 %v3376, 1.442695
        %v3394 = vpow.pop %v3393
        %v3395 = vmul.f32 %v3377, 1.442695
        %v3396 = vpow.pop %v3395
        %v3397 = vmul.f32 %v3378, 1.442695
        %v3398 = vpow.pop %v3397
        %v3399 = vmul.f32 %v3379, 1.442695
        %v3400 = vpow.pop %v3399
        %v3401 = vmul.f32 %v3380, 1.442695
        %v3402 = vpow.pop %v3401
        %v3403 = vmul.f32 %v3381, 1.442695
        %v3404 = vpow.pop %v3403
        %v3405 = vmul.f32 %v3382, 1.442695
        %v3406 = vpow.pop %v3405
        %v3407 = vmul.f32 %v3383, 1.442695
        %v3408 = vpow.pop %v3407
        %v3409 = vmul.f32 %v3384, 1.442695
        %v3410 = vpow.pop %v3409
        %v3411 = vmul.f32 %v3385, 1.442695
        %v3412 = vpow.pop %v3411
        %v3413 = vmul.f32 %v3386, 1.442695
        %v3414 = vpow.pop %v3413
        %v3415 = vmul.f32 %v3387, 1.442695
        %v3416 = vpow.pop %v3415
        %v3417 = vmul.f32 %v3388, 1.442695
        %v3418 = vpow.pop %v3417
        %v3419 = vmul.f32 %v3389, 1.442695
        %v3420 = vpow.pop %v3419
        %v3421 = vmul.f32 %v3390, 1.442695
        %v3422 = vpow.pop %v3421
        %3423 = vadd.xlane.f32.xlu0 %v3392
        %v3424 = vpop.xlane.xlu0 %3423
        %3425 = vadd.xlane.f32.xlu0 %v3394
        %v3426 = vpop.xlane.xlu0 %3425
        %3427 = vadd.xlane.f32.xlu0 %v3396
        %v3428 = vpop.xlane.xlu0 %3427
        %3429 = vadd.xlane.f32.xlu0 %v3398
        %v3430 = vpop.xlane.xlu0 %3429
        %3431 = vadd.xlane.f32.xlu0 %v3400
        %v3432 = vpop.xlane.xlu0 %3431
        %3433 = vadd.xlane.f32.xlu0 %v3402
        %v3434 = vpop.xlane.xlu0 %3433
        %3435 = vadd.xlane.f32.xlu0 %v3404
        %v3436 = vpop.xlane.xlu0 %3435
        %3437 = vadd.xlane.f32.xlu0 %v3406
        %v3438 = vpop.xlane.xlu0 %3437
        %3439 = vadd.xlane.f32.xlu0 %v3408
        %v3440 = vpop.xlane.xlu0 %3439
        %3441 = vadd.xlane.f32.xlu0 %v3410
        %v3442 = vpop.xlane.xlu0 %3441
        %3443 = vadd.xlane.f32.xlu0 %v3412
        %v3444 = vpop.xlane.xlu0 %3443
        %3445 = vadd.xlane.f32.xlu0 %v3414
        %v3446 = vpop.xlane.xlu0 %3445
        %3447 = vadd.xlane.f32.xlu0 %v3416
        %v3448 = vpop.xlane.xlu0 %3447
        %3449 = vadd.xlane.f32.xlu0 %v3418
        %v3450 = vpop.xlane.xlu0 %3449
        %3451 = vadd.xlane.f32.xlu0 %v3420
        %v3452 = vpop.xlane.xlu0 %3451
        %3453 = vadd.xlane.f32.xlu0 %v3422
        %v3454 = vpop.xlane.xlu0 %3453
        %v3455 = vrcp.pop %v3424
        %v3456 = vrcp.pop %v3426
        %v3457 = vrcp.pop %v3428
        %v3458 = vrcp.pop %v3430
        %v3459 = vrcp.pop %v3432
        %v3460 = vrcp.pop %v3434
        %v3461 = vrcp.pop %v3436
        %v3462 = vrcp.pop %v3438
        %v3463 = vrcp.pop %v3440
        %v3464 = vrcp.pop %v3442
        %v3465 = vrcp.pop %v3444
        %v3466 = vrcp.pop %v3446
        %v3467 = vrcp.pop %v3448
        %v3468 = vrcp.pop %v3450
        %v3469 = vrcp.pop %v3452
        %v3470 = vrcp.pop %v3454
        %v3471 = vmul.f32 %v3392, %v3455
        %v3472 = vmul.f32 %v3394, %v3456
        %v3473 = vmul.f32 %v3396, %v3457
        %v3474 = vmul.f32 %v3398, %v3458
        %v3475 = vmul.f32 %v3400, %v3459
        %v3476 = vmul.f32 %v3402, %v3460
        %v3477 = vmul.f32 %v3404, %v3461
        %v3478 = vmul.f32 %v3406, %v3462
        %v3479 = vmul.f32 %v3408, %v3463
        %v3480 = vmul.f32 %v3410, %v3464
        %v3481 = vmul.f32 %v3412, %v3465
        %v3482 = vmul.f32 %v3414, %v3466
        %v3483 = vmul.f32 %v3416, %v3467
        %v3484 = vmul.f32 %v3418, %v3468
        %v3485 = vmul.f32 %v3420, %v3469
        %v3486 = vmul.f32 %v3422, %v3470
        %v3487 = vpack.c.bf16 %v3472, %v3471
        %v3488 = vpack.c.bf16 %v3474, %v3473
        %v3489 = vpack.c.bf16 %v3476, %v3475
        %v3490 = vpack.c.bf16 %v3478, %v3477
        %v3491 = vpack.c.bf16 %v3480, %v3479
        %v3492 = vpack.c.bf16 %v3482, %v3481
        %v3493 = vpack.c.bf16 %v3484, %v3483
        %v3494 = vpack.c.bf16 %v3486, %v3485
        %3495 = vmatprep.subr.bf16.mxu0 0
        %3496 = vmatpush1.bf16.msra.mxu0 %v3238
        %3497 = vmatprep.subr.bf16.mxu0 0
        %3498 = vmatpush1.bf16.msra.mxu0 %v3239
        %3499 = vmatprep.subr.bf16.mxu0 0
        %3500 = vmatpush1.bf16.msra.mxu0 %v3240
        %3501 = vmatprep.subr.bf16.mxu0 0
        %3502 = vmatpush1.bf16.msra.mxu0 %v3241
        %3503 = vmatprep.subr.bf16.mxu0 0
        %3504 = vmatpush1.bf16.msra.mxu0 %v3242
        %3505 = vmatprep.subr.bf16.mxu0 0
        %3506 = vmatpush1.bf16.msra.mxu0 %v3243
        %3507 = vmatprep.subr.bf16.mxu0 0
        %3508 = vmatpush1.bf16.msra.mxu0 %v3244
        %3509 = vmatprep.subr.bf16.mxu0 0
        %3510 = vmatpush1.bf16.msra.mxu0 %v3245
        %3511 = vmatprep.subr.bf16.mxu0 0
        %3512 = vmatpush1.bf16.msra.mxu0 0
        %3513 = vmatprep.subr.bf16.mxu0 0
        %3514 = vmatpush1.bf16.msra.mxu0 0
        %3515 = vmatprep.subr.bf16.mxu0 0
        %3516 = vmatpush1.bf16.msra.mxu0 0
        %3517 = vmatprep.subr.bf16.mxu0 0
        %3518 = vmatpush1.bf16.msra.mxu0 0
        %3519 = vmatprep.subr.bf16.mxu0 0
        %3520 = vmatpush1.bf16.msra.mxu0 0
        %3521 = vmatprep.subr.bf16.mxu0 0
        %3522 = vmatpush1.bf16.msra.mxu0 0
        %3523 = vmatprep.subr.bf16.mxu0 0
        %3524 = vmatpush1.bf16.msra.mxu0 0
        %3525 = vmatprep.subr.bf16.mxu0 0
        %3526 = vmatpush1.bf16.msra.mxu0 0
        %3527 = vmatprep.mubr.bf16.mxu0 0
        %3528 = vmatmul.mubr.bf16.gmra.mrb[0].mxu0 %v3487
        %v3529 = vpop.f32.mrb[0].mxu0
        %v3530 = vadd.f32 0.0, %v3529
        %v3531 = vpop.f32.mrb[0].mxu0
        %v3532 = vpop.f32.mrb[0].mxu0
        %v3533 = vadd.f32 0.0, %v3532
        %v3534 = vpop.f32.mrb[0].mxu0
        %3535 = vmatprep.mubr.bf16.mxu0 0
        %3536 = vmatmul.mubr.bf16.gmra.mrb[0].mxu0 %v3488
        %v3537 = vpop.f32.mrb[0].mxu0
        %v3538 = vadd.f32 0.0, %v3537
        %v3539 = vpop.f32.mrb[0].mxu0
        %v3540 = vpop.f32.mrb[0].mxu0
        %v3541 = vadd.f32 0.0, %v3540
        %v3542 = vpop.f32.mrb[0].mxu0
        %3543 = vmatprep.mubr.bf16.mxu0 0
        %3544 = vmatmul.mubr.bf16.gmra.mrb[0].mxu0 %v3489
        %v3545 = vpop.f32.mrb[0].mxu0
        %v3546 = vadd.f32 0.0, %v3545
        %v3547 = vpop.f32.mrb[0].mxu0
        %v3548 = vpop.f32.mrb[0].mxu0
        %v3549 = vadd.f32 0.0, %v3548
        %v3550 = vpop.f32.mrb[0].mxu0
        %3551 = vmatprep.mubr.bf16.mxu0 0
        %3552 = vmatmul.mubr.bf16.gmra.mrb[0].mxu0 %v3490
        %v3553 = vpop.f32.mrb[0].mxu0
        %v3554 = vadd.f32 0.0, %v3553
        %v3555 = vpop.f32.mrb[0].mxu0
        %v3556 = vpop.f32.mrb[0].mxu0
        %v3557 = vadd.f32 0.0, %v3556
        %v3558 = vpop.f32.mrb[0].mxu0
        %3559 = vmatprep.mubr.bf16.mxu0 0
        %3560 = vmatmul.mubr.bf16.gmra.mrb[0].mxu0 %v3491
        %v3561 = vpop.f32.mrb[0].mxu0
        %v3562 = vadd.f32 0.0, %v3561
        %v3563 = vpop.f32.mrb[0].mxu0
        %v3564 = vpop.f32.mrb[0].mxu0
        %v3565 = vadd.f32 0.0, %v3564
        %v3566 = vpop.f32.mrb[0].mxu0
        %3567 = vmatprep.mubr.bf16.mxu0 0
        %3568 = vmatmul.mubr.bf16.gmra.mrb[0].mxu0 %v3492
        %v3569 = vpop.f32.mrb[0].mxu0
        %v3570 = vadd.f32 0.0, %v3569
        %v3571 = vpop.f32.mrb[0].mxu0
        %v3572 = vpop.f32.mrb[0].mxu0
        %v3573 = vadd.f32 0.0, %v3572
        %v3574 = vpop.f32.mrb[0].mxu0
        %3575 = vmatprep.mubr.bf16.mxu0 0
        %3576 = vmatmul.mubr.bf16.gmra.mrb[0].mxu0 %v3493
        %v3577 = vpop.f32.mrb[0].mxu0
        %v3578 = vadd.f32 0.0, %v3577
        %v3579 = vpop.f32.mrb[0].mxu0
        %v3580 = vpop.f32.mrb[0].mxu0
        %v3581 = vadd.f32 0.0, %v3580
        %v3582 = vpop.f32.mrb[0].mxu0
        %3583 = vmatprep.mubr.bf16.mxu0 0
        %3584 = vmatmul.mubr.bf16.gmra.mrb[0].mxu0 %v3494
        %v3585 = vpop.f32.mrb[0].mxu0
        %v3586 = vadd.f32 0.0, %v3585
        %v3587 = vpop.f32.mrb[0].mxu0
        %v3588 = vpop.f32.mrb[0].mxu0
        %v3589 = vadd.f32 0.0, %v3588
        %v3590 = vpop.f32.mrb[0].mxu0
        %3591 = vdwg.mxu0
        %v3592 = vpack.c.bf16 %v3533, %v3530
        %v3593 = vpack.c.bf16 %v3541, %v3538
        %v3594 = vpack.c.bf16 %v3549, %v3546
        %v3595 = vpack.c.bf16 %v3557, %v3554
        %v3596 = vpack.c.bf16 %v3565, %v3562
        %v3597 = vpack.c.bf16 %v3573, %v3570
        %v3598 = vpack.c.bf16 %v3581, %v3578
        %v3599 = vpack.c.bf16 %v3589, %v3586
        %s3600 = scalar_lea.vmem [#allocation6], 64
        %v3601 = vld [vmem:[%s3600] sm:$0xf]
        %v3602 = vld [vmem:[%s3600 + $0x4] sm:$0xf]
        %v3603 = vld [vmem:[%s3600 + $0x8] sm:$0xf]
        %v3604 = vld [vmem:[%s3600 + $0xc] sm:$0xf]
        %v3605 = vld [vmem:[%s3600 + $0x10] sm:$0xf]
        %v3606 = vld [vmem:[%s3600 + $0x14] sm:$0xf]
        %v3607 = vld [vmem:[%s3600 + $0x18] sm:$0xf]
        %v3608 = vld [vmem:[%s3600 + $0x1c] sm:$0xf]
        %v3609 = vld [vmem:[%s3600 + $0x20] sm:$0xf]
        %v3610 = vld [vmem:[%s3600 + $0x24] sm:$0xf]
        %v3611 = vld [vmem:[%s3600 + $0x28] sm:$0xf]
        %v3612 = vld [vmem:[%s3600 + $0x2c] sm:$0xf]
        %v3613 = vld [vmem:[%s3600 + $0x30] sm:$0xf]
        %v3614 = vld [vmem:[%s3600 + $0x34] sm:$0xf]
        %v3615 = vld [vmem:[%s3600 + $0x38] sm:$0xf]
        %v3616 = vld [vmem:[%s3600 + $0x3c] sm:$0xf]
        %s3617 = scalar_lea.vmem %s6, 1
        %v3618 = vld [vmem:[%s3617] sm:$0x1]
        %v3620 = vlaneseq
        %v3621 = vshrl.u32 %v3620, 7
        %v3622 = vsub.s32 0, %v3621
        %v3623 = vrot.slane %v3618, %v3622
        %v3641 = vunpack.c.l.b16 %v3601
        %v3642 = vunpack.c.l.b16 %v3602
        %v3643 = vunpack.c.l.b16 %v3603
        %v3644 = vunpack.c.l.b16 %v3604
        %v3645 = vunpack.c.l.b16 %v3605
        %v3646 = vunpack.c.l.b16 %v3606
        %v3647 = vunpack.c.l.b16 %v3607
        %v3648 = vunpack.c.l.b16 %v3608
        %v3649 = vunpack.c.l.b16 %v3609
        %v3650 = vunpack.c.l.b16 %v3610
        %v3651 = vunpack.c.l.b16 %v3611
        %v3652 = vunpack.c.l.b16 %v3612
        %v3653 = vunpack.c.l.b16 %v3613
        %v3654 = vunpack.c.l.b16 %v3614
        %v3655 = vunpack.c.l.b16 %v3615
        %v3656 = vunpack.c.l.b16 %v3616
        %v3657 = vpack.c.b16 %v3642, %v3641
        %v3658 = vpack.c.b16 %v3644, %v3643
        %v3659 = vpack.c.b16 %v3646, %v3645
        %v3660 = vpack.c.b16 %v3648, %v3647
        %v3661 = vpack.c.b16 %v3650, %v3649
        %v3662 = vpack.c.b16 %v3652, %v3651
        %v3663 = vpack.c.b16 %v3654, %v3653
        %v3664 = vpack.c.b16 %v3656, %v3655
        %3673 = vmatprep.subr.bf16.mxu0 0
        %3674 = vmatpush1.bf16.msra.mxu0 %v3657
        %3675 = vmatprep.subr.bf16.mxu0 0
        %3676 = vmatpush1.bf16.msra.mxu0 %v3658
        %3677 = vmatprep.subr.bf16.mxu0 0
        %3678 = vmatpush1.bf16.msra.mxu0 %v3659
        %3679 = vmatprep.subr.bf16.mxu0 0
        %3680 = vmatpush1.bf16.msra.mxu0 %v3660
        %3681 = vmatprep.subr.bf16.mxu0 0
        %3682 = vmatpush1.bf16.msra.mxu0 %v3661
        %3683 = vmatprep.subr.bf16.mxu0 0
        %3684 = vmatpush1.bf16.msra.mxu0 %v3662
        %3685 = vmatprep.subr.bf16.mxu0 0
        %3686 = vmatpush1.bf16.msra.mxu0 %v3663
        %3687 = vmatprep.subr.bf16.mxu0 0
        %3688 = vmatpush1.bf16.msra.mxu0 %v3664
        %3689 = vmatprep.subr.bf16.mxu0 0
        %3690 = vmatpush1.bf16.msra.mxu0 0
        %3691 = vmatprep.subr.bf16.mxu0 0
        %3692 = vmatpush1.bf16.msra.mxu0 0
        %3693 = vmatprep.subr.bf16.mxu0 0
        %3694 = vmatpush1.bf16.msra.mxu0 0
        %3695 = vmatprep.subr.bf16.mxu0 0
        %3696 = vmatpush1.bf16.msra.mxu0 0
        %3697 = vmatprep.subr.bf16.mxu0 0
        %3698 = vmatpush1.bf16.msra.mxu0 0
        %3699 = vmatprep.subr.bf16.mxu0 0
        %3700 = vmatpush1.bf16.msra.mxu0 0
        %3701 = vmatprep.subr.bf16.mxu0 0
        %3702 = vmatpush1.bf16.msra.mxu0 0
        %3703 = vmatprep.subr.bf16.mxu0 0
        %3704 = vmatpush1.bf16.msra.mxu0 0
        %3705 = vmatprep.mubr.bf16.mxu0 0
        %3706 = vmatmul.mubr.bf16.gmra.mrb[0].mxu0 %v3592
        %v3707 = vpop.f32.mrb[0].mxu0
        %v3708 = vadd.f32 %v3623, %v3707
        %v3709 = vpop.f32.mrb[0].mxu0
        %v3710 = vpop.f32.mrb[0].mxu0
        %v3711 = vadd.f32 %v3623, %v3710
        %v3712 = vpop.f32.mrb[0].mxu0
        %3713 = vmatprep.mubr.bf16.mxu0 0
        %3714 = vmatmul.mubr.bf16.gmra.mrb[0].mxu0 %v3593
        %v3715 = vpop.f32.mrb[0].mxu0
        %v3716 = vadd.f32 %v3623, %v3715
        %v3717 = vpop.f32.mrb[0].mxu0
        %v3718 = vpop.f32.mrb[0].mxu0
        %v3719 = vadd.f32 %v3623, %v3718
        %v3720 = vpop.f32.mrb[0].mxu0
        %3721 = vmatprep.mubr.bf16.mxu0 0
        %3722 = vmatmul.mubr.bf16.gmra.mrb[0].mxu0 %v3594
        %v3723 = vpop.f32.mrb[0].mxu0
        %v3724 = vadd.f32 %v3623, %v3723
        %v3725 = vpop.f32.mrb[0].mxu0
        %v3726 = vpop.f32.mrb[0].mxu0
        %v3727 = vadd.f32 %v3623, %v3726
        %v3728 = vpop.f32.mrb[0].mxu0
        %3729 = vmatprep.mubr.bf16.mxu0 0
        %3730 = vmatmul.mubr.bf16.gmra.mrb[0].mxu0 %v3595
        %v3731 = vpop.f32.mrb[0].mxu0
        %v3732 = vadd.f32 %v3623, %v3731
        %v3733 = vpop.f32.mrb[0].mxu0
        %v3734 = vpop.f32.mrb[0].mxu0
        %v3735 = vadd.f32 %v3623, %v3734
        %v3736 = vpop.f32.mrb[0].mxu0
        %3737 = vmatprep.mubr.bf16.mxu0 0
        %3738 = vmatmul.mubr.bf16.gmra.mrb[0].mxu0 %v3596
        %v3739 = vpop.f32.mrb[0].mxu0
        %v3740 = vadd.f32 %v3623, %v3739
        %v3741 = vpop.f32.mrb[0].mxu0
        %v3742 = vpop.f32.mrb[0].mxu0
        %v3743 = vadd.f32 %v3623, %v3742
        %v3744 = vpop.f32.mrb[0].mxu0
        %3745 = vmatprep.mubr.bf16.mxu0 0
        %3746 = vmatmul.mubr.bf16.gmra.mrb[0].mxu0 %v3597
        %v3747 = vpop.f32.mrb[0].mxu0
        %v3748 = vadd.f32 %v3623, %v3747
        %v3749 = vpop.f32.mrb[0].mxu0
        %v3750 = vpop.f32.mrb[0].mxu0
        %v3751 = vadd.f32 %v3623, %v3750
        %v3752 = vpop.f32.mrb[0].mxu0
        %3753 = vmatprep.mubr.bf16.mxu0 0
        %3754 = vmatmul.mubr.bf16.gmra.mrb[0].mxu0 %v3598
        %v3755 = vpop.f32.mrb[0].mxu0
        %v3756 = vadd.f32 %v3623, %v3755
        %v3757 = vpop.f32.mrb[0].mxu0
        %v3758 = vpop.f32.mrb[0].mxu0
        %v3759 = vadd.f32 %v3623, %v3758
        %v3760 = vpop.f32.mrb[0].mxu0
        %3761 = vmatprep.mubr.bf16.mxu0 0
        %3762 = vmatmul.mubr.bf16.gmra.mrb[0].mxu0 %v3599
        %v3763 = vpop.f32.mrb[0].mxu0
        %v3764 = vadd.f32 %v3623, %v3763
        %v3765 = vpop.f32.mrb[0].mxu0
        %v3766 = vpop.f32.mrb[0].mxu0
        %v3767 = vadd.f32 %v3623, %v3766
        %v3768 = vpop.f32.mrb[0].mxu0
        %3769 = vdwg.mxu0
        %v3770 = vadd.f32 %v2793, %v3708
        %v3771 = vadd.f32 %v2794, %v3711
        %v3772 = vadd.f32 %v2795, %v3716
        %v3773 = vadd.f32 %v2796, %v3719
        %v3774 = vadd.f32 %v2797, %v3724
        %v3775 = vadd.f32 %v2798, %v3727
        %v3776 = vadd.f32 %v2799, %v3732
        %v3777 = vadd.f32 %v2800, %v3735
        %v3778 = vadd.f32 %v2801, %v3740
        %v3779 = vadd.f32 %v2802, %v3743
        %v3780 = vadd.f32 %v2803, %v3748
        %v3781 = vadd.f32 %v2804, %v3751
        %v3782 = vadd.f32 %v2805, %v3756
        %v3783 = vadd.f32 %v2806, %v3759
        %v3784 = vadd.f32 %v2807, %v3764
        %v3785 = vadd.f32 %v2808, %v3767
        %s3786 = scalar_lea.vmem %s7, 1
        %v3787 = vld [vmem:[%s3786] sm:$0x1]
        %s3788 = scalar_lea.vmem %s8, 1
        %v3789 = vld [vmem:[%s3788] sm:$0x1]
        %3790 = vadd.xlane.f32.xlu0 %v3770
        %v3791 = vpop.xlane.xlu0 %3790
        %3792 = vadd.xlane.f32.xlu0 %v3771
        %v3793 = vpop.xlane.xlu0 %3792
        %3794 = vadd.xlane.f32.xlu0 %v3772
        %v3795 = vpop.xlane.xlu0 %3794
        %3796 = vadd.xlane.f32.xlu0 %v3773
        %v3797 = vpop.xlane.xlu0 %3796
        %3798 = vadd.xlane.f32.xlu0 %v3774
        %v3799 = vpop.xlane.xlu0 %3798
        %3800 = vadd.xlane.f32.xlu0 %v3775
        %v3801 = vpop.xlane.xlu0 %3800
        %3802 = vadd.xlane.f32.xlu0 %v3776
        %v3803 = vpop.xlane.xlu0 %3802
        %3804 = vadd.xlane.f32.xlu0 %v3777
        %v3805 = vpop.xlane.xlu0 %3804
        %3806 = vadd.xlane.f32.xlu0 %v3778
        %v3807 = vpop.xlane.xlu0 %3806
        %3808 = vadd.xlane.f32.xlu0 %v3779
        %v3809 = vpop.xlane.xlu0 %3808
        %3810 = vadd.xlane.f32.xlu0 %v3780
        %v3811 = vpop.xlane.xlu0 %3810
        %3812 = vadd.xlane.f32.xlu0 %v3781
        %v3813 = vpop.xlane.xlu0 %3812
        %3814 = vadd.xlane.f32.xlu0 %v3782
        %v3815 = vpop.xlane.xlu0 %3814
        %3816 = vadd.xlane.f32.xlu0 %v3783
        %v3817 = vpop.xlane.xlu0 %3816
        %3818 = vadd.xlane.f32.xlu0 %v3784
        %v3819 = vpop.xlane.xlu0 %3818
        %3820 = vadd.xlane.f32.xlu0 %v3785
        %v3821 = vpop.xlane.xlu0 %3820
        %v3822 = vmul.f32 %v3791, %v1617
        %v3823 = vmul.f32 %v3793, %v1617
        %v3824 = vmul.f32 %v3795, %v1617
        %v3825 = vmul.f32 %v3797, %v1617
        %v3826 = vmul.f32 %v3799, %v1617
        %v3827 = vmul.f32 %v3801, %v1617
        %v3828 = vmul.f32 %v3803, %v1617
        %v3829 = vmul.f32 %v3805, %v1617
        %v3830 = vmul.f32 %v3807, %v1617
        %v3831 = vmul.f32 %v3809, %v1617
        %v3832 = vmul.f32 %v3811, %v1617
        %v3833 = vmul.f32 %v3813, %v1617
        %v3834 = vmul.f32 %v3815, %v1617
        %v3835 = vmul.f32 %v3817, %v1617
        %v3836 = vmul.f32 %v3819, %v1617
        %v3837 = vmul.f32 %v3821, %v1617
        %v3838 = vsub.f32 %v3770, %v3822
        %v3839 = vsub.f32 %v3771, %v3823
        %v3840 = vsub.f32 %v3772, %v3824
        %v3841 = vsub.f32 %v3773, %v3825
        %v3842 = vsub.f32 %v3774, %v3826
        %v3843 = vsub.f32 %v3775, %v3827
        %v3844 = vsub.f32 %v3776, %v3828
        %v3845 = vsub.f32 %v3777, %v3829
        %v3846 = vsub.f32 %v3778, %v3830
        %v3847 = vsub.f32 %v3779, %v3831
        %v3848 = vsub.f32 %v3780, %v3832
        %v3849 = vsub.f32 %v3781, %v3833
        %v3850 = vsub.f32 %v3782, %v3834
        %v3851 = vsub.f32 %v3783, %v3835
        %v3852 = vsub.f32 %v3784, %v3836
        %v3853 = vsub.f32 %v3785, %v3837
        %v3854 = vmul.f32 %v3838, %v3838
        %v3855 = vmul.f32 %v3839, %v3839
        %v3856 = vmul.f32 %v3840, %v3840
        %v3857 = vmul.f32 %v3841, %v3841
        %v3858 = vmul.f32 %v3842, %v3842
        %v3859 = vmul.f32 %v3843, %v3843
        %v3860 = vmul.f32 %v3844, %v3844
        %v3861 = vmul.f32 %v3845, %v3845
        %v3862 = vmul.f32 %v3846, %v3846
        %v3863 = vmul.f32 %v3847, %v3847
        %v3864 = vmul.f32 %v3848, %v3848
        %v3865 = vmul.f32 %v3849, %v3849
        %v3866 = vmul.f32 %v3850, %v3850
        %v3867 = vmul.f32 %v3851, %v3851
        %v3868 = vmul.f32 %v3852, %v3852
        %v3869 = vmul.f32 %v3853, %v3853
        %3870 = vadd.xlane.f32.xlu0 %v3854
        %v3871 = vpop.xlane.xlu0 %3870
        %3872 = vadd.xlane.f32.xlu0 %v3855
        %v3873 = vpop.xlane.xlu0 %3872
        %3874 = vadd.xlane.f32.xlu0 %v3856
        %v3875 = vpop.xlane.xlu0 %3874
        %3876 = vadd.xlane.f32.xlu0 %v3857
        %v3877 = vpop.xlane.xlu0 %3876
        %3878 = vadd.xlane.f32.xlu0 %v3858
        %v3879 = vpop.xlane.xlu0 %3878
        %3880 = vadd.xlane.f32.xlu0 %v3859
        %v3881 = vpop.xlane.xlu0 %3880
        %3882 = vadd.xlane.f32.xlu0 %v3860
        %v3883 = vpop.xlane.xlu0 %3882
        %3884 = vadd.xlane.f32.xlu0 %v3861
        %v3885 = vpop.xlane.xlu0 %3884
        %3886 = vadd.xlane.f32.xlu0 %v3862
        %v3887 = vpop.xlane.xlu0 %3886
        %3888 = vadd.xlane.f32.xlu0 %v3863
        %v3889 = vpop.xlane.xlu0 %3888
        %3890 = vadd.xlane.f32.xlu0 %v3864
        %v3891 = vpop.xlane.xlu0 %3890
        %3892 = vadd.xlane.f32.xlu0 %v3865
        %v3893 = vpop.xlane.xlu0 %3892
        %3894 = vadd.xlane.f32.xlu0 %v3866
        %v3895 = vpop.xlane.xlu0 %3894
        %3896 = vadd.xlane.f32.xlu0 %v3867
        %v3897 = vpop.xlane.xlu0 %3896
        %3898 = vadd.xlane.f32.xlu0 %v3868
        %v3899 = vpop.xlane.xlu0 %3898
        %3900 = vadd.xlane.f32.xlu0 %v3869
        %v3901 = vpop.xlane.xlu0 %3900
        %v3902 = vmul.f32 %v3871, %v1617
        %v3903 = vmul.f32 %v3873, %v1617
        %v3904 = vmul.f32 %v3875, %v1617
        %v3905 = vmul.f32 %v3877, %v1617
        %v3906 = vmul.f32 %v3879, %v1617
        %v3907 = vmul.f32 %v3881, %v1617
        %v3908 = vmul.f32 %v3883, %v1617
        %v3909 = vmul.f32 %v3885, %v1617
        %v3910 = vmul.f32 %v3887, %v1617
        %v3911 = vmul.f32 %v3889, %v1617
        %v3912 = vmul.f32 %v3891, %v1617
        %v3913 = vmul.f32 %v3893, %v1617
        %v3914 = vmul.f32 %v3895, %v1617
        %v3915 = vmul.f32 %v3897, %v1617
        %v3916 = vmul.f32 %v3899, %v1617
        %v3917 = vmul.f32 %v3901, %v1617
        %v3918 = vadd.f32 %v3902, 1e-12
        %v3919 = vadd.f32 %v3903, 1e-12
        %v3920 = vadd.f32 %v3904, 1e-12
        %v3921 = vadd.f32 %v3905, 1e-12
        %v3922 = vadd.f32 %v3906, 1e-12
        %v3923 = vadd.f32 %v3907, 1e-12
        %v3924 = vadd.f32 %v3908, 1e-12
        %v3925 = vadd.f32 %v3909, 1e-12
        %v3926 = vadd.f32 %v3910, 1e-12
        %v3927 = vadd.f32 %v3911, 1e-12
        %v3928 = vadd.f32 %v3912, 1e-12
        %v3929 = vadd.f32 %v3913, 1e-12
        %v3930 = vadd.f32 %v3914, 1e-12
        %v3931 = vadd.f32 %v3915, 1e-12
        %v3932 = vadd.f32 %v3916, 1e-12
        %v3933 = vadd.f32 %v3917, 1e-12
        %v3934 = vrsqrt.pop %v3918
        %v3935 = vrsqrt.pop %v3919
        %v3936 = vrsqrt.pop %v3920
        %v3937 = vrsqrt.pop %v3921
        %v3938 = vrsqrt.pop %v3922
        %v3939 = vrsqrt.pop %v3923
        %v3940 = vrsqrt.pop %v3924
        %v3941 = vrsqrt.pop %v3925
        %v3942 = vrsqrt.pop %v3926
        %v3943 = vrsqrt.pop %v3927
        %v3944 = vrsqrt.pop %v3928
        %v3945 = vrsqrt.pop %v3929
        %v3946 = vrsqrt.pop %v3930
        %v3947 = vrsqrt.pop %v3931
        %v3948 = vrsqrt.pop %v3932
        %v3949 = vrsqrt.pop %v3933
        %v3950 = vmul.f32 %v3838, %v3934
        %v3951 = vmul.f32 %v3839, %v3935
        %v3952 = vmul.f32 %v3840, %v3936
        %v3953 = vmul.f32 %v3841, %v3937
        %v3954 = vmul.f32 %v3842, %v3938
        %v3955 = vmul.f32 %v3843, %v3939
        %v3956 = vmul.f32 %v3844, %v3940
        %v3957 = vmul.f32 %v3845, %v3941
        %v3958 = vmul.f32 %v3846, %v3942
        %v3959 = vmul.f32 %v3847, %v3943
        %v3960 = vmul.f32 %v3848, %v3944
        %v3961 = vmul.f32 %v3849, %v3945
        %v3962 = vmul.f32 %v3850, %v3946
        %v3963 = vmul.f32 %v3851, %v3947
        %v3964 = vmul.f32 %v3852, %v3948
        %v3965 = vmul.f32 %v3853, %v3949
        %v3967 = vlaneseq
        %v3968 = vshrl.u32 %v3967, 7
        %v3969 = vsub.s32 0, %v3968
        %v3970 = vrot.slane %v3787, %v3969
        %v3972 = vmul.f32 %v3950, %v3970
        %v3973 = vmul.f32 %v3951, %v3970
        %v3974 = vmul.f32 %v3952, %v3970
        %v3975 = vmul.f32 %v3953, %v3970
        %v3976 = vmul.f32 %v3954, %v3970
        %v3977 = vmul.f32 %v3955, %v3970
        %v3978 = vmul.f32 %v3956, %v3970
        %v3979 = vmul.f32 %v3957, %v3970
        %v3980 = vmul.f32 %v3958, %v3970
        %v3981 = vmul.f32 %v3959, %v3970
        %v3982 = vmul.f32 %v3960, %v3970
        %v3983 = vmul.f32 %v3961, %v3970
        %v3984 = vmul.f32 %v3962, %v3970
        %v3985 = vmul.f32 %v3963, %v3970
        %v3986 = vmul.f32 %v3964, %v3970
        %v3987 = vmul.f32 %v3965, %v3970
        %v3989 = vlaneseq
        %v3990 = vshrl.u32 %v3989, 7
        %v3991 = vsub.s32 0, %v3990
        %v3992 = vrot.slane %v3789, %v3991
        %v3994 = vadd.f32 %v3972, %v3992
        %v3995 = vadd.f32 %v3973, %v3992
        %v3996 = vadd.f32 %v3974, %v3992
        %v3997 = vadd.f32 %v3975, %v3992
        %v3998 = vadd.f32 %v3976, %v3992
        %v3999 = vadd.f32 %v3977, %v3992
        %v4000 = vadd.f32 %v3978, %v3992
        %v4001 = vadd.f32 %v3979, %v3992
        %v4002 = vadd.f32 %v3980, %v3992
        %v4003 = vadd.f32 %v3981, %v3992
        %v4004 = vadd.f32 %v3982, %v3992
        %v4005 = vadd.f32 %v3983, %v3992
        %v4006 = vadd.f32 %v3984, %v3992
        %v4007 = vadd.f32 %v3985, %v3992
        %v4008 = vadd.f32 %v3986, %v3992
        %v4009 = vadd.f32 %v3987, %v3992
        %v4010 = vpack.c.bf16 %v3995, %v3994
        %v4011 = vpack.c.bf16 %v3997, %v3996
        %v4012 = vpack.c.bf16 %v3999, %v3998
        %v4013 = vpack.c.bf16 %v4001, %v4000
        %v4014 = vpack.c.bf16 %v4003, %v4002
        %v4015 = vpack.c.bf16 %v4005, %v4004
        %v4016 = vpack.c.bf16 %v4007, %v4006
        %v4017 = vpack.c.bf16 %v4009, %v4008
        %s4018 = scalar_lea.vmem [#allocation7], 128
        %v4019 = vld [vmem:[%s4018] sm:$0xff]
        %v4020 = vld [vmem:[%s4018 + $0x8] sm:$0xff]
        %v4021 = vld [vmem:[%s4018 + $0x10] sm:$0xff]
        %v4022 = vld [vmem:[%s4018 + $0x18] sm:$0xff]
        %v4023 = vld [vmem:[%s4018 + $0x20] sm:$0xff]
        %v4024 = vld [vmem:[%s4018 + $0x28] sm:$0xff]
        %v4025 = vld [vmem:[%s4018 + $0x30] sm:$0xff]
        %v4026 = vld [vmem:[%s4018 + $0x38] sm:$0xff]
        %v4027 = vld [vmem:[%s4018 + $0x40] sm:$0xff]
        %v4028 = vld [vmem:[%s4018 + $0x48] sm:$0xff]
        %v4029 = vld [vmem:[%s4018 + $0x50] sm:$0xff]
        %v4030 = vld [vmem:[%s4018 + $0x58] sm:$0xff]
        %v4031 = vld [vmem:[%s4018 + $0x60] sm:$0xff]
        %v4032 = vld [vmem:[%s4018 + $0x68] sm:$0xff]
        %v4033 = vld [vmem:[%s4018 + $0x70] sm:$0xff]
        %v4034 = vld [vmem:[%s4018 + $0x78] sm:$0xff]
        %s4035 = scalar_lea.vmem %s10, 2
        %v4036 = vld [vmem:[%s4035] sm:$0x3]
        %v4038 = vlaneseq
        %v4039 = vshrl.u32 %v4038, 7
        %v4040 = vsub.s32 0, %v4039
        %v4041 = vrot.slane %v4036, %v4040
        %v4042 = vlaneseq
        %v4043 = vshrl.u32 %v4042, 7
        %v4044 = vsub.s32 1, %v4043
        %v4045 = vrot.slane %v4036, %v4044
        %v4064 = vunpack.c.l.b16 %v4019
        %v4065 = vunpack.c.h.b16 %v4019
        %v4066 = vunpack.c.l.b16 %v4020
        %v4067 = vunpack.c.h.b16 %v4020
        %v4068 = vunpack.c.l.b16 %v4021
        %v4069 = vunpack.c.h.b16 %v4021
        %v4070 = vunpack.c.l.b16 %v4022
        %v4071 = vunpack.c.h.b16 %v4022
        %v4072 = vunpack.c.l.b16 %v4023
        %v4073 = vunpack.c.h.b16 %v4023
        %v4074 = vunpack.c.l.b16 %v4024
        %v4075 = vunpack.c.h.b16 %v4024
        %v4076 = vunpack.c.l.b16 %v4025
        %v4077 = vunpack.c.h.b16 %v4025
        %v4078 = vunpack.c.l.b16 %v4026
        %v4079 = vunpack.c.h.b16 %v4026
        %v4080 = vunpack.c.l.b16 %v4027
        %v4081 = vunpack.c.h.b16 %v4027
        %v4082 = vunpack.c.l.b16 %v4028
        %v4083 = vunpack.c.h.b16 %v4028
        %v4084 = vunpack.c.l.b16 %v4029
        %v4085 = vunpack.c.h.b16 %v4029
        %v4086 = vunpack.c.l.b16 %v4030
        %v4087 = vunpack.c.h.b16 %v4030
        %v4088 = vunpack.c.l.b16 %v4031
        %v4089 = vunpack.c.h.b16 %v4031
        %v4090 = vunpack.c.l.b16 %v4032
        %v4091 = vunpack.c.h.b16 %v4032
        %v4092 = vunpack.c.l.b16 %v4033
        %v4093 = vunpack.c.h.b16 %v4033
        %v4094 = vunpack.c.l.b16 %v4034
        %v4095 = vunpack.c.h.b16 %v4034
        %v4096 = vpack.c.b16 %v4066, %v4064
        %v4097 = vpack.c.b16 %v4067, %v4065
        %v4098 = vpack.c.b16 %v4070, %v4068
        %v4099 = vpack.c.b16 %v4071, %v4069
        %v4100 = vpack.c.b16 %v4074, %v4072
        %v4101 = vpack.c.b16 %v4075, %v4073
        %v4102 = vpack.c.b16 %v4078, %v4076
        %v4103 = vpack.c.b16 %v4079, %v4077
        %v4104 = vpack.c.b16 %v4082, %v4080
        %v4105 = vpack.c.b16 %v4083, %v4081
        %v4106 = vpack.c.b16 %v4086, %v4084
        %v4107 = vpack.c.b16 %v4087, %v4085
        %v4108 = vpack.c.b16 %v4090, %v4088
        %v4109 = vpack.c.b16 %v4091, %v4089
        %v4110 = vpack.c.b16 %v4094, %v4092
        %v4111 = vpack.c.b16 %v4095, %v4093
        %4128 = vmatprep.subr.bf16.mxu0 %v4097
        %4129 = vmatpush1.bf16.msra.mxu0 %v4096
        %4130 = vmatprep.subr.bf16.mxu0 %v4099
        %4131 = vmatpush1.bf16.msra.mxu0 %v4098
        %4132 = vmatprep.subr.bf16.mxu0 %v4101
        %4133 = vmatpush1.bf16.msra.mxu0 %v4100
        %4134 = vmatprep.subr.bf16.mxu0 %v4103
        %4135 = vmatpush1.bf16.msra.mxu0 %v4102
        %4136 = vmatprep.subr.bf16.mxu0 %v4105
        %4137 = vmatpush1.bf16.msra.mxu0 %v4104
        %4138 = vmatprep.subr.bf16.mxu0 %v4107
        %4139 = vmatpush1.bf16.msra.mxu0 %v4106
        %4140 = vmatprep.subr.bf16.mxu0 %v4109
        %4141 = vmatpush1.bf16.msra.mxu0 %v4108
        %4142 = vmatprep.subr.bf16.mxu0 %v4111
        %4143 = vmatpush1.bf16.msra.mxu0 %v4110
        %4144 = vmatprep.subr.bf16.mxu0 0
        %4145 = vmatpush1.bf16.msra.mxu0 0
        %4146 = vmatprep.subr.bf16.mxu0 0
        %4147 = vmatpush1.bf16.msra.mxu0 0
        %4148 = vmatprep.subr.bf16.mxu0 0
        %4149 = vmatpush1.bf16.msra.mxu0 0
        %4150 = vmatprep.subr.bf16.mxu0 0
        %4151 = vmatpush1.bf16.msra.mxu0 0
        %4152 = vmatprep.subr.bf16.mxu0 0
        %4153 = vmatpush1.bf16.msra.mxu0 0
        %4154 = vmatprep.subr.bf16.mxu0 0
        %4155 = vmatpush1.bf16.msra.mxu0 0
        %4156 = vmatprep.subr.bf16.mxu0 0
        %4157 = vmatpush1.bf16.msra.mxu0 0
        %4158 = vmatprep.subr.bf16.mxu0 0
        %4159 = vmatpush1.bf16.msra.mxu0 0
        %4160 = vmatprep.mubr.bf16.mxu0 0
        %4161 = vmatmul.mubr.bf16.gmra.mrb[0].mxu0 %v4010
        %v4162 = vpop.f32.mrb[0].mxu0
        %v4163 = vadd.f32 %v4041, %v4162
        %v4164 = vpop.f32.mrb[0].mxu0
        %v4165 = vadd.f32 %v4045, %v4164
        %v4166 = vpop.f32.mrb[0].mxu0
        %v4167 = vadd.f32 %v4041, %v4166
        %v4168 = vpop.f32.mrb[0].mxu0
        %v4169 = vadd.f32 %v4045, %v4168
        %4170 = vmatprep.mubr.bf16.mxu0 0
        %4171 = vmatmul.mubr.bf16.gmra.mrb[0].mxu0 %v4011
        %v4172 = vpop.f32.mrb[0].mxu0
        %v4173 = vadd.f32 %v4041, %v4172
        %v4174 = vpop.f32.mrb[0].mxu0
        %v4175 = vadd.f32 %v4045, %v4174
        %v4176 = vpop.f32.mrb[0].mxu0
        %v4177 = vadd.f32 %v4041, %v4176
        %v4178 = vpop.f32.mrb[0].mxu0
        %v4179 = vadd.f32 %v4045, %v4178
        %4180 = vmatprep.mubr.bf16.mxu0 0
        %4181 = vmatmul.mubr.bf16.gmra.mrb[0].mxu0 %v4012
        %v4182 = vpop.f32.mrb[0].mxu0
        %v4183 = vadd.f32 %v4041, %v4182
        %v4184 = vpop.f32.mrb[0].mxu0
        %v4185 = vadd.f32 %v4045, %v4184
        %v4186 = vpop.f32.mrb[0].mxu0
        %v4187 = vadd.f32 %v4041, %v4186
        %v4188 = vpop.f32.mrb[0].mxu0
        %v4189 = vadd.f32 %v4045, %v4188
        %4190 = vmatprep.mubr.bf16.mxu0 0
        %4191 = vmatmul.mubr.bf16.gmra.mrb[0].mxu0 %v4013
        %v4192 = vpop.f32.mrb[0].mxu0
        %v4193 = vadd.f32 %v4041, %v4192
        %v4194 = vpop.f32.mrb[0].mxu0
        %v4195 = vadd.f32 %v4045, %v4194
        %v4196 = vpop.f32.mrb[0].mxu0
        %v4197 = vadd.f32 %v4041, %v4196
        %v4198 = vpop.f32.mrb[0].mxu0
        %v4199 = vadd.f32 %v4045, %v4198
        %4200 = vmatprep.mubr.bf16.mxu0 0
        %4201 = vmatmul.mubr.bf16.gmra.mrb[0].mxu0 %v4014
        %v4202 = vpop.f32.mrb[0].mxu0
        %v4203 = vadd.f32 %v4041, %v4202
        %v4204 = vpop.f32.mrb[0].mxu0
        %v4205 = vadd.f32 %v4045, %v4204
        %v4206 = vpop.f32.mrb[0].mxu0
        %v4207 = vadd.f32 %v4041, %v4206
        %v4208 = vpop.f32.mrb[0].mxu0
        %v4209 = vadd.f32 %v4045, %v4208
        %4210 = vmatprep.mubr.bf16.mxu0 0
        %4211 = vmatmul.mubr.bf16.gmra.mrb[0].mxu0 %v4015
        %v4212 = vpop.f32.mrb[0].mxu0
        %v4213 = vadd.f32 %v4041, %v4212
        %v4214 = vpop.f32.mrb[0].mxu0
        %v4215 = vadd.f32 %v4045, %v4214
        %v4216 = vpop.f32.mrb[0].mxu0
        %v4217 = vadd.f32 %v4041, %v4216
        %v4218 = vpop.f32.mrb[0].mxu0
        %v4219 = vadd.f32 %v4045, %v4218
        %4220 = vmatprep.mubr.bf16.mxu0 0
        %4221 = vmatmul.mubr.bf16.gmra.mrb[0].mxu0 %v4016
        %v4222 = vpop.f32.mrb[0].mxu0
        %v4223 = vadd.f32 %v4041, %v4222
        %v4224 = vpop.f32.mrb[0].mxu0
        %v4225 = vadd.f32 %v4045, %v4224
        %v4226 = vpop.f32.mrb[0].mxu0
        %v4227 = vadd.f32 %v4041, %v4226
        %v4228 = vpop.f32.mrb[0].mxu0
        %v4229 = vadd.f32 %v4045, %v4228
        %4230 = vmatprep.mubr.bf16.mxu0 0
        %4231 = vmatmul.mubr.bf16.gmra.mrb[0].mxu0 %v4017
        %v4232 = vpop.f32.mrb[0].mxu0
        %v4233 = vadd.f32 %v4041, %v4232
        %v4234 = vpop.f32.mrb[0].mxu0
        %v4235 = vadd.f32 %v4045, %v4234
        %v4236 = vpop.f32.mrb[0].mxu0
        %v4237 = vadd.f32 %v4041, %v4236
        %v4238 = vpop.f32.mrb[0].mxu0
        %v4239 = vadd.f32 %v4045, %v4238
        %4240 = vdwg.mxu0
        %v4241 = vmul.f32 %v4163, 0.5
        %v4242 = vmul.f32 %v4165, 0.5
        %v4243 = vmul.f32 %v4167, 0.5
        %v4244 = vmul.f32 %v4169, 0.5
        %v4245 = vmul.f32 %v4173, 0.5
        %v4246 = vmul.f32 %v4175, 0.5
        %v4247 = vmul.f32 %v4177, 0.5
        %v4248 = vmul.f32 %v4179, 0.5
        %v4249 = vmul.f32 %v4183, 0.5
        %v4250 = vmul.f32 %v4185, 0.5
        %v4251 = vmul.f32 %v4187, 0.5
        %v4252 = vmul.f32 %v4189, 0.5
        %v4253 = vmul.f32 %v4193, 0.5
        %v4254 = vmul.f32 %v4195, 0.5
        %v4255 = vmul.f32 %v4197, 0.5
        %v4256 = vmul.f32 %v4199, 0.5
        %v4257 = vmul.f32 %v4203, 0.5
        %v4258 = vmul.f32 %v4205, 0.5
        %v4259 = vmul.f32 %v4207, 0.5
        %v4260 = vmul.f32 %v4209, 0.5
        %v4261 = vmul.f32 %v4213, 0.5
        %v4262 = vmul.f32 %v4215, 0.5
        %v4263 = vmul.f32 %v4217, 0.5
        %v4264 = vmul.f32 %v4219, 0.5
        %v4265 = vmul.f32 %v4223, 0.5
        %v4266 = vmul.f32 %v4225, 0.5
        %v4267 = vmul.f32 %v4227, 0.5
        %v4268 = vmul.f32 %v4229, 0.5
        %v4269 = vmul.f32 %v4233, 0.5
        %v4270 = vmul.f32 %v4235, 0.5
        %v4271 = vmul.f32 %v4237, 0.5
        %v4272 = vmul.f32 %v4239, 0.5
        %v4273 = vmul.f32 %v4163, 0.044715
        %v4274 = vmul.f32 %v4165, 0.044715
        %v4275 = vmul.f32 %v4167, 0.044715
        %v4276 = vmul.f32 %v4169, 0.044715
        %v4277 = vmul.f32 %v4173, 0.044715
        %v4278 = vmul.f32 %v4175, 0.044715
        %v4279 = vmul.f32 %v4177, 0.044715
        %v4280 = vmul.f32 %v4179, 0.044715
        %v4281 = vmul.f32 %v4183, 0.044715
        %v4282 = vmul.f32 %v4185, 0.044715
        %v4283 = vmul.f32 %v4187, 0.044715
        %v4284 = vmul.f32 %v4189, 0.044715
        %v4285 = vmul.f32 %v4193, 0.044715
        %v4286 = vmul.f32 %v4195, 0.044715
        %v4287 = vmul.f32 %v4197, 0.044715
        %v4288 = vmul.f32 %v4199, 0.044715
        %v4289 = vmul.f32 %v4203, 0.044715
        %v4290 = vmul.f32 %v4205, 0.044715
        %v4291 = vmul.f32 %v4207, 0.044715
        %v4292 = vmul.f32 %v4209, 0.044715
        %v4293 = vmul.f32 %v4213, 0.044715
        %v4294 = vmul.f32 %v4215, 0.044715
        %v4295 = vmul.f32 %v4217, 0.044715
        %v4296 = vmul.f32 %v4219, 0.044715
        %v4297 = vmul.f32 %v4223, 0.044715
        %v4298 = vmul.f32 %v4225, 0.044715
        %v4299 = vmul.f32 %v4227, 0.044715
        %v4300 = vmul.f32 %v4229, 0.044715
        %v4301 = vmul.f32 %v4233, 0.044715
        %v4302 = vmul.f32 %v4235, 0.044715
        %v4303 = vmul.f32 %v4237, 0.044715
        %v4304 = vmul.f32 %v4239, 0.044715
        %v4305 = vmul.f32 %v4273, %v4163
        %v4306 = vmul.f32 %v4274, %v4165
        %v4307 = vmul.f32 %v4275, %v4167
        %v4308 = vmul.f32 %v4276, %v4169
        %v4309 = vmul.f32 %v4277, %v4173
        %v4310 = vmul.f32 %v4278, %v4175
        %v4311 = vmul.f32 %v4279, %v4177
        %v4312 = vmul.f32 %v4280, %v4179
        %v4313 = vmul.f32 %v4281, %v4183
        %v4314 = vmul.f32 %v4282, %v4185
        %v4315 = vmul.f32 %v4283, %v4187
        %v4316 = vmul.f32 %v4284, %v4189
        %v4317 = vmul.f32 %v4285, %v4193
        %v4318 = vmul.f32 %v4286, %v4195
        %v4319 = vmul.f32 %v4287, %v4197
        %v4320 = vmul.f32 %v4288, %v4199
        %v4321 = vmul.f32 %v4289, %v4203
        %v4322 = vmul.f32 %v4290, %v4205
        %v4323 = vmul.f32 %v4291, %v4207
        %v4324 = vmul.f32 %v4292, %v4209
        %v4325 = vmul.f32 %v4293, %v4213
        %v4326 = vmul.f32 %v4294, %v4215
        %v4327 = vmul.f32 %v4295, %v4217
        %v4328 = vmul.f32 %v4296, %v4219
        %v4329 = vmul.f32 %v4297, %v4223
        %v4330 = vmul.f32 %v4298, %v4225
        %v4331 = vmul.f32 %v4299, %v4227
        %v4332 = vmul.f32 %v4300, %v4229
        %v4333 = vmul.f32 %v4301, %v4233
        %v4334 = vmul.f32 %v4302, %v4235
        %v4335 = vmul.f32 %v4303, %v4237
        %v4336 = vmul.f32 %v4304, %v4239
        %v4337 = vmul.f32 %v4305, %v4163
        %v4338 = vmul.f32 %v4306, %v4165
        %v4339 = vmul.f32 %v4307, %v4167
        %v4340 = vmul.f32 %v4308, %v4169
        %v4341 = vmul.f32 %v4309, %v4173
        %v4342 = vmul.f32 %v4310, %v4175
        %v4343 = vmul.f32 %v4311, %v4177
        %v4344 = vmul.f32 %v4312, %v4179
        %v4345 = vmul.f32 %v4313, %v4183
        %v4346 = vmul.f32 %v4314, %v4185
        %v4347 = vmul.f32 %v4315, %v4187
        %v4348 = vmul.f32 %v4316, %v4189
        %v4349 = vmul.f32 %v4317, %v4193
        %v4350 = vmul.f32 %v4318, %v4195
        %v4351 = vmul.f32 %v4319, %v4197
        %v4352 = vmul.f32 %v4320, %v4199
        %v4353 = vmul.f32 %v4321, %v4203
        %v4354 = vmul.f32 %v4322, %v4205
        %v4355 = vmul.f32 %v4323, %v4207
        %v4356 = vmul.f32 %v4324, %v4209
        %v4357 = vmul.f32 %v4325, %v4213
        %v4358 = vmul.f32 %v4326, %v4215
        %v4359 = vmul.f32 %v4327, %v4217
        %v4360 = vmul.f32 %v4328, %v4219
        %v4361 = vmul.f32 %v4329, %v4223
        %v4362 = vmul.f32 %v4330, %v4225
        %v4363 = vmul.f32 %v4331, %v4227
        %v4364 = vmul.f32 %v4332, %v4229
        %v4365 = vmul.f32 %v4333, %v4233
        %v4366 = vmul.f32 %v4334, %v4235
        %v4367 = vmul.f32 %v4335, %v4237
        %v4368 = vmul.f32 %v4336, %v4239
        %v4369 = vadd.f32 %v4163, %v4337
        %v4370 = vadd.f32 %v4165, %v4338
        %v4371 = vadd.f32 %v4167, %v4339
        %v4372 = vadd.f32 %v4169, %v4340
        %v4373 = vadd.f32 %v4173, %v4341
        %v4374 = vadd.f32 %v4175, %v4342
        %v4375 = vadd.f32 %v4177, %v4343
        %v4376 = vadd.f32 %v4179, %v4344
        %v4377 = vadd.f32 %v4183, %v4345
        %v4378 = vadd.f32 %v4185, %v4346
        %v4379 = vadd.f32 %v4187, %v4347
        %v4380 = vadd.f32 %v4189, %v4348
        %v4381 = vadd.f32 %v4193, %v4349
        %v4382 = vadd.f32 %v4195, %v4350
        %v4383 = vadd.f32 %v4197, %v4351
        %v4384 = vadd.f32 %v4199, %v4352
        %v4385 = vadd.f32 %v4203, %v4353
        %v4386 = vadd.f32 %v4205, %v4354
        %v4387 = vadd.f32 %v4207, %v4355
        %v4388 = vadd.f32 %v4209, %v4356
        %v4389 = vadd.f32 %v4213, %v4357
        %v4390 = vadd.f32 %v4215, %v4358
        %v4391 = vadd.f32 %v4217, %v4359
        %v4392 = vadd.f32 %v4219, %v4360
        %v4393 = vadd.f32 %v4223, %v4361
        %v4394 = vadd.f32 %v4225, %v4362
        %v4395 = vadd.f32 %v4227, %v4363
        %v4396 = vadd.f32 %v4229, %v4364
        %v4397 = vadd.f32 %v4233, %v4365
        %v4398 = vadd.f32 %v4235, %v4366
        %v4399 = vadd.f32 %v4237, %v4367
        %v4400 = vadd.f32 %v4239, %v4368
        %v4401 = vmul.f32 %v4369, 0.7978846
        %v4402 = vmul.f32 %v4370, 0.7978846
        %v4403 = vmul.f32 %v4371, 0.7978846
        %v4404 = vmul.f32 %v4372, 0.7978846
        %v4405 = vmul.f32 %v4373, 0.7978846
        %v4406 = vmul.f32 %v4374, 0.7978846
        %v4407 = vmul.f32 %v4375, 0.7978846
        %v4408 = vmul.f32 %v4376, 0.7978846
        %v4409 = vmul.f32 %v4377, 0.7978846
        %v4410 = vmul.f32 %v4378, 0.7978846
        %v4411 = vmul.f32 %v4379, 0.7978846
        %v4412 = vmul.f32 %v4380, 0.7978846
        %v4413 = vmul.f32 %v4381, 0.7978846
        %v4414 = vmul.f32 %v4382, 0.7978846
        %v4415 = vmul.f32 %v4383, 0.7978846
        %v4416 = vmul.f32 %v4384, 0.7978846
        %v4417 = vmul.f32 %v4385, 0.7978846
        %v4418 = vmul.f32 %v4386, 0.7978846
        %v4419 = vmul.f32 %v4387, 0.7978846
        %v4420 = vmul.f32 %v4388, 0.7978846
        %v4421 = vmul.f32 %v4389, 0.7978846
        %v4422 = vmul.f32 %v4390, 0.7978846
        %v4423 = vmul.f32 %v4391, 0.7978846
        %v4424 = vmul.f32 %v4392, 0.7978846
        %v4425 = vmul.f32 %v4393, 0.7978846
        %v4426 = vmul.f32 %v4394, 0.7978846
        %v4427 = vmul.f32 %v4395, 0.7978846
        %v4428 = vmul.f32 %v4396, 0.7978846
        %v4429 = vmul.f32 %v4397, 0.7978846
        %v4430 = vmul.f32 %v4398, 0.7978846
        %v4431 = vmul.f32 %v4399, 0.7978846
        %v4432 = vmul.f32 %v4400, 0.7978846
        %v4433 = vtanh.pop %v4401
        %v4434 = vtanh.pop %v4402
        %v4435 = vtanh.pop %v4403
        %v4436 = vtanh.pop %v4404
        %v4437 = vtanh.pop %v4405
        %v4438 = vtanh.pop %v4406
        %v4439 = vtanh.pop %v4407
        %v4440 = vtanh.pop %v4408
        %v4441 = vtanh.pop %v4409
        %v4442 = vtanh.pop %v4410
        %v4443 = vtanh.pop %v4411
        %v4444 = vtanh.pop %v4412
        %v4445 = vtanh.pop %v4413
        %v4446 = vtanh.pop %v4414
        %v4447 = vtanh.pop %v4415
        %v4448 = vtanh.pop %v4416
        %v4449 = vtanh.pop %v4417
        %v4450 = vtanh.pop %v4418
        %v4451 = vtanh.pop %v4419
        %v4452 = vtanh.pop %v4420
        %v4453 = vtanh.pop %v4421
        %v4454 = vtanh.pop %v4422
        %v4455 = vtanh.pop %v4423
        %v4456 = vtanh.pop %v4424
        %v4457 = vtanh.pop %v4425
        %v4458 = vtanh.pop %v4426
        %v4459 = vtanh.pop %v4427
        %v4460 = vtanh.pop %v4428
        %v4461 = vtanh.pop %v4429
        %v4462 = vtanh.pop %v4430
        %v4463 = vtanh.pop %v4431
        %v4464 = vtanh.pop %v4432
        %v4465 = vadd.f32 %v4433, 1.0
        %v4466 = vadd.f32 %v4434, 1.0
        %v4467 = vadd.f32 %v4435, 1.0
        %v4468 = vadd.f32 %v4436, 1.0
        %v4469 = vadd.f32 %v4437, 1.0
        %v4470 = vadd.f32 %v4438, 1.0
        %v4471 = vadd.f32 %v4439, 1.0
        %v4472 = vadd.f32 %v4440, 1.0
        %v4473 = vadd.f32 %v4441, 1.0
        %v4474 = vadd.f32 %v4442, 1.0
        %v4475 = vadd.f32 %v4443, 1.0
        %v4476 = vadd.f32 %v4444, 1.0
        %v4477 = vadd.f32 %v4445, 1.0
        %v4478 = vadd.f32 %v4446, 1.0
        %v4479 = vadd.f32 %v4447, 1.0
        %v4480 = vadd.f32 %v4448, 1.0
        %v4481 = vadd.f32 %v4449, 1.0
        %v4482 = vadd.f32 %v4450, 1.0
        %v4483 = vadd.f32 %v4451, 1.0
        %v4484 = vadd.f32 %v4452, 1.0
        %v4485 = vadd.f32 %v4453, 1.0
        %v4486 = vadd.f32 %v4454, 1.0
        %v4487 = vadd.f32 %v4455, 1.0
        %v4488 = vadd.f32 %v4456, 1.0
        %v4489 = vadd.f32 %v4457, 1.0
        %v4490 = vadd.f32 %v4458, 1.0
        %v4491 = vadd.f32 %v4459, 1.0
        %v4492 = vadd.f32 %v4460, 1.0
        %v4493 = vadd.f32 %v4461, 1.0
        %v4494 = vadd.f32 %v4462, 1.0
        %v4495 = vadd.f32 %v4463, 1.0
        %v4496 = vadd.f32 %v4464, 1.0
        %v4497 = vmul.f32 %v4241, %v4465
        %v4498 = vmul.f32 %v4242, %v4466
        %v4499 = vmul.f32 %v4243, %v4467
        %v4500 = vmul.f32 %v4244, %v4468
        %v4501 = vmul.f32 %v4245, %v4469
        %v4502 = vmul.f32 %v4246, %v4470
        %v4503 = vmul.f32 %v4247, %v4471
        %v4504 = vmul.f32 %v4248, %v4472
        %v4505 = vmul.f32 %v4249, %v4473
        %v4506 = vmul.f32 %v4250, %v4474
        %v4507 = vmul.f32 %v4251, %v4475
        %v4508 = vmul.f32 %v4252, %v4476
        %v4509 = vmul.f32 %v4253, %v4477
        %v4510 = vmul.f32 %v4254, %v4478
        %v4511 = vmul.f32 %v4255, %v4479
        %v4512 = vmul.f32 %v4256, %v4480
        %v4513 = vmul.f32 %v4257, %v4481
        %v4514 = vmul.f32 %v4258, %v4482
        %v4515 = vmul.f32 %v4259, %v4483
        %v4516 = vmul.f32 %v4260, %v4484
        %v4517 = vmul.f32 %v4261, %v4485
        %v4518 = vmul.f32 %v4262, %v4486
        %v4519 = vmul.f32 %v4263, %v4487
        %v4520 = vmul.f32 %v4264, %v4488
        %v4521 = vmul.f32 %v4265, %v4489
        %v4522 = vmul.f32 %v4266, %v4490
        %v4523 = vmul.f32 %v4267, %v4491
        %v4524 = vmul.f32 %v4268, %v4492
        %v4525 = vmul.f32 %v4269, %v4493
        %v4526 = vmul.f32 %v4270, %v4494
        %v4527 = vmul.f32 %v4271, %v4495
        %v4528 = vmul.f32 %v4272, %v4496
        %v4529 = vpack.c.bf16 %v4499, %v4497
        %v4530 = vpack.c.bf16 %v4500, %v4498
        %v4531 = vpack.c.bf16 %v4503, %v4501
        %v4532 = vpack.c.bf16 %v4504, %v4502
        %v4533 = vpack.c.bf16 %v4507, %v4505
        %v4534 = vpack.c.bf16 %v4508, %v4506
        %v4535 = vpack.c.bf16 %v4511, %v4509
        %v4536 = vpack.c.bf16 %v4512, %v4510
        %v4537 = vpack.c.bf16 %v4515, %v4513
        %v4538 = vpack.c.bf16 %v4516, %v4514
        %v4539 = vpack.c.bf16 %v4519, %v4517
        %v4540 = vpack.c.bf16 %v4520, %v4518
        %v4541 = vpack.c.bf16 %v4523, %v4521
        %v4542 = vpack.c.bf16 %v4524, %v4522
        %v4543 = vpack.c.bf16 %v4527, %v4525
        %v4544 = vpack.c.bf16 %v4528, %v4526
        %s4545 = scalar_lea.vmem [#allocation9], 128
        %v4546 = vld [vmem:[%s4545] sm:$0xf]
        %v4547 = vld [vmem:[%s4545 + $0x4] sm:$0xf]
        %v4548 = vld [vmem:[%s4545 + $0x8] sm:$0xf]
        %v4549 = vld [vmem:[%s4545 + $0xc] sm:$0xf]
        %v4550 = vld [vmem:[%s4545 + $0x10] sm:$0xf]
        %v4551 = vld [vmem:[%s4545 + $0x14] sm:$0xf]
        %v4552 = vld [vmem:[%s4545 + $0x18] sm:$0xf]
        %v4553 = vld [vmem:[%s4545 + $0x1c] sm:$0xf]
        %v4554 = vld [vmem:[%s4545 + $0x20] sm:$0xf]
        %v4555 = vld [vmem:[%s4545 + $0x24] sm:$0xf]
        %v4556 = vld [vmem:[%s4545 + $0x28] sm:$0xf]
        %v4557 = vld [vmem:[%s4545 + $0x2c] sm:$0xf]
        %v4558 = vld [vmem:[%s4545 + $0x30] sm:$0xf]
        %v4559 = vld [vmem:[%s4545 + $0x34] sm:$0xf]
        %v4560 = vld [vmem:[%s4545 + $0x38] sm:$0xf]
        %v4561 = vld [vmem:[%s4545 + $0x3c] sm:$0xf]
        %v4562 = vld [vmem:[%s4545 + $0x40] sm:$0xf]
        %v4563 = vld [vmem:[%s4545 + $0x44] sm:$0xf]
        %v4564 = vld [vmem:[%s4545 + $0x48] sm:$0xf]
        %v4565 = vld [vmem:[%s4545 + $0x4c] sm:$0xf]
        %v4566 = vld [vmem:[%s4545 + $0x50] sm:$0xf]
        %v4567 = vld [vmem:[%s4545 + $0x54] sm:$0xf]
        %v4568 = vld [vmem:[%s4545 + $0x58] sm:$0xf]
        %v4569 = vld [vmem:[%s4545 + $0x5c] sm:$0xf]
        %v4570 = vld [vmem:[%s4545 + $0x60] sm:$0xf]
        %v4571 = vld [vmem:[%s4545 + $0x64] sm:$0xf]
        %v4572 = vld [vmem:[%s4545 + $0x68] sm:$0xf]
        %v4573 = vld [vmem:[%s4545 + $0x6c] sm:$0xf]
        %v4574 = vld [vmem:[%s4545 + $0x70] sm:$0xf]
        %v4575 = vld [vmem:[%s4545 + $0x74] sm:$0xf]
        %v4576 = vld [vmem:[%s4545 + $0x78] sm:$0xf]
        %v4577 = vld [vmem:[%s4545 + $0x7c] sm:$0xf]
        %s4578 = scalar_lea.vmem %s12, 1
        %v4579 = vld [vmem:[%s4578] sm:$0x1]
        %v4581 = vlaneseq
        %v4582 = vshrl.u32 %v4581, 7
        %v4583 = vsub.s32 0, %v4582
        %v4584 = vrot.slane %v4579, %v4583
        %v4618 = vunpack.c.l.b16 %v4546
        %v4619 = vunpack.c.l.b16 %v4547
        %v4620 = vunpack.c.l.b16 %v4548
        %v4621 = vunpack.c.l.b16 %v4549
        %v4622 = vunpack.c.l.b16 %v4550
        %v4623 = vunpack.c.l.b16 %v4551
        %v4624 = vunpack.c.l.b16 %v4552
        %v4625 = vunpack.c.l.b16 %v4553
        %v4626 = vunpack.c.l.b16 %v4554
        %v4627 = vunpack.c.l.b16 %v4555
        %v4628 = vunpack.c.l.b16 %v4556
        %v4629 = vunpack.c.l.b16 %v4557
        %v4630 = vunpack.c.l.b16 %v4558
        %v4631 = vunpack.c.l.b16 %v4559
        %v4632 = vunpack.c.l.b16 %v4560
        %v4633 = vunpack.c.l.b16 %v4561
        %v4634 = vunpack.c.l.b16 %v4562
        %v4635 = vunpack.c.l.b16 %v4563
        %v4636 = vunpack.c.l.b16 %v4564
        %v4637 = vunpack.c.l.b16 %v4565
        %v4638 = vunpack.c.l.b16 %v4566
        %v4639 = vunpack.c.l.b16 %v4567
        %v4640 = vunpack.c.l.b16 %v4568
        %v4641 = vunpack.c.l.b16 %v4569
        %v4642 = vunpack.c.l.b16 %v4570
        %v4643 = vunpack.c.l.b16 %v4571
        %v4644 = vunpack.c.l.b16 %v4572
        %v4645 = vunpack.c.l.b16 %v4573
        %v4646 = vunpack.c.l.b16 %v4574
        %v4647 = vunpack.c.l.b16 %v4575
        %v4648 = vunpack.c.l.b16 %v4576
        %v4649 = vunpack.c.l.b16 %v4577
        %v4650 = vpack.c.b16 %v4619, %v4618
        %v4651 = vpack.c.b16 %v4621, %v4620
        %v4652 = vpack.c.b16 %v4623, %v4622
        %v4653 = vpack.c.b16 %v4625, %v4624
        %v4654 = vpack.c.b16 %v4627, %v4626
        %v4655 = vpack.c.b16 %v4629, %v4628
        %v4656 = vpack.c.b16 %v4631, %v4630
        %v4657 = vpack.c.b16 %v4633, %v4632
        %v4658 = vpack.c.b16 %v4635, %v4634
        %v4659 = vpack.c.b16 %v4637, %v4636
        %v4660 = vpack.c.b16 %v4639, %v4638
        %v4661 = vpack.c.b16 %v4641, %v4640
        %v4662 = vpack.c.b16 %v4643, %v4642
        %v4663 = vpack.c.b16 %v4645, %v4644
        %v4664 = vpack.c.b16 %v4647, %v4646
        %v4665 = vpack.c.b16 %v4649, %v4648
        %4682 = vmatprep.subr.bf16.mxu0 0
        %4683 = vmatpush1.bf16.msra.mxu0 %v4650
        %4684 = vmatprep.subr.bf16.mxu0 0
        %4685 = vmatpush1.bf16.msra.mxu0 %v4651
        %4686 = vmatprep.subr.bf16.mxu0 0
        %4687 = vmatpush1.bf16.msra.mxu0 %v4652
        %4688 = vmatprep.subr.bf16.mxu0 0
        %4689 = vmatpush1.bf16.msra.mxu0 %v4653
        %4690 = vmatprep.subr.bf16.mxu0 0
        %4691 = vmatpush1.bf16.msra.mxu0 %v4654
        %4692 = vmatprep.subr.bf16.mxu0 0
        %4693 = vmatpush1.bf16.msra.mxu0 %v4655
        %4694 = vmatprep.subr.bf16.mxu0 0
        %4695 = vmatpush1.bf16.msra.mxu0 %v4656
        %4696 = vmatprep.subr.bf16.mxu0 0
        %4697 = vmatpush1.bf16.msra.mxu0 %v4657
        %4698 = vmatprep.subr.bf16.mxu0 0
        %4699 = vmatpush1.bf16.msra.mxu0 %v4658
        %4700 = vmatprep.subr.bf16.mxu0 0
        %4701 = vmatpush1.bf16.msra.mxu0 %v4659
        %4702 = vmatprep.subr.bf16.mxu0 0
        %4703 = vmatpush1.bf16.msra.mxu0 %v4660
        %4704 = vmatprep.subr.bf16.mxu0 0
        %4705 = vmatpush1.bf16.msra.mxu0 %v4661
        %4706 = vmatprep.subr.bf16.mxu0 0
        %4707 = vmatpush1.bf16.msra.mxu0 %v4662
        %4708 = vmatprep.subr.bf16.mxu0 0
        %4709 = vmatpush1.bf16.msra.mxu0 %v4663
        %4710 = vmatprep.subr.bf16.mxu0 0
        %4711 = vmatpush1.bf16.msra.mxu0 %v4664
        %4712 = vmatprep.subr.bf16.mxu0 0
        %4713 = vmatpush1.bf16.msra.mxu0 %v4665
        %4714 = vmatprep.mubr.bf16.mxu0 %v4530
        %4715 = vmatmul.mubr.bf16.gmra.mrb[0].mxu0 %v4529
        %v4716 = vpop.f32.mrb[0].mxu0
        %v4717 = vadd.f32 %v4584, %v4716
        %v4718 = vpop.f32.mrb[0].mxu0
        %v4719 = vpop.f32.mrb[0].mxu0
        %v4720 = vadd.f32 %v4584, %v4719
        %v4721 = vpop.f32.mrb[0].mxu0
        %4722 = vmatprep.mubr.bf16.mxu0 %v4532
        %4723 = vmatmul.mubr.bf16.gmra.mrb[0].mxu0 %v4531
        %v4724 = vpop.f32.mrb[0].mxu0
        %v4725 = vadd.f32 %v4584, %v4724
        %v4726 = vpop.f32.mrb[0].mxu0
        %v4727 = vpop.f32.mrb[0].mxu0
        %v4728 = vadd.f32 %v4584, %v4727
        %v4729 = vpop.f32.mrb[0].mxu0
        %4730 = vmatprep.mubr.bf16.mxu0 %v4534
        %4731 = vmatmul.mubr.bf16.gmra.mrb[0].mxu0 %v4533
        %v4732 = vpop.f32.mrb[0].mxu0
        %v4733 = vadd.f32 %v4584, %v4732
        %v4734 = vpop.f32.mrb[0].mxu0
        %v4735 = vpop.f32.mrb[0].mxu0
        %v4736 = vadd.f32 %v4584, %v4735
        %v4737 = vpop.f32.mrb[0].mxu0
        %4738 = vmatprep.mubr.bf16.mxu0 %v4536
        %4739 = vmatmul.mubr.bf16.gmra.mrb[0].mxu0 %v4535
        %v4740 = vpop.f32.mrb[0].mxu0
        %v4741 = vadd.f32 %v4584, %v4740
        %v4742 = vpop.f32.mrb[0].mxu0
        %v4743 = vpop.f32.mrb[0].mxu0
        %v4744 = vadd.f32 %v4584, %v4743
        %v4745 = vpop.f32.mrb[0].mxu0
        %4746 = vmatprep.mubr.bf16.mxu0 %v4538
        %4747 = vmatmul.mubr.bf16.gmra.mrb[0].mxu0 %v4537
        %v4748 = vpop.f32.mrb[0].mxu0
        %v4749 = vadd.f32 %v4584, %v4748
        %v4750 = vpop.f32.mrb[0].mxu0
        %v4751 = vpop.f32.mrb[0].mxu0
        %v4752 = vadd.f32 %v4584, %v4751
        %v4753 = vpop.f32.mrb[0].mxu0
        %4754 = vmatprep.mubr.bf16.mxu0 %v4540
        %4755 = vmatmul.mubr.bf16.gmra.mrb[0].mxu0 %v4539
        %v4756 = vpop.f32.mrb[0].mxu0
        %v4757 = vadd.f32 %v4584, %v4756
        %v4758 = vpop.f32.mrb[0].mxu0
        %v4759 = vpop.f32.mrb[0].mxu0
        %v4760 = vadd.f32 %v4584, %v4759
        %v4761 = vpop.f32.mrb[0].mxu0
        %4762 = vmatprep.mubr.bf16.mxu0 %v4542
        %4763 = vmatmul.mubr.bf16.gmra.mrb[0].mxu0 %v4541
        %v4764 = vpop.f32.mrb[0].mxu0
        %v4765 = vadd.f32 %v4584, %v4764
        %v4766 = vpop.f32.mrb[0].mxu0
        %v4767 = vpop.f32.mrb[0].mxu0
        %v4768 = vadd.f32 %v4584, %v4767
        %v4769 = vpop.f32.mrb[0].mxu0
        %4770 = vmatprep.mubr.bf16.mxu0 %v4544
        %4771 = vmatmul.mubr.bf16.gmra.mrb[0].mxu0 %v4543
        %v4772 = vpop.f32.mrb[0].mxu0
        %v4773 = vadd.f32 %v4584, %v4772
        %v4774 = vpop.f32.mrb[0].mxu0
        %v4775 = vpop.f32.mrb[0].mxu0
        %v4776 = vadd.f32 %v4584, %v4775
        %v4777 = vpop.f32.mrb[0].mxu0
        %4778 = vdwg.mxu0
        %v4779 = vadd.f32 %v3994, %v4717
        %v4780 = vadd.f32 %v3995, %v4720
        %v4781 = vadd.f32 %v3996, %v4725
        %v4782 = vadd.f32 %v3997, %v4728
        %v4783 = vadd.f32 %v3998, %v4733
        %v4784 = vadd.f32 %v3999, %v4736
        %v4785 = vadd.f32 %v4000, %v4741
        %v4786 = vadd.f32 %v4001, %v4744
        %v4787 = vadd.f32 %v4002, %v4749
        %v4788 = vadd.f32 %v4003, %v4752
        %v4789 = vadd.f32 %v4004, %v4757
        %v4790 = vadd.f32 %v4005, %v4760
        %v4791 = vadd.f32 %v4006, %v4765
        %v4792 = vadd.f32 %v4007, %v4768
        %v4793 = vadd.f32 %v4008, %v4773
        %v4794 = vadd.f32 %v4009, %v4776
        %s4795 = scalar_lea.vmem %s13, 1
        %v4796 = vld [vmem:[%s4795] sm:$0x1]
        %s4797 = scalar_lea.vmem %s14, 1
        %v4798 = vld [vmem:[%s4797] sm:$0x1]
        %4799 = vadd.xlane.f32.xlu0 %v4779
        %v4800 = vpop.xlane.xlu0 %4799
        %4801 = vadd.xlane.f32.xlu0 %v4780
        %v4802 = vpop.xlane.xlu0 %4801
        %4803 = vadd.xlane.f32.xlu0 %v4781
        %v4804 = vpop.xlane.xlu0 %4803
        %4805 = vadd.xlane.f32.xlu0 %v4782
        %v4806 = vpop.xlane.xlu0 %4805
        %4807 = vadd.xlane.f32.xlu0 %v4783
        %v4808 = vpop.xlane.xlu0 %4807
        %4809 = vadd.xlane.f32.xlu0 %v4784
        %v4810 = vpop.xlane.xlu0 %4809
        %4811 = vadd.xlane.f32.xlu0 %v4785
        %v4812 = vpop.xlane.xlu0 %4811
        %4813 = vadd.xlane.f32.xlu0 %v4786
        %v4814 = vpop.xlane.xlu0 %4813
        %4815 = vadd.xlane.f32.xlu0 %v4787
        %v4816 = vpop.xlane.xlu0 %4815
        %4817 = vadd.xlane.f32.xlu0 %v4788
        %v4818 = vpop.xlane.xlu0 %4817
        %4819 = vadd.xlane.f32.xlu0 %v4789
        %v4820 = vpop.xlane.xlu0 %4819
        %4821 = vadd.xlane.f32.xlu0 %v4790
        %v4822 = vpop.xlane.xlu0 %4821
        %4823 = vadd.xlane.f32.xlu0 %v4791
        %v4824 = vpop.xlane.xlu0 %4823
        %4825 = vadd.xlane.f32.xlu0 %v4792
        %v4826 = vpop.xlane.xlu0 %4825
        %4827 = vadd.xlane.f32.xlu0 %v4793
        %v4828 = vpop.xlane.xlu0 %4827
        %4829 = vadd.xlane.f32.xlu0 %v4794
        %v4830 = vpop.xlane.xlu0 %4829
        %v4831 = vmul.f32 %v4800, %v1617
        %v4832 = vmul.f32 %v4802, %v1617
        %v4833 = vmul.f32 %v4804, %v1617
        %v4834 = vmul.f32 %v4806, %v1617
        %v4835 = vmul.f32 %v4808, %v1617
        %v4836 = vmul.f32 %v4810, %v1617
        %v4837 = vmul.f32 %v4812, %v1617
        %v4838 = vmul.f32 %v4814, %v1617
        %v4839 = vmul.f32 %v4816, %v1617
        %v4840 = vmul.f32 %v4818, %v1617
        %v4841 = vmul.f32 %v4820, %v1617
        %v4842 = vmul.f32 %v4822, %v1617
        %v4843 = vmul.f32 %v4824, %v1617
        %v4844 = vmul.f32 %v4826, %v1617
        %v4845 = vmul.f32 %v4828, %v1617
        %v4846 = vmul.f32 %v4830, %v1617
        %v4847 = vsub.f32 %v4779, %v4831
        %v4848 = vsub.f32 %v4780, %v4832
        %v4849 = vsub.f32 %v4781, %v4833
        %v4850 = vsub.f32 %v4782, %v4834
        %v4851 = vsub.f32 %v4783, %v4835
        %v4852 = vsub.f32 %v4784, %v4836
        %v4853 = vsub.f32 %v4785, %v4837
        %v4854 = vsub.f32 %v4786, %v4838
        %v4855 = vsub.f32 %v4787, %v4839
        %v4856 = vsub.f32 %v4788, %v4840
        %v4857 = vsub.f32 %v4789, %v4841
        %v4858 = vsub.f32 %v4790, %v4842
        %v4859 = vsub.f32 %v4791, %v4843
        %v4860 = vsub.f32 %v4792, %v4844
        %v4861 = vsub.f32 %v4793, %v4845
        %v4862 = vsub.f32 %v4794, %v4846
        %v4863 = vmul.f32 %v4847, %v4847
        %v4864 = vmul.f32 %v4848, %v4848
        %v4865 = vmul.f32 %v4849, %v4849
        %v4866 = vmul.f32 %v4850, %v4850
        %v4867 = vmul.f32 %v4851, %v4851
        %v4868 = vmul.f32 %v4852, %v4852
        %v4869 = vmul.f32 %v4853, %v4853
        %v4870 = vmul.f32 %v4854, %v4854
        %v4871 = vmul.f32 %v4855, %v4855
        %v4872 = vmul.f32 %v4856, %v4856
        %v4873 = vmul.f32 %v4857, %v4857
        %v4874 = vmul.f32 %v4858, %v4858
        %v4875 = vmul.f32 %v4859, %v4859
        %v4876 = vmul.f32 %v4860, %v4860
        %v4877 = vmul.f32 %v4861, %v4861
        %v4878 = vmul.f32 %v4862, %v4862
        %4879 = vadd.xlane.f32.xlu0 %v4863
        %v4880 = vpop.xlane.xlu0 %4879
        %4881 = vadd.xlane.f32.xlu0 %v4864
        %v4882 = vpop.xlane.xlu0 %4881
        %4883 = vadd.xlane.f32.xlu0 %v4865
        %v4884 = vpop.xlane.xlu0 %4883
        %4885 = vadd.xlane.f32.xlu0 %v4866
        %v4886 = vpop.xlane.xlu0 %4885
        %4887 = vadd.xlane.f32.xlu0 %v4867
        %v4888 = vpop.xlane.xlu0 %4887
        %4889 = vadd.xlane.f32.xlu0 %v4868
        %v4890 = vpop.xlane.xlu0 %4889
        %4891 = vadd.xlane.f32.xlu0 %v4869
        %v4892 = vpop.xlane.xlu0 %4891
        %4893 = vadd.xlane.f32.xlu0 %v4870
        %v4894 = vpop.xlane.xlu0 %4893
        %4895 = vadd.xlane.f32.xlu0 %v4871
        %v4896 = vpop.xlane.xlu0 %4895
        %4897 = vadd.xlane.f32.xlu0 %v4872
        %v4898 = vpop.xlane.xlu0 %4897
        %4899 = vadd.xlane.f32.xlu0 %v4873
        %v4900 = vpop.xlane.xlu0 %4899
        %4901 = vadd.xlane.f32.xlu0 %v4874
        %v4902 = vpop.xlane.xlu0 %4901
        %4903 = vadd.xlane.f32.xlu0 %v4875
        %v4904 = vpop.xlane.xlu0 %4903
        %4905 = vadd.xlane.f32.xlu0 %v4876
        %v4906 = vpop.xlane.xlu0 %4905
        %4907 = vadd.xlane.f32.xlu0 %v4877
        %v4908 = vpop.xlane.xlu0 %4907
        %4909 = vadd.xlane.f32.xlu0 %v4878
        %v4910 = vpop.xlane.xlu0 %4909
        %v4911 = vmul.f32 %v4880, %v1617
        %v4912 = vmul.f32 %v4882, %v1617
        %v4913 = vmul.f32 %v4884, %v1617
        %v4914 = vmul.f32 %v4886, %v1617
        %v4915 = vmul.f32 %v4888, %v1617
        %v4916 = vmul.f32 %v4890, %v1617
        %v4917 = vmul.f32 %v4892, %v1617
        %v4918 = vmul.f32 %v4894, %v1617
        %v4919 = vmul.f32 %v4896, %v1617
        %v4920 = vmul.f32 %v4898, %v1617
        %v4921 = vmul.f32 %v4900, %v1617
        %v4922 = vmul.f32 %v4902, %v1617
        %v4923 = vmul.f32 %v4904, %v1617
        %v4924 = vmul.f32 %v4906, %v1617
        %v4925 = vmul.f32 %v4908, %v1617
        %v4926 = vmul.f32 %v4910, %v1617
        %v4927 = vadd.f32 %v4911, 1e-12
        %v4928 = vadd.f32 %v4912, 1e-12
        %v4929 = vadd.f32 %v4913, 1e-12
        %v4930 = vadd.f32 %v4914, 1e-12
        %v4931 = vadd.f32 %v4915, 1e-12
        %v4932 = vadd.f32 %v4916, 1e-12
        %v4933 = vadd.f32 %v4917, 1e-12
        %v4934 = vadd.f32 %v4918, 1e-12
        %v4935 = vadd.f32 %v4919, 1e-12
        %v4936 = vadd.f32 %v4920, 1e-12
        %v4937 = vadd.f32 %v4921, 1e-12
        %v4938 = vadd.f32 %v4922, 1e-12
        %v4939 = vadd.f32 %v4923, 1e-12
        %v4940 = vadd.f32 %v4924, 1e-12
        %v4941 = vadd.f32 %v4925, 1e-12
        %v4942 = vadd.f32 %v4926, 1e-12
        %v4943 = vrsqrt.pop %v4927
        %v4944 = vrsqrt.pop %v4928
        %v4945 = vrsqrt.pop %v4929
        %v4946 = vrsqrt.pop %v4930
        %v4947 = vrsqrt.pop %v4931
        %v4948 = vrsqrt.pop %v4932
        %v4949 = vrsqrt.pop %v4933
        %v4950 = vrsqrt.pop %v4934
        %v4951 = vrsqrt.pop %v4935
        %v4952 = vrsqrt.pop %v4936
        %v4953 = vrsqrt.pop %v4937
        %v4954 = vrsqrt.pop %v4938
        %v4955 = vrsqrt.pop %v4939
        %v4956 = vrsqrt.pop %v4940
        %v4957 = vrsqrt.pop %v4941
        %v4958 = vrsqrt.pop %v4942
        %v4959 = vmul.f32 %v4847, %v4943
        %v4960 = vmul.f32 %v4848, %v4944
        %v4961 = vmul.f32 %v4849, %v4945
        %v4962 = vmul.f32 %v4850, %v4946
        %v4963 = vmul.f32 %v4851, %v4947
        %v4964 = vmul.f32 %v4852, %v4948
        %v4965 = vmul.f32 %v4853, %v4949
        %v4966 = vmul.f32 %v4854, %v4950
        %v4967 = vmul.f32 %v4855, %v4951
        %v4968 = vmul.f32 %v4856, %v4952
        %v4969 = vmul.f32 %v4857, %v4953
        %v4970 = vmul.f32 %v4858, %v4954
        %v4971 = vmul.f32 %v4859, %v4955
        %v4972 = vmul.f32 %v4860, %v4956
        %v4973 = vmul.f32 %v4861, %v4957
        %v4974 = vmul.f32 %v4862, %v4958
        %v4976 = vlaneseq
        %v4977 = vshrl.u32 %v4976, 7
        %v4978 = vsub.s32 0, %v4977
        %v4979 = vrot.slane %v4796, %v4978
        %v4981 = vmul.f32 %v4959, %v4979
        %v4982 = vmul.f32 %v4960, %v4979
        %v4983 = vmul.f32 %v4961, %v4979
        %v4984 = vmul.f32 %v4962, %v4979
        %v4985 = vmul.f32 %v4963, %v4979
        %v4986 = vmul.f32 %v4964, %v4979
        %v4987 = vmul.f32 %v4965, %v4979
        %v4988 = vmul.f32 %v4966, %v4979
        %v4989 = vmul.f32 %v4967, %v4979
        %v4990 = vmul.f32 %v4968, %v4979
        %v4991 = vmul.f32 %v4969, %v4979
        %v4992 = vmul.f32 %v4970, %v4979
        %v4993 = vmul.f32 %v4971, %v4979
        %v4994 = vmul.f32 %v4972, %v4979
        %v4995 = vmul.f32 %v4973, %v4979
        %v4996 = vmul.f32 %v4974, %v4979
        %v4998 = vlaneseq
        %v4999 = vshrl.u32 %v4998, 7
        %v5000 = vsub.s32 0, %v4999
        %v5001 = vrot.slane %v4798, %v5000
        %v5003 = vadd.f32 %v4981, %v5001
        %v5004 = vadd.f32 %v4982, %v5001
        %v5005 = vadd.f32 %v4983, %v5001
        %v5006 = vadd.f32 %v4984, %v5001
        %v5007 = vadd.f32 %v4985, %v5001
        %v5008 = vadd.f32 %v4986, %v5001
        %v5009 = vadd.f32 %v4987, %v5001
        %v5010 = vadd.f32 %v4988, %v5001
        %v5011 = vadd.f32 %v4989, %v5001
        %v5012 = vadd.f32 %v4990, %v5001
        %v5013 = vadd.f32 %v4991, %v5001
        %v5014 = vadd.f32 %v4992, %v5001
        %v5015 = vadd.f32 %v4993, %v5001
        %v5016 = vadd.f32 %v4994, %v5001
        %v5017 = vadd.f32 %v4995, %v5001
        %v5018 = vadd.f32 %v4996, %v5001
        %v5019 = vadd.f32 %v2809, %v5003
        %v5020 = vadd.f32 %v2810, %v5004
        %v5021 = vadd.f32 %v2811, %v5005
        %v5022 = vadd.f32 %v2812, %v5006
        %v5023 = vadd.f32 %v2813, %v5007
        %v5024 = vadd.f32 %v2814, %v5008
        %v5025 = vadd.f32 %v2815, %v5009
        %v5026 = vadd.f32 %v2816, %v5010
        %v5027 = vadd.f32 %v2817, %v5011
        %v5028 = vadd.f32 %v2818, %v5012
        %v5029 = vadd.f32 %v2819, %v5013
        %v5030 = vadd.f32 %v2820, %v5014
        %v5031 = vadd.f32 %v2821, %v5015
        %v5032 = vadd.f32 %v2822, %v5016
        %v5033 = vadd.f32 %v2823, %v5017
        %v5034 = vadd.f32 %v2824, %v5018
        %v5035 = vpack.c.bf16 %v5004, %v5003
        %v5036 = vpack.c.bf16 %v5006, %v5005
        %v5037 = vpack.c.bf16 %v5008, %v5007
        %v5038 = vpack.c.bf16 %v5010, %v5009
        %v5039 = vpack.c.bf16 %v5012, %v5011
        %v5040 = vpack.c.bf16 %v5014, %v5013
        %v5041 = vpack.c.bf16 %v5016, %v5015
        %v5042 = vpack.c.bf16 %v5018, %v5017
        %s5043 = scalar_lea.vmem [#allocation4], 384
        %v5044 = vld [vmem:[%s5043] sm:$0xff]
        %v5045 = vld [vmem:[%s5043 + $0x8] sm:$0xf]
        %v5046 = vld [vmem:[%s5043 + $0xc] sm:$0xff]
        %v5047 = vld [vmem:[%s5043 + $0x14] sm:$0xf]
        %v5048 = vld [vmem:[%s5043 + $0x18] sm:$0xff]
        %v5049 = vld [vmem:[%s5043 + $0x20] sm:$0xf]
        %v5050 = vld [vmem:[%s5043 + $0x24] sm:$0xff]
        %v5051 = vld [vmem:[%s5043 + $0x2c] sm:$0xf]
        %v5052 = vld [vmem:[%s5043 + $0x30] sm:$0xff]
        %v5053 = vld [vmem:[%s5043 + $0x38] sm:$0xf]
        %v5054 = vld [vmem:[%s5043 + $0x3c] sm:$0xff]
        %v5055 = vld [vmem:[%s5043 + $0x44] sm:$0xf]
        %v5056 = vld [vmem:[%s5043 + $0x48] sm:$0xff]
        %v5057 = vld [vmem:[%s5043 + $0x50] sm:$0xf]
        %v5058 = vld [vmem:[%s5043 + $0x54] sm:$0xff]
        %v5059 = vld [vmem:[%s5043 + $0x5c] sm:$0xf]
        %v5060 = vld [vmem:[%s5043 + $0x60] sm:$0xff]
        %v5061 = vld [vmem:[%s5043 + $0x68] sm:$0xf]
        %v5062 = vld [vmem:[%s5043 + $0x6c] sm:$0xff]
        %v5063 = vld [vmem:[%s5043 + $0x74] sm:$0xf]
        %v5064 = vld [vmem:[%s5043 + $0x78] sm:$0xff]
        %v5065 = vld [vmem:[%s5043 + $0x80] sm:$0xf]
        %v5066 = vld [vmem:[%s5043 + $0x84] sm:$0xff]
        %v5067 = vld [vmem:[%s5043 + $0x8c] sm:$0xf]
        %v5068 = vld [vmem:[%s5043 + $0x90] sm:$0xff]
        %v5069 = vld [vmem:[%s5043 + $0x98] sm:$0xf]
        %v5070 = vld [vmem:[%s5043 + $0x9c] sm:$0xff]
        %v5071 = vld [vmem:[%s5043 + $0xa4] sm:$0xf]
        %v5072 = vld [vmem:[%s5043 + $0xa8] sm:$0xff]
        %v5073 = vld [vmem:[%s5043 + $0xb0] sm:$0xf]
        %v5074 = vld [vmem:[%s5043 + $0xb4] sm:$0xff]
        %v5075 = vld [vmem:[%s5043 + $0xbc] sm:$0xf]
        %s5076 = scalar_lea.vmem %s4, 6
        %v5077 = vld [vmem:[%s5076] sm:$0x7]
        %v5079 = vlaneseq
        %v5080 = vshrl.u32 %v5079, 7
        %v5081 = vsub.s32 0, %v5080
        %v5082 = vrot.slane %v5077, %v5081
        %v5083 = vlaneseq
        %v5084 = vshrl.u32 %v5083, 7
        %v5085 = vsub.s32 1, %v5084
        %v5086 = vrot.slane %v5077, %v5085
        %v5087 = vlaneseq
        %v5088 = vshrl.u32 %v5087, 7
        %v5089 = vsub.s32 2, %v5088
        %v5090 = vrot.slane %v5077, %v5089
        %v5126 = vunpack.c.l.b16 %v5044
        %v5127 = vunpack.c.h.b16 %v5044
        %v5128 = vunpack.c.l.b16 %v5045
        %v5129 = vunpack.c.l.b16 %v5046
        %v5130 = vunpack.c.h.b16 %v5046
        %v5131 = vunpack.c.l.b16 %v5047
        %v5132 = vunpack.c.l.b16 %v5048
        %v5133 = vunpack.c.h.b16 %v5048
        %v5134 = vunpack.c.l.b16 %v5049
        %v5135 = vunpack.c.l.b16 %v5050
        %v5136 = vunpack.c.h.b16 %v5050
        %v5137 = vunpack.c.l.b16 %v5051
        %v5138 = vunpack.c.l.b16 %v5052
        %v5139 = vunpack.c.h.b16 %v5052
        %v5140 = vunpack.c.l.b16 %v5053
        %v5141 = vunpack.c.l.b16 %v5054
        %v5142 = vunpack.c.h.b16 %v5054
        %v5143 = vunpack.c.l.b16 %v5055
        %v5144 = vunpack.c.l.b16 %v5056
        %v5145 = vunpack.c.h.b16 %v5056
        %v5146 = vunpack.c.l.b16 %v5057
        %v5147 = vunpack.c.l.b16 %v5058
        %v5148 = vunpack.c.h.b16 %v5058
        %v5149 = vunpack.c.l.b16 %v5059
        %v5150 = vunpack.c.l.b16 %v5060
        %v5151 = vunpack.c.h.b16 %v5060
        %v5152 = vunpack.c.l.b16 %v5061
        %v5153 = vunpack.c.l.b16 %v5062
        %v5154 = vunpack.c.h.b16 %v5062
        %v5155 = vunpack.c.l.b16 %v5063
        %v5156 = vunpack.c.l.b16 %v5064
        %v5157 = vunpack.c.h.b16 %v5064
        %v5158 = vunpack.c.l.b16 %v5065
        %v5159 = vunpack.c.l.b16 %v5066
        %v5160 = vunpack.c.h.b16 %v5066
        %v5161 = vunpack.c.l.b16 %v5067
        %v5162 = vunpack.c.l.b16 %v5068
        %v5163 = vunpack.c.h.b16 %v5068
        %v5164 = vunpack.c.l.b16 %v5069
        %v5165 = vunpack.c.l.b16 %v5070
        %v5166 = vunpack.c.h.b16 %v5070
        %v5167 = vunpack.c.l.b16 %v5071
        %v5168 = vunpack.c.l.b16 %v5072
        %v5169 = vunpack.c.h.b16 %v5072
        %v5170 = vunpack.c.l.b16 %v5073
        %v5171 = vunpack.c.l.b16 %v5074
        %v5172 = vunpack.c.h.b16 %v5074
        %v5173 = vunpack.c.l.b16 %v5075
        %v5174 = vpack.c.b16 %v5129, %v5126
        %v5175 = vpack.c.b16 %v5130, %v5127
        %v5176 = vpack.c.b16 %v5131, %v5128
        %v5177 = vpack.c.b16 %v5135, %v5132
        %v5178 = vpack.c.b16 %v5136, %v5133
        %v5179 = vpack.c.b16 %v5137, %v5134
        %v5180 = vpack.c.b16 %v5141, %v5138
        %v5181 = vpack.c.b16 %v5142, %v5139
        %v5182 = vpack.c.b16 %v5143, %v5140
        %v5183 = vpack.c.b16 %v5147, %v5144
        %v5184 = vpack.c.b16 %v5148, %v5145
        %v5185 = vpack.c.b16 %v5149, %v5146
        %v5186 = vpack.c.b16 %v5153, %v5150
        %v5187 = vpack.c.b16 %v5154, %v5151
        %v5188 = vpack.c.b16 %v5155, %v5152
        %v5189 = vpack.c.b16 %v5159, %v5156
        %v5190 = vpack.c.b16 %v5160, %v5157
        %v5191 = vpack.c.b16 %v5161, %v5158
        %v5192 = vpack.c.b16 %v5165, %v5162
        %v5193 = vpack.c.b16 %v5166, %v5163
        %v5194 = vpack.c.b16 %v5167, %v5164
        %v5195 = vpack.c.b16 %v5171, %v5168
        %v5196 = vpack.c.b16 %v5172, %v5169
        %v5197 = vpack.c.b16 %v5173, %v5170
        %5222 = vmatprep.subr.bf16.mxu0 %v5175
        %5223 = vmatpush1.bf16.msra.mxu0 %v5174
        %5224 = vmatprep.subr.bf16.mxu0 %v5178
        %5225 = vmatpush1.bf16.msra.mxu0 %v5177
        %5226 = vmatprep.subr.bf16.mxu0 %v5181
        %5227 = vmatpush1.bf16.msra.mxu0 %v5180
        %5228 = vmatprep.subr.bf16.mxu0 %v5184
        %5229 = vmatpush1.bf16.msra.mxu0 %v5183
        %5230 = vmatprep.subr.bf16.mxu0 %v5187
        %5231 = vmatpush1.bf16.msra.mxu0 %v5186
        %5232 = vmatprep.subr.bf16.mxu0 %v5190
        %5233 = vmatpush1.bf16.msra.mxu0 %v5189
        %5234 = vmatprep.subr.bf16.mxu0 %v5193
        %5235 = vmatpush1.bf16.msra.mxu0 %v5192
        %5236 = vmatprep.subr.bf16.mxu0 %v5196
        %5237 = vmatpush1.bf16.msra.mxu0 %v5195
        %5238 = vmatprep.subr.bf16.mxu0 0
        %5239 = vmatpush1.bf16.msra.mxu0 0
        %5240 = vmatprep.subr.bf16.mxu0 0
        %5241 = vmatpush1.bf16.msra.mxu0 0
        %5242 = vmatprep.subr.bf16.mxu0 0
        %5243 = vmatpush1.bf16.msra.mxu0 0
        %5244 = vmatprep.subr.bf16.mxu0 0
        %5245 = vmatpush1.bf16.msra.mxu0 0
        %5246 = vmatprep.subr.bf16.mxu0 0
        %5247 = vmatpush1.bf16.msra.mxu0 0
        %5248 = vmatprep.subr.bf16.mxu0 0
        %5249 = vmatpush1.bf16.msra.mxu0 0
        %5250 = vmatprep.subr.bf16.mxu0 0
        %5251 = vmatpush1.bf16.msra.mxu0 0
        %5252 = vmatprep.subr.bf16.mxu0 0
        %5253 = vmatpush1.bf16.msra.mxu0 0
        %5254 = vmatprep.mubr.bf16.mxu0 0
        %5255 = vmatmul.mubr.bf16.gmra.mrb[0].mxu0 %v5035
        %v5256 = vpop.f32.mrb[0].mxu0
        %v5257 = vadd.f32 %v5082, %v5256
        %v5258 = vpop.f32.mrb[0].mxu0
        %v5259 = vadd.f32 %v5086, %v5258
        %v5260 = vpop.f32.mrb[0].mxu0
        %v5261 = vadd.f32 %v5082, %v5260
        %v5262 = vpop.f32.mrb[0].mxu0
        %v5263 = vadd.f32 %v5086, %v5262
        %5264 = vmatprep.mubr.bf16.mxu0 0
        %5265 = vmatmul.mubr.bf16.gmra.mrb[0].mxu0 %v5036
        %v5266 = vpop.f32.mrb[0].mxu0
        %v5267 = vadd.f32 %v5082, %v5266
        %v5268 = vpop.f32.mrb[0].mxu0
        %v5269 = vadd.f32 %v5086, %v5268
        %v5270 = vpop.f32.mrb[0].mxu0
        %v5271 = vadd.f32 %v5082, %v5270
        %v5272 = vpop.f32.mrb[0].mxu0
        %v5273 = vadd.f32 %v5086, %v5272
        %5274 = vmatprep.mubr.bf16.mxu0 0
        %5275 = vmatmul.mubr.bf16.gmra.mrb[0].mxu0 %v5037
        %v5276 = vpop.f32.mrb[0].mxu0
        %v5277 = vadd.f32 %v5082, %v5276
        %v5278 = vpop.f32.mrb[0].mxu0
        %v5279 = vadd.f32 %v5086, %v5278
        %v5280 = vpop.f32.mrb[0].mxu0
        %v5281 = vadd.f32 %v5082, %v5280
        %v5282 = vpop.f32.mrb[0].mxu0
        %v5283 = vadd.f32 %v5086, %v5282
        %5284 = vmatprep.mubr.bf16.mxu0 0
        %5285 = vmatmul.mubr.bf16.gmra.mrb[0].mxu0 %v5038
        %v5286 = vpop.f32.mrb[0].mxu0
        %v5287 = vadd.f32 %v5082, %v5286
        %v5288 = vpop.f32.mrb[0].mxu0
        %v5289 = vadd.f32 %v5086, %v5288
        %v5290 = vpop.f32.mrb[0].mxu0
        %v5291 = vadd.f32 %v5082, %v5290
        %v5292 = vpop.f32.mrb[0].mxu0
        %v5293 = vadd.f32 %v5086, %v5292
        %5294 = vmatprep.mubr.bf16.mxu0 0
        %5295 = vmatmul.mubr.bf16.gmra.mrb[0].mxu0 %v5039
        %v5296 = vpop.f32.mrb[0].mxu0
        %v5297 = vadd.f32 %v5082, %v5296
        %v5298 = vpop.f32.mrb[0].mxu0
        %v5299 = vadd.f32 %v5086, %v5298
        %v5300 = vpop.f32.mrb[0].mxu0
        %v5301 = vadd.f32 %v5082, %v5300
        %v5302 = vpop.f32.mrb[0].mxu0
        %v5303 = vadd.f32 %v5086, %v5302
        %5304 = vmatprep.mubr.bf16.mxu0 0
        %5305 = vmatmul.mubr.bf16.gmra.mrb[0].mxu0 %v5040
        %v5306 = vpop.f32.mrb[0].mxu0
        %v5307 = vadd.f32 %v5082, %v5306
        %v5308 = vpop.f32.mrb[0].mxu0
        %v5309 = vadd.f32 %v5086, %v5308
        %v5310 = vpop.f32.mrb[0].mxu0
        %v5311 = vadd.f32 %v5082, %v5310
        %v5312 = vpop.f32.mrb[0].mxu0
        %v5313 = vadd.f32 %v5086, %v5312
        %5314 = vmatprep.mubr.bf16.mxu0 0
        %5315 = vmatmul.mubr.bf16.gmra.mrb[0].mxu0 %v5041
        %v5316 = vpop.f32.mrb[0].mxu0
        %v5317 = vadd.f32 %v5082, %v5316
        %v5318 = vpop.f32.mrb[0].mxu0
        %v5319 = vadd.f32 %v5086, %v5318
        %v5320 = vpop.f32.mrb[0].mxu0
        %v5321 = vadd.f32 %v5082, %v5320
        %v5322 = vpop.f32.mrb[0].mxu0
        %v5323 = vadd.f32 %v5086, %v5322
        %5324 = vmatprep.mubr.bf16.mxu0 0
        %5325 = vmatmul.mubr.bf16.gmra.mrb[0].mxu0 %v5042
        %v5326 = vpop.f32.mrb[0].mxu0
        %v5327 = vadd.f32 %v5082, %v5326
        %v5328 = vpop.f32.mrb[0].mxu0
        %v5329 = vadd.f32 %v5086, %v5328
        %v5330 = vpop.f32.mrb[0].mxu0
        %v5331 = vadd.f32 %v5082, %v5330
        %v5332 = vpop.f32.mrb[0].mxu0
        %v5333 = vadd.f32 %v5086, %v5332
        %5334 = vdwg.mxu0
        %5335 = vmatprep.subr.bf16.mxu0 0
        %5336 = vmatpush1.bf16.msra.mxu0 %v5176
        %5337 = vmatprep.subr.bf16.mxu0 0
        %5338 = vmatpush1.bf16.msra.mxu0 %v5179
        %5339 = vmatprep.subr.bf16.mxu0 0
        %5340 = vmatpush1.bf16.msra.mxu0 %v5182
        %5341 = vmatprep.subr.bf16.mxu0 0
        %5342 = vmatpush1.bf16.msra.mxu0 %v5185
        %5343 = vmatprep.subr.bf16.mxu0 0
        %5344 = vmatpush1.bf16.msra.mxu0 %v5188
        %5345 = vmatprep.subr.bf16.mxu0 0
        %5346 = vmatpush1.bf16.msra.mxu0 %v5191
        %5347 = vmatprep.subr.bf16.mxu0 0
        %5348 = vmatpush1.bf16.msra.mxu0 %v5194
        %5349 = vmatprep.subr.bf16.mxu0 0
        %5350 = vmatpush1.bf16.msra.mxu0 %v5197
        %5351 = vmatprep.subr.bf16.mxu0 0
        %5352 = vmatpush1.bf16.msra.mxu0 0
        %5353 = vmatprep.subr.bf16.mxu0 0
        %5354 = vmatpush1.bf16.msra.mxu0 0
        %5355 = vmatprep.subr.bf16.mxu0 0
        %5356 = vmatpush1.bf16.msra.mxu0 0
        %5357 = vmatprep.subr.bf16.mxu0 0
        %5358 = vmatpush1.bf16.msra.mxu0 0
        %5359 = vmatprep.subr.bf16.mxu0 0
        %5360 = vmatpush1.bf16.msra.mxu0 0
        %5361 = vmatprep.subr.bf16.mxu0 0
        %5362 = vmatpush1.bf16.msra.mxu0 0
        %5363 = vmatprep.subr.bf16.mxu0 0
        %5364 = vmatpush1.bf16.msra.mxu0 0
        %5365 = vmatprep.subr.bf16.mxu0 0
        %5366 = vmatpush1.bf16.msra.mxu0 0
        %5367 = vmatprep.mubr.bf16.mxu0 0
        %5368 = vmatmul.mubr.bf16.gmra.mrb[0].mxu0 %v5035
        %v5369 = vpop.f32.mrb[0].mxu0
        %v5370 = vadd.f32 %v5090, %v5369
        %v5371 = vpop.f32.mrb[0].mxu0
        %v5372 = vpop.f32.mrb[0].mxu0
        %v5373 = vadd.f32 %v5090, %v5372
        %v5374 = vpop.f32.mrb[0].mxu0
        %5375 = vmatprep.mubr.bf16.mxu0 0
        %5376 = vmatmul.mubr.bf16.gmra.mrb[0].mxu0 %v5036
        %v5377 = vpop.f32.mrb[0].mxu0
        %v5378 = vadd.f32 %v5090, %v5377
        %v5379 = vpop.f32.mrb[0].mxu0
        %v5380 = vpop.f32.mrb[0].mxu0
        %v5381 = vadd.f32 %v5090, %v5380
        %v5382 = vpop.f32.mrb[0].mxu0
        %5383 = vmatprep.mubr.bf16.mxu0 0
        %5384 = vmatmul.mubr.bf16.gmra.mrb[0].mxu0 %v5037
        %v5385 = vpop.f32.mrb[0].mxu0
        %v5386 = vadd.f32 %v5090, %v5385
        %v5387 = vpop.f32.mrb[0].mxu0
        %v5388 = vpop.f32.mrb[0].mxu0
        %v5389 = vadd.f32 %v5090, %v5388
        %v5390 = vpop.f32.mrb[0].mxu0
        %5391 = vmatprep.mubr.bf16.mxu0 0
        %5392 = vmatmul.mubr.bf16.gmra.mrb[0].mxu0 %v5038
        %v5393 = vpop.f32.mrb[0].mxu0
        %v5394 = vadd.f32 %v5090, %v5393
        %v5395 = vpop.f32.mrb[0].mxu0
        %v5396 = vpop.f32.mrb[0].mxu0
        %v5397 = vadd.f32 %v5090, %v5396
        %v5398 = vpop.f32.mrb[0].mxu0
        %5399 = vmatprep.mubr.bf16.mxu0 0
        %5400 = vmatmul.mubr.bf16.gmra.mrb[0].mxu0 %v5039
        %v5401 = vpop.f32.mrb[0].mxu0
        %v5402 = vadd.f32 %v5090, %v5401
        %v5403 = vpop.f32.mrb[0].mxu0
        %v5404 = vpop.f32.mrb[0].mxu0
        %v5405 = vadd.f32 %v5090, %v5404
        %v5406 = vpop.f32.mrb[0].mxu0
        %5407 = vmatprep.mubr.bf16.mxu0 0
        %5408 = vmatmul.mubr.bf16.gmra.mrb[0].mxu0 %v5040
        %v5409 = vpop.f32.mrb[0].mxu0
        %v5410 = vadd.f32 %v5090, %v5409
        %v5411 = vpop.f32.mrb[0].mxu0
        %v5412 = vpop.f32.mrb[0].mxu0
        %v5413 = vadd.f32 %v5090, %v5412
        %v5414 = vpop.f32.mrb[0].mxu0
        %5415 = vmatprep.mubr.bf16.mxu0 0
        %5416 = vmatmul.mubr.bf16.gmra.mrb[0].mxu0 %v5041
        %v5417 = vpop.f32.mrb[0].mxu0
        %v5418 = vadd.f32 %v5090, %v5417
        %v5419 = vpop.f32.mrb[0].mxu0
        %v5420 = vpop.f32.mrb[0].mxu0
        %v5421 = vadd.f32 %v5090, %v5420
        %v5422 = vpop.f32.mrb[0].mxu0
        %5423 = vmatprep.mubr.bf16.mxu0 0
        %5424 = vmatmul.mubr.bf16.gmra.mrb[0].mxu0 %v5042
        %v5425 = vpop.f32.mrb[0].mxu0
        %v5426 = vadd.f32 %v5090, %v5425
        %v5427 = vpop.f32.mrb[0].mxu0
        %v5428 = vpop.f32.mrb[0].mxu0
        %v5429 = vadd.f32 %v5090, %v5428
        %v5430 = vpop.f32.mrb[0].mxu0
        %5431 = vdwg.mxu0
        %v5432 = vpack.c.bf16 %v5261, %v5257
        %v5433 = vpack.c.bf16 %v5271, %v5267
        %v5434 = vpack.c.bf16 %v5281, %v5277
        %v5435 = vpack.c.bf16 %v5291, %v5287
        %v5436 = vpack.c.bf16 %v5301, %v5297
        %v5437 = vpack.c.bf16 %v5311, %v5307
        %v5438 = vpack.c.bf16 %v5321, %v5317
        %v5439 = vpack.c.bf16 %v5331, %v5327
        %v5440 = vpack.c.bf16 %v5263, %v5259
        %v5441 = vpack.c.bf16 %v5273, %v5269
        %v5442 = vpack.c.bf16 %v5283, %v5279
        %v5443 = vpack.c.bf16 %v5293, %v5289
        %v5444 = vpack.c.bf16 %v5303, %v5299
        %v5445 = vpack.c.bf16 %v5313, %v5309
        %v5446 = vpack.c.bf16 %v5323, %v5319
        %v5447 = vpack.c.bf16 %v5333, %v5329
        %v5448 = vpack.c.bf16 %v5373, %v5370
        %v5449 = vpack.c.bf16 %v5381, %v5378
        %v5450 = vpack.c.bf16 %v5389, %v5386
        %v5451 = vpack.c.bf16 %v5397, %v5394
        %v5452 = vpack.c.bf16 %v5405, %v5402
        %v5453 = vpack.c.bf16 %v5413, %v5410
        %v5454 = vpack.c.bf16 %v5421, %v5418
        %v5455 = vpack.c.bf16 %v5429, %v5426
        %5456 = vmatprep.subr.bf16.mxu0 0
        %5457 = vmatpush1.bf16.xpose.msra.mxu0 %v5440
        %5458 = vmatprep.subr.bf16.mxu0 0
        %5459 = vmatpush1.bf16.xpose.msra.mxu0 %v5441
        %5460 = vmatprep.subr.bf16.mxu0 0
        %5461 = vmatpush1.bf16.xpose.msra.mxu0 %v5442
        %5462 = vmatprep.subr.bf16.mxu0 0
        %5463 = vmatpush1.bf16.xpose.msra.mxu0 %v5443
        %5464 = vmatprep.subr.bf16.mxu0 0
        %5465 = vmatpush1.bf16.xpose.msra.mxu0 %v5444
        %5466 = vmatprep.subr.bf16.mxu0 0
        %5467 = vmatpush1.bf16.xpose.msra.mxu0 %v5445
        %5468 = vmatprep.subr.bf16.mxu0 0
        %5469 = vmatpush1.bf16.xpose.msra.mxu0 %v5446
        %5470 = vmatprep.subr.bf16.mxu0 0
        %5471 = vmatpush1.bf16.xpose.msra.mxu0 %v5447
        %5472 = vmatprep.subr.bf16.mxu0 0
        %5473 = vmatpush1.bf16.xpose.msra.mxu0 0
        %5474 = vmatprep.subr.bf16.mxu0 0
        %5475 = vmatpush1.bf16.xpose.msra.mxu0 0
        %5476 = vmatprep.subr.bf16.mxu0 0
        %5477 = vmatpush1.bf16.xpose.msra.mxu0 0
        %5478 = vmatprep.subr.bf16.mxu0 0
        %5479 = vmatpush1.bf16.xpose.msra.mxu0 0
        %5480 = vmatprep.subr.bf16.mxu0 0
        %5481 = vmatpush1.bf16.xpose.msra.mxu0 0
        %5482 = vmatprep.subr.bf16.mxu0 0
        %5483 = vmatpush1.bf16.xpose.msra.mxu0 0
        %5484 = vmatprep.subr.bf16.mxu0 0
        %5485 = vmatpush1.bf16.xpose.msra.mxu0 0
        %5486 = vmatprep.subr.bf16.mxu0 0
        %5487 = vmatpush1.bf16.xpose.msra.mxu0 0
        %5488 = vmatprep.mubr.bf16.mxu0 0
        %5489 = vmatmul.mubr.bf16.gmra.mrb[0].mxu0 %v5432
        %v5490 = vpop.f32.mrb[0].mxu0
        %v5491 = vadd.f32 %v1043, %v5490
        %v5492 = vpop.f32.mrb[0].mxu0
        %v5493 = vpop.f32.mrb[0].mxu0
        %v5494 = vadd.f32 %v1043, %v5493
        %v5495 = vpop.f32.mrb[0].mxu0
        %5496 = vmatprep.mubr.bf16.mxu0 0
        %5497 = vmatmul.mubr.bf16.gmra.mrb[0].mxu0 %v5433
        %v5498 = vpop.f32.mrb[0].mxu0
        %v5499 = vadd.f32 %v1043, %v5498
        %v5500 = vpop.f32.mrb[0].mxu0
        %v5501 = vpop.f32.mrb[0].mxu0
        %v5502 = vadd.f32 %v1043, %v5501
        %v5503 = vpop.f32.mrb[0].mxu0
        %5504 = vmatprep.mubr.bf16.mxu0 0
        %5505 = vmatmul.mubr.bf16.gmra.mrb[0].mxu0 %v5434
        %v5506 = vpop.f32.mrb[0].mxu0
        %v5507 = vadd.f32 %v1043, %v5506
        %v5508 = vpop.f32.mrb[0].mxu0
        %v5509 = vpop.f32.mrb[0].mxu0
        %v5510 = vadd.f32 %v1043, %v5509
        %v5511 = vpop.f32.mrb[0].mxu0
        %5512 = vmatprep.mubr.bf16.mxu0 0
        %5513 = vmatmul.mubr.bf16.gmra.mrb[0].mxu0 %v5435
        %v5514 = vpop.f32.mrb[0].mxu0
        %v5515 = vadd.f32 %v1043, %v5514
        %v5516 = vpop.f32.mrb[0].mxu0
        %v5517 = vpop.f32.mrb[0].mxu0
        %v5518 = vadd.f32 %v1043, %v5517
        %v5519 = vpop.f32.mrb[0].mxu0
        %5520 = vmatprep.mubr.bf16.mxu0 0
        %5521 = vmatmul.mubr.bf16.gmra.mrb[0].mxu0 %v5436
        %v5522 = vpop.f32.mrb[0].mxu0
        %v5523 = vadd.f32 %v1043, %v5522
        %v5524 = vpop.f32.mrb[0].mxu0
        %v5525 = vpop.f32.mrb[0].mxu0
        %v5526 = vadd.f32 %v1043, %v5525
        %v5527 = vpop.f32.mrb[0].mxu0
        %5528 = vmatprep.mubr.bf16.mxu0 0
        %5529 = vmatmul.mubr.bf16.gmra.mrb[0].mxu0 %v5437
        %v5530 = vpop.f32.mrb[0].mxu0
        %v5531 = vadd.f32 %v1043, %v5530
        %v5532 = vpop.f32.mrb[0].mxu0
        %v5533 = vpop.f32.mrb[0].mxu0
        %v5534 = vadd.f32 %v1043, %v5533
        %v5535 = vpop.f32.mrb[0].mxu0
        %5536 = vmatprep.mubr.bf16.mxu0 0
        %5537 = vmatmul.mubr.bf16.gmra.mrb[0].mxu0 %v5438
        %v5538 = vpop.f32.mrb[0].mxu0
        %v5539 = vadd.f32 %v1043, %v5538
        %v5540 = vpop.f32.mrb[0].mxu0
        %v5541 = vpop.f32.mrb[0].mxu0
        %v5542 = vadd.f32 %v1043, %v5541
        %v5543 = vpop.f32.mrb[0].mxu0
        %5544 = vmatprep.mubr.bf16.mxu0 0
        %5545 = vmatmul.mubr.bf16.gmra.mrb[0].mxu0 %v5439
        %v5546 = vpop.f32.mrb[0].mxu0
        %v5547 = vadd.f32 %v1043, %v5546
        %v5548 = vpop.f32.mrb[0].mxu0
        %v5549 = vpop.f32.mrb[0].mxu0
        %v5550 = vadd.f32 %v1043, %v5549
        %v5551 = vpop.f32.mrb[0].mxu0
        %5552 = vdwg.mxu0
        %5553 = vmax.xlane.f32.xlu0 %v5491
        %v5554 = vpop.xlane.xlu0 %5553
        %5555 = vmax.xlane.f32.xlu0 %v5494
        %v5556 = vpop.xlane.xlu0 %5555
        %5557 = vmax.xlane.f32.xlu0 %v5499
        %v5558 = vpop.xlane.xlu0 %5557
        %5559 = vmax.xlane.f32.xlu0 %v5502
        %v5560 = vpop.xlane.xlu0 %5559
        %5561 = vmax.xlane.f32.xlu0 %v5507
        %v5562 = vpop.xlane.xlu0 %5561
        %5563 = vmax.xlane.f32.xlu0 %v5510
        %v5564 = vpop.xlane.xlu0 %5563
        %5565 = vmax.xlane.f32.xlu0 %v5515
        %v5566 = vpop.xlane.xlu0 %5565
        %5567 = vmax.xlane.f32.xlu0 %v5518
        %v5568 = vpop.xlane.xlu0 %5567
        %5569 = vmax.xlane.f32.xlu0 %v5523
        %v5570 = vpop.xlane.xlu0 %5569
        %5571 = vmax.xlane.f32.xlu0 %v5526
        %v5572 = vpop.xlane.xlu0 %5571
        %5573 = vmax.xlane.f32.xlu0 %v5531
        %v5574 = vpop.xlane.xlu0 %5573
        %5575 = vmax.xlane.f32.xlu0 %v5534
        %v5576 = vpop.xlane.xlu0 %5575
        %5577 = vmax.xlane.f32.xlu0 %v5539
        %v5578 = vpop.xlane.xlu0 %5577
        %5579 = vmax.xlane.f32.xlu0 %v5542
        %v5580 = vpop.xlane.xlu0 %5579
        %5581 = vmax.xlane.f32.xlu0 %v5547
        %v5582 = vpop.xlane.xlu0 %5581
        %5583 = vmax.xlane.f32.xlu0 %v5550
        %v5584 = vpop.xlane.xlu0 %5583
        %v5585 = vsub.f32 %v5491, %v5554
        %v5586 = vsub.f32 %v5494, %v5556
        %v5587 = vsub.f32 %v5499, %v5558
        %v5588 = vsub.f32 %v5502, %v5560
        %v5589 = vsub.f32 %v5507, %v5562
        %v5590 = vsub.f32 %v5510, %v5564
        %v5591 = vsub.f32 %v5515, %v5566
        %v5592 = vsub.f32 %v5518, %v5568
        %v5593 = vsub.f32 %v5523, %v5570
        %v5594 = vsub.f32 %v5526, %v5572
        %v5595 = vsub.f32 %v5531, %v5574
        %v5596 = vsub.f32 %v5534, %v5576
        %v5597 = vsub.f32 %v5539, %v5578
        %v5598 = vsub.f32 %v5542, %v5580
        %v5599 = vsub.f32 %v5547, %v5582
        %v5600 = vsub.f32 %v5550, %v5584
        %v5601 = vmul.f32 %v5585, 1.442695
        %v5602 = vpow.pop %v5601
        %v5603 = vmul.f32 %v5586, 1.442695
        %v5604 = vpow.pop %v5603
        %v5605 = vmul.f32 %v5587, 1.442695
        %v5606 = vpow.pop %v5605
        %v5607 = vmul.f32 %v5588, 1.442695
        %v5608 = vpow.pop %v5607
        %v5609 = vmul.f32 %v5589, 1.442695
        %v5610 = vpow.pop %v5609
        %v5611 = vmul.f32 %v5590, 1.442695
        %v5612 = vpow.pop %v5611
        %v5613 = vmul.f32 %v5591, 1.442695
        %v5614 = vpow.pop %v5613
        %v5615 = vmul.f32 %v5592, 1.442695
        %v5616 = vpow.pop %v5615
        %v5617 = vmul.f32 %v5593, 1.442695
        %v5618 = vpow.pop %v5617
        %v5619 = vmul.f32 %v5594, 1.442695
        %v5620 = vpow.pop %v5619
        %v5621 = vmul.f32 %v5595, 1.442695
        %v5622 = vpow.pop %v5621
        %v5623 = vmul.f32 %v5596, 1.442695
        %v5624 = vpow.pop %v5623
        %v5625 = vmul.f32 %v5597, 1.442695
        %v5626 = vpow.pop %v5625
        %v5627 = vmul.f32 %v5598, 1.442695
        %v5628 = vpow.pop %v5627
        %v5629 = vmul.f32 %v5599, 1.442695
        %v5630 = vpow.pop %v5629
        %v5631 = vmul.f32 %v5600, 1.442695
        %v5632 = vpow.pop %v5631
        %5633 = vadd.xlane.f32.xlu0 %v5602
        %v5634 = vpop.xlane.xlu0 %5633
        %5635 = vadd.xlane.f32.xlu0 %v5604
        %v5636 = vpop.xlane.xlu0 %5635
        %5637 = vadd.xlane.f32.xlu0 %v5606
        %v5638 = vpop.xlane.xlu0 %5637
        %5639 = vadd.xlane.f32.xlu0 %v5608
        %v5640 = vpop.xlane.xlu0 %5639
        %5641 = vadd.xlane.f32.xlu0 %v5610
        %v5642 = vpop.xlane.xlu0 %5641
        %5643 = vadd.xlane.f32.xlu0 %v5612
        %v5644 = vpop.xlane.xlu0 %5643
        %5645 = vadd.xlane.f32.xlu0 %v5614
        %v5646 = vpop.xlane.xlu0 %5645
        %5647 = vadd.xlane.f32.xlu0 %v5616
        %v5648 = vpop.xlane.xlu0 %5647
        %5649 = vadd.xlane.f32.xlu0 %v5618
        %v5650 = vpop.xlane.xlu0 %5649
        %5651 = vadd.xlane.f32.xlu0 %v5620
        %v5652 = vpop.xlane.xlu0 %5651
        %5653 = vadd.xlane.f32.xlu0 %v5622
        %v5654 = vpop.xlane.xlu0 %5653
        %5655 = vadd.xlane.f32.xlu0 %v5624
        %v5656 = vpop.xlane.xlu0 %5655
        %5657 = vadd.xlane.f32.xlu0 %v5626
        %v5658 = vpop.xlane.xlu0 %5657
        %5659 = vadd.xlane.f32.xlu0 %v5628
        %v5660 = vpop.xlane.xlu0 %5659
        %5661 = vadd.xlane.f32.xlu0 %v5630
        %v5662 = vpop.xlane.xlu0 %5661
        %5663 = vadd.xlane.f32.xlu0 %v5632
        %v5664 = vpop.xlane.xlu0 %5663
        %v5665 = vrcp.pop %v5634
        %v5666 = vrcp.pop %v5636
        %v5667 = vrcp.pop %v5638
        %v5668 = vrcp.pop %v5640
        %v5669 = vrcp.pop %v5642
        %v5670 = vrcp.pop %v5644
        %v5671 = vrcp.pop %v5646
        %v5672 = vrcp.pop %v5648
        %v5673 = vrcp.pop %v5650
        %v5674 = vrcp.pop %v5652
        %v5675 = vrcp.pop %v5654
        %v5676 = vrcp.pop %v5656
        %v5677 = vrcp.pop %v5658
        %v5678 = vrcp.pop %v5660
        %v5679 = vrcp.pop %v5662
        %v5680 = vrcp.pop %v5664
        %v5681 = vmul.f32 %v5602, %v5665
        %v5682 = vmul.f32 %v5604, %v5666
        %v5683 = vmul.f32 %v5606, %v5667
        %v5684 = vmul.f32 %v5608, %v5668
        %v5685 = vmul.f32 %v5610, %v5669
        %v5686 = vmul.f32 %v5612, %v5670
        %v5687 = vmul.f32 %v5614, %v5671
        %v5688 = vmul.f32 %v5616, %v5672
        %v5689 = vmul.f32 %v5618, %v5673
        %v5690 = vmul.f32 %v5620, %v5674
        %v5691 = vmul.f32 %v5622, %v5675
        %v5692 = vmul.f32 %v5624, %v5676
        %v5693 = vmul.f32 %v5626, %v5677
        %v5694 = vmul.f32 %v5628, %v5678
        %v5695 = vmul.f32 %v5630, %v5679
        %v5696 = vmul.f32 %v5632, %v5680
        %v5697 = vpack.c.bf16 %v5682, %v5681
        %v5698 = vpack.c.bf16 %v5684, %v5683
        %v5699 = vpack.c.bf16 %v5686, %v5685
        %v5700 = vpack.c.bf16 %v5688, %v5687
        %v5701 = vpack.c.bf16 %v5690, %v5689
        %v5702 = vpack.c.bf16 %v5692, %v5691
        %v5703 = vpack.c.bf16 %v5694, %v5693
        %v5704 = vpack.c.bf16 %v5696, %v5695
        %5705 = vmatprep.subr.bf16.mxu0 0
        %5706 = vmatpush1.bf16.msra.mxu0 %v5448
        %5707 = vmatprep.subr.bf16.mxu0 0
        %5708 = vmatpush1.bf16.msra.mxu0 %v5449
        %5709 = vmatprep.subr.bf16.mxu0 0
        %5710 = vmatpush1.bf16.msra.mxu0 %v5450
        %5711 = vmatprep.subr.bf16.mxu0 0
        %5712 = vmatpush1.bf16.msra.mxu0 %v5451
        %5713 = vmatprep.subr.bf16.mxu0 0
        %5714 = vmatpush1.bf16.msra.mxu0 %v5452
        %5715 = vmatprep.subr.bf16.mxu0 0
        %5716 = vmatpush1.bf16.msra.mxu0 %v5453
        %5717 = vmatprep.subr.bf16.mxu0 0
        %5718 = vmatpush1.bf16.msra.mxu0 %v5454
        %5719 = vmatprep.subr.bf16.mxu0 0
        %5720 = vmatpush1.bf16.msra.mxu0 %v5455
        %5721 = vmatprep.subr.bf16.mxu0 0
        %5722 = vmatpush1.bf16.msra.mxu0 0
        %5723 = vmatprep.subr.bf16.mxu0 0
        %5724 = vmatpush1.bf16.msra.mxu0 0
        %5725 = vmatprep.subr.bf16.mxu0 0
        %5726 = vmatpush1.bf16.msra.mxu0 0
        %5727 = vmatprep.subr.bf16.mxu0 0
        %5728 = vmatpush1.bf16.msra.mxu0 0
        %5729 = vmatprep.subr.bf16.mxu0 0
        %5730 = vmatpush1.bf16.msra.mxu0 0
        %5731 = vmatprep.subr.bf16.mxu0 0
        %5732 = vmatpush1.bf16.msra.mxu0 0
        %5733 = vmatprep.subr.bf16.mxu0 0
        %5734 = vmatpush1.bf16.msra.mxu0 0
        %5735 = vmatprep.subr.bf16.mxu0 0
        %5736 = vmatpush1.bf16.msra.mxu0 0
        %5737 = vmatprep.mubr.bf16.mxu0 0
        %5738 = vmatmul.mubr.bf16.gmra.mrb[0].mxu0 %v5697
        %v5739 = vpop.f32.mrb[0].mxu0
        %v5740 = vadd.f32 0.0, %v5739
        %v5741 = vpop.f32.mrb[0].mxu0
        %v5742 = vpop.f32.mrb[0].mxu0
        %v5743 = vadd.f32 0.0, %v5742
        %v5744 = vpop.f32.mrb[0].mxu0
        %5745 = vmatprep.mubr.bf16.mxu0 0
        %5746 = vmatmul.mubr.bf16.gmra.mrb[0].mxu0 %v5698
        %v5747 = vpop.f32.mrb[0].mxu0
        %v5748 = vadd.f32 0.0, %v5747
        %v5749 = vpop.f32.mrb[0].mxu0
        %v5750 = vpop.f32.mrb[0].mxu0
        %v5751 = vadd.f32 0.0, %v5750
        %v5752 = vpop.f32.mrb[0].mxu0
        %5753 = vmatprep.mubr.bf16.mxu0 0
        %5754 = vmatmul.mubr.bf16.gmra.mrb[0].mxu0 %v5699
        %v5755 = vpop.f32.mrb[0].mxu0
        %v5756 = vadd.f32 0.0, %v5755
        %v5757 = vpop.f32.mrb[0].mxu0
        %v5758 = vpop.f32.mrb[0].mxu0
        %v5759 = vadd.f32 0.0, %v5758
        %v5760 = vpop.f32.mrb[0].mxu0
        %5761 = vmatprep.mubr.bf16.mxu0 0
        %5762 = vmatmul.mubr.bf16.gmra.mrb[0].mxu0 %v5700
        %v5763 = vpop.f32.mrb[0].mxu0
        %v5764 = vadd.f32 0.0, %v5763
        %v5765 = vpop.f32.mrb[0].mxu0
        %v5766 = vpop.f32.mrb[0].mxu0
        %v5767 = vadd.f32 0.0, %v5766
        %v5768 = vpop.f32.mrb[0].mxu0
        %5769 = vmatprep.mubr.bf16.mxu0 0
        %5770 = vmatmul.mubr.bf16.gmra.mrb[0].mxu0 %v5701
        %v5771 = vpop.f32.mrb[0].mxu0
        %v5772 = vadd.f32 0.0, %v5771
        %v5773 = vpop.f32.mrb[0].mxu0
        %v5774 = vpop.f32.mrb[0].mxu0
        %v5775 = vadd.f32 0.0, %v5774
        %v5776 = vpop.f32.mrb[0].mxu0
        %5777 = vmatprep.mubr.bf16.mxu0 0
        %5778 = vmatmul.mubr.bf16.gmra.mrb[0].mxu0 %v5702
        %v5779 = vpop.f32.mrb[0].mxu0
        %v5780 = vadd.f32 0.0, %v5779
        %v5781 = vpop.f32.mrb[0].mxu0
        %v5782 = vpop.f32.mrb[0].mxu0
        %v5783 = vadd.f32 0.0, %v5782
        %v5784 = vpop.f32.mrb[0].mxu0
        %5785 = vmatprep.mubr.bf16.mxu0 0
        %5786 = vmatmul.mubr.bf16.gmra.mrb[0].mxu0 %v5703
        %v5787 = vpop.f32.mrb[0].mxu0
        %v5788 = vadd.f32 0.0, %v5787
        %v5789 = vpop.f32.mrb[0].mxu0
        %v5790 = vpop.f32.mrb[0].mxu0
        %v5791 = vadd.f32 0.0, %v5790
        %v5792 = vpop.f32.mrb[0].mxu0
        %5793 = vmatprep.mubr.bf16.mxu0 0
        %5794 = vmatmul.mubr.bf16.gmra.mrb[0].mxu0 %v5704
        %v5795 = vpop.f32.mrb[0].mxu0
        %v5796 = vadd.f32 0.0, %v5795
        %v5797 = vpop.f32.mrb[0].mxu0
        %v5798 = vpop.f32.mrb[0].mxu0
        %v5799 = vadd.f32 0.0, %v5798
        %v5800 = vpop.f32.mrb[0].mxu0
        %5801 = vdwg.mxu0
        %v5802 = vpack.c.bf16 %v5743, %v5740
        %v5803 = vpack.c.bf16 %v5751, %v5748
        %v5804 = vpack.c.bf16 %v5759, %v5756
        %v5805 = vpack.c.bf16 %v5767, %v5764
        %v5806 = vpack.c.bf16 %v5775, %v5772
        %v5807 = vpack.c.bf16 %v5783, %v5780
        %v5808 = vpack.c.bf16 %v5791, %v5788
        %v5809 = vpack.c.bf16 %v5799, %v5796
        %s5810 = scalar_lea.vmem [#allocation6], 128
        %v5811 = vld [vmem:[%s5810] sm:$0xf]
        %v5812 = vld [vmem:[%s5810 + $0x4] sm:$0xf]
        %v5813 = vld [vmem:[%s5810 + $0x8] sm:$0xf]
        %v5814 = vld [vmem:[%s5810 + $0xc] sm:$0xf]
        %v5815 = vld [vmem:[%s5810 + $0x10] sm:$0xf]
        %v5816 = vld [vmem:[%s5810 + $0x14] sm:$0xf]
        %v5817 = vld [vmem:[%s5810 + $0x18] sm:$0xf]
        %v5818 = vld [vmem:[%s5810 + $0x1c] sm:$0xf]
        %v5819 = vld [vmem:[%s5810 + $0x20] sm:$0xf]
        %v5820 = vld [vmem:[%s5810 + $0x24] sm:$0xf]
        %v5821 = vld [vmem:[%s5810 + $0x28] sm:$0xf]
        %v5822 = vld [vmem:[%s5810 + $0x2c] sm:$0xf]
        %v5823 = vld [vmem:[%s5810 + $0x30] sm:$0xf]
        %v5824 = vld [vmem:[%s5810 + $0x34] sm:$0xf]
        %v5825 = vld [vmem:[%s5810 + $0x38] sm:$0xf]
        %v5826 = vld [vmem:[%s5810 + $0x3c] sm:$0xf]
        %s5827 = scalar_lea.vmem %s6, 2
        %v5828 = vld [vmem:[%s5827] sm:$0x1]
        %v5830 = vlaneseq
        %v5831 = vshrl.u32 %v5830, 7
        %v5832 = vsub.s32 0, %v5831
        %v5833 = vrot.slane %v5828, %v5832
        %v5851 = vunpack.c.l.b16 %v5811
        %v5852 = vunpack.c.l.b16 %v5812
        %v5853 = vunpack.c.l.b16 %v5813
        %v5854 = vunpack.c.l.b16 %v5814
        %v5855 = vunpack.c.l.b16 %v5815
        %v5856 = vunpack.c.l.b16 %v5816
        %v5857 = vunpack.c.l.b16 %v5817
        %v5858 = vunpack.c.l.b16 %v5818
        %v5859 = vunpack.c.l.b16 %v5819
        %v5860 = vunpack.c.l.b16 %v5820
        %v5861 = vunpack.c.l.b16 %v5821
        %v5862 = vunpack.c.l.b16 %v5822
        %v5863 = vunpack.c.l.b16 %v5823
        %v5864 = vunpack.c.l.b16 %v5824
        %v5865 = vunpack.c.l.b16 %v5825
        %v5866 = vunpack.c.l.b16 %v5826
        %v5867 = vpack.c.b16 %v5852, %v5851
        %v5868 = vpack.c.b16 %v5854, %v5853
        %v5869 = vpack.c.b16 %v5856, %v5855
        %v5870 = vpack.c.b16 %v5858, %v5857
        %v5871 = vpack.c.b16 %v5860, %v5859
        %v5872 = vpack.c.b16 %v5862, %v5861
        %v5873 = vpack.c.b16 %v5864, %v5863
        %v5874 = vpack.c.b16 %v5866, %v5865
        %5883 = vmatprep.subr.bf16.mxu0 0
        %5884 = vmatpush1.bf16.msra.mxu0 %v5867
        %5885 = vmatprep.subr.bf16.mxu0 0
        %5886 = vmatpush1.bf16.msra.mxu0 %v5868
        %5887 = vmatprep.subr.bf16.mxu0 0
        %5888 = vmatpush1.bf16.msra.mxu0 %v5869
        %5889 = vmatprep.subr.bf16.mxu0 0
        %5890 = vmatpush1.bf16.msra.mxu0 %v5870
        %5891 = vmatprep.subr.bf16.mxu0 0
        %5892 = vmatpush1.bf16.msra.mxu0 %v5871
        %5893 = vmatprep.subr.bf16.mxu0 0
        %5894 = vmatpush1.bf16.msra.mxu0 %v5872
        %5895 = vmatprep.subr.bf16.mxu0 0
        %5896 = vmatpush1.bf16.msra.mxu0 %v5873
        %5897 = vmatprep.subr.bf16.mxu0 0
        %5898 = vmatpush1.bf16.msra.mxu0 %v5874
        %5899 = vmatprep.subr.bf16.mxu0 0
        %5900 = vmatpush1.bf16.msra.mxu0 0
        %5901 = vmatprep.subr.bf16.mxu0 0
        %5902 = vmatpush1.bf16.msra.mxu0 0
        %5903 = vmatprep.subr.bf16.mxu0 0
        %5904 = vmatpush1.bf16.msra.mxu0 0
        %5905 = vmatprep.subr.bf16.mxu0 0
        %5906 = vmatpush1.bf16.msra.mxu0 0
        %5907 = vmatprep.subr.bf16.mxu0 0
        %5908 = vmatpush1.bf16.msra.mxu0 0
        %5909 = vmatprep.subr.bf16.mxu0 0
        %5910 = vmatpush1.bf16.msra.mxu0 0
        %5911 = vmatprep.subr.bf16.mxu0 0
        %5912 = vmatpush1.bf16.msra.mxu0 0
        %5913 = vmatprep.subr.bf16.mxu0 0
        %5914 = vmatpush1.bf16.msra.mxu0 0
        %5915 = vmatprep.mubr.bf16.mxu0 0
        %5916 = vmatmul.mubr.bf16.gmra.mrb[0].mxu0 %v5802
        %v5917 = vpop.f32.mrb[0].mxu0
        %v5918 = vadd.f32 %v5833, %v5917
        %v5919 = vpop.f32.mrb[0].mxu0
        %v5920 = vpop.f32.mrb[0].mxu0
        %v5921 = vadd.f32 %v5833, %v5920
        %v5922 = vpop.f32.mrb[0].mxu0
        %5923 = vmatprep.mubr.bf16.mxu0 0
        %5924 = vmatmul.mubr.bf16.gmra.mrb[0].mxu0 %v5803
        %v5925 = vpop.f32.mrb[0].mxu0
        %v5926 = vadd.f32 %v5833, %v5925
        %v5927 = vpop.f32.mrb[0].mxu0
        %v5928 = vpop.f32.mrb[0].mxu0
        %v5929 = vadd.f32 %v5833, %v5928
        %v5930 = vpop.f32.mrb[0].mxu0
        %5931 = vmatprep.mubr.bf16.mxu0 0
        %5932 = vmatmul.mubr.bf16.gmra.mrb[0].mxu0 %v5804
        %v5933 = vpop.f32.mrb[0].mxu0
        %v5934 = vadd.f32 %v5833, %v5933
        %v5935 = vpop.f32.mrb[0].mxu0
        %v5936 = vpop.f32.mrb[0].mxu0
        %v5937 = vadd.f32 %v5833, %v5936
        %v5938 = vpop.f32.mrb[0].mxu0
        %5939 = vmatprep.mubr.bf16.mxu0 0
        %5940 = vmatmul.mubr.bf16.gmra.mrb[0].mxu0 %v5805
        %v5941 = vpop.f32.mrb[0].mxu0
        %v5942 = vadd.f32 %v5833, %v5941
        %v5943 = vpop.f32.mrb[0].mxu0
        %v5944 = vpop.f32.mrb[0].mxu0
        %v5945 = vadd.f32 %v5833, %v5944
        %v5946 = vpop.f32.mrb[0].mxu0
        %5947 = vmatprep.mubr.bf16.mxu0 0
        %5948 = vmatmul.mubr.bf16.gmra.mrb[0].mxu0 %v5806
        %v5949 = vpop.f32.mrb[0].mxu0
        %v5950 = vadd.f32 %v5833, %v5949
        %v5951 = vpop.f32.mrb[0].mxu0
        %v5952 = vpop.f32.mrb[0].mxu0
        %v5953 = vadd.f32 %v5833, %v5952
        %v5954 = vpop.f32.mrb[0].mxu0
        %5955 = vmatprep.mubr.bf16.mxu0 0
        %5956 = vmatmul.mubr.bf16.gmra.mrb[0].mxu0 %v5807
        %v5957 = vpop.f32.mrb[0].mxu0
        %v5958 = vadd.f32 %v5833, %v5957
        %v5959 = vpop.f32.mrb[0].mxu0
        %v5960 = vpop.f32.mrb[0].mxu0
        %v5961 = vadd.f32 %v5833, %v5960
        %v5962 = vpop.f32.mrb[0].mxu0
        %5963 = vmatprep.mubr.bf16.mxu0 0
        %5964 = vmatmul.mubr.bf16.gmra.mrb[0].mxu0 %v5808
        %v5965 = vpop.f32.mrb[0].mxu0
        %v5966 = vadd.f32 %v5833, %v5965
        %v5967 = vpop.f32.mrb[0].mxu0
        %v5968 = vpop.f32.mrb[0].mxu0
        %v5969 = vadd.f32 %v5833, %v5968
        %v5970 = vpop.f32.mrb[0].mxu0
        %5971 = vmatprep.mubr.bf16.mxu0 0
        %5972 = vmatmul.mubr.bf16.gmra.mrb[0].mxu0 %v5809
        %v5973 = vpop.f32.mrb[0].mxu0
        %v5974 = vadd.f32 %v5833, %v5973
        %v5975 = vpop.f32.mrb[0].mxu0
        %v5976 = vpop.f32.mrb[0].mxu0
        %v5977 = vadd.f32 %v5833, %v5976
        %v5978 = vpop.f32.mrb[0].mxu0
        %5979 = vdwg.mxu0
        %v5980 = vadd.f32 %v5003, %v5918
        %v5981 = vadd.f32 %v5004, %v5921
        %v5982 = vadd.f32 %v5005, %v5926
        %v5983 = vadd.f32 %v5006, %v5929
        %v5984 = vadd.f32 %v5007, %v5934
        %v5985 = vadd.f32 %v5008, %v5937
        %v5986 = vadd.f32 %v5009, %v5942
        %v5987 = vadd.f32 %v5010, %v5945
        %v5988 = vadd.f32 %v5011, %v5950
        %v5989 = vadd.f32 %v5012, %v5953
        %v5990 = vadd.f32 %v5013, %v5958
        %v5991 = vadd.f32 %v5014, %v5961
        %v5992 = vadd.f32 %v5015, %v5966
        %v5993 = vadd.f32 %v5016, %v5969
        %v5994 = vadd.f32 %v5017, %v5974
        %v5995 = vadd.f32 %v5018, %v5977
        %s5996 = scalar_lea.vmem %s7, 2
        %v5997 = vld [vmem:[%s5996] sm:$0x1]
        %s5998 = scalar_lea.vmem %s8, 2
        %v5999 = vld [vmem:[%s5998] sm:$0x1]
        %6000 = vadd.xlane.f32.xlu0 %v5980
        %v6001 = vpop.xlane.xlu0 %6000
        %6002 = vadd.xlane.f32.xlu0 %v5981
        %v6003 = vpop.xlane.xlu0 %6002
        %6004 = vadd.xlane.f32.xlu0 %v5982
        %v6005 = vpop.xlane.xlu0 %6004
        %6006 = vadd.xlane.f32.xlu0 %v5983
        %v6007 = vpop.xlane.xlu0 %6006
        %6008 = vadd.xlane.f32.xlu0 %v5984
        %v6009 = vpop.xlane.xlu0 %6008
        %6010 = vadd.xlane.f32.xlu0 %v5985
        %v6011 = vpop.xlane.xlu0 %6010
        %6012 = vadd.xlane.f32.xlu0 %v5986
        %v6013 = vpop.xlane.xlu0 %6012
        %6014 = vadd.xlane.f32.xlu0 %v5987
        %v6015 = vpop.xlane.xlu0 %6014
        %6016 = vadd.xlane.f32.xlu0 %v5988
        %v6017 = vpop.xlane.xlu0 %6016
        %6018 = vadd.xlane.f32.xlu0 %v5989
        %v6019 = vpop.xlane.xlu0 %6018
        %6020 = vadd.xlane.f32.xlu0 %v5990
        %v6021 = vpop.xlane.xlu0 %6020
        %6022 = vadd.xlane.f32.xlu0 %v5991
        %v6023 = vpop.xlane.xlu0 %6022
        %6024 = vadd.xlane.f32.xlu0 %v5992
        %v6025 = vpop.xlane.xlu0 %6024
        %6026 = vadd.xlane.f32.xlu0 %v5993
        %v6027 = vpop.xlane.xlu0 %6026
        %6028 = vadd.xlane.f32.xlu0 %v5994
        %v6029 = vpop.xlane.xlu0 %6028
        %6030 = vadd.xlane.f32.xlu0 %v5995
        %v6031 = vpop.xlane.xlu0 %6030
        %v6032 = vmul.f32 %v6001, %v1617
        %v6033 = vmul.f32 %v6003, %v1617
        %v6034 = vmul.f32 %v6005, %v1617
        %v6035 = vmul.f32 %v6007, %v1617
        %v6036 = vmul.f32 %v6009, %v1617
        %v6037 = vmul.f32 %v6011, %v1617
        %v6038 = vmul.f32 %v6013, %v1617
        %v6039 = vmul.f32 %v6015, %v1617
        %v6040 = vmul.f32 %v6017, %v1617
        %v6041 = vmul.f32 %v6019, %v1617
        %v6042 = vmul.f32 %v6021, %v1617
        %v6043 = vmul.f32 %v6023, %v1617
        %v6044 = vmul.f32 %v6025, %v1617
        %v6045 = vmul.f32 %v6027, %v1617
        %v6046 = vmul.f32 %v6029, %v1617
        %v6047 = vmul.f32 %v6031, %v1617
        %v6048 = vsub.f32 %v5980, %v6032
        %v6049 = vsub.f32 %v5981, %v6033
        %v6050 = vsub.f32 %v5982, %v6034
        %v6051 = vsub.f32 %v5983, %v6035
        %v6052 = vsub.f32 %v5984, %v6036
        %v6053 = vsub.f32 %v5985, %v6037
        %v6054 = vsub.f32 %v5986, %v6038
        %v6055 = vsub.f32 %v5987, %v6039
        %v6056 = vsub.f32 %v5988, %v6040
        %v6057 = vsub.f32 %v5989, %v6041
        %v6058 = vsub.f32 %v5990, %v6042
        %v6059 = vsub.f32 %v5991, %v6043
        %v6060 = vsub.f32 %v5992, %v6044
        %v6061 = vsub.f32 %v5993, %v6045
        %v6062 = vsub.f32 %v5994, %v6046
        %v6063 = vsub.f32 %v5995, %v6047
        %v6064 = vmul.f32 %v6048, %v6048
        %v6065 = vmul.f32 %v6049, %v6049
        %v6066 = vmul.f32 %v6050, %v6050
        %v6067 = vmul.f32 %v6051, %v6051
        %v6068 = vmul.f32 %v6052, %v6052
        %v6069 = vmul.f32 %v6053, %v6053
        %v6070 = vmul.f32 %v6054, %v6054
        %v6071 = vmul.f32 %v6055, %v6055
        %v6072 = vmul.f32 %v6056, %v6056
        %v6073 = vmul.f32 %v6057, %v6057
        %v6074 = vmul.f32 %v6058, %v6058
        %v6075 = vmul.f32 %v6059, %v6059
        %v6076 = vmul.f32 %v6060, %v6060
        %v6077 = vmul.f32 %v6061, %v6061
        %v6078 = vmul.f32 %v6062, %v6062
        %v6079 = vmul.f32 %v6063, %v6063
        %6080 = vadd.xlane.f32.xlu0 %v6064
        %v6081 = vpop.xlane.xlu0 %6080
        %6082 = vadd.xlane.f32.xlu0 %v6065
        %v6083 = vpop.xlane.xlu0 %6082
        %6084 = vadd.xlane.f32.xlu0 %v6066
        %v6085 = vpop.xlane.xlu0 %6084
        %6086 = vadd.xlane.f32.xlu0 %v6067
        %v6087 = vpop.xlane.xlu0 %6086
        %6088 = vadd.xlane.f32.xlu0 %v6068
        %v6089 = vpop.xlane.xlu0 %6088
        %6090 = vadd.xlane.f32.xlu0 %v6069
        %v6091 = vpop.xlane.xlu0 %6090
        %6092 = vadd.xlane.f32.xlu0 %v6070
        %v6093 = vpop.xlane.xlu0 %6092
        %6094 = vadd.xlane.f32.xlu0 %v6071
        %v6095 = vpop.xlane.xlu0 %6094
        %6096 = vadd.xlane.f32.xlu0 %v6072
        %v6097 = vpop.xlane.xlu0 %6096
        %6098 = vadd.xlane.f32.xlu0 %v6073
        %v6099 = vpop.xlane.xlu0 %6098
        %6100 = vadd.xlane.f32.xlu0 %v6074
        %v6101 = vpop.xlane.xlu0 %6100
        %6102 = vadd.xlane.f32.xlu0 %v6075
        %v6103 = vpop.xlane.xlu0 %6102
        %6104 = vadd.xlane.f32.xlu0 %v6076
        %v6105 = vpop.xlane.xlu0 %6104
        %6106 = vadd.xlane.f32.xlu0 %v6077
        %v6107 = vpop.xlane.xlu0 %6106
        %6108 = vadd.xlane.f32.xlu0 %v6078
        %v6109 = vpop.xlane.xlu0 %6108
        %6110 = vadd.xlane.f32.xlu0 %v6079
        %v6111 = vpop.xlane.xlu0 %6110
        %v6112 = vmul.f32 %v6081, %v1617
        %v6113 = vmul.f32 %v6083, %v1617
        %v6114 = vmul.f32 %v6085, %v1617
        %v6115 = vmul.f32 %v6087, %v1617
        %v6116 = vmul.f32 %v6089, %v1617
        %v6117 = vmul.f32 %v6091, %v1617
        %v6118 = vmul.f32 %v6093, %v1617
        %v6119 = vmul.f32 %v6095, %v1617
        %v6120 = vmul.f32 %v6097, %v1617
        %v6121 = vmul.f32 %v6099, %v1617
        %v6122 = vmul.f32 %v6101, %v1617
        %v6123 = vmul.f32 %v6103, %v1617
        %v6124 = vmul.f32 %v6105, %v1617
        %v6125 = vmul.f32 %v6107, %v1617
        %v6126 = vmul.f32 %v6109, %v1617
        %v6127 = vmul.f32 %v6111, %v1617
        %v6128 = vadd.f32 %v6112, 1e-12
        %v6129 = vadd.f32 %v6113, 1e-12
        %v6130 = vadd.f32 %v6114, 1e-12
        %v6131 = vadd.f32 %v6115, 1e-12
        %v6132 = vadd.f32 %v6116, 1e-12
        %v6133 = vadd.f32 %v6117, 1e-12
        %v6134 = vadd.f32 %v6118, 1e-12
        %v6135 = vadd.f32 %v6119, 1e-12
        %v6136 = vadd.f32 %v6120, 1e-12
        %v6137 = vadd.f32 %v6121, 1e-12
        %v6138 = vadd.f32 %v6122, 1e-12
        %v6139 = vadd.f32 %v6123, 1e-12
        %v6140 = vadd.f32 %v6124, 1e-12
        %v6141 = vadd.f32 %v6125, 1e-12
        %v6142 = vadd.f32 %v6126, 1e-12
        %v6143 = vadd.f32 %v6127, 1e-12
        %v6144 = vrsqrt.pop %v6128
        %v6145 = vrsqrt.pop %v6129
        %v6146 = vrsqrt.pop %v6130
        %v6147 = vrsqrt.pop %v6131
        %v6148 = vrsqrt.pop %v6132
        %v6149 = vrsqrt.pop %v6133
        %v6150 = vrsqrt.pop %v6134
        %v6151 = vrsqrt.pop %v6135
        %v6152 = vrsqrt.pop %v6136
        %v6153 = vrsqrt.pop %v6137
        %v6154 = vrsqrt.pop %v6138
        %v6155 = vrsqrt.pop %v6139
        %v6156 = vrsqrt.pop %v6140
        %v6157 = vrsqrt.pop %v6141
        %v6158 = vrsqrt.pop %v6142
        %v6159 = vrsqrt.pop %v6143
        %v6160 = vmul.f32 %v6048, %v6144
        %v6161 = vmul.f32 %v6049, %v6145
        %v6162 = vmul.f32 %v6050, %v6146
        %v6163 = vmul.f32 %v6051, %v6147
        %v6164 = vmul.f32 %v6052, %v6148
        %v6165 = vmul.f32 %v6053, %v6149
        %v6166 = vmul.f32 %v6054, %v6150
        %v6167 = vmul.f32 %v6055, %v6151
        %v6168 = vmul.f32 %v6056, %v6152
        %v6169 = vmul.f32 %v6057, %v6153
        %v6170 = vmul.f32 %v6058, %v6154
        %v6171 = vmul.f32 %v6059, %v6155
        %v6172 = vmul.f32 %v6060, %v6156
        %v6173 = vmul.f32 %v6061, %v6157
        %v6174 = vmul.f32 %v6062, %v6158
        %v6175 = vmul.f32 %v6063, %v6159
        %v6177 = vlaneseq
        %v6178 = vshrl.u32 %v6177, 7
        %v6179 = vsub.s32 0, %v6178
        %v6180 = vrot.slane %v5997, %v6179
        %v6182 = vmul.f32 %v6160, %v6180
        %v6183 = vmul.f32 %v6161, %v6180
        %v6184 = vmul.f32 %v6162, %v6180
        %v6185 = vmul.f32 %v6163, %v6180
        %v6186 = vmul.f32 %v6164, %v6180
        %v6187 = vmul.f32 %v6165, %v6180
        %v6188 = vmul.f32 %v6166, %v6180
        %v6189 = vmul.f32 %v6167, %v6180
        %v6190 = vmul.f32 %v6168, %v6180
        %v6191 = vmul.f32 %v6169, %v6180
        %v6192 = vmul.f32 %v6170, %v6180
        %v6193 = vmul.f32 %v6171, %v6180
        %v6194 = vmul.f32 %v6172, %v6180
        %v6195 = vmul.f32 %v6173, %v6180
        %v6196 = vmul.f32 %v6174, %v6180
        %v6197 = vmul.f32 %v6175, %v6180
        %v6199 = vlaneseq
        %v6200 = vshrl.u32 %v6199, 7
        %v6201 = vsub.s32 0, %v6200
        %v6202 = vrot.slane %v5999, %v6201
        %v6204 = vadd.f32 %v6182, %v6202
        %v6205 = vadd.f32 %v6183, %v6202
        %v6206 = vadd.f32 %v6184, %v6202
        %v6207 = vadd.f32 %v6185, %v6202
        %v6208 = vadd.f32 %v6186, %v6202
        %v6209 = vadd.f32 %v6187, %v6202
        %v6210 = vadd.f32 %v6188, %v6202
        %v6211 = vadd.f32 %v6189, %v6202
        %v6212 = vadd.f32 %v6190, %v6202
        %v6213 = vadd.f32 %v6191, %v6202
        %v6214 = vadd.f32 %v6192, %v6202
        %v6215 = vadd.f32 %v6193, %v6202
        %v6216 = vadd.f32 %v6194, %v6202
        %v6217 = vadd.f32 %v6195, %v6202
        %v6218 = vadd.f32 %v6196, %v6202
        %v6219 = vadd.f32 %v6197, %v6202
        %v6220 = vpack.c.bf16 %v6205, %v6204
        %v6221 = vpack.c.bf16 %v6207, %v6206
        %v6222 = vpack.c.bf16 %v6209, %v6208
        %v6223 = vpack.c.bf16 %v6211, %v6210
        %v6224 = vpack.c.bf16 %v6213, %v6212
        %v6225 = vpack.c.bf16 %v6215, %v6214
        %v6226 = vpack.c.bf16 %v6217, %v6216
        %v6227 = vpack.c.bf16 %v6219, %v6218
        %s6228 = scalar_lea.vmem [#allocation7], 256
        %v6229 = vld [vmem:[%s6228] sm:$0xff]
        %v6230 = vld [vmem:[%s6228 + $0x8] sm:$0xff]
        %v6231 = vld [vmem:[%s6228 + $0x10] sm:$0xff]
        %v6232 = vld [vmem:[%s6228 + $0x18] sm:$0xff]
        %v6233 = vld [vmem:[%s6228 + $0x20] sm:$0xff]
        %v6234 = vld [vmem:[%s6228 + $0x28] sm:$0xff]
        %v6235 = vld [vmem:[%s6228 + $0x30] sm:$0xff]
        %v6236 = vld [vmem:[%s6228 + $0x38] sm:$0xff]
        %v6237 = vld [vmem:[%s6228 + $0x40] sm:$0xff]
        %v6238 = vld [vmem:[%s6228 + $0x48] sm:$0xff]
        %v6239 = vld [vmem:[%s6228 + $0x50] sm:$0xff]
        %v6240 = vld [vmem:[%s6228 + $0x58] sm:$0xff]
        %v6241 = vld [vmem:[%s6228 + $0x60] sm:$0xff]
        %v6242 = vld [vmem:[%s6228 + $0x68] sm:$0xff]
        %v6243 = vld [vmem:[%s6228 + $0x70] sm:$0xff]
        %v6244 = vld [vmem:[%s6228 + $0x78] sm:$0xff]
        %s6245 = scalar_lea.vmem %s10, 4
        %v6246 = vld [vmem:[%s6245] sm:$0x3]
        %v6248 = vlaneseq
        %v6249 = vshrl.u32 %v6248, 7
        %v6250 = vsub.s32 0, %v6249
        %v6251 = vrot.slane %v6246, %v6250
        %v6252 = vlaneseq
        %v6253 = vshrl.u32 %v6252, 7
        %v6254 = vsub.s32 1, %v6253
        %v6255 = vrot.slane %v6246, %v6254
        %v6274 = vunpack.c.l.b16 %v6229
        %v6275 = vunpack.c.h.b16 %v6229
        %v6276 = vunpack.c.l.b16 %v6230
        %v6277 = vunpack.c.h.b16 %v6230
        %v6278 = vunpack.c.l.b16 %v6231
        %v6279 = vunpack.c.h.b16 %v6231
        %v6280 = vunpack.c.l.b16 %v6232
        %v6281 = vunpack.c.h.b16 %v6232
        %v6282 = vunpack.c.l.b16 %v6233
        %v6283 = vunpack.c.h.b16 %v6233
        %v6284 = vunpack.c.l.b16 %v6234
        %v6285 = vunpack.c.h.b16 %v6234
        %v6286 = vunpack.c.l.b16 %v6235
        %v6287 = vunpack.c.h.b16 %v6235
        %v6288 = vunpack.c.l.b16 %v6236
        %v6289 = vunpack.c.h.b16 %v6236
        %v6290 = vunpack.c.l.b16 %v6237
        %v6291 = vunpack.c.h.b16 %v6237
        %v6292 = vunpack.c.l.b16 %v6238
        %v6293 = vunpack.c.h.b16 %v6238
        %v6294 = vunpack.c.l.b16 %v6239
        %v6295 = vunpack.c.h.b16 %v6239
        %v6296 = vunpack.c.l.b16 %v6240
        %v6297 = vunpack.c.h.b16 %v6240
        %v6298 = vunpack.c.l.b16 %v6241
        %v6299 = vunpack.c.h.b16 %v6241
        %v6300 = vunpack.c.l.b16 %v6242
        %v6301 = vunpack.c.h.b16 %v6242
        %v6302 = vunpack.c.l.b16 %v6243
        %v6303 = vunpack.c.h.b16 %v6243
        %v6304 = vunpack.c.l.b16 %v6244
        %v6305 = vunpack.c.h.b16 %v6244
        %v6306 = vpack.c.b16 %v6276, %v6274
        %v6307 = vpack.c.b16 %v6277, %v6275
        %v6308 = vpack.c.b16 %v6280, %v6278
        %v6309 = vpack.c.b16 %v6281, %v6279
        %v6310 = vpack.c.b16 %v6284, %v6282
        %v6311 = vpack.c.b16 %v6285, %v6283
        %v6312 = vpack.c.b16 %v6288, %v6286
        %v6313 = vpack.c.b16 %v6289, %v6287
        %v6314 = vpack.c.b16 %v6292, %v6290
        %v6315 = vpack.c.b16 %v6293, %v6291
        %v6316 = vpack.c.b16 %v6296, %v6294
        %v6317 = vpack.c.b16 %v6297, %v6295
        %v6318 = vpack.c.b16 %v6300, %v6298
        %v6319 = vpack.c.b16 %v6301, %v6299
        %v6320 = vpack.c.b16 %v6304, %v6302
        %v6321 = vpack.c.b16 %v6305, %v6303
        %6338 = vmatprep.subr.bf16.mxu0 %v6307
        %6339 = vmatpush1.bf16.msra.mxu0 %v6306
        %6340 = vmatprep.subr.bf16.mxu0 %v6309
        %6341 = vmatpush1.bf16.msra.mxu0 %v6308
        %6342 = vmatprep.subr.bf16.mxu0 %v6311
        %6343 = vmatpush1.bf16.msra.mxu0 %v6310
        %6344 = vmatprep.subr.bf16.mxu0 %v6313
        %6345 = vmatpush1.bf16.msra.mxu0 %v6312
        %6346 = vmatprep.subr.bf16.mxu0 %v6315
        %6347 = vmatpush1.bf16.msra.mxu0 %v6314
        %6348 = vmatprep.subr.bf16.mxu0 %v6317
        %6349 = vmatpush1.bf16.msra.mxu0 %v6316
        %6350 = vmatprep.subr.bf16.mxu0 %v6319
        %6351 = vmatpush1.bf16.msra.mxu0 %v6318
        %6352 = vmatprep.subr.bf16.mxu0 %v6321
        %6353 = vmatpush1.bf16.msra.mxu0 %v6320
        %6354 = vmatprep.subr.bf16.mxu0 0
        %6355 = vmatpush1.bf16.msra.mxu0 0
        %6356 = vmatprep.subr.bf16.mxu0 0
        %6357 = vmatpush1.bf16.msra.mxu0 0
        %6358 = vmatprep.subr.bf16.mxu0 0
        %6359 = vmatpush1.bf16.msra.mxu0 0
        %6360 = vmatprep.subr.bf16.mxu0 0
        %6361 = vmatpush1.bf16.msra.mxu0 0
        %6362 = vmatprep.subr.bf16.mxu0 0
        %6363 = vmatpush1.bf16.msra.mxu0 0
        %6364 = vmatprep.subr.bf16.mxu0 0
        %6365 = vmatpush1.bf16.msra.mxu0 0
        %6366 = vmatprep.subr.bf16.mxu0 0
        %6367 = vmatpush1.bf16.msra.mxu0 0
        %6368 = vmatprep.subr.bf16.mxu0 0
        %6369 = vmatpush1.bf16.msra.mxu0 0
        %6370 = vmatprep.mubr.bf16.mxu0 0
        %6371 = vmatmul.mubr.bf16.gmra.mrb[0].mxu0 %v6220
        %v6372 = vpop.f32.mrb[0].mxu0
        %v6373 = vadd.f32 %v6251, %v6372
        %v6374 = vpop.f32.mrb[0].mxu0
        %v6375 = vadd.f32 %v6255, %v6374
        %v6376 = vpop.f32.mrb[0].mxu0
        %v6377 = vadd.f32 %v6251, %v6376
        %v6378 = vpop.f32.mrb[0].mxu0
        %v6379 = vadd.f32 %v6255, %v6378
        %6380 = vmatprep.mubr.bf16.mxu0 0
        %6381 = vmatmul.mubr.bf16.gmra.mrb[0].mxu0 %v6221
        %v6382 = vpop.f32.mrb[0].mxu0
        %v6383 = vadd.f32 %v6251, %v6382
        %v6384 = vpop.f32.mrb[0].mxu0
        %v6385 = vadd.f32 %v6255, %v6384
        %v6386 = vpop.f32.mrb[0].mxu0
        %v6387 = vadd.f32 %v6251, %v6386
        %v6388 = vpop.f32.mrb[0].mxu0
        %v6389 = vadd.f32 %v6255, %v6388
        %6390 = vmatprep.mubr.bf16.mxu0 0
        %6391 = vmatmul.mubr.bf16.gmra.mrb[0].mxu0 %v6222
        %v6392 = vpop.f32.mrb[0].mxu0
        %v6393 = vadd.f32 %v6251, %v6392
        %v6394 = vpop.f32.mrb[0].mxu0
        %v6395 = vadd.f32 %v6255, %v6394
        %v6396 = vpop.f32.mrb[0].mxu0
        %v6397 = vadd.f32 %v6251, %v6396
        %v6398 = vpop.f32.mrb[0].mxu0
        %v6399 = vadd.f32 %v6255, %v6398
        %6400 = vmatprep.mubr.bf16.mxu0 0
        %6401 = vmatmul.mubr.bf16.gmra.mrb[0].mxu0 %v6223
        %v6402 = vpop.f32.mrb[0].mxu0
        %v6403 = vadd.f32 %v6251, %v6402
        %v6404 = vpop.f32.mrb[0].mxu0
        %v6405 = vadd.f32 %v6255, %v6404
        %v6406 = vpop.f32.mrb[0].mxu0
        %v6407 = vadd.f32 %v6251, %v6406
        %v6408 = vpop.f32.mrb[0].mxu0
        %v6409 = vadd.f32 %v6255, %v6408
        %6410 = vmatprep.mubr.bf16.mxu0 0
        %6411 = vmatmul.mubr.bf16.gmra.mrb[0].mxu0 %v6224
        %v6412 = vpop.f32.mrb[0].mxu0
        %v6413 = vadd.f32 %v6251, %v6412
        %v6414 = vpop.f32.mrb[0].mxu0
        %v6415 = vadd.f32 %v6255, %v6414
        %v6416 = vpop.f32.mrb[0].mxu0
        %v6417 = vadd.f32 %v6251, %v6416
        %v6418 = vpop.f32.mrb[0].mxu0
        %v6419 = vadd.f32 %v6255, %v6418
        %6420 = vmatprep.mubr.bf16.mxu0 0
        %6421 = vmatmul.mubr.bf16.gmra.mrb[0].mxu0 %v6225
        %v6422 = vpop.f32.mrb[0].mxu0
        %v6423 = vadd.f32 %v6251, %v6422
        %v6424 = vpop.f32.mrb[0].mxu0
        %v6425 = vadd.f32 %v6255, %v6424
        %v6426 = vpop.f32.mrb[0].mxu0
        %v6427 = vadd.f32 %v6251, %v6426
        %v6428 = vpop.f32.mrb[0].mxu0
        %v6429 = vadd.f32 %v6255, %v6428
        %6430 = vmatprep.mubr.bf16.mxu0 0
        %6431 = vmatmul.mubr.bf16.gmra.mrb[0].mxu0 %v6226
        %v6432 = vpop.f32.mrb[0].mxu0
        %v6433 = vadd.f32 %v6251, %v6432
        %v6434 = vpop.f32.mrb[0].mxu0
        %v6435 = vadd.f32 %v6255, %v6434
        %v6436 = vpop.f32.mrb[0].mxu0
        %v6437 = vadd.f32 %v6251, %v6436
        %v6438 = vpop.f32.mrb[0].mxu0
        %v6439 = vadd.f32 %v6255, %v6438
        %6440 = vmatprep.mubr.bf16.mxu0 0
        %6441 = vmatmul.mubr.bf16.gmra.mrb[0].mxu0 %v6227
        %v6442 = vpop.f32.mrb[0].mxu0
        %v6443 = vadd.f32 %v6251, %v6442
        %v6444 = vpop.f32.mrb[0].mxu0
        %v6445 = vadd.f32 %v6255, %v6444
        %v6446 = vpop.f32.mrb[0].mxu0
        %v6447 = vadd.f32 %v6251, %v6446
        %v6448 = vpop.f32.mrb[0].mxu0
        %v6449 = vadd.f32 %v6255, %v6448
        %6450 = vdwg.mxu0
        %v6451 = vmul.f32 %v6373, 0.5
        %v6452 = vmul.f32 %v6375, 0.5
        %v6453 = vmul.f32 %v6377, 0.5
        %v6454 = vmul.f32 %v6379, 0.5
        %v6455 = vmul.f32 %v6383, 0.5
        %v6456 = vmul.f32 %v6385, 0.5
        %v6457 = vmul.f32 %v6387, 0.5
        %v6458 = vmul.f32 %v6389, 0.5
        %v6459 = vmul.f32 %v6393, 0.5
        %v6460 = vmul.f32 %v6395, 0.5
        %v6461 = vmul.f32 %v6397, 0.5
        %v6462 = vmul.f32 %v6399, 0.5
        %v6463 = vmul.f32 %v6403, 0.5
        %v6464 = vmul.f32 %v6405, 0.5
        %v6465 = vmul.f32 %v6407, 0.5
        %v6466 = vmul.f32 %v6409, 0.5
        %v6467 = vmul.f32 %v6413, 0.5
        %v6468 = vmul.f32 %v6415, 0.5
        %v6469 = vmul.f32 %v6417, 0.5
        %v6470 = vmul.f32 %v6419, 0.5
        %v6471 = vmul.f32 %v6423, 0.5
        %v6472 = vmul.f32 %v6425, 0.5
        %v6473 = vmul.f32 %v6427, 0.5
        %v6474 = vmul.f32 %v6429, 0.5
        %v6475 = vmul.f32 %v6433, 0.5
        %v6476 = vmul.f32 %v6435, 0.5
        %v6477 = vmul.f32 %v6437, 0.5
        %v6478 = vmul.f32 %v6439, 0.5
        %v6479 = vmul.f32 %v6443, 0.5
        %v6480 = vmul.f32 %v6445, 0.5
        %v6481 = vmul.f32 %v6447, 0.5
        %v6482 = vmul.f32 %v6449, 0.5
        %v6483 = vmul.f32 %v6373, 0.044715
        %v6484 = vmul.f32 %v6375, 0.044715
        %v6485 = vmul.f32 %v6377, 0.044715
        %v6486 = vmul.f32 %v6379, 0.044715
        %v6487 = vmul.f32 %v6383, 0.044715
        %v6488 = vmul.f32 %v6385, 0.044715
        %v6489 = vmul.f32 %v6387, 0.044715
        %v6490 = vmul.f32 %v6389, 0.044715
        %v6491 = vmul.f32 %v6393, 0.044715
        %v6492 = vmul.f32 %v6395, 0.044715
        %v6493 = vmul.f32 %v6397, 0.044715
        %v6494 = vmul.f32 %v6399, 0.044715
        %v6495 = vmul.f32 %v6403, 0.044715
        %v6496 = vmul.f32 %v6405, 0.044715
        %v6497 = vmul.f32 %v6407, 0.044715
        %v6498 = vmul.f32 %v6409, 0.044715
        %v6499 = vmul.f32 %v6413, 0.044715
        %v6500 = vmul.f32 %v6415, 0.044715
        %v6501 = vmul.f32 %v6417, 0.044715
        %v6502 = vmul.f32 %v6419, 0.044715
        %v6503 = vmul.f32 %v6423, 0.044715
        %v6504 = vmul.f32 %v6425, 0.044715
        %v6505 = vmul.f32 %v6427, 0.044715
        %v6506 = vmul.f32 %v6429, 0.044715
        %v6507 = vmul.f32 %v6433, 0.044715
        %v6508 = vmul.f32 %v6435, 0.044715
        %v6509 = vmul.f32 %v6437, 0.044715
        %v6510 = vmul.f32 %v6439, 0.044715
        %v6511 = vmul.f32 %v6443, 0.044715
        %v6512 = vmul.f32 %v6445, 0.044715
        %v6513 = vmul.f32 %v6447, 0.044715
        %v6514 = vmul.f32 %v6449, 0.044715
        %v6515 = vmul.f32 %v6483, %v6373
        %v6516 = vmul.f32 %v6484, %v6375
        %v6517 = vmul.f32 %v6485, %v6377
        %v6518 = vmul.f32 %v6486, %v6379
        %v6519 = vmul.f32 %v6487, %v6383
        %v6520 = vmul.f32 %v6488, %v6385
        %v6521 = vmul.f32 %v6489, %v6387
        %v6522 = vmul.f32 %v6490, %v6389
        %v6523 = vmul.f32 %v6491, %v6393
        %v6524 = vmul.f32 %v6492, %v6395
        %v6525 = vmul.f32 %v6493, %v6397
        %v6526 = vmul.f32 %v6494, %v6399
        %v6527 = vmul.f32 %v6495, %v6403
        %v6528 = vmul.f32 %v6496, %v6405
        %v6529 = vmul.f32 %v6497, %v6407
        %v6530 = vmul.f32 %v6498, %v6409
        %v6531 = vmul.f32 %v6499, %v6413
        %v6532 = vmul.f32 %v6500, %v6415
        %v6533 = vmul.f32 %v6501, %v6417
        %v6534 = vmul.f32 %v6502, %v6419
        %v6535 = vmul.f32 %v6503, %v6423
        %v6536 = vmul.f32 %v6504, %v6425
        %v6537 = vmul.f32 %v6505, %v6427
        %v6538 = vmul.f32 %v6506, %v6429
        %v6539 = vmul.f32 %v6507, %v6433
        %v6540 = vmul.f32 %v6508, %v6435
        %v6541 = vmul.f32 %v6509, %v6437
        %v6542 = vmul.f32 %v6510, %v6439
        %v6543 = vmul.f32 %v6511, %v6443
        %v6544 = vmul.f32 %v6512, %v6445
        %v6545 = vmul.f32 %v6513, %v6447
        %v6546 = vmul.f32 %v6514, %v6449
        %v6547 = vmul.f32 %v6515, %v6373
        %v6548 = vmul.f32 %v6516, %v6375
        %v6549 = vmul.f32 %v6517, %v6377
        %v6550 = vmul.f32 %v6518, %v6379
        %v6551 = vmul.f32 %v6519, %v6383
        %v6552 = vmul.f32 %v6520, %v6385
        %v6553 = vmul.f32 %v6521, %v6387
        %v6554 = vmul.f32 %v6522, %v6389
        %v6555 = vmul.f32 %v6523, %v6393
        %v6556 = vmul.f32 %v6524, %v6395
        %v6557 = vmul.f32 %v6525, %v6397
        %v6558 = vmul.f32 %v6526, %v6399
        %v6559 = vmul.f32 %v6527, %v6403
        %v6560 = vmul.f32 %v6528, %v6405
        %v6561 = vmul.f32 %v6529, %v6407
        %v6562 = vmul.f32 %v6530, %v6409
        %v6563 = vmul.f32 %v6531, %v6413
        %v6564 = vmul.f32 %v6532, %v6415
        %v6565 = vmul.f32 %v6533, %v6417
        %v6566 = vmul.f32 %v6534, %v6419
        %v6567 = vmul.f32 %v6535, %v6423
        %v6568 = vmul.f32 %v6536, %v6425
        %v6569 = vmul.f32 %v6537, %v6427
        %v6570 = vmul.f32 %v6538, %v6429
        %v6571 = vmul.f32 %v6539, %v6433
        %v6572 = vmul.f32 %v6540, %v6435
        %v6573 = vmul.f32 %v6541, %v6437
        %v6574 = vmul.f32 %v6542, %v6439
        %v6575 = vmul.f32 %v6543, %v6443
        %v6576 = vmul.f32 %v6544, %v6445
        %v6577 = vmul.f32 %v6545, %v6447
        %v6578 = vmul.f32 %v6546, %v6449
        %v6579 = vadd.f32 %v6373, %v6547
        %v6580 = vadd.f32 %v6375, %v6548
        %v6581 = vadd.f32 %v6377, %v6549
        %v6582 = vadd.f32 %v6379, %v6550
        %v6583 = vadd.f32 %v6383, %v6551
        %v6584 = vadd.f32 %v6385, %v6552
        %v6585 = vadd.f32 %v6387, %v6553
        %v6586 = vadd.f32 %v6389, %v6554
        %v6587 = vadd.f32 %v6393, %v6555
        %v6588 = vadd.f32 %v6395, %v6556
        %v6589 = vadd.f32 %v6397, %v6557
        %v6590 = vadd.f32 %v6399, %v6558
        %v6591 = vadd.f32 %v6403, %v6559
        %v6592 = vadd.f32 %v6405, %v6560
        %v6593 = vadd.f32 %v6407, %v6561
        %v6594 = vadd.f32 %v6409, %v6562
        %v6595 = vadd.f32 %v6413, %v6563
        %v6596 = vadd.f32 %v6415, %v6564
        %v6597 = vadd.f32 %v6417, %v6565
        %v6598 = vadd.f32 %v6419, %v6566
        %v6599 = vadd.f32 %v6423, %v6567
        %v6600 = vadd.f32 %v6425, %v6568
        %v6601 = vadd.f32 %v6427, %v6569
        %v6602 = vadd.f32 %v6429, %v6570
        %v6603 = vadd.f32 %v6433, %v6571
        %v6604 = vadd.f32 %v6435, %v6572
        %v6605 = vadd.f32 %v6437, %v6573
        %v6606 = vadd.f32 %v6439, %v6574
        %v6607 = vadd.f32 %v6443, %v6575
        %v6608 = vadd.f32 %v6445, %v6576
        %v6609 = vadd.f32 %v6447, %v6577
        %v6610 = vadd.f32 %v6449, %v6578
        %v6611 = vmul.f32 %v6579, 0.7978846
        %v6612 = vmul.f32 %v6580, 0.7978846
        %v6613 = vmul.f32 %v6581, 0.7978846
        %v6614 = vmul.f32 %v6582, 0.7978846
        %v6615 = vmul.f32 %v6583, 0.7978846
        %v6616 = vmul.f32 %v6584, 0.7978846
        %v6617 = vmul.f32 %v6585, 0.7978846
        %v6618 = vmul.f32 %v6586, 0.7978846
        %v6619 = vmul.f32 %v6587, 0.7978846
        %v6620 = vmul.f32 %v6588, 0.7978846
        %v6621 = vmul.f32 %v6589, 0.7978846
        %v6622 = vmul.f32 %v6590, 0.7978846
        %v6623 = vmul.f32 %v6591, 0.7978846
        %v6624 = vmul.f32 %v6592, 0.7978846
        %v6625 = vmul.f32 %v6593, 0.7978846
        %v6626 = vmul.f32 %v6594, 0.7978846
        %v6627 = vmul.f32 %v6595, 0.7978846
        %v6628 = vmul.f32 %v6596, 0.7978846
        %v6629 = vmul.f32 %v6597, 0.7978846
        %v6630 = vmul.f32 %v6598, 0.7978846
        %v6631 = vmul.f32 %v6599, 0.7978846
        %v6632 = vmul.f32 %v6600, 0.7978846
        %v6633 = vmul.f32 %v6601, 0.7978846
        %v6634 = vmul.f32 %v6602, 0.7978846
        %v6635 = vmul.f32 %v6603, 0.7978846
        %v6636 = vmul.f32 %v6604, 0.7978846
        %v6637 = vmul.f32 %v6605, 0.7978846
        %v6638 = vmul.f32 %v6606, 0.7978846
        %v6639 = vmul.f32 %v6607, 0.7978846
        %v6640 = vmul.f32 %v6608, 0.7978846
        %v6641 = vmul.f32 %v6609, 0.7978846
        %v6642 = vmul.f32 %v6610, 0.7978846
        %v6643 = vtanh.pop %v6611
        %v6644 = vtanh.pop %v6612
        %v6645 = vtanh.pop %v6613
        %v6646 = vtanh.pop %v6614
        %v6647 = vtanh.pop %v6615
        %v6648 = vtanh.pop %v6616
        %v6649 = vtanh.pop %v6617
        %v6650 = vtanh.pop %v6618
        %v6651 = vtanh.pop %v6619
        %v6652 = vtanh.pop %v6620
        %v6653 = vtanh.pop %v6621
        %v6654 = vtanh.pop %v6622
        %v6655 = vtanh.pop %v6623
        %v6656 = vtanh.pop %v6624
        %v6657 = vtanh.pop %v6625
        %v6658 = vtanh.pop %v6626
        %v6659 = vtanh.pop %v6627
        %v6660 = vtanh.pop %v6628
        %v6661 = vtanh.pop %v6629
        %v6662 = vtanh.pop %v6630
        %v6663 = vtanh.pop %v6631
        %v6664 = vtanh.pop %v6632
        %v6665 = vtanh.pop %v6633
        %v6666 = vtanh.pop %v6634
        %v6667 = vtanh.pop %v6635
        %v6668 = vtanh.pop %v6636
        %v6669 = vtanh.pop %v6637
        %v6670 = vtanh.pop %v6638
        %v6671 = vtanh.pop %v6639
        %v6672 = vtanh.pop %v6640
        %v6673 = vtanh.pop %v6641
        %v6674 = vtanh.pop %v6642
        %v6675 = vadd.f32 %v6643, 1.0
        %v6676 = vadd.f32 %v6644, 1.0
        %v6677 = vadd.f32 %v6645, 1.0
        %v6678 = vadd.f32 %v6646, 1.0
        %v6679 = vadd.f32 %v6647, 1.0
        %v6680 = vadd.f32 %v6648, 1.0
        %v6681 = vadd.f32 %v6649, 1.0
        %v6682 = vadd.f32 %v6650, 1.0
        %v6683 = vadd.f32 %v6651, 1.0
        %v6684 = vadd.f32 %v6652, 1.0
        %v6685 = vadd.f32 %v6653, 1.0
        %v6686 = vadd.f32 %v6654, 1.0
        %v6687 = vadd.f32 %v6655, 1.0
        %v6688 = vadd.f32 %v6656, 1.0
        %v6689 = vadd.f32 %v6657, 1.0
        %v6690 = vadd.f32 %v6658, 1.0
        %v6691 = vadd.f32 %v6659, 1.0
        %v6692 = vadd.f32 %v6660, 1.0
        %v6693 = vadd.f32 %v6661, 1.0
        %v6694 = vadd.f32 %v6662, 1.0
        %v6695 = vadd.f32 %v6663, 1.0
        %v6696 = vadd.f32 %v6664, 1.0
        %v6697 = vadd.f32 %v6665, 1.0
        %v6698 = vadd.f32 %v6666, 1.0
        %v6699 = vadd.f32 %v6667, 1.0
        %v6700 = vadd.f32 %v6668, 1.0
        %v6701 = vadd.f32 %v6669, 1.0
        %v6702 = vadd.f32 %v6670, 1.0
        %v6703 = vadd.f32 %v6671, 1.0
        %v6704 = vadd.f32 %v6672, 1.0
        %v6705 = vadd.f32 %v6673, 1.0
        %v6706 = vadd.f32 %v6674, 1.0
        %v6707 = vmul.f32 %v6451, %v6675
        %v6708 = vmul.f32 %v6452, %v6676
        %v6709 = vmul.f32 %v6453, %v6677
        %v6710 = vmul.f32 %v6454, %v6678
        %v6711 = vmul.f32 %v6455, %v6679
        %v6712 = vmul.f32 %v6456, %v6680
        %v6713 = vmul.f32 %v6457, %v6681
        %v6714 = vmul.f32 %v6458, %v6682
        %v6715 = vmul.f32 %v6459, %v6683
        %v6716 = vmul.f32 %v6460, %v6684
        %v6717 = vmul.f32 %v6461, %v6685
        %v6718 = vmul.f32 %v6462, %v6686
        %v6719 = vmul.f32 %v6463, %v6687
        %v6720 = vmul.f32 %v6464, %v6688
        %v6721 = vmul.f32 %v6465, %v6689
        %v6722 = vmul.f32 %v6466, %v6690
        %v6723 = vmul.f32 %v6467, %v6691
        %v6724 = vmul.f32 %v6468, %v6692
        %v6725 = vmul.f32 %v6469, %v6693
        %v6726 = vmul.f32 %v6470, %v6694
        %v6727 = vmul.f32 %v6471, %v6695
        %v6728 = vmul.f32 %v6472, %v6696
        %v6729 = vmul.f32 %v6473, %v6697
        %v6730 = vmul.f32 %v6474, %v6698
        %v6731 = vmul.f32 %v6475, %v6699
        %v6732 = vmul.f32 %v6476, %v6700
        %v6733 = vmul.f32 %v6477, %v6701
        %v6734 = vmul.f32 %v6478, %v6702
        %v6735 = vmul.f32 %v6479, %v6703
        %v6736 = vmul.f32 %v6480, %v6704
        %v6737 = vmul.f32 %v6481, %v6705
        %v6738 = vmul.f32 %v6482, %v6706
        %v6739 = vpack.c.bf16 %v6709, %v6707
        %v6740 = vpack.c.bf16 %v6710, %v6708
        %v6741 = vpack.c.bf16 %v6713, %v6711
        %v6742 = vpack.c.bf16 %v6714, %v6712
        %v6743 = vpack.c.bf16 %v6717, %v6715
        %v6744 = vpack.c.bf16 %v6718, %v6716
        %v6745 = vpack.c.bf16 %v6721, %v6719
        %v6746 = vpack.c.bf16 %v6722, %v6720
        %v6747 = vpack.c.bf16 %v6725, %v6723
        %v6748 = vpack.c.bf16 %v6726, %v6724
        %v6749 = vpack.c.bf16 %v6729, %v6727
        %v6750 = vpack.c.bf16 %v6730, %v6728
        %v6751 = vpack.c.bf16 %v6733, %v6731
        %v6752 = vpack.c.bf16 %v6734, %v6732
        %v6753 = vpack.c.bf16 %v6737, %v6735
        %v6754 = vpack.c.bf16 %v6738, %v6736
        %s6755 = scalar_lea.vmem [#allocation9], 256
        %v6756 = vld [vmem:[%s6755] sm:$0xf]
        %v6757 = vld [vmem:[%s6755 + $0x4] sm:$0xf]
        %v6758 = vld [vmem:[%s6755 + $0x8] sm:$0xf]
        %v6759 = vld [vmem:[%s6755 + $0xc] sm:$0xf]
        %v6760 = vld [vmem:[%s6755 + $0x10] sm:$0xf]
        %v6761 = vld [vmem:[%s6755 + $0x14] sm:$0xf]
        %v6762 = vld [vmem:[%s6755 + $0x18] sm:$0xf]
        %v6763 = vld [vmem:[%s6755 + $0x1c] sm:$0xf]
        %v6764 = vld [vmem:[%s6755 + $0x20] sm:$0xf]
        %v6765 = vld [vmem:[%s6755 + $0x24] sm:$0xf]
        %v6766 = vld [vmem:[%s6755 + $0x28] sm:$0xf]
        %v6767 = vld [vmem:[%s6755 + $0x2c] sm:$0xf]
        %v6768 = vld [vmem:[%s6755 + $0x30] sm:$0xf]
        %v6769 = vld [vmem:[%s6755 + $0x34] sm:$0xf]
        %v6770 = vld [vmem:[%s6755 + $0x38] sm:$0xf]
        %v6771 = vld [vmem:[%s6755 + $0x3c] sm:$0xf]
        %v6772 = vld [vmem:[%s6755 + $0x40] sm:$0xf]
        %v6773 = vld [vmem:[%s6755 + $0x44] sm:$0xf]
        %v6774 = vld [vmem:[%s6755 + $0x48] sm:$0xf]
        %v6775 = vld [vmem:[%s6755 + $0x4c] sm:$0xf]
        %v6776 = vld [vmem:[%s6755 + $0x50] sm:$0xf]
        %v6777 = vld [vmem:[%s6755 + $0x54] sm:$0xf]
        %v6778 = vld [vmem:[%s6755 + $0x58] sm:$0xf]
        %v6779 = vld [vmem:[%s6755 + $0x5c] sm:$0xf]
        %v6780 = vld [vmem:[%s6755 + $0x60] sm:$0xf]
        %v6781 = vld [vmem:[%s6755 + $0x64] sm:$0xf]
        %v6782 = vld [vmem:[%s6755 + $0x68] sm:$0xf]
        %v6783 = vld [vmem:[%s6755 + $0x6c] sm:$0xf]
        %v6784 = vld [vmem:[%s6755 + $0x70] sm:$0xf]
        %v6785 = vld [vmem:[%s6755 + $0x74] sm:$0xf]
        %v6786 = vld [vmem:[%s6755 + $0x78] sm:$0xf]
        %v6787 = vld [vmem:[%s6755 + $0x7c] sm:$0xf]
        %s6788 = scalar_lea.vmem %s12, 2
        %v6789 = vld [vmem:[%s6788] sm:$0x1]
        %v6791 = vlaneseq
        %v6792 = vshrl.u32 %v6791, 7
        %v6793 = vsub.s32 0, %v6792
        %v6794 = vrot.slane %v6789, %v6793
        %v6828 = vunpack.c.l.b16 %v6756
        %v6829 = vunpack.c.l.b16 %v6757
        %v6830 = vunpack.c.l.b16 %v6758
        %v6831 = vunpack.c.l.b16 %v6759
        %v6832 = vunpack.c.l.b16 %v6760
        %v6833 = vunpack.c.l.b16 %v6761
        %v6834 = vunpack.c.l.b16 %v6762
        %v6835 = vunpack.c.l.b16 %v6763
        %v6836 = vunpack.c.l.b16 %v6764
        %v6837 = vunpack.c.l.b16 %v6765
        %v6838 = vunpack.c.l.b16 %v6766
        %v6839 = vunpack.c.l.b16 %v6767
        %v6840 = vunpack.c.l.b16 %v6768
        %v6841 = vunpack.c.l.b16 %v6769
        %v6842 = vunpack.c.l.b16 %v6770
        %v6843 = vunpack.c.l.b16 %v6771
        %v6844 = vunpack.c.l.b16 %v6772
        %v6845 = vunpack.c.l.b16 %v6773
        %v6846 = vunpack.c.l.b16 %v6774
        %v6847 = vunpack.c.l.b16 %v6775
        %v6848 = vunpack.c.l.b16 %v6776
        %v6849 = vunpack.c.l.b16 %v6777
        %v6850 = vunpack.c.l.b16 %v6778
        %v6851 = vunpack.c.l.b16 %v6779
        %v6852 = vunpack.c.l.b16 %v6780
        %v6853 = vunpack.c.l.b16 %v6781
        %v6854 = vunpack.c.l.b16 %v6782
        %v6855 = vunpack.c.l.b16 %v6783
        %v6856 = vunpack.c.l.b16 %v6784
        %v6857 = vunpack.c.l.b16 %v6785
        %v6858 = vunpack.c.l.b16 %v6786
        %v6859 = vunpack.c.l.b16 %v6787
        %v6860 = vpack.c.b16 %v6829, %v6828
        %v6861 = vpack.c.b16 %v6831, %v6830
        %v6862 = vpack.c.b16 %v6833, %v6832
        %v6863 = vpack.c.b16 %v6835, %v6834
        %v6864 = vpack.c.b16 %v6837, %v6836
        %v6865 = vpack.c.b16 %v6839, %v6838
        %v6866 = vpack.c.b16 %v6841, %v6840
        %v6867 = vpack.c.b16 %v6843, %v6842
        %v6868 = vpack.c.b16 %v6845, %v6844
        %v6869 = vpack.c.b16 %v6847, %v6846
        %v6870 = vpack.c.b16 %v6849, %v6848
        %v6871 = vpack.c.b16 %v6851, %v6850
        %v6872 = vpack.c.b16 %v6853, %v6852
        %v6873 = vpack.c.b16 %v6855, %v6854
        %v6874 = vpack.c.b16 %v6857, %v6856
        %v6875 = vpack.c.b16 %v6859, %v6858
        %6892 = vmatprep.subr.bf16.mxu0 0
        %6893 = vmatpush1.bf16.msra.mxu0 %v6860
        %6894 = vmatprep.subr.bf16.mxu0 0
        %6895 = vmatpush1.bf16.msra.mxu0 %v6861
        %6896 = vmatprep.subr.bf16.mxu0 0
        %6897 = vmatpush1.bf16.msra.mxu0 %v6862
        %6898 = vmatprep.subr.bf16.mxu0 0
        %6899 = vmatpush1.bf16.msra.mxu0 %v6863
        %6900 = vmatprep.subr.bf16.mxu0 0
        %6901 = vmatpush1.bf16.msra.mxu0 %v6864
        %6902 = vmatprep.subr.bf16.mxu0 0
        %6903 = vmatpush1.bf16.msra.mxu0 %v6865
        %6904 = vmatprep.subr.bf16.mxu0 0
        %6905 = vmatpush1.bf16.msra.mxu0 %v6866
        %6906 = vmatprep.subr.bf16.mxu0 0
        %6907 = vmatpush1.bf16.msra.mxu0 %v6867
        %6908 = vmatprep.subr.bf16.mxu0 0
        %6909 = vmatpush1.bf16.msra.mxu0 %v6868
        %6910 = vmatprep.subr.bf16.mxu0 0
        %6911 = vmatpush1.bf16.msra.mxu0 %v6869
        %6912 = vmatprep.subr.bf16.mxu0 0
        %6913 = vmatpush1.bf16.msra.mxu0 %v6870
        %6914 = vmatprep.subr.bf16.mxu0 0
        %6915 = vmatpush1.bf16.msra.mxu0 %v6871
        %6916 = vmatprep.subr.bf16.mxu0 0
        %6917 = vmatpush1.bf16.msra.mxu0 %v6872
        %6918 = vmatprep.subr.bf16.mxu0 0
        %6919 = vmatpush1.bf16.msra.mxu0 %v6873
        %6920 = vmatprep.subr.bf16.mxu0 0
        %6921 = vmatpush1.bf16.msra.mxu0 %v6874
        %6922 = vmatprep.subr.bf16.mxu0 0
        %6923 = vmatpush1.bf16.msra.mxu0 %v6875
        %6924 = vmatprep.mubr.bf16.mxu0 %v6740
        %6925 = vmatmul.mubr.bf16.gmra.mrb[0].mxu0 %v6739
        %v6926 = vpop.f32.mrb[0].mxu0
        %v6927 = vadd.f32 %v6794, %v6926
        %v6928 = vpop.f32.mrb[0].mxu0
        %v6929 = vpop.f32.mrb[0].mxu0
        %v6930 = vadd.f32 %v6794, %v6929
        %v6931 = vpop.f32.mrb[0].mxu0
        %6932 = vmatprep.mubr.bf16.mxu0 %v6742
        %6933 = vmatmul.mubr.bf16.gmra.mrb[0].mxu0 %v6741
        %v6934 = vpop.f32.mrb[0].mxu0
        %v6935 = vadd.f32 %v6794, %v6934
        %v6936 = vpop.f32.mrb[0].mxu0
        %v6937 = vpop.f32.mrb[0].mxu0
        %v6938 = vadd.f32 %v6794, %v6937
        %v6939 = vpop.f32.mrb[0].mxu0
        %6940 = vmatprep.mubr.bf16.mxu0 %v6744
        %6941 = vmatmul.mubr.bf16.gmra.mrb[0].mxu0 %v6743
        %v6942 = vpop.f32.mrb[0].mxu0
        %v6943 = vadd.f32 %v6794, %v6942
        %v6944 = vpop.f32.mrb[0].mxu0
        %v6945 = vpop.f32.mrb[0].mxu0
        %v6946 = vadd.f32 %v6794, %v6945
        %v6947 = vpop.f32.mrb[0].mxu0
        %6948 = vmatprep.mubr.bf16.mxu0 %v6746
        %6949 = vmatmul.mubr.bf16.gmra.mrb[0].mxu0 %v6745
        %v6950 = vpop.f32.mrb[0].mxu0
        %v6951 = vadd.f32 %v6794, %v6950
        %v6952 = vpop.f32.mrb[0].mxu0
        %v6953 = vpop.f32.mrb[0].mxu0
        %v6954 = vadd.f32 %v6794, %v6953
        %v6955 = vpop.f32.mrb[0].mxu0
        %6956 = vmatprep.mubr.bf16.mxu0 %v6748
        %6957 = vmatmul.mubr.bf16.gmra.mrb[0].mxu0 %v6747
        %v6958 = vpop.f32.mrb[0].mxu0
        %v6959 = vadd.f32 %v6794, %v6958
        %v6960 = vpop.f32.mrb[0].mxu0
        %v6961 = vpop.f32.mrb[0].mxu0
        %v6962 = vadd.f32 %v6794, %v6961
        %v6963 = vpop.f32.mrb[0].mxu0
        %6964 = vmatprep.mubr.bf16.mxu0 %v6750
        %6965 = vmatmul.mubr.bf16.gmra.mrb[0].mxu0 %v6749
        %v6966 = vpop.f32.mrb[0].mxu0
        %v6967 = vadd.f32 %v6794, %v6966
        %v6968 = vpop.f32.mrb[0].mxu0
        %v6969 = vpop.f32.mrb[0].mxu0
        %v6970 = vadd.f32 %v6794, %v6969
        %v6971 = vpop.f32.mrb[0].mxu0
        %6972 = vmatprep.mubr.bf16.mxu0 %v6752
        %6973 = vmatmul.mubr.bf16.gmra.mrb[0].mxu0 %v6751
        %v6974 = vpop.f32.mrb[0].mxu0
        %v6975 = vadd.f32 %v6794, %v6974
        %v6976 = vpop.f32.mrb[0].mxu0
        %v6977 = vpop.f32.mrb[0].mxu0
        %v6978 = vadd.f32 %v6794, %v6977
        %v6979 = vpop.f32.mrb[0].mxu0
        %6980 = vmatprep.mubr.bf16.mxu0 %v6754
        %6981 = vmatmul.mubr.bf16.gmra.mrb[0].mxu0 %v6753
        %v6982 = vpop.f32.mrb[0].mxu0
        %v6983 = vadd.f32 %v6794, %v6982
        %v6984 = vpop.f32.mrb[0].mxu0
        %v6985 = vpop.f32.mrb[0].mxu0
        %v6986 = vadd.f32 %v6794, %v6985
        %v6987 = vpop.f32.mrb[0].mxu0
        %6988 = vdwg.mxu0
        %v6989 = vadd.f32 %v6204, %v6927
        %v6990 = vadd.f32 %v6205, %v6930
        %v6991 = vadd.f32 %v6206, %v6935
        %v6992 = vadd.f32 %v6207, %v6938
        %v6993 = vadd.f32 %v6208, %v6943
        %v6994 = vadd.f32 %v6209, %v6946
        %v6995 = vadd.f32 %v6210, %v6951
        %v6996 = vadd.f32 %v6211, %v6954
        %v6997 = vadd.f32 %v6212, %v6959
        %v6998 = vadd.f32 %v6213, %v6962
        %v6999 = vadd.f32 %v6214, %v6967
        %v7000 = vadd.f32 %v6215, %v6970
        %v7001 = vadd.f32 %v6216, %v6975
        %v7002 = vadd.f32 %v6217, %v6978
        %v7003 = vadd.f32 %v6218, %v6983
        %v7004 = vadd.f32 %v6219, %v6986
        %s7005 = scalar_lea.vmem %s13, 2
        %v7006 = vld [vmem:[%s7005] sm:$0x1]
        %s7007 = scalar_lea.vmem %s14, 2
        %v7008 = vld [vmem:[%s7007] sm:$0x1]
        %7009 = vadd.xlane.f32.xlu0 %v6989
        %v7010 = vpop.xlane.xlu0 %7009
        %7011 = vadd.xlane.f32.xlu0 %v6990
        %v7012 = vpop.xlane.xlu0 %7011
        %7013 = vadd.xlane.f32.xlu0 %v6991
        %v7014 = vpop.xlane.xlu0 %7013
        %7015 = vadd.xlane.f32.xlu0 %v6992
        %v7016 = vpop.xlane.xlu0 %7015
        %7017 = vadd.xlane.f32.xlu0 %v6993
        %v7018 = vpop.xlane.xlu0 %7017
        %7019 = vadd.xlane.f32.xlu0 %v6994
        %v7020 = vpop.xlane.xlu0 %7019
        %7021 = vadd.xlane.f32.xlu0 %v6995
        %v7022 = vpop.xlane.xlu0 %7021
        %7023 = vadd.xlane.f32.xlu0 %v6996
        %v7024 = vpop.xlane.xlu0 %7023
        %7025 = vadd.xlane.f32.xlu0 %v6997
        %v7026 = vpop.xlane.xlu0 %7025
        %7027 = vadd.xlane.f32.xlu0 %v6998
        %v7028 = vpop.xlane.xlu0 %7027
        %7029 = vadd.xlane.f32.xlu0 %v6999
        %v7030 = vpop.xlane.xlu0 %7029
        %7031 = vadd.xlane.f32.xlu0 %v7000
        %v7032 = vpop.xlane.xlu0 %7031
        %7033 = vadd.xlane.f32.xlu0 %v7001
        %v7034 = vpop.xlane.xlu0 %7033
        %7035 = vadd.xlane.f32.xlu0 %v7002
        %v7036 = vpop.xlane.xlu0 %7035
        %7037 = vadd.xlane.f32.xlu0 %v7003
        %v7038 = vpop.xlane.xlu0 %7037
        %7039 = vadd.xlane.f32.xlu0 %v7004
        %v7040 = vpop.xlane.xlu0 %7039
        %v7041 = vmul.f32 %v7010, %v1617
        %v7042 = vmul.f32 %v7012, %v1617
        %v7043 = vmul.f32 %v7014, %v1617
        %v7044 = vmul.f32 %v7016, %v1617
        %v7045 = vmul.f32 %v7018, %v1617
        %v7046 = vmul.f32 %v7020, %v1617
        %v7047 = vmul.f32 %v7022, %v1617
        %v7048 = vmul.f32 %v7024, %v1617
        %v7049 = vmul.f32 %v7026, %v1617
        %v7050 = vmul.f32 %v7028, %v1617
        %v7051 = vmul.f32 %v7030, %v1617
        %v7052 = vmul.f32 %v7032, %v1617
        %v7053 = vmul.f32 %v7034, %v1617
        %v7054 = vmul.f32 %v7036, %v1617
        %v7055 = vmul.f32 %v7038, %v1617
        %v7056 = vmul.f32 %v7040, %v1617
        %v7057 = vsub.f32 %v6989, %v7041
        %v7058 = vsub.f32 %v6990, %v7042
        %v7059 = vsub.f32 %v6991, %v7043
        %v7060 = vsub.f32 %v6992, %v7044
        %v7061 = vsub.f32 %v6993, %v7045
        %v7062 = vsub.f32 %v6994, %v7046
        %v7063 = vsub.f32 %v6995, %v7047
        %v7064 = vsub.f32 %v6996, %v7048
        %v7065 = vsub.f32 %v6997, %v7049
        %v7066 = vsub.f32 %v6998, %v7050
        %v7067 = vsub.f32 %v6999, %v7051
        %v7068 = vsub.f32 %v7000, %v7052
        %v7069 = vsub.f32 %v7001, %v7053
        %v7070 = vsub.f32 %v7002, %v7054
        %v7071 = vsub.f32 %v7003, %v7055
        %v7072 = vsub.f32 %v7004, %v7056
        %v7073 = vmul.f32 %v7057, %v7057
        %v7074 = vmul.f32 %v7058, %v7058
        %v7075 = vmul.f32 %v7059, %v7059
        %v7076 = vmul.f32 %v7060, %v7060
        %v7077 = vmul.f32 %v7061, %v7061
        %v7078 = vmul.f32 %v7062, %v7062
        %v7079 = vmul.f32 %v7063, %v7063
        %v7080 = vmul.f32 %v7064, %v7064
        %v7081 = vmul.f32 %v7065, %v7065
        %v7082 = vmul.f32 %v7066, %v7066
        %v7083 = vmul.f32 %v7067, %v7067
        %v7084 = vmul.f32 %v7068, %v7068
        %v7085 = vmul.f32 %v7069, %v7069
        %v7086 = vmul.f32 %v7070, %v7070
        %v7087 = vmul.f32 %v7071, %v7071
        %v7088 = vmul.f32 %v7072, %v7072
        %7089 = vadd.xlane.f32.xlu0 %v7073
        %v7090 = vpop.xlane.xlu0 %7089
        %7091 = vadd.xlane.f32.xlu0 %v7074
        %v7092 = vpop.xlane.xlu0 %7091
        %7093 = vadd.xlane.f32.xlu0 %v7075
        %v7094 = vpop.xlane.xlu0 %7093
        %7095 = vadd.xlane.f32.xlu0 %v7076
        %v7096 = vpop.xlane.xlu0 %7095
        %7097 = vadd.xlane.f32.xlu0 %v7077
        %v7098 = vpop.xlane.xlu0 %7097
        %7099 = vadd.xlane.f32.xlu0 %v7078
        %v7100 = vpop.xlane.xlu0 %7099
        %7101 = vadd.xlane.f32.xlu0 %v7079
        %v7102 = vpop.xlane.xlu0 %7101
        %7103 = vadd.xlane.f32.xlu0 %v7080
        %v7104 = vpop.xlane.xlu0 %7103
        %7105 = vadd.xlane.f32.xlu0 %v7081
        %v7106 = vpop.xlane.xlu0 %7105
        %7107 = vadd.xlane.f32.xlu0 %v7082
        %v7108 = vpop.xlane.xlu0 %7107
        %7109 = vadd.xlane.f32.xlu0 %v7083
        %v7110 = vpop.xlane.xlu0 %7109
        %7111 = vadd.xlane.f32.xlu0 %v7084
        %v7112 = vpop.xlane.xlu0 %7111
        %7113 = vadd.xlane.f32.xlu0 %v7085
        %v7114 = vpop.xlane.xlu0 %7113
        %7115 = vadd.xlane.f32.xlu0 %v7086
        %v7116 = vpop.xlane.xlu0 %7115
        %7117 = vadd.xlane.f32.xlu0 %v7087
        %v7118 = vpop.xlane.xlu0 %7117
        %7119 = vadd.xlane.f32.xlu0 %v7088
        %v7120 = vpop.xlane.xlu0 %7119
        %v7121 = vmul.f32 %v7090, %v1617
        %v7122 = vmul.f32 %v7092, %v1617
        %v7123 = vmul.f32 %v7094, %v1617
        %v7124 = vmul.f32 %v7096, %v1617
        %v7125 = vmul.f32 %v7098, %v1617
        %v7126 = vmul.f32 %v7100, %v1617
        %v7127 = vmul.f32 %v7102, %v1617
        %v7128 = vmul.f32 %v7104, %v1617
        %v7129 = vmul.f32 %v7106, %v1617
        %v7130 = vmul.f32 %v7108, %v1617
        %v7131 = vmul.f32 %v7110, %v1617
        %v7132 = vmul.f32 %v7112, %v1617
        %v7133 = vmul.f32 %v7114, %v1617
        %v7134 = vmul.f32 %v7116, %v1617
        %v7135 = vmul.f32 %v7118, %v1617
        %v7136 = vmul.f32 %v7120, %v1617
        %v7137 = vadd.f32 %v7121, 1e-12
        %v7138 = vadd.f32 %v7122, 1e-12
        %v7139 = vadd.f32 %v7123, 1e-12
        %v7140 = vadd.f32 %v7124, 1e-12
        %v7141 = vadd.f32 %v7125, 1e-12
        %v7142 = vadd.f32 %v7126, 1e-12
        %v7143 = vadd.f32 %v7127, 1e-12
        %v7144 = vadd.f32 %v7128, 1e-12
        %v7145 = vadd.f32 %v7129, 1e-12
        %v7146 = vadd.f32 %v7130, 1e-12
        %v7147 = vadd.f32 %v7131, 1e-12
        %v7148 = vadd.f32 %v7132, 1e-12
        %v7149 = vadd.f32 %v7133, 1e-12
        %v7150 = vadd.f32 %v7134, 1e-12
        %v7151 = vadd.f32 %v7135, 1e-12
        %v7152 = vadd.f32 %v7136, 1e-12
        %v7153 = vrsqrt.pop %v7137
        %v7154 = vrsqrt.pop %v7138
        %v7155 = vrsqrt.pop %v7139
        %v7156 = vrsqrt.pop %v7140
        %v7157 = vrsqrt.pop %v7141
        %v7158 = vrsqrt.pop %v7142
        %v7159 = vrsqrt.pop %v7143
        %v7160 = vrsqrt.pop %v7144
        %v7161 = vrsqrt.pop %v7145
        %v7162 = vrsqrt.pop %v7146
        %v7163 = vrsqrt.pop %v7147
        %v7164 = vrsqrt.pop %v7148
        %v7165 = vrsqrt.pop %v7149
        %v7166 = vrsqrt.pop %v7150
        %v7167 = vrsqrt.pop %v7151
        %v7168 = vrsqrt.pop %v7152
        %v7169 = vmul.f32 %v7057, %v7153
        %v7170 = vmul.f32 %v7058, %v7154
        %v7171 = vmul.f32 %v7059, %v7155
        %v7172 = vmul.f32 %v7060, %v7156
        %v7173 = vmul.f32 %v7061, %v7157
        %v7174 = vmul.f32 %v7062, %v7158
        %v7175 = vmul.f32 %v7063, %v7159
        %v7176 = vmul.f32 %v7064, %v7160
        %v7177 = vmul.f32 %v7065, %v7161
        %v7178 = vmul.f32 %v7066, %v7162
        %v7179 = vmul.f32 %v7067, %v7163
        %v7180 = vmul.f32 %v7068, %v7164
        %v7181 = vmul.f32 %v7069, %v7165
        %v7182 = vmul.f32 %v7070, %v7166
        %v7183 = vmul.f32 %v7071, %v7167
        %v7184 = vmul.f32 %v7072, %v7168
        %v7186 = vlaneseq
        %v7187 = vshrl.u32 %v7186, 7
        %v7188 = vsub.s32 0, %v7187
        %v7189 = vrot.slane %v7006, %v7188
        %v7191 = vmul.f32 %v7169, %v7189
        %v7192 = vmul.f32 %v7170, %v7189
        %v7193 = vmul.f32 %v7171, %v7189
        %v7194 = vmul.f32 %v7172, %v7189
        %v7195 = vmul.f32 %v7173, %v7189
        %v7196 = vmul.f32 %v7174, %v7189
        %v7197 = vmul.f32 %v7175, %v7189
        %v7198 = vmul.f32 %v7176, %v7189
        %v7199 = vmul.f32 %v7177, %v7189
        %v7200 = vmul.f32 %v7178, %v7189
        %v7201 = vmul.f32 %v7179, %v7189
        %v7202 = vmul.f32 %v7180, %v7189
        %v7203 = vmul.f32 %v7181, %v7189
        %v7204 = vmul.f32 %v7182, %v7189
        %v7205 = vmul.f32 %v7183, %v7189
        %v7206 = vmul.f32 %v7184, %v7189
        %v7208 = vlaneseq
        %v7209 = vshrl.u32 %v7208, 7
        %v7210 = vsub.s32 0, %v7209
        %v7211 = vrot.slane %v7008, %v7210
        %v7213 = vadd.f32 %v7191, %v7211
        %v7214 = vadd.f32 %v7192, %v7211
        %v7215 = vadd.f32 %v7193, %v7211
        %v7216 = vadd.f32 %v7194, %v7211
        %v7217 = vadd.f32 %v7195, %v7211
        %v7218 = vadd.f32 %v7196, %v7211
        %v7219 = vadd.f32 %v7197, %v7211
        %v7220 = vadd.f32 %v7198, %v7211
        %v7221 = vadd.f32 %v7199, %v7211
        %v7222 = vadd.f32 %v7200, %v7211
        %v7223 = vadd.f32 %v7201, %v7211
        %v7224 = vadd.f32 %v7202, %v7211
        %v7225 = vadd.f32 %v7203, %v7211
        %v7226 = vadd.f32 %v7204, %v7211
        %v7227 = vadd.f32 %v7205, %v7211
        %v7228 = vadd.f32 %v7206, %v7211
        %v7229 = vadd.f32 %v5019, %v7213
        %v7230 = vadd.f32 %v5020, %v7214
        %v7231 = vadd.f32 %v5021, %v7215
        %v7232 = vadd.f32 %v5022, %v7216
        %v7233 = vadd.f32 %v5023, %v7217
        %v7234 = vadd.f32 %v5024, %v7218
        %v7235 = vadd.f32 %v5025, %v7219
        %v7236 = vadd.f32 %v5026, %v7220
        %v7237 = vadd.f32 %v5027, %v7221
        %v7238 = vadd.f32 %v5028, %v7222
        %v7239 = vadd.f32 %v5029, %v7223
        %v7240 = vadd.f32 %v5030, %v7224
        %v7241 = vadd.f32 %v5031, %v7225
        %v7242 = vadd.f32 %v5032, %v7226
        %v7243 = vadd.f32 %v5033, %v7227
        %v7244 = vadd.f32 %v5034, %v7228
        %v7245 = vpack.c.bf16 %v7214, %v7213
        %v7246 = vpack.c.bf16 %v7216, %v7215
        %v7247 = vpack.c.bf16 %v7218, %v7217
        %v7248 = vpack.c.bf16 %v7220, %v7219
        %v7249 = vpack.c.bf16 %v7222, %v7221
        %v7250 = vpack.c.bf16 %v7224, %v7223
        %v7251 = vpack.c.bf16 %v7226, %v7225
        %v7252 = vpack.c.bf16 %v7228, %v7227
        %s7253 = scalar_lea.vmem [#allocation4], 576
        %v7254 = vld [vmem:[%s7253] sm:$0xff]
        %v7255 = vld [vmem:[%s7253 + $0x8] sm:$0xf]
        %v7256 = vld [vmem:[%s7253 + $0xc] sm:$0xff]
        %v7257 = vld [vmem:[%s7253 + $0x14] sm:$0xf]
        %v7258 = vld [vmem:[%s7253 + $0x18] sm:$0xff]
        %v7259 = vld [vmem:[%s7253 + $0x20] sm:$0xf]
        %v7260 = vld [vmem:[%s7253 + $0x24] sm:$0xff]
        %v7261 = vld [vmem:[%s7253 + $0x2c] sm:$0xf]
        %v7262 = vld [vmem:[%s7253 + $0x30] sm:$0xff]
        %v7263 = vld [vmem:[%s7253 + $0x38] sm:$0xf]
        %v7264 = vld [vmem:[%s7253 + $0x3c] sm:$0xff]
        %v7265 = vld [vmem:[%s7253 + $0x44] sm:$0xf]
        %v7266 = vld [vmem:[%s7253 + $0x48] sm:$0xff]
        %v7267 = vld [vmem:[%s7253 + $0x50] sm:$0xf]
        %v7268 = vld [vmem:[%s7253 + $0x54] sm:$0xff]
        %v7269 = vld [vmem:[%s7253 + $0x5c] sm:$0xf]
        %v7270 = vld [vmem:[%s7253 + $0x60] sm:$0xff]
        %v7271 = vld [vmem:[%s7253 + $0x68] sm:$0xf]
        %v7272 = vld [vmem:[%s7253 + $0x6c] sm:$0xff]
        %v7273 = vld [vmem:[%s7253 + $0x74] sm:$0xf]
        %v7274 = vld [vmem:[%s7253 + $0x78] sm:$0xff]
        %v7275 = vld [vmem:[%s7253 + $0x80] sm:$0xf]
        %v7276 = vld [vmem:[%s7253 + $0x84] sm:$0xff]
        %v7277 = vld [vmem:[%s7253 + $0x8c] sm:$0xf]
        %v7278 = vld [vmem:[%s7253 + $0x90] sm:$0xff]
        %v7279 = vld [vmem:[%s7253 + $0x98] sm:$0xf]
        %v7280 = vld [vmem:[%s7253 + $0x9c] sm:$0xff]
        %v7281 = vld [vmem:[%s7253 + $0xa4] sm:$0xf]
        %v7282 = vld [vmem:[%s7253 + $0xa8] sm:$0xff]
        %v7283 = vld [vmem:[%s7253 + $0xb0] sm:$0xf]
        %v7284 = vld [vmem:[%s7253 + $0xb4] sm:$0xff]
        %v7285 = vld [vmem:[%s7253 + $0xbc] sm:$0xf]
        %s7286 = scalar_lea.vmem %s4, 9
        %v7287 = vld [vmem:[%s7286] sm:$0x7]
        %v7289 = vlaneseq
        %v7290 = vshrl.u32 %v7289, 7
        %v7291 = vsub.s32 0, %v7290
        %v7292 = vrot.slane %v7287, %v7291
        %v7293 = vlaneseq
        %v7294 = vshrl.u32 %v7293, 7
        %v7295 = vsub.s32 1, %v7294
        %v7296 = vrot.slane %v7287, %v7295
        %v7297 = vlaneseq
        %v7298 = vshrl.u32 %v7297, 7
        %v7299 = vsub.s32 2, %v7298
        %v7300 = vrot.slane %v7287, %v7299
        %v7336 = vunpack.c.l.b16 %v7254
        %v7337 = vunpack.c.h.b16 %v7254
        %v7338 = vunpack.c.l.b16 %v7255
        %v7339 = vunpack.c.l.b16 %v7256
        %v7340 = vunpack.c.h.b16 %v7256
        %v7341 = vunpack.c.l.b16 %v7257
        %v7342 = vunpack.c.l.b16 %v7258
        %v7343 = vunpack.c.h.b16 %v7258
        %v7344 = vunpack.c.l.b16 %v7259
        %v7345 = vunpack.c.l.b16 %v7260
        %v7346 = vunpack.c.h.b16 %v7260
        %v7347 = vunpack.c.l.b16 %v7261
        %v7348 = vunpack.c.l.b16 %v7262
        %v7349 = vunpack.c.h.b16 %v7262
        %v7350 = vunpack.c.l.b16 %v7263
        %v7351 = vunpack.c.l.b16 %v7264
        %v7352 = vunpack.c.h.b16 %v7264
        %v7353 = vunpack.c.l.b16 %v7265
        %v7354 = vunpack.c.l.b16 %v7266
        %v7355 = vunpack.c.h.b16 %v7266
        %v7356 = vunpack.c.l.b16 %v7267
        %v7357 = vunpack.c.l.b16 %v7268
        %v7358 = vunpack.c.h.b16 %v7268
        %v7359 = vunpack.c.l.b16 %v7269
        %v7360 = vunpack.c.l.b16 %v7270
        %v7361 = vunpack.c.h.b16 %v7270
        %v7362 = vunpack.c.l.b16 %v7271
        %v7363 = vunpack.c.l.b16 %v7272
        %v7364 = vunpack.c.h.b16 %v7272
        %v7365 = vunpack.c.l.b16 %v7273
        %v7366 = vunpack.c.l.b16 %v7274
        %v7367 = vunpack.c.h.b16 %v7274
        %v7368 = vunpack.c.l.b16 %v7275
        %v7369 = vunpack.c.l.b16 %v7276
        %v7370 = vunpack.c.h.b16 %v7276
        %v7371 = vunpack.c.l.b16 %v7277
        %v7372 = vunpack.c.l.b16 %v7278
        %v7373 = vunpack.c.h.b16 %v7278
        %v7374 = vunpack.c.l.b16 %v7279
        %v7375 = vunpack.c.l.b16 %v7280
        %v7376 = vunpack.c.h.b16 %v7280
        %v7377 = vunpack.c.l.b16 %v7281
        %v7378 = vunpack.c.l.b16 %v7282
        %v7379 = vunpack.c.h.b16 %v7282
        %v7380 = vunpack.c.l.b16 %v7283
        %v7381 = vunpack.c.l.b16 %v7284
        %v7382 = vunpack.c.h.b16 %v7284
        %v7383 = vunpack.c.l.b16 %v7285
        %v7384 = vpack.c.b16 %v7339, %v7336
        %v7385 = vpack.c.b16 %v7340, %v7337
        %v7386 = vpack.c.b16 %v7341, %v7338
        %v7387 = vpack.c.b16 %v7345, %v7342
        %v7388 = vpack.c.b16 %v7346, %v7343
        %v7389 = vpack.c.b16 %v7347, %v7344
        %v7390 = vpack.c.b16 %v7351, %v7348
        %v7391 = vpack.c.b16 %v7352, %v7349
        %v7392 = vpack.c.b16 %v7353, %v7350
        %v7393 = vpack.c.b16 %v7357, %v7354
        %v7394 = vpack.c.b16 %v7358, %v7355
        %v7395 = vpack.c.b16 %v7359, %v7356
        %v7396 = vpack.c.b16 %v7363, %v7360
        %v7397 = vpack.c.b16 %v7364, %v7361
        %v7398 = vpack.c.b16 %v7365, %v7362
        %v7399 = vpack.c.b16 %v7369, %v7366
        %v7400 = vpack.c.b16 %v7370, %v7367
        %v7401 = vpack.c.b16 %v7371, %v7368
        %v7402 = vpack.c.b16 %v7375, %v7372
        %v7403 = vpack.c.b16 %v7376, %v7373
        %v7404 = vpack.c.b16 %v7377, %v7374
        %v7405 = vpack.c.b16 %v7381, %v7378
        %v7406 = vpack.c.b16 %v7382, %v7379
        %v7407 = vpack.c.b16 %v7383, %v7380
        %7432 = vmatprep.subr.bf16.mxu0 %v7385
        %7433 = vmatpush1.bf16.msra.mxu0 %v7384
        %7434 = vmatprep.subr.bf16.mxu0 %v7388
        %7435 = vmatpush1.bf16.msra.mxu0 %v7387
        %7436 = vmatprep.subr.bf16.mxu0 %v7391
        %7437 = vmatpush1.bf16.msra.mxu0 %v7390
        %7438 = vmatprep.subr.bf16.mxu0 %v7394
        %7439 = vmatpush1.bf16.msra.mxu0 %v7393
        %7440 = vmatprep.subr.bf16.mxu0 %v7397
        %7441 = vmatpush1.bf16.msra.mxu0 %v7396
        %7442 = vmatprep.subr.bf16.mxu0 %v7400
        %7443 = vmatpush1.bf16.msra.mxu0 %v7399
        %7444 = vmatprep.subr.bf16.mxu0 %v7403
        %7445 = vmatpush1.bf16.msra.mxu0 %v7402
        %7446 = vmatprep.subr.bf16.mxu0 %v7406
        %7447 = vmatpush1.bf16.msra.mxu0 %v7405
        %7448 = vmatprep.subr.bf16.mxu0 0
        %7449 = vmatpush1.bf16.msra.mxu0 0
        %7450 = vmatprep.subr.bf16.mxu0 0
        %7451 = vmatpush1.bf16.msra.mxu0 0
        %7452 = vmatprep.subr.bf16.mxu0 0
        %7453 = vmatpush1.bf16.msra.mxu0 0
        %7454 = vmatprep.subr.bf16.mxu0 0
        %7455 = vmatpush1.bf16.msra.mxu0 0
        %7456 = vmatprep.subr.bf16.mxu0 0
        %7457 = vmatpush1.bf16.msra.mxu0 0
        %7458 = vmatprep.subr.bf16.mxu0 0
        %7459 = vmatpush1.bf16.msra.mxu0 0
        %7460 = vmatprep.subr.bf16.mxu0 0
        %7461 = vmatpush1.bf16.msra.mxu0 0
        %7462 = vmatprep.subr.bf16.mxu0 0
        %7463 = vmatpush1.bf16.msra.mxu0 0
        %7464 = vmatprep.mubr.bf16.mxu0 0
        %7465 = vmatmul.mubr.bf16.gmra.mrb[0].mxu0 %v7245
        %v7466 = vpop.f32.mrb[0].mxu0
        %v7467 = vadd.f32 %v7292, %v7466
        %v7468 = vpop.f32.mrb[0].mxu0
        %v7469 = vadd.f32 %v7296, %v7468
        %v7470 = vpop.f32.mrb[0].mxu0
        %v7471 = vadd.f32 %v7292, %v7470
        %v7472 = vpop.f32.mrb[0].mxu0
        %v7473 = vadd.f32 %v7296, %v7472
        %7474 = vmatprep.mubr.bf16.mxu0 0
        %7475 = vmatmul.mubr.bf16.gmra.mrb[0].mxu0 %v7246
        %v7476 = vpop.f32.mrb[0].mxu0
        %v7477 = vadd.f32 %v7292, %v7476
        %v7478 = vpop.f32.mrb[0].mxu0
        %v7479 = vadd.f32 %v7296, %v7478
        %v7480 = vpop.f32.mrb[0].mxu0
        %v7481 = vadd.f32 %v7292, %v7480
        %v7482 = vpop.f32.mrb[0].mxu0
        %v7483 = vadd.f32 %v7296, %v7482
        %7484 = vmatprep.mubr.bf16.mxu0 0
        %7485 = vmatmul.mubr.bf16.gmra.mrb[0].mxu0 %v7247
        %v7486 = vpop.f32.mrb[0].mxu0
        %v7487 = vadd.f32 %v7292, %v7486
        %v7488 = vpop.f32.mrb[0].mxu0
        %v7489 = vadd.f32 %v7296, %v7488
        %v7490 = vpop.f32.mrb[0].mxu0
        %v7491 = vadd.f32 %v7292, %v7490
        %v7492 = vpop.f32.mrb[0].mxu0
        %v7493 = vadd.f32 %v7296, %v7492
        %7494 = vmatprep.mubr.bf16.mxu0 0
        %7495 = vmatmul.mubr.bf16.gmra.mrb[0].mxu0 %v7248
        %v7496 = vpop.f32.mrb[0].mxu0
        %v7497 = vadd.f32 %v7292, %v7496
        %v7498 = vpop.f32.mrb[0].mxu0
        %v7499 = vadd.f32 %v7296, %v7498
        %v7500 = vpop.f32.mrb[0].mxu0
        %v7501 = vadd.f32 %v7292, %v7500
        %v7502 = vpop.f32.mrb[0].mxu0
        %v7503 = vadd.f32 %v7296, %v7502
        %7504 = vmatprep.mubr.bf16.mxu0 0
        %7505 = vmatmul.mubr.bf16.gmra.mrb[0].mxu0 %v7249
        %v7506 = vpop.f32.mrb[0].mxu0
        %v7507 = vadd.f32 %v7292, %v7506
        %v7508 = vpop.f32.mrb[0].mxu0
        %v7509 = vadd.f32 %v7296, %v7508
        %v7510 = vpop.f32.mrb[0].mxu0
        %v7511 = vadd.f32 %v7292, %v7510
        %v7512 = vpop.f32.mrb[0].mxu0
        %v7513 = vadd.f32 %v7296, %v7512
        %7514 = vmatprep.mubr.bf16.mxu0 0
        %7515 = vmatmul.mubr.bf16.gmra.mrb[0].mxu0 %v7250
        %v7516 = vpop.f32.mrb[0].mxu0
        %v7517 = vadd.f32 %v7292, %v7516
        %v7518 = vpop.f32.mrb[0].mxu0
        %v7519 = vadd.f32 %v7296, %v7518
        %v7520 = vpop.f32.mrb[0].mxu0
        %v7521 = vadd.f32 %v7292, %v7520
        %v7522 = vpop.f32.mrb[0].mxu0
        %v7523 = vadd.f32 %v7296, %v7522
        %7524 = vmatprep.mubr.bf16.mxu0 0
        %7525 = vmatmul.mubr.bf16.gmra.mrb[0].mxu0 %v7251
        %v7526 = vpop.f32.mrb[0].mxu0
        %v7527 = vadd.f32 %v7292, %v7526
        %v7528 = vpop.f32.mrb[0].mxu0
        %v7529 = vadd.f32 %v7296, %v7528
        %v7530 = vpop.f32.mrb[0].mxu0
        %v7531 = vadd.f32 %v7292, %v7530
        %v7532 = vpop.f32.mrb[0].mxu0
        %v7533 = vadd.f32 %v7296, %v7532
        %7534 = vmatprep.mubr.bf16.mxu0 0
        %7535 = vmatmul.mubr.bf16.gmra.mrb[0].mxu0 %v7252
        %v7536 = vpop.f32.mrb[0].mxu0
        %v7537 = vadd.f32 %v7292, %v7536
        %v7538 = vpop.f32.mrb[0].mxu0
        %v7539 = vadd.f32 %v7296, %v7538
        %v7540 = vpop.f32.mrb[0].mxu0
        %v7541 = vadd.f32 %v7292, %v7540
        %v7542 = vpop.f32.mrb[0].mxu0
        %v7543 = vadd.f32 %v7296, %v7542
        %7544 = vdwg.mxu0
        %7545 = vmatprep.subr.bf16.mxu0 0
        %7546 = vmatpush1.bf16.msra.mxu0 %v7386
        %7547 = vmatprep.subr.bf16.mxu0 0
        %7548 = vmatpush1.bf16.msra.mxu0 %v7389
        %7549 = vmatprep.subr.bf16.mxu0 0
        %7550 = vmatpush1.bf16.msra.mxu0 %v7392
        %7551 = vmatprep.subr.bf16.mxu0 0
        %7552 = vmatpush1.bf16.msra.mxu0 %v7395
        %7553 = vmatprep.subr.bf16.mxu0 0
        %7554 = vmatpush1.bf16.msra.mxu0 %v7398
        %7555 = vmatprep.subr.bf16.mxu0 0
        %7556 = vmatpush1.bf16.msra.mxu0 %v7401
        %7557 = vmatprep.subr.bf16.mxu0 0
        %7558 = vmatpush1.bf16.msra.mxu0 %v7404
        %7559 = vmatprep.subr.bf16.mxu0 0
        %7560 = vmatpush1.bf16.msra.mxu0 %v7407
        %7561 = vmatprep.subr.bf16.mxu0 0
        %7562 = vmatpush1.bf16.msra.mxu0 0
        %7563 = vmatprep.subr.bf16.mxu0 0
        %7564 = vmatpush1.bf16.msra.mxu0 0
        %7565 = vmatprep.subr.bf16.mxu0 0
        %7566 = vmatpush1.bf16.msra.mxu0 0
        %7567 = vmatprep.subr.bf16.mxu0 0
        %7568 = vmatpush1.bf16.msra.mxu0 0
        %7569 = vmatprep.subr.bf16.mxu0 0
        %7570 = vmatpush1.bf16.msra.mxu0 0
        %7571 = vmatprep.subr.bf16.mxu0 0
        %7572 = vmatpush1.bf16.msra.mxu0 0
        %7573 = vmatprep.subr.bf16.mxu0 0
        %7574 = vmatpush1.bf16.msra.mxu0 0
        %7575 = vmatprep.subr.bf16.mxu0 0
        %7576 = vmatpush1.bf16.msra.mxu0 0
        %7577 = vmatprep.mubr.bf16.mxu0 0
        %7578 = vmatmul.mubr.bf16.gmra.mrb[0].mxu0 %v7245
        %v7579 = vpop.f32.mrb[0].mxu0
        %v7580 = vadd.f32 %v7300, %v7579
        %v7581 = vpop.f32.mrb[0].mxu0
        %v7582 = vpop.f32.mrb[0].mxu0
        %v7583 = vadd.f32 %v7300, %v7582
        %v7584 = vpop.f32.mrb[0].mxu0
        %7585 = vmatprep.mubr.bf16.mxu0 0
        %7586 = vmatmul.mubr.bf16.gmra.mrb[0].mxu0 %v7246
        %v7587 = vpop.f32.mrb[0].mxu0
        %v7588 = vadd.f32 %v7300, %v7587
        %v7589 = vpop.f32.mrb[0].mxu0
        %v7590 = vpop.f32.mrb[0].mxu0
        %v7591 = vadd.f32 %v7300, %v7590
        %v7592 = vpop.f32.mrb[0].mxu0
        %7593 = vmatprep.mubr.bf16.mxu0 0
        %7594 = vmatmul.mubr.bf16.gmra.mrb[0].mxu0 %v7247
        %v7595 = vpop.f32.mrb[0].mxu0
        %v7596 = vadd.f32 %v7300, %v7595
        %v7597 = vpop.f32.mrb[0].mxu0
        %v7598 = vpop.f32.mrb[0].mxu0
        %v7599 = vadd.f32 %v7300, %v7598
        %v7600 = vpop.f32.mrb[0].mxu0
        %7601 = vmatprep.mubr.bf16.mxu0 0
        %7602 = vmatmul.mubr.bf16.gmra.mrb[0].mxu0 %v7248
        %v7603 = vpop.f32.mrb[0].mxu0
        %v7604 = vadd.f32 %v7300, %v7603
        %v7605 = vpop.f32.mrb[0].mxu0
        %v7606 = vpop.f32.mrb[0].mxu0
        %v7607 = vadd.f32 %v7300, %v7606
        %v7608 = vpop.f32.mrb[0].mxu0
        %7609 = vmatprep.mubr.bf16.mxu0 0
        %7610 = vmatmul.mubr.bf16.gmra.mrb[0].mxu0 %v7249
        %v7611 = vpop.f32.mrb[0].mxu0
        %v7612 = vadd.f32 %v7300, %v7611
        %v7613 = vpop.f32.mrb[0].mxu0
        %v7614 = vpop.f32.mrb[0].mxu0
        %v7615 = vadd.f32 %v7300, %v7614
        %v7616 = vpop.f32.mrb[0].mxu0
        %7617 = vmatprep.mubr.bf16.mxu0 0
        %7618 = vmatmul.mubr.bf16.gmra.mrb[0].mxu0 %v7250
        %v7619 = vpop.f32.mrb[0].mxu0
        %v7620 = vadd.f32 %v7300, %v7619
        %v7621 = vpop.f32.mrb[0].mxu0
        %v7622 = vpop.f32.mrb[0].mxu0
        %v7623 = vadd.f32 %v7300, %v7622
        %v7624 = vpop.f32.mrb[0].mxu0
        %7625 = vmatprep.mubr.bf16.mxu0 0
        %7626 = vmatmul.mubr.bf16.gmra.mrb[0].mxu0 %v7251
        %v7627 = vpop.f32.mrb[0].mxu0
        %v7628 = vadd.f32 %v7300, %v7627
        %v7629 = vpop.f32.mrb[0].mxu0
        %v7630 = vpop.f32.mrb[0].mxu0
        %v7631 = vadd.f32 %v7300, %v7630
        %v7632 = vpop.f32.mrb[0].mxu0
        %7633 = vmatprep.mubr.bf16.mxu0 0
        %7634 = vmatmul.mubr.bf16.gmra.mrb[0].mxu0 %v7252
        %v7635 = vpop.f32.mrb[0].mxu0
        %v7636 = vadd.f32 %v7300, %v7635
        %v7637 = vpop.f32.mrb[0].mxu0
        %v7638 = vpop.f32.mrb[0].mxu0
        %v7639 = vadd.f32 %v7300, %v7638
        %v7640 = vpop.f32.mrb[0].mxu0
        %7641 = vdwg.mxu0
        %v7642 = vpack.c.bf16 %v7471, %v7467
        %v7643 = vpack.c.bf16 %v7481, %v7477
        %v7644 = vpack.c.bf16 %v7491, %v7487
        %v7645 = vpack.c.bf16 %v7501, %v7497
        %v7646 = vpack.c.bf16 %v7511, %v7507
        %v7647 = vpack.c.bf16 %v7521, %v7517
        %v7648 = vpack.c.bf16 %v7531, %v7527
        %v7649 = vpack.c.bf16 %v7541, %v7537
        %v7650 = vpack.c.bf16 %v7473, %v7469
        %v7651 = vpack.c.bf16 %v7483, %v7479
        %v7652 = vpack.c.bf16 %v7493, %v7489
        %v7653 = vpack.c.bf16 %v7503, %v7499
        %v7654 = vpack.c.bf16 %v7513, %v7509
        %v7655 = vpack.c.bf16 %v7523, %v7519
        %v7656 = vpack.c.bf16 %v7533, %v7529
        %v7657 = vpack.c.bf16 %v7543, %v7539
        %v7658 = vpack.c.bf16 %v7583, %v7580
        %v7659 = vpack.c.bf16 %v7591, %v7588
        %v7660 = vpack.c.bf16 %v7599, %v7596
        %v7661 = vpack.c.bf16 %v7607, %v7604
        %v7662 = vpack.c.bf16 %v7615, %v7612
        %v7663 = vpack.c.bf16 %v7623, %v7620
        %v7664 = vpack.c.bf16 %v7631, %v7628
        %v7665 = vpack.c.bf16 %v7639, %v7636
        %7666 = vmatprep.subr.bf16.mxu0 0
        %7667 = vmatpush1.bf16.xpose.msra.mxu0 %v7650
        %7668 = vmatprep.subr.bf16.mxu0 0
        %7669 = vmatpush1.bf16.xpose.msra.mxu0 %v7651
        %7670 = vmatprep.subr.bf16.mxu0 0
        %7671 = vmatpush1.bf16.xpose.msra.mxu0 %v7652
        %7672 = vmatprep.subr.bf16.mxu0 0
        %7673 = vmatpush1.bf16.xpose.msra.mxu0 %v7653
        %7674 = vmatprep.subr.bf16.mxu0 0
        %7675 = vmatpush1.bf16.xpose.msra.mxu0 %v7654
        %7676 = vmatprep.subr.bf16.mxu0 0
        %7677 = vmatpush1.bf16.xpose.msra.mxu0 %v7655
        %7678 = vmatprep.subr.bf16.mxu0 0
        %7679 = vmatpush1.bf16.xpose.msra.mxu0 %v7656
        %7680 = vmatprep.subr.bf16.mxu0 0
        %7681 = vmatpush1.bf16.xpose.msra.mxu0 %v7657
        %7682 = vmatprep.subr.bf16.mxu0 0
        %7683 = vmatpush1.bf16.xpose.msra.mxu0 0
        %7684 = vmatprep.subr.bf16.mxu0 0
        %7685 = vmatpush1.bf16.xpose.msra.mxu0 0
        %7686 = vmatprep.subr.bf16.mxu0 0
        %7687 = vmatpush1.bf16.xpose.msra.mxu0 0
        %7688 = vmatprep.subr.bf16.mxu0 0
        %7689 = vmatpush1.bf16.xpose.msra.mxu0 0
        %7690 = vmatprep.subr.bf16.mxu0 0
        %7691 = vmatpush1.bf16.xpose.msra.mxu0 0
        %7692 = vmatprep.subr.bf16.mxu0 0
        %7693 = vmatpush1.bf16.xpose.msra.mxu0 0
        %7694 = vmatprep.subr.bf16.mxu0 0
        %7695 = vmatpush1.bf16.xpose.msra.mxu0 0
        %7696 = vmatprep.subr.bf16.mxu0 0
        %7697 = vmatpush1.bf16.xpose.msra.mxu0 0
        %7698 = vmatprep.mubr.bf16.mxu0 0
        %7699 = vmatmul.mubr.bf16.gmra.mrb[0].mxu0 %v7642
        %v7700 = vpop.f32.mrb[0].mxu0
        %v7701 = vadd.f32 %v1043, %v7700
        %v7702 = vpop.f32.mrb[0].mxu0
        %v7703 = vpop.f32.mrb[0].mxu0
        %v7704 = vadd.f32 %v1043, %v7703
        %v7705 = vpop.f32.mrb[0].mxu0
        %7706 = vmatprep.mubr.bf16.mxu0 0
        %7707 = vmatmul.mubr.bf16.gmra.mrb[0].mxu0 %v7643
        %v7708 = vpop.f32.mrb[0].mxu0
        %v7709 = vadd.f32 %v1043, %v7708
        %v7710 = vpop.f32.mrb[0].mxu0
        %v7711 = vpop.f32.mrb[0].mxu0
        %v7712 = vadd.f32 %v1043, %v7711
        %v7713 = vpop.f32.mrb[0].mxu0
        %7714 = vmatprep.mubr.bf16.mxu0 0
        %7715 = vmatmul.mubr.bf16.gmra.mrb[0].mxu0 %v7644
        %v7716 = vpop.f32.mrb[0].mxu0
        %v7717 = vadd.f32 %v1043, %v7716
        %v7718 = vpop.f32.mrb[0].mxu0
        %v7719 = vpop.f32.mrb[0].mxu0
        %v7720 = vadd.f32 %v1043, %v7719
        %v7721 = vpop.f32.mrb[0].mxu0
        %7722 = vmatprep.mubr.bf16.mxu0 0
        %7723 = vmatmul.mubr.bf16.gmra.mrb[0].mxu0 %v7645
        %v7724 = vpop.f32.mrb[0].mxu0
        %v7725 = vadd.f32 %v1043, %v7724
        %v7726 = vpop.f32.mrb[0].mxu0
        %v7727 = vpop.f32.mrb[0].mxu0
        %v7728 = vadd.f32 %v1043, %v7727
        %v7729 = vpop.f32.mrb[0].mxu0
        %7730 = vmatprep.mubr.bf16.mxu0 0
        %7731 = vmatmul.mubr.bf16.gmra.mrb[0].mxu0 %v7646
        %v7732 = vpop.f32.mrb[0].mxu0
        %v7733 = vadd.f32 %v1043, %v7732
        %v7734 = vpop.f32.mrb[0].mxu0
        %v7735 = vpop.f32.mrb[0].mxu0
        %v7736 = vadd.f32 %v1043, %v7735
        %v7737 = vpop.f32.mrb[0].mxu0
        %7738 = vmatprep.mubr.bf16.mxu0 0
        %7739 = vmatmul.mubr.bf16.gmra.mrb[0].mxu0 %v7647
        %v7740 = vpop.f32.mrb[0].mxu0
        %v7741 = vadd.f32 %v1043, %v7740
        %v7742 = vpop.f32.mrb[0].mxu0
        %v7743 = vpop.f32.mrb[0].mxu0
        %v7744 = vadd.f32 %v1043, %v7743
        %v7745 = vpop.f32.mrb[0].mxu0
        %7746 = vmatprep.mubr.bf16.mxu0 0
        %7747 = vmatmul.mubr.bf16.gmra.mrb[0].mxu0 %v7648
        %v7748 = vpop.f32.mrb[0].mxu0
        %v7749 = vadd.f32 %v1043, %v7748
        %v7750 = vpop.f32.mrb[0].mxu0
        %v7751 = vpop.f32.mrb[0].mxu0
        %v7752 = vadd.f32 %v1043, %v7751
        %v7753 = vpop.f32.mrb[0].mxu0
        %7754 = vmatprep.mubr.bf16.mxu0 0
        %7755 = vmatmul.mubr.bf16.gmra.mrb[0].mxu0 %v7649
        %v7756 = vpop.f32.mrb[0].mxu0
        %v7757 = vadd.f32 %v1043, %v7756
        %v7758 = vpop.f32.mrb[0].mxu0
        %v7759 = vpop.f32.mrb[0].mxu0
        %v7760 = vadd.f32 %v1043, %v7759
        %v7761 = vpop.f32.mrb[0].mxu0
        %7762 = vdwg.mxu0
        %7763 = vmax.xlane.f32.xlu0 %v7701
        %v7764 = vpop.xlane.xlu0 %7763
        %7765 = vmax.xlane.f32.xlu0 %v7704
        %v7766 = vpop.xlane.xlu0 %7765
        %7767 = vmax.xlane.f32.xlu0 %v7709
        %v7768 = vpop.xlane.xlu0 %7767
        %7769 = vmax.xlane.f32.xlu0 %v7712
        %v7770 = vpop.xlane.xlu0 %7769
        %7771 = vmax.xlane.f32.xlu0 %v7717
        %v7772 = vpop.xlane.xlu0 %7771
        %7773 = vmax.xlane.f32.xlu0 %v7720
        %v7774 = vpop.xlane.xlu0 %7773
        %7775 = vmax.xlane.f32.xlu0 %v7725
        %v7776 = vpop.xlane.xlu0 %7775
        %7777 = vmax.xlane.f32.xlu0 %v7728
        %v7778 = vpop.xlane.xlu0 %7777
        %7779 = vmax.xlane.f32.xlu0 %v7733
        %v7780 = vpop.xlane.xlu0 %7779
        %7781 = vmax.xlane.f32.xlu0 %v7736
        %v7782 = vpop.xlane.xlu0 %7781
        %7783 = vmax.xlane.f32.xlu0 %v7741
        %v7784 = vpop.xlane.xlu0 %7783
        %7785 = vmax.xlane.f32.xlu0 %v7744
        %v7786 = vpop.xlane.xlu0 %7785
        %7787 = vmax.xlane.f32.xlu0 %v7749
        %v7788 = vpop.xlane.xlu0 %7787
        %7789 = vmax.xlane.f32.xlu0 %v7752
        %v7790 = vpop.xlane.xlu0 %7789
        %7791 = vmax.xlane.f32.xlu0 %v7757
        %v7792 = vpop.xlane.xlu0 %7791
        %7793 = vmax.xlane.f32.xlu0 %v7760
        %v7794 = vpop.xlane.xlu0 %7793
        %v7795 = vsub.f32 %v7701, %v7764
        %v7796 = vsub.f32 %v7704, %v7766
        %v7797 = vsub.f32 %v7709, %v7768
        %v7798 = vsub.f32 %v7712, %v7770
        %v7799 = vsub.f32 %v7717, %v7772
        %v7800 = vsub.f32 %v7720, %v7774
        %v7801 = vsub.f32 %v7725, %v7776
        %v7802 = vsub.f32 %v7728, %v7778
        %v7803 = vsub.f32 %v7733, %v7780
        %v7804 = vsub.f32 %v7736, %v7782
        %v7805 = vsub.f32 %v7741, %v7784
        %v7806 = vsub.f32 %v7744, %v7786
        %v7807 = vsub.f32 %v7749, %v7788
        %v7808 = vsub.f32 %v7752, %v7790
        %v7809 = vsub.f32 %v7757, %v7792
        %v7810 = vsub.f32 %v7760, %v7794
        %v7811 = vmul.f32 %v7795, 1.442695
        %v7812 = vpow.pop %v7811
        %v7813 = vmul.f32 %v7796, 1.442695
        %v7814 = vpow.pop %v7813
        %v7815 = vmul.f32 %v7797, 1.442695
        %v7816 = vpow.pop %v7815
        %v7817 = vmul.f32 %v7798, 1.442695
        %v7818 = vpow.pop %v7817
        %v7819 = vmul.f32 %v7799, 1.442695
        %v7820 = vpow.pop %v7819
        %v7821 = vmul.f32 %v7800, 1.442695
        %v7822 = vpow.pop %v7821
        %v7823 = vmul.f32 %v7801, 1.442695
        %v7824 = vpow.pop %v7823
        %v7825 = vmul.f32 %v7802, 1.442695
        %v7826 = vpow.pop %v7825
        %v7827 = vmul.f32 %v7803, 1.442695
        %v7828 = vpow.pop %v7827
        %v7829 = vmul.f32 %v7804, 1.442695
        %v7830 = vpow.pop %v7829
        %v7831 = vmul.f32 %v7805, 1.442695
        %v7832 = vpow.pop %v7831
        %v7833 = vmul.f32 %v7806, 1.442695
        %v7834 = vpow.pop %v7833
        %v7835 = vmul.f32 %v7807, 1.442695
        %v7836 = vpow.pop %v7835
        %v7837 = vmul.f32 %v7808, 1.442695
        %v7838 = vpow.pop %v7837
        %v7839 = vmul.f32 %v7809, 1.442695
        %v7840 = vpow.pop %v7839
        %v7841 = vmul.f32 %v7810, 1.442695
        %v7842 = vpow.pop %v7841
        %7843 = vadd.xlane.f32.xlu0 %v7812
        %v7844 = vpop.xlane.xlu0 %7843
        %7845 = vadd.xlane.f32.xlu0 %v7814
        %v7846 = vpop.xlane.xlu0 %7845
        %7847 = vadd.xlane.f32.xlu0 %v7816
        %v7848 = vpop.xlane.xlu0 %7847
        %7849 = vadd.xlane.f32.xlu0 %v7818
        %v7850 = vpop.xlane.xlu0 %7849
        %7851 = vadd.xlane.f32.xlu0 %v7820
        %v7852 = vpop.xlane.xlu0 %7851
        %7853 = vadd.xlane.f32.xlu0 %v7822
        %v7854 = vpop.xlane.xlu0 %7853
        %7855 = vadd.xlane.f32.xlu0 %v7824
        %v7856 = vpop.xlane.xlu0 %7855
        %7857 = vadd.xlane.f32.xlu0 %v7826
        %v7858 = vpop.xlane.xlu0 %7857
        %7859 = vadd.xlane.f32.xlu0 %v7828
        %v7860 = vpop.xlane.xlu0 %7859
        %7861 = vadd.xlane.f32.xlu0 %v7830
        %v7862 = vpop.xlane.xlu0 %7861
        %7863 = vadd.xlane.f32.xlu0 %v7832
        %v7864 = vpop.xlane.xlu0 %7863
        %7865 = vadd.xlane.f32.xlu0 %v7834
        %v7866 = vpop.xlane.xlu0 %7865
        %7867 = vadd.xlane.f32.xlu0 %v7836
        %v7868 = vpop.xlane.xlu0 %7867
        %7869 = vadd.xlane.f32.xlu0 %v7838
        %v7870 = vpop.xlane.xlu0 %7869
        %7871 = vadd.xlane.f32.xlu0 %v7840
        %v7872 = vpop.xlane.xlu0 %7871
        %7873 = vadd.xlane.f32.xlu0 %v7842
        %v7874 = vpop.xlane.xlu0 %7873
        %v7875 = vrcp.pop %v7844
        %v7876 = vrcp.pop %v7846
        %v7877 = vrcp.pop %v7848
        %v7878 = vrcp.pop %v7850
        %v7879 = vrcp.pop %v7852
        %v7880 = vrcp.pop %v7854
        %v7881 = vrcp.pop %v7856
        %v7882 = vrcp.pop %v7858
        %v7883 = vrcp.pop %v7860
        %v7884 = vrcp.pop %v7862
        %v7885 = vrcp.pop %v7864
        %v7886 = vrcp.pop %v7866
        %v7887 = vrcp.pop %v7868
        %v7888 = vrcp.pop %v7870
        %v7889 = vrcp.pop %v7872
        %v7890 = vrcp.pop %v7874
        %v7891 = vmul.f32 %v7812, %v7875
        %v7892 = vmul.f32 %v7814, %v7876
        %v7893 = vmul.f32 %v7816, %v7877
        %v7894 = vmul.f32 %v7818, %v7878
        %v7895 = vmul.f32 %v7820, %v7879
        %v7896 = vmul.f32 %v7822, %v7880
        %v7897 = vmul.f32 %v7824, %v7881
        %v7898 = vmul.f32 %v7826, %v7882
        %v7899 = vmul.f32 %v7828, %v7883
        %v7900 = vmul.f32 %v7830, %v7884
        %v7901 = vmul.f32 %v7832, %v7885
        %v7902 = vmul.f32 %v7834, %v7886
        %v7903 = vmul.f32 %v7836, %v7887
        %v7904 = vmul.f32 %v7838, %v7888
        %v7905 = vmul.f32 %v7840, %v7889
        %v7906 = vmul.f32 %v7842, %v7890
        %v7907 = vpack.c.bf16 %v7892, %v7891
        %v7908 = vpack.c.bf16 %v7894, %v7893
        %v7909 = vpack.c.bf16 %v7896, %v7895
        %v7910 = vpack.c.bf16 %v7898, %v7897
        %v7911 = vpack.c.bf16 %v7900, %v7899
        %v7912 = vpack.c.bf16 %v7902, %v7901
        %v7913 = vpack.c.bf16 %v7904, %v7903
        %v7914 = vpack.c.bf16 %v7906, %v7905
        %7915 = vmatprep.subr.bf16.mxu0 0
        %7916 = vmatpush1.bf16.msra.mxu0 %v7658
        %7917 = vmatprep.subr.bf16.mxu0 0
        %7918 = vmatpush1.bf16.msra.mxu0 %v7659
        %7919 = vmatprep.subr.bf16.mxu0 0
        %7920 = vmatpush1.bf16.msra.mxu0 %v7660
        %7921 = vmatprep.subr.bf16.mxu0 0
        %7922 = vmatpush1.bf16.msra.mxu0 %v7661
        %7923 = vmatprep.subr.bf16.mxu0 0
        %7924 = vmatpush1.bf16.msra.mxu0 %v7662
        %7925 = vmatprep.subr.bf16.mxu0 0
        %7926 = vmatpush1.bf16.msra.mxu0 %v7663
        %7927 = vmatprep.subr.bf16.mxu0 0
        %7928 = vmatpush1.bf16.msra.mxu0 %v7664
        %7929 = vmatprep.subr.bf16.mxu0 0
        %7930 = vmatpush1.bf16.msra.mxu0 %v7665
        %7931 = vmatprep.subr.bf16.mxu0 0
        %7932 = vmatpush1.bf16.msra.mxu0 0
        %7933 = vmatprep.subr.bf16.mxu0 0
        %7934 = vmatpush1.bf16.msra.mxu0 0
        %7935 = vmatprep.subr.bf16.mxu0 0
        %7936 = vmatpush1.bf16.msra.mxu0 0
        %7937 = vmatprep.subr.bf16.mxu0 0
        %7938 = vmatpush1.bf16.msra.mxu0 0
        %7939 = vmatprep.subr.bf16.mxu0 0
        %7940 = vmatpush1.bf16.msra.mxu0 0
        %7941 = vmatprep.subr.bf16.mxu0 0
        %7942 = vmatpush1.bf16.msra.mxu0 0
        %7943 = vmatprep.subr.bf16.mxu0 0
        %7944 = vmatpush1.bf16.msra.mxu0 0
        %7945 = vmatprep.subr.bf16.mxu0 0
        %7946 = vmatpush1.bf16.msra.mxu0 0
        %7947 = vmatprep.mubr.bf16.mxu0 0
        %7948 = vmatmul.mubr.bf16.gmra.mrb[0].mxu0 %v7907
        %v7949 = vpop.f32.mrb[0].mxu0
        %v7950 = vadd.f32 0.0, %v7949
        %v7951 = vpop.f32.mrb[0].mxu0
        %v7952 = vpop.f32.mrb[0].mxu0
        %v7953 = vadd.f32 0.0, %v7952
        %v7954 = vpop.f32.mrb[0].mxu0
        %7955 = vmatprep.mubr.bf16.mxu0 0
        %7956 = vmatmul.mubr.bf16.gmra.mrb[0].mxu0 %v7908
        %v7957 = vpop.f32.mrb[0].mxu0
        %v7958 = vadd.f32 0.0, %v7957
        %v7959 = vpop.f32.mrb[0].mxu0
        %v7960 = vpop.f32.mrb[0].mxu0
        %v7961 = vadd.f32 0.0, %v7960
        %v7962 = vpop.f32.mrb[0].mxu0
        %7963 = vmatprep.mubr.bf16.mxu0 0
        %7964 = vmatmul.mubr.bf16.gmra.mrb[0].mxu0 %v7909
        %v7965 = vpop.f32.mrb[0].mxu0
        %v7966 = vadd.f32 0.0, %v7965
        %v7967 = vpop.f32.mrb[0].mxu0
        %v7968 = vpop.f32.mrb[0].mxu0
        %v7969 = vadd.f32 0.0, %v7968
        %v7970 = vpop.f32.mrb[0].mxu0
        %7971 = vmatprep.mubr.bf16.mxu0 0
        %7972 = vmatmul.mubr.bf16.gmra.mrb[0].mxu0 %v7910
        %v7973 = vpop.f32.mrb[0].mxu0
        %v7974 = vadd.f32 0.0, %v7973
        %v7975 = vpop.f32.mrb[0].mxu0
        %v7976 = vpop.f32.mrb[0].mxu0
        %v7977 = vadd.f32 0.0, %v7976
        %v7978 = vpop.f32.mrb[0].mxu0
        %7979 = vmatprep.mubr.bf16.mxu0 0
        %7980 = vmatmul.mubr.bf16.gmra.mrb[0].mxu0 %v7911
        %v7981 = vpop.f32.mrb[0].mxu0
        %v7982 = vadd.f32 0.0, %v7981
        %v7983 = vpop.f32.mrb[0].mxu0
        %v7984 = vpop.f32.mrb[0].mxu0
        %v7985 = vadd.f32 0.0, %v7984
        %v7986 = vpop.f32.mrb[0].mxu0
        %7987 = vmatprep.mubr.bf16.mxu0 0
        %7988 = vmatmul.mubr.bf16.gmra.mrb[0].mxu0 %v7912
        %v7989 = vpop.f32.mrb[0].mxu0
        %v7990 = vadd.f32 0.0, %v7989
        %v7991 = vpop.f32.mrb[0].mxu0
        %v7992 = vpop.f32.mrb[0].mxu0
        %v7993 = vadd.f32 0.0, %v7992
        %v7994 = vpop.f32.mrb[0].mxu0
        %7995 = vmatprep.mubr.bf16.mxu0 0
        %7996 = vmatmul.mubr.bf16.gmra.mrb[0].mxu0 %v7913
        %v7997 = vpop.f32.mrb[0].mxu0
        %v7998 = vadd.f32 0.0, %v7997
        %v7999 = vpop.f32.mrb[0].mxu0
        %v8000 = vpop.f32.mrb[0].mxu0
        %v8001 = vadd.f32 0.0, %v8000
        %v8002 = vpop.f32.mrb[0].mxu0
        %8003 = vmatprep.mubr.bf16.mxu0 0
        %8004 = vmatmul.mubr.bf16.gmra.mrb[0].mxu0 %v7914
        %v8005 = vpop.f32.mrb[0].mxu0
        %v8006 = vadd.f32 0.0, %v8005
        %v8007 = vpop.f32.mrb[0].mxu0
        %v8008 = vpop.f32.mrb[0].mxu0
        %v8009 = vadd.f32 0.0, %v8008
        %v8010 = vpop.f32.mrb[0].mxu0
        %8011 = vdwg.mxu0
        %v8012 = vpack.c.bf16 %v7953, %v7950
        %v8013 = vpack.c.bf16 %v7961, %v7958
        %v8014 = vpack.c.bf16 %v7969, %v7966
        %v8015 = vpack.c.bf16 %v7977, %v7974
        %v8016 = vpack.c.bf16 %v7985, %v7982
        %v8017 = vpack.c.bf16 %v7993, %v7990
        %v8018 = vpack.c.bf16 %v8001, %v7998
        %v8019 = vpack.c.bf16 %v8009, %v8006
        %s8020 = scalar_lea.vmem [#allocation6], 192
        %v8021 = vld [vmem:[%s8020] sm:$0xf]
        %v8022 = vld [vmem:[%s8020 + $0x4] sm:$0xf]
        %v8023 = vld [vmem:[%s8020 + $0x8] sm:$0xf]
        %v8024 = vld [vmem:[%s8020 + $0xc] sm:$0xf]
        %v8025 = vld [vmem:[%s8020 + $0x10] sm:$0xf]
        %v8026 = vld [vmem:[%s8020 + $0x14] sm:$0xf]
        %v8027 = vld [vmem:[%s8020 + $0x18] sm:$0xf]
        %v8028 = vld [vmem:[%s8020 + $0x1c] sm:$0xf]
        %v8029 = vld [vmem:[%s8020 + $0x20] sm:$0xf]
        %v8030 = vld [vmem:[%s8020 + $0x24] sm:$0xf]
        %v8031 = vld [vmem:[%s8020 + $0x28] sm:$0xf]
        %v8032 = vld [vmem:[%s8020 + $0x2c] sm:$0xf]
        %v8033 = vld [vmem:[%s8020 + $0x30] sm:$0xf]
        %v8034 = vld [vmem:[%s8020 + $0x34] sm:$0xf]
        %v8035 = vld [vmem:[%s8020 + $0x38] sm:$0xf]
        %v8036 = vld [vmem:[%s8020 + $0x3c] sm:$0xf]
        %s8037 = scalar_lea.vmem %s6, 3
        %v8038 = vld [vmem:[%s8037] sm:$0x1]
        %v8040 = vlaneseq
        %v8041 = vshrl.u32 %v8040, 7
        %v8042 = vsub.s32 0, %v8041
        %v8043 = vrot.slane %v8038, %v8042
        %v8061 = vunpack.c.l.b16 %v8021
        %v8062 = vunpack.c.l.b16 %v8022
        %v8063 = vunpack.c.l.b16 %v8023
        %v8064 = vunpack.c.l.b16 %v8024
        %v8065 = vunpack.c.l.b16 %v8025
        %v8066 = vunpack.c.l.b16 %v8026
        %v8067 = vunpack.c.l.b16 %v8027
        %v8068 = vunpack.c.l.b16 %v8028
        %v8069 = vunpack.c.l.b16 %v8029
        %v8070 = vunpack.c.l.b16 %v8030
        %v8071 = vunpack.c.l.b16 %v8031
        %v8072 = vunpack.c.l.b16 %v8032
        %v8073 = vunpack.c.l.b16 %v8033
        %v8074 = vunpack.c.l.b16 %v8034
        %v8075 = vunpack.c.l.b16 %v8035
        %v8076 = vunpack.c.l.b16 %v8036
        %v8077 = vpack.c.b16 %v8062, %v8061
        %v8078 = vpack.c.b16 %v8064, %v8063
        %v8079 = vpack.c.b16 %v8066, %v8065
        %v8080 = vpack.c.b16 %v8068, %v8067
        %v8081 = vpack.c.b16 %v8070, %v8069
        %v8082 = vpack.c.b16 %v8072, %v8071
        %v8083 = vpack.c.b16 %v8074, %v8073
        %v8084 = vpack.c.b16 %v8076, %v8075
        %8093 = vmatprep.subr.bf16.mxu0 0
        %8094 = vmatpush1.bf16.msra.mxu0 %v8077
        %8095 = vmatprep.subr.bf16.mxu0 0
        %8096 = vmatpush1.bf16.msra.mxu0 %v8078
        %8097 = vmatprep.subr.bf16.mxu0 0
        %8098 = vmatpush1.bf16.msra.mxu0 %v8079
        %8099 = vmatprep.subr.bf16.mxu0 0
        %8100 = vmatpush1.bf16.msra.mxu0 %v8080
        %8101 = vmatprep.subr.bf16.mxu0 0
        %8102 = vmatpush1.bf16.msra.mxu0 %v8081
        %8103 = vmatprep.subr.bf16.mxu0 0
        %8104 = vmatpush1.bf16.msra.mxu0 %v8082
        %8105 = vmatprep.subr.bf16.mxu0 0
        %8106 = vmatpush1.bf16.msra.mxu0 %v8083
        %8107 = vmatprep.subr.bf16.mxu0 0
        %8108 = vmatpush1.bf16.msra.mxu0 %v8084
        %8109 = vmatprep.subr.bf16.mxu0 0
        %8110 = vmatpush1.bf16.msra.mxu0 0
        %8111 = vmatprep.subr.bf16.mxu0 0
        %8112 = vmatpush1.bf16.msra.mxu0 0
        %8113 = vmatprep.subr.bf16.mxu0 0
        %8114 = vmatpush1.bf16.msra.mxu0 0
        %8115 = vmatprep.subr.bf16.mxu0 0
        %8116 = vmatpush1.bf16.msra.mxu0 0
        %8117 = vmatprep.subr.bf16.mxu0 0
        %8118 = vmatpush1.bf16.msra.mxu0 0
        %8119 = vmatprep.subr.bf16.mxu0 0
        %8120 = vmatpush1.bf16.msra.mxu0 0
        %8121 = vmatprep.subr.bf16.mxu0 0
        %8122 = vmatpush1.bf16.msra.mxu0 0
        %8123 = vmatprep.subr.bf16.mxu0 0
        %8124 = vmatpush1.bf16.msra.mxu0 0
        %8125 = vmatprep.mubr.bf16.mxu0 0
        %8126 = vmatmul.mubr.bf16.gmra.mrb[0].mxu0 %v8012
        %v8127 = vpop.f32.mrb[0].mxu0
        %v8128 = vadd.f32 %v8043, %v8127
        %v8129 = vpop.f32.mrb[0].mxu0
        %v8130 = vpop.f32.mrb[0].mxu0
        %v8131 = vadd.f32 %v8043, %v8130
        %v8132 = vpop.f32.mrb[0].mxu0
        %8133 = vmatprep.mubr.bf16.mxu0 0
        %8134 = vmatmul.mubr.bf16.gmra.mrb[0].mxu0 %v8013
        %v8135 = vpop.f32.mrb[0].mxu0
        %v8136 = vadd.f32 %v8043, %v8135
        %v8137 = vpop.f32.mrb[0].mxu0
        %v8138 = vpop.f32.mrb[0].mxu0
        %v8139 = vadd.f32 %v8043, %v8138
        %v8140 = vpop.f32.mrb[0].mxu0
        %8141 = vmatprep.mubr.bf16.mxu0 0
        %8142 = vmatmul.mubr.bf16.gmra.mrb[0].mxu0 %v8014
        %v8143 = vpop.f32.mrb[0].mxu0
        %v8144 = vadd.f32 %v8043, %v8143
        %v8145 = vpop.f32.mrb[0].mxu0
        %v8146 = vpop.f32.mrb[0].mxu0
        %v8147 = vadd.f32 %v8043, %v8146
        %v8148 = vpop.f32.mrb[0].mxu0
        %8149 = vmatprep.mubr.bf16.mxu0 0
        %8150 = vmatmul.mubr.bf16.gmra.mrb[0].mxu0 %v8015
        %v8151 = vpop.f32.mrb[0].mxu0
        %v8152 = vadd.f32 %v8043, %v8151
        %v8153 = vpop.f32.mrb[0].mxu0
        %v8154 = vpop.f32.mrb[0].mxu0
        %v8155 = vadd.f32 %v8043, %v8154
        %v8156 = vpop.f32.mrb[0].mxu0
        %8157 = vmatprep.mubr.bf16.mxu0 0
        %8158 = vmatmul.mubr.bf16.gmra.mrb[0].mxu0 %v8016
        %v8159 = vpop.f32.mrb[0].mxu0
        %v8160 = vadd.f32 %v8043, %v8159
        %v8161 = vpop.f32.mrb[0].mxu0
        %v8162 = vpop.f32.mrb[0].mxu0
        %v8163 = vadd.f32 %v8043, %v8162
        %v8164 = vpop.f32.mrb[0].mxu0
        %8165 = vmatprep.mubr.bf16.mxu0 0
        %8166 = vmatmul.mubr.bf16.gmra.mrb[0].mxu0 %v8017
        %v8167 = vpop.f32.mrb[0].mxu0
        %v8168 = vadd.f32 %v8043, %v8167
        %v8169 = vpop.f32.mrb[0].mxu0
        %v8170 = vpop.f32.mrb[0].mxu0
        %v8171 = vadd.f32 %v8043, %v8170
        %v8172 = vpop.f32.mrb[0].mxu0
        %8173 = vmatprep.mubr.bf16.mxu0 0
        %8174 = vmatmul.mubr.bf16.gmra.mrb[0].mxu0 %v8018
        %v8175 = vpop.f32.mrb[0].mxu0
        %v8176 = vadd.f32 %v8043, %v8175
        %v8177 = vpop.f32.mrb[0].mxu0
        %v8178 = vpop.f32.mrb[0].mxu0
        %v8179 = vadd.f32 %v8043, %v8178
        %v8180 = vpop.f32.mrb[0].mxu0
        %8181 = vmatprep.mubr.bf16.mxu0 0
        %8182 = vmatmul.mubr.bf16.gmra.mrb[0].mxu0 %v8019
        %v8183 = vpop.f32.mrb[0].mxu0
        %v8184 = vadd.f32 %v8043, %v8183
        %v8185 = vpop.f32.mrb[0].mxu0
        %v8186 = vpop.f32.mrb[0].mxu0
        %v8187 = vadd.f32 %v8043, %v8186
        %v8188 = vpop.f32.mrb[0].mxu0
        %8189 = vdwg.mxu0
        %v8190 = vadd.f32 %v7213, %v8128
        %v8191 = vadd.f32 %v7214, %v8131
        %v8192 = vadd.f32 %v7215, %v8136
        %v8193 = vadd.f32 %v7216, %v8139
        %v8194 = vadd.f32 %v7217, %v8144
        %v8195 = vadd.f32 %v7218, %v8147
        %v8196 = vadd.f32 %v7219, %v8152
        %v8197 = vadd.f32 %v7220, %v8155
        %v8198 = vadd.f32 %v7221, %v8160
        %v8199 = vadd.f32 %v7222, %v8163
        %v8200 = vadd.f32 %v7223, %v8168
        %v8201 = vadd.f32 %v7224, %v8171
        %v8202 = vadd.f32 %v7225, %v8176
        %v8203 = vadd.f32 %v7226, %v8179
        %v8204 = vadd.f32 %v7227, %v8184
        %v8205 = vadd.f32 %v7228, %v8187
        %s8206 = scalar_lea.vmem %s7, 3
        %v8207 = vld [vmem:[%s8206] sm:$0x1]
        %s8208 = scalar_lea.vmem %s8, 3
        %v8209 = vld [vmem:[%s8208] sm:$0x1]
        %8210 = vadd.xlane.f32.xlu0 %v8190
        %v8211 = vpop.xlane.xlu0 %8210
        %8212 = vadd.xlane.f32.xlu0 %v8191
        %v8213 = vpop.xlane.xlu0 %8212
        %8214 = vadd.xlane.f32.xlu0 %v8192
        %v8215 = vpop.xlane.xlu0 %8214
        %8216 = vadd.xlane.f32.xlu0 %v8193
        %v8217 = vpop.xlane.xlu0 %8216
        %8218 = vadd.xlane.f32.xlu0 %v8194
        %v8219 = vpop.xlane.xlu0 %8218
        %8220 = vadd.xlane.f32.xlu0 %v8195
        %v8221 = vpop.xlane.xlu0 %8220
        %8222 = vadd.xlane.f32.xlu0 %v8196
        %v8223 = vpop.xlane.xlu0 %8222
        %8224 = vadd.xlane.f32.xlu0 %v8197
        %v8225 = vpop.xlane.xlu0 %8224
        %8226 = vadd.xlane.f32.xlu0 %v8198
        %v8227 = vpop.xlane.xlu0 %8226
        %8228 = vadd.xlane.f32.xlu0 %v8199
        %v8229 = vpop.xlane.xlu0 %8228
        %8230 = vadd.xlane.f32.xlu0 %v8200
        %v8231 = vpop.xlane.xlu0 %8230
        %8232 = vadd.xlane.f32.xlu0 %v8201
        %v8233 = vpop.xlane.xlu0 %8232
        %8234 = vadd.xlane.f32.xlu0 %v8202
        %v8235 = vpop.xlane.xlu0 %8234
        %8236 = vadd.xlane.f32.xlu0 %v8203
        %v8237 = vpop.xlane.xlu0 %8236
        %8238 = vadd.xlane.f32.xlu0 %v8204
        %v8239 = vpop.xlane.xlu0 %8238
        %8240 = vadd.xlane.f32.xlu0 %v8205
        %v8241 = vpop.xlane.xlu0 %8240
        %v8242 = vmul.f32 %v8211, %v1617
        %v8243 = vmul.f32 %v8213, %v1617
        %v8244 = vmul.f32 %v8215, %v1617
        %v8245 = vmul.f32 %v8217, %v1617
        %v8246 = vmul.f32 %v8219, %v1617
        %v8247 = vmul.f32 %v8221, %v1617
        %v8248 = vmul.f32 %v8223, %v1617
        %v8249 = vmul.f32 %v8225, %v1617
        %v8250 = vmul.f32 %v8227, %v1617
        %v8251 = vmul.f32 %v8229, %v1617
        %v8252 = vmul.f32 %v8231, %v1617
        %v8253 = vmul.f32 %v8233, %v1617
        %v8254 = vmul.f32 %v8235, %v1617
        %v8255 = vmul.f32 %v8237, %v1617
        %v8256 = vmul.f32 %v8239, %v1617
        %v8257 = vmul.f32 %v8241, %v1617
        %v8258 = vsub.f32 %v8190, %v8242
        %v8259 = vsub.f32 %v8191, %v8243
        %v8260 = vsub.f32 %v8192, %v8244
        %v8261 = vsub.f32 %v8193, %v8245
        %v8262 = vsub.f32 %v8194, %v8246
        %v8263 = vsub.f32 %v8195, %v8247
        %v8264 = vsub.f32 %v8196, %v8248
        %v8265 = vsub.f32 %v8197, %v8249
        %v8266 = vsub.f32 %v8198, %v8250
        %v8267 = vsub.f32 %v8199, %v8251
        %v8268 = vsub.f32 %v8200, %v8252
        %v8269 = vsub.f32 %v8201, %v8253
        %v8270 = vsub.f32 %v8202, %v8254
        %v8271 = vsub.f32 %v8203, %v8255
        %v8272 = vsub.f32 %v8204, %v8256
        %v8273 = vsub.f32 %v8205, %v8257
        %v8274 = vmul.f32 %v8258, %v8258
        %v8275 = vmul.f32 %v8259, %v8259
        %v8276 = vmul.f32 %v8260, %v8260
        %v8277 = vmul.f32 %v8261, %v8261
        %v8278 = vmul.f32 %v8262, %v8262
        %v8279 = vmul.f32 %v8263, %v8263
        %v8280 = vmul.f32 %v8264, %v8264
        %v8281 = vmul.f32 %v8265, %v8265
        %v8282 = vmul.f32 %v8266, %v8266
        %v8283 = vmul.f32 %v8267, %v8267
        %v8284 = vmul.f32 %v8268, %v8268
        %v8285 = vmul.f32 %v8269, %v8269
        %v8286 = vmul.f32 %v8270, %v8270
        %v8287 = vmul.f32 %v8271, %v8271
        %v8288 = vmul.f32 %v8272, %v8272
        %v8289 = vmul.f32 %v8273, %v8273
        %8290 = vadd.xlane.f32.xlu0 %v8274
        %v8291 = vpop.xlane.xlu0 %8290
        %8292 = vadd.xlane.f32.xlu0 %v8275
        %v8293 = vpop.xlane.xlu0 %8292
        %8294 = vadd.xlane.f32.xlu0 %v8276
        %v8295 = vpop.xlane.xlu0 %8294
        %8296 = vadd.xlane.f32.xlu0 %v8277
        %v8297 = vpop.xlane.xlu0 %8296
        %8298 = vadd.xlane.f32.xlu0 %v8278
        %v8299 = vpop.xlane.xlu0 %8298
        %8300 = vadd.xlane.f32.xlu0 %v8279
        %v8301 = vpop.xlane.xlu0 %8300
        %8302 = vadd.xlane.f32.xlu0 %v8280
        %v8303 = vpop.xlane.xlu0 %8302
        %8304 = vadd.xlane.f32.xlu0 %v8281
        %v8305 = vpop.xlane.xlu0 %8304
        %8306 = vadd.xlane.f32.xlu0 %v8282
        %v8307 = vpop.xlane.xlu0 %8306
        %8308 = vadd.xlane.f32.xlu0 %v8283
        %v8309 = vpop.xlane.xlu0 %8308
        %8310 = vadd.xlane.f32.xlu0 %v8284
        %v8311 = vpop.xlane.xlu0 %8310
        %8312 = vadd.xlane.f32.xlu0 %v8285
        %v8313 = vpop.xlane.xlu0 %8312
        %8314 = vadd.xlane.f32.xlu0 %v8286
        %v8315 = vpop.xlane.xlu0 %8314
        %8316 = vadd.xlane.f32.xlu0 %v8287
        %v8317 = vpop.xlane.xlu0 %8316
        %8318 = vadd.xlane.f32.xlu0 %v8288
        %v8319 = vpop.xlane.xlu0 %8318
        %8320 = vadd.xlane.f32.xlu0 %v8289
        %v8321 = vpop.xlane.xlu0 %8320
        %v8322 = vmul.f32 %v8291, %v1617
        %v8323 = vmul.f32 %v8293, %v1617
        %v8324 = vmul.f32 %v8295, %v1617
        %v8325 = vmul.f32 %v8297, %v1617
        %v8326 = vmul.f32 %v8299, %v1617
        %v8327 = vmul.f32 %v8301, %v1617
        %v8328 = vmul.f32 %v8303, %v1617
        %v8329 = vmul.f32 %v8305, %v1617
        %v8330 = vmul.f32 %v8307, %v1617
        %v8331 = vmul.f32 %v8309, %v1617
        %v8332 = vmul.f32 %v8311, %v1617
        %v8333 = vmul.f32 %v8313, %v1617
        %v8334 = vmul.f32 %v8315, %v1617
        %v8335 = vmul.f32 %v8317, %v1617
        %v8336 = vmul.f32 %v8319, %v1617
        %v8337 = vmul.f32 %v8321, %v1617
        %v8338 = vadd.f32 %v8322, 1e-12
        %v8339 = vadd.f32 %v8323, 1e-12
        %v8340 = vadd.f32 %v8324, 1e-12
        %v8341 = vadd.f32 %v8325, 1e-12
        %v8342 = vadd.f32 %v8326, 1e-12
        %v8343 = vadd.f32 %v8327, 1e-12
        %v8344 = vadd.f32 %v8328, 1e-12
        %v8345 = vadd.f32 %v8329, 1e-12
        %v8346 = vadd.f32 %v8330, 1e-12
        %v8347 = vadd.f32 %v8331, 1e-12
        %v8348 = vadd.f32 %v8332, 1e-12
        %v8349 = vadd.f32 %v8333, 1e-12
        %v8350 = vadd.f32 %v8334, 1e-12
        %v8351 = vadd.f32 %v8335, 1e-12
        %v8352 = vadd.f32 %v8336, 1e-12
        %v8353 = vadd.f32 %v8337, 1e-12
        %v8354 = vrsqrt.pop %v8338
        %v8355 = vrsqrt.pop %v8339
        %v8356 = vrsqrt.pop %v8340
        %v8357 = vrsqrt.pop %v8341
        %v8358 = vrsqrt.pop %v8342
        %v8359 = vrsqrt.pop %v8343
        %v8360 = vrsqrt.pop %v8344
        %v8361 = vrsqrt.pop %v8345
        %v8362 = vrsqrt.pop %v8346
        %v8363 = vrsqrt.pop %v8347
        %v8364 = vrsqrt.pop %v8348
        %v8365 = vrsqrt.pop %v8349
        %v8366 = vrsqrt.pop %v8350
        %v8367 = vrsqrt.pop %v8351
        %v8368 = vrsqrt.pop %v8352
        %v8369 = vrsqrt.pop %v8353
        %v8370 = vmul.f32 %v8258, %v8354
        %v8371 = vmul.f32 %v8259, %v8355
        %v8372 = vmul.f32 %v8260, %v8356
        %v8373 = vmul.f32 %v8261, %v8357
        %v8374 = vmul.f32 %v8262, %v8358
        %v8375 = vmul.f32 %v8263, %v8359
        %v8376 = vmul.f32 %v8264, %v8360
        %v8377 = vmul.f32 %v8265, %v8361
        %v8378 = vmul.f32 %v8266, %v8362
        %v8379 = vmul.f32 %v8267, %v8363
        %v8380 = vmul.f32 %v8268, %v8364
        %v8381 = vmul.f32 %v8269, %v8365
        %v8382 = vmul.f32 %v8270, %v8366
        %v8383 = vmul.f32 %v8271, %v8367
        %v8384 = vmul.f32 %v8272, %v8368
        %v8385 = vmul.f32 %v8273, %v8369
        %v8387 = vlaneseq
        %v8388 = vshrl.u32 %v8387, 7
        %v8389 = vsub.s32 0, %v8388
        %v8390 = vrot.slane %v8207, %v8389
        %v8392 = vmul.f32 %v8370, %v8390
        %v8393 = vmul.f32 %v8371, %v8390
        %v8394 = vmul.f32 %v8372, %v8390
        %v8395 = vmul.f32 %v8373, %v8390
        %v8396 = vmul.f32 %v8374, %v8390
        %v8397 = vmul.f32 %v8375, %v8390
        %v8398 = vmul.f32 %v8376, %v8390
        %v8399 = vmul.f32 %v8377, %v8390
        %v8400 = vmul.f32 %v8378, %v8390
        %v8401 = vmul.f32 %v8379, %v8390
        %v8402 = vmul.f32 %v8380, %v8390
        %v8403 = vmul.f32 %v8381, %v8390
        %v8404 = vmul.f32 %v8382, %v8390
        %v8405 = vmul.f32 %v8383, %v8390
        %v8406 = vmul.f32 %v8384, %v8390
        %v8407 = vmul.f32 %v8385, %v8390
        %v8409 = vlaneseq
        %v8410 = vshrl.u32 %v8409, 7
        %v8411 = vsub.s32 0, %v8410
        %v8412 = vrot.slane %v8209, %v8411
        %v8414 = vadd.f32 %v8392, %v8412
        %v8415 = vadd.f32 %v8393, %v8412
        %v8416 = vadd.f32 %v8394, %v8412
        %v8417 = vadd.f32 %v8395, %v8412
        %v8418 = vadd.f32 %v8396, %v8412
        %v8419 = vadd.f32 %v8397, %v8412
        %v8420 = vadd.f32 %v8398, %v8412
        %v8421 = vadd.f32 %v8399, %v8412
        %v8422 = vadd.f32 %v8400, %v8412
        %v8423 = vadd.f32 %v8401, %v8412
        %v8424 = vadd.f32 %v8402, %v8412
        %v8425 = vadd.f32 %v8403, %v8412
        %v8426 = vadd.f32 %v8404, %v8412
        %v8427 = vadd.f32 %v8405, %v8412
        %v8428 = vadd.f32 %v8406, %v8412
        %v8429 = vadd.f32 %v8407, %v8412
        %v8430 = vpack.c.bf16 %v8415, %v8414
        %v8431 = vpack.c.bf16 %v8417, %v8416
        %v8432 = vpack.c.bf16 %v8419, %v8418
        %v8433 = vpack.c.bf16 %v8421, %v8420
        %v8434 = vpack.c.bf16 %v8423, %v8422
        %v8435 = vpack.c.bf16 %v8425, %v8424
        %v8436 = vpack.c.bf16 %v8427, %v8426
        %v8437 = vpack.c.bf16 %v8429, %v8428
        %s8438 = scalar_lea.vmem [#allocation7], 384
        %v8439 = vld [vmem:[%s8438] sm:$0xff]
        %v8440 = vld [vmem:[%s8438 + $0x8] sm:$0xff]
        %v8441 = vld [vmem:[%s8438 + $0x10] sm:$0xff]
        %v8442 = vld [vmem:[%s8438 + $0x18] sm:$0xff]
        %v8443 = vld [vmem:[%s8438 + $0x20] sm:$0xff]
        %v8444 = vld [vmem:[%s8438 + $0x28] sm:$0xff]
        %v8445 = vld [vmem:[%s8438 + $0x30] sm:$0xff]
        %v8446 = vld [vmem:[%s8438 + $0x38] sm:$0xff]
        %v8447 = vld [vmem:[%s8438 + $0x40] sm:$0xff]
        %v8448 = vld [vmem:[%s8438 + $0x48] sm:$0xff]
        %v8449 = vld [vmem:[%s8438 + $0x50] sm:$0xff]
        %v8450 = vld [vmem:[%s8438 + $0x58] sm:$0xff]
        %v8451 = vld [vmem:[%s8438 + $0x60] sm:$0xff]
        %v8452 = vld [vmem:[%s8438 + $0x68] sm:$0xff]
        %v8453 = vld [vmem:[%s8438 + $0x70] sm:$0xff]
        %v8454 = vld [vmem:[%s8438 + $0x78] sm:$0xff]
        %s8455 = scalar_lea.vmem %s10, 6
        %v8456 = vld [vmem:[%s8455] sm:$0x3]
        %v8458 = vlaneseq
        %v8459 = vshrl.u32 %v8458, 7
        %v8460 = vsub.s32 0, %v8459
        %v8461 = vrot.slane %v8456, %v8460
        %v8462 = vlaneseq
        %v8463 = vshrl.u32 %v8462, 7
        %v8464 = vsub.s32 1, %v8463
        %v8465 = vrot.slane %v8456, %v8464
        %v8484 = vunpack.c.l.b16 %v8439
        %v8485 = vunpack.c.h.b16 %v8439
        %v8486 = vunpack.c.l.b16 %v8440
        %v8487 = vunpack.c.h.b16 %v8440
        %v8488 = vunpack.c.l.b16 %v8441
        %v8489 = vunpack.c.h.b16 %v8441
        %v8490 = vunpack.c.l.b16 %v8442
        %v8491 = vunpack.c.h.b16 %v8442
        %v8492 = vunpack.c.l.b16 %v8443
        %v8493 = vunpack.c.h.b16 %v8443
        %v8494 = vunpack.c.l.b16 %v8444
        %v8495 = vunpack.c.h.b16 %v8444
        %v8496 = vunpack.c.l.b16 %v8445
        %v8497 = vunpack.c.h.b16 %v8445
        %v8498 = vunpack.c.l.b16 %v8446
        %v8499 = vunpack.c.h.b16 %v8446
        %v8500 = vunpack.c.l.b16 %v8447
        %v8501 = vunpack.c.h.b16 %v8447
        %v8502 = vunpack.c.l.b16 %v8448
        %v8503 = vunpack.c.h.b16 %v8448
        %v8504 = vunpack.c.l.b16 %v8449
        %v8505 = vunpack.c.h.b16 %v8449
        %v8506 = vunpack.c.l.b16 %v8450
        %v8507 = vunpack.c.h.b16 %v8450
        %v8508 = vunpack.c.l.b16 %v8451
        %v8509 = vunpack.c.h.b16 %v8451
        %v8510 = vunpack.c.l.b16 %v8452
        %v8511 = vunpack.c.h.b16 %v8452
        %v8512 = vunpack.c.l.b16 %v8453
        %v8513 = vunpack.c.h.b16 %v8453
        %v8514 = vunpack.c.l.b16 %v8454
        %v8515 = vunpack.c.h.b16 %v8454
        %v8516 = vpack.c.b16 %v8486, %v8484
        %v8517 = vpack.c.b16 %v8487, %v8485
        %v8518 = vpack.c.b16 %v8490, %v8488
        %v8519 = vpack.c.b16 %v8491, %v8489
        %v8520 = vpack.c.b16 %v8494, %v8492
        %v8521 = vpack.c.b16 %v8495, %v8493
        %v8522 = vpack.c.b16 %v8498, %v8496
        %v8523 = vpack.c.b16 %v8499, %v8497
        %v8524 = vpack.c.b16 %v8502, %v8500
        %v8525 = vpack.c.b16 %v8503, %v8501
        %v8526 = vpack.c.b16 %v8506, %v8504
        %v8527 = vpack.c.b16 %v8507, %v8505
        %v8528 = vpack.c.b16 %v8510, %v8508
        %v8529 = vpack.c.b16 %v8511, %v8509
        %v8530 = vpack.c.b16 %v8514, %v8512
        %v8531 = vpack.c.b16 %v8515, %v8513
        %8548 = vmatprep.subr.bf16.mxu0 %v8517
        %8549 = vmatpush1.bf16.msra.mxu0 %v8516
        %8550 = vmatprep.subr.bf16.mxu0 %v8519
        %8551 = vmatpush1.bf16.msra.mxu0 %v8518
        %8552 = vmatprep.subr.bf16.mxu0 %v8521
        %8553 = vmatpush1.bf16.msra.mxu0 %v8520
        %8554 = vmatprep.subr.bf16.mxu0 %v8523
        %8555 = vmatpush1.bf16.msra.mxu0 %v8522
        %8556 = vmatprep.subr.bf16.mxu0 %v8525
        %8557 = vmatpush1.bf16.msra.mxu0 %v8524
        %8558 = vmatprep.subr.bf16.mxu0 %v8527
        %8559 = vmatpush1.bf16.msra.mxu0 %v8526
        %8560 = vmatprep.subr.bf16.mxu0 %v8529
        %8561 = vmatpush1.bf16.msra.mxu0 %v8528
        %8562 = vmatprep.subr.bf16.mxu0 %v8531
        %8563 = vmatpush1.bf16.msra.mxu0 %v8530
        %8564 = vmatprep.subr.bf16.mxu0 0
        %8565 = vmatpush1.bf16.msra.mxu0 0
        %8566 = vmatprep.subr.bf16.mxu0 0
        %8567 = vmatpush1.bf16.msra.mxu0 0
        %8568 = vmatprep.subr.bf16.mxu0 0
        %8569 = vmatpush1.bf16.msra.mxu0 0
        %8570 = vmatprep.subr.bf16.mxu0 0
        %8571 = vmatpush1.bf16.msra.mxu0 0
        %8572 = vmatprep.subr.bf16.mxu0 0
        %8573 = vmatpush1.bf16.msra.mxu0 0
        %8574 = vmatprep.subr.bf16.mxu0 0
        %8575 = vmatpush1.bf16.msra.mxu0 0
        %8576 = vmatprep.subr.bf16.mxu0 0
        %8577 = vmatpush1.bf16.msra.mxu0 0
        %8578 = vmatprep.subr.bf16.mxu0 0
        %8579 = vmatpush1.bf16.msra.mxu0 0
        %8580 = vmatprep.mubr.bf16.mxu0 0
        %8581 = vmatmul.mubr.bf16.gmra.mrb[0].mxu0 %v8430
        %v8582 = vpop.f32.mrb[0].mxu0
        %v8583 = vadd.f32 %v8461, %v8582
        %v8584 = vpop.f32.mrb[0].mxu0
        %v8585 = vadd.f32 %v8465, %v8584
        %v8586 = vpop.f32.mrb[0].mxu0
        %v8587 = vadd.f32 %v8461, %v8586
        %v8588 = vpop.f32.mrb[0].mxu0
        %v8589 = vadd.f32 %v8465, %v8588
        %8590 = vmatprep.mubr.bf16.mxu0 0
        %8591 = vmatmul.mubr.bf16.gmra.mrb[0].mxu0 %v8431
        %v8592 = vpop.f32.mrb[0].mxu0
        %v8593 = vadd.f32 %v8461, %v8592
        %v8594 = vpop.f32.mrb[0].mxu0
        %v8595 = vadd.f32 %v8465, %v8594
        %v8596 = vpop.f32.mrb[0].mxu0
        %v8597 = vadd.f32 %v8461, %v8596
        %v8598 = vpop.f32.mrb[0].mxu0
        %v8599 = vadd.f32 %v8465, %v8598
        %8600 = vmatprep.mubr.bf16.mxu0 0
        %8601 = vmatmul.mubr.bf16.gmra.mrb[0].mxu0 %v8432
        %v8602 = vpop.f32.mrb[0].mxu0
        %v8603 = vadd.f32 %v8461, %v8602
        %v8604 = vpop.f32.mrb[0].mxu0
        %v8605 = vadd.f32 %v8465, %v8604
        %v8606 = vpop.f32.mrb[0].mxu0
        %v8607 = vadd.f32 %v8461, %v8606
        %v8608 = vpop.f32.mrb[0].mxu0
        %v8609 = vadd.f32 %v8465, %v8608
        %8610 = vmatprep.mubr.bf16.mxu0 0
        %8611 = vmatmul.mubr.bf16.gmra.mrb[0].mxu0 %v8433
        %v8612 = vpop.f32.mrb[0].mxu0
        %v8613 = vadd.f32 %v8461, %v8612
        %v8614 = vpop.f32.mrb[0].mxu0
        %v8615 = vadd.f32 %v8465, %v8614
        %v8616 = vpop.f32.mrb[0].mxu0
        %v8617 = vadd.f32 %v8461, %v8616
        %v8618 = vpop.f32.mrb[0].mxu0
        %v8619 = vadd.f32 %v8465, %v8618
        %8620 = vmatprep.mubr.bf16.mxu0 0
        %8621 = vmatmul.mubr.bf16.gmra.mrb[0].mxu0 %v8434
        %v8622 = vpop.f32.mrb[0].mxu0
        %v8623 = vadd.f32 %v8461, %v8622
        %v8624 = vpop.f32.mrb[0].mxu0
        %v8625 = vadd.f32 %v8465, %v8624
        %v8626 = vpop.f32.mrb[0].mxu0
        %v8627 = vadd.f32 %v8461, %v8626
        %v8628 = vpop.f32.mrb[0].mxu0
        %v8629 = vadd.f32 %v8465, %v8628
        %8630 = vmatprep.mubr.bf16.mxu0 0
        %8631 = vmatmul.mubr.bf16.gmra.mrb[0].mxu0 %v8435
        %v8632 = vpop.f32.mrb[0].mxu0
        %v8633 = vadd.f32 %v8461, %v8632
        %v8634 = vpop.f32.mrb[0].mxu0
        %v8635 = vadd.f32 %v8465, %v8634
        %v8636 = vpop.f32.mrb[0].mxu0
        %v8637 = vadd.f32 %v8461, %v8636
        %v8638 = vpop.f32.mrb[0].mxu0
        %v8639 = vadd.f32 %v8465, %v8638
        %8640 = vmatprep.mubr.bf16.mxu0 0
        %8641 = vmatmul.mubr.bf16.gmra.mrb[0].mxu0 %v8436
        %v8642 = vpop.f32.mrb[0].mxu0
        %v8643 = vadd.f32 %v8461, %v8642
        %v8644 = vpop.f32.mrb[0].mxu0
        %v8645 = vadd.f32 %v8465, %v8644
        %v8646 = vpop.f32.mrb[0].mxu0
        %v8647 = vadd.f32 %v8461, %v8646
        %v8648 = vpop.f32.mrb[0].mxu0
        %v8649 = vadd.f32 %v8465, %v8648
        %8650 = vmatprep.mubr.bf16.mxu0 0
        %8651 = vmatmul.mubr.bf16.gmra.mrb[0].mxu0 %v8437
        %v8652 = vpop.f32.mrb[0].mxu0
        %v8653 = vadd.f32 %v8461, %v8652
        %v8654 = vpop.f32.mrb[0].mxu0
        %v8655 = vadd.f32 %v8465, %v8654
        %v8656 = vpop.f32.mrb[0].mxu0
        %v8657 = vadd.f32 %v8461, %v8656
        %v8658 = vpop.f32.mrb[0].mxu0
        %v8659 = vadd.f32 %v8465, %v8658
        %8660 = vdwg.mxu0
        %v8661 = vmul.f32 %v8583, 0.5
        %v8662 = vmul.f32 %v8585, 0.5
        %v8663 = vmul.f32 %v8587, 0.5
        %v8664 = vmul.f32 %v8589, 0.5
        %v8665 = vmul.f32 %v8593, 0.5
        %v8666 = vmul.f32 %v8595, 0.5
        %v8667 = vmul.f32 %v8597, 0.5
        %v8668 = vmul.f32 %v8599, 0.5
        %v8669 = vmul.f32 %v8603, 0.5
        %v8670 = vmul.f32 %v8605, 0.5
        %v8671 = vmul.f32 %v8607, 0.5
        %v8672 = vmul.f32 %v8609, 0.5
        %v8673 = vmul.f32 %v8613, 0.5
        %v8674 = vmul.f32 %v8615, 0.5
        %v8675 = vmul.f32 %v8617, 0.5
        %v8676 = vmul.f32 %v8619, 0.5
        %v8677 = vmul.f32 %v8623, 0.5
        %v8678 = vmul.f32 %v8625, 0.5
        %v8679 = vmul.f32 %v8627, 0.5
        %v8680 = vmul.f32 %v8629, 0.5
        %v8681 = vmul.f32 %v8633, 0.5
        %v8682 = vmul.f32 %v8635, 0.5
        %v8683 = vmul.f32 %v8637, 0.5
        %v8684 = vmul.f32 %v8639, 0.5
        %v8685 = vmul.f32 %v8643, 0.5
        %v8686 = vmul.f32 %v8645, 0.5
        %v8687 = vmul.f32 %v8647, 0.5
        %v8688 = vmul.f32 %v8649, 0.5
        %v8689 = vmul.f32 %v8653, 0.5
        %v8690 = vmul.f32 %v8655, 0.5
        %v8691 = vmul.f32 %v8657, 0.5
        %v8692 = vmul.f32 %v8659, 0.5
        %v8693 = vmul.f32 %v8583, 0.044715
        %v8694 = vmul.f32 %v8585, 0.044715
        %v8695 = vmul.f32 %v8587, 0.044715
        %v8696 = vmul.f32 %v8589, 0.044715
        %v8697 = vmul.f32 %v8593, 0.044715
        %v8698 = vmul.f32 %v8595, 0.044715
        %v8699 = vmul.f32 %v8597, 0.044715
        %v8700 = vmul.f32 %v8599, 0.044715
        %v8701 = vmul.f32 %v8603, 0.044715
        %v8702 = vmul.f32 %v8605, 0.044715
        %v8703 = vmul.f32 %v8607, 0.044715
        %v8704 = vmul.f32 %v8609, 0.044715
        %v8705 = vmul.f32 %v8613, 0.044715
        %v8706 = vmul.f32 %v8615, 0.044715
        %v8707 = vmul.f32 %v8617, 0.044715
        %v8708 = vmul.f32 %v8619, 0.044715
        %v8709 = vmul.f32 %v8623, 0.044715
        %v8710 = vmul.f32 %v8625, 0.044715
        %v8711 = vmul.f32 %v8627, 0.044715
        %v8712 = vmul.f32 %v8629, 0.044715
        %v8713 = vmul.f32 %v8633, 0.044715
        %v8714 = vmul.f32 %v8635, 0.044715
        %v8715 = vmul.f32 %v8637, 0.044715
        %v8716 = vmul.f32 %v8639, 0.044715
        %v8717 = vmul.f32 %v8643, 0.044715
        %v8718 = vmul.f32 %v8645, 0.044715
        %v8719 = vmul.f32 %v8647, 0.044715
        %v8720 = vmul.f32 %v8649, 0.044715
        %v8721 = vmul.f32 %v8653, 0.044715
        %v8722 = vmul.f32 %v8655, 0.044715
        %v8723 = vmul.f32 %v8657, 0.044715
        %v8724 = vmul.f32 %v8659, 0.044715
        %v8725 = vmul.f32 %v8693, %v8583
        %v8726 = vmul.f32 %v8694, %v8585
        %v8727 = vmul.f32 %v8695, %v8587
        %v8728 = vmul.f32 %v8696, %v8589
        %v8729 = vmul.f32 %v8697, %v8593
        %v8730 = vmul.f32 %v8698, %v8595
        %v8731 = vmul.f32 %v8699, %v8597
        %v8732 = vmul.f32 %v8700, %v8599
        %v8733 = vmul.f32 %v8701, %v8603
        %v8734 = vmul.f32 %v8702, %v8605
        %v8735 = vmul.f32 %v8703, %v8607
        %v8736 = vmul.f32 %v8704, %v8609
        %v8737 = vmul.f32 %v8705, %v8613
        %v8738 = vmul.f32 %v8706, %v8615
        %v8739 = vmul.f32 %v8707, %v8617
        %v8740 = vmul.f32 %v8708, %v8619
        %v8741 = vmul.f32 %v8709, %v8623
        %v8742 = vmul.f32 %v8710, %v8625
        %v8743 = vmul.f32 %v8711, %v8627
        %v8744 = vmul.f32 %v8712, %v8629
        %v8745 = vmul.f32 %v8713, %v8633
        %v8746 = vmul.f32 %v8714, %v8635
        %v8747 = vmul.f32 %v8715, %v8637
        %v8748 = vmul.f32 %v8716, %v8639
        %v8749 = vmul.f32 %v8717, %v8643
        %v8750 = vmul.f32 %v8718, %v8645
        %v8751 = vmul.f32 %v8719, %v8647
        %v8752 = vmul.f32 %v8720, %v8649
        %v8753 = vmul.f32 %v8721, %v8653
        %v8754 = vmul.f32 %v8722, %v8655
        %v8755 = vmul.f32 %v8723, %v8657
        %v8756 = vmul.f32 %v8724, %v8659
        %v8757 = vmul.f32 %v8725, %v8583
        %v8758 = vmul.f32 %v8726, %v8585
        %v8759 = vmul.f32 %v8727, %v8587
        %v8760 = vmul.f32 %v8728, %v8589
        %v8761 = vmul.f32 %v8729, %v8593
        %v8762 = vmul.f32 %v8730, %v8595
        %v8763 = vmul.f32 %v8731, %v8597
        %v8764 = vmul.f32 %v8732, %v8599
        %v8765 = vmul.f32 %v8733, %v8603
        %v8766 = vmul.f32 %v8734, %v8605
        %v8767 = vmul.f32 %v8735, %v8607
        %v8768 = vmul.f32 %v8736, %v8609
        %v8769 = vmul.f32 %v8737, %v8613
        %v8770 = vmul.f32 %v8738, %v8615
        %v8771 = vmul.f32 %v8739, %v8617
        %v8772 = vmul.f32 %v8740, %v8619
        %v8773 = vmul.f32 %v8741, %v8623
        %v8774 = vmul.f32 %v8742, %v8625
        %v8775 = vmul.f32 %v8743, %v8627
        %v8776 = vmul.f32 %v8744, %v8629
        %v8777 = vmul.f32 %v8745, %v8633
        %v8778 = vmul.f32 %v8746, %v8635
        %v8779 = vmul.f32 %v8747, %v8637
        %v8780 = vmul.f32 %v8748, %v8639
        %v8781 = vmul.f32 %v8749, %v8643
        %v8782 = vmul.f32 %v8750, %v8645
        %v8783 = vmul.f32 %v8751, %v8647
        %v8784 = vmul.f32 %v8752, %v8649
        %v8785 = vmul.f32 %v8753, %v8653
        %v8786 = vmul.f32 %v8754, %v8655
        %v8787 = vmul.f32 %v8755, %v8657
        %v8788 = vmul.f32 %v8756, %v8659
        %v8789 = vadd.f32 %v8583, %v8757
        %v8790 = vadd.f32 %v8585, %v8758
        %v8791 = vadd.f32 %v8587, %v8759
        %v8792 = vadd.f32 %v8589, %v8760
        %v8793 = vadd.f32 %v8593, %v8761
        %v8794 = vadd.f32 %v8595, %v8762
        %v8795 = vadd.f32 %v8597, %v8763
        %v8796 = vadd.f32 %v8599, %v8764
        %v8797 = vadd.f32 %v8603, %v8765
        %v8798 = vadd.f32 %v8605, %v8766
        %v8799 = vadd.f32 %v8607, %v8767
        %v8800 = vadd.f32 %v8609, %v8768
        %v8801 = vadd.f32 %v8613, %v8769
        %v8802 = vadd.f32 %v8615, %v8770
        %v8803 = vadd.f32 %v8617, %v8771
        %v8804 = vadd.f32 %v8619, %v8772
        %v8805 = vadd.f32 %v8623, %v8773
        %v8806 = vadd.f32 %v8625, %v8774
        %v8807 = vadd.f32 %v8627, %v8775
        %v8808 = vadd.f32 %v8629, %v8776
        %v8809 = vadd.f32 %v8633, %v8777
        %v8810 = vadd.f32 %v8635, %v8778
        %v8811 = vadd.f32 %v8637, %v8779
        %v8812 = vadd.f32 %v8639, %v8780
        %v8813 = vadd.f32 %v8643, %v8781
        %v8814 = vadd.f32 %v8645, %v8782
        %v8815 = vadd.f32 %v8647, %v8783
        %v8816 = vadd.f32 %v8649, %v8784
        %v8817 = vadd.f32 %v8653, %v8785
        %v8818 = vadd.f32 %v8655, %v8786
        %v8819 = vadd.f32 %v8657, %v8787
        %v8820 = vadd.f32 %v8659, %v8788
        %v8821 = vmul.f32 %v8789, 0.7978846
        %v8822 = vmul.f32 %v8790, 0.7978846
        %v8823 = vmul.f32 %v8791, 0.7978846
        %v8824 = vmul.f32 %v8792, 0.7978846
        %v8825 = vmul.f32 %v8793, 0.7978846
        %v8826 = vmul.f32 %v8794, 0.7978846
        %v8827 = vmul.f32 %v8795, 0.7978846
        %v8828 = vmul.f32 %v8796, 0.7978846
        %v8829 = vmul.f32 %v8797, 0.7978846
        %v8830 = vmul.f32 %v8798, 0.7978846
        %v8831 = vmul.f32 %v8799, 0.7978846
        %v8832 = vmul.f32 %v8800, 0.7978846
        %v8833 = vmul.f32 %v8801, 0.7978846
        %v8834 = vmul.f32 %v8802, 0.7978846
        %v8835 = vmul.f32 %v8803, 0.7978846
        %v8836 = vmul.f32 %v8804, 0.7978846
        %v8837 = vmul.f32 %v8805, 0.7978846
        %v8838 = vmul.f32 %v8806, 0.7978846
        %v8839 = vmul.f32 %v8807, 0.7978846
        %v8840 = vmul.f32 %v8808, 0.7978846
        %v8841 = vmul.f32 %v8809, 0.7978846
        %v8842 = vmul.f32 %v8810, 0.7978846
        %v8843 = vmul.f32 %v8811, 0.7978846
        %v8844 = vmul.f32 %v8812, 0.7978846
        %v8845 = vmul.f32 %v8813, 0.7978846
        %v8846 = vmul.f32 %v8814, 0.7978846
        %v8847 = vmul.f32 %v8815, 0.7978846
        %v8848 = vmul.f32 %v8816, 0.7978846
        %v8849 = vmul.f32 %v8817, 0.7978846
        %v8850 = vmul.f32 %v8818, 0.7978846
        %v8851 = vmul.f32 %v8819, 0.7978846
        %v8852 = vmul.f32 %v8820, 0.7978846
        %v8853 = vtanh.pop %v8821
        %v8854 = vtanh.pop %v8822
        %v8855 = vtanh.pop %v8823
        %v8856 = vtanh.pop %v8824
        %v8857 = vtanh.pop %v8825
        %v8858 = vtanh.pop %v8826
        %v8859 = vtanh.pop %v8827
        %v8860 = vtanh.pop %v8828
        %v8861 = vtanh.pop %v8829
        %v8862 = vtanh.pop %v8830
        %v8863 = vtanh.pop %v8831
        %v8864 = vtanh.pop %v8832
        %v8865 = vtanh.pop %v8833
        %v8866 = vtanh.pop %v8834
        %v8867 = vtanh.pop %v8835
        %v8868 = vtanh.pop %v8836
        %v8869 = vtanh.pop %v8837
        %v8870 = vtanh.pop %v8838
        %v8871 = vtanh.pop %v8839
        %v8872 = vtanh.pop %v8840
        %v8873 = vtanh.pop %v8841
        %v8874 = vtanh.pop %v8842
        %v8875 = vtanh.pop %v8843
        %v8876 = vtanh.pop %v8844
        %v8877 = vtanh.pop %v8845
        %v8878 = vtanh.pop %v8846
        %v8879 = vtanh.pop %v8847
        %v8880 = vtanh.pop %v8848
        %v8881 = vtanh.pop %v8849
        %v8882 = vtanh.pop %v8850
        %v8883 = vtanh.pop %v8851
        %v8884 = vtanh.pop %v8852
        %v8885 = vadd.f32 %v8853, 1.0
        %v8886 = vadd.f32 %v8854, 1.0
        %v8887 = vadd.f32 %v8855, 1.0
        %v8888 = vadd.f32 %v8856, 1.0
        %v8889 = vadd.f32 %v8857, 1.0
        %v8890 = vadd.f32 %v8858, 1.0
        %v8891 = vadd.f32 %v8859, 1.0
        %v8892 = vadd.f32 %v8860, 1.0
        %v8893 = vadd.f32 %v8861, 1.0
        %v8894 = vadd.f32 %v8862, 1.0
        %v8895 = vadd.f32 %v8863, 1.0
        %v8896 = vadd.f32 %v8864, 1.0
        %v8897 = vadd.f32 %v8865, 1.0
        %v8898 = vadd.f32 %v8866, 1.0
        %v8899 = vadd.f32 %v8867, 1.0
        %v8900 = vadd.f32 %v8868, 1.0
        %v8901 = vadd.f32 %v8869, 1.0
        %v8902 = vadd.f32 %v8870, 1.0
        %v8903 = vadd.f32 %v8871, 1.0
        %v8904 = vadd.f32 %v8872, 1.0
        %v8905 = vadd.f32 %v8873, 1.0
        %v8906 = vadd.f32 %v8874, 1.0
        %v8907 = vadd.f32 %v8875, 1.0
        %v8908 = vadd.f32 %v8876, 1.0
        %v8909 = vadd.f32 %v8877, 1.0
        %v8910 = vadd.f32 %v8878, 1.0
        %v8911 = vadd.f32 %v8879, 1.0
        %v8912 = vadd.f32 %v8880, 1.0
        %v8913 = vadd.f32 %v8881, 1.0
        %v8914 = vadd.f32 %v8882, 1.0
        %v8915 = vadd.f32 %v8883, 1.0
        %v8916 = vadd.f32 %v8884, 1.0
        %v8917 = vmul.f32 %v8661, %v8885
        %v8918 = vmul.f32 %v8662, %v8886
        %v8919 = vmul.f32 %v8663, %v8887
        %v8920 = vmul.f32 %v8664, %v8888
        %v8921 = vmul.f32 %v8665, %v8889
        %v8922 = vmul.f32 %v8666, %v8890
        %v8923 = vmul.f32 %v8667, %v8891
        %v8924 = vmul.f32 %v8668, %v8892
        %v8925 = vmul.f32 %v8669, %v8893
        %v8926 = vmul.f32 %v8670, %v8894
        %v8927 = vmul.f32 %v8671, %v8895
        %v8928 = vmul.f32 %v8672, %v8896
        %v8929 = vmul.f32 %v8673, %v8897
        %v8930 = vmul.f32 %v8674, %v8898
        %v8931 = vmul.f32 %v8675, %v8899
        %v8932 = vmul.f32 %v8676, %v8900
        %v8933 = vmul.f32 %v8677, %v8901
        %v8934 = vmul.f32 %v8678, %v8902
        %v8935 = vmul.f32 %v8679, %v8903
        %v8936 = vmul.f32 %v8680, %v8904
        %v8937 = vmul.f32 %v8681, %v8905
        %v8938 = vmul.f32 %v8682, %v8906
        %v8939 = vmul.f32 %v8683, %v8907
        %v8940 = vmul.f32 %v8684, %v8908
        %v8941 = vmul.f32 %v8685, %v8909
        %v8942 = vmul.f32 %v8686, %v8910
        %v8943 = vmul.f32 %v8687, %v8911
        %v8944 = vmul.f32 %v8688, %v8912
        %v8945 = vmul.f32 %v8689, %v8913
        %v8946 = vmul.f32 %v8690, %v8914
        %v8947 = vmul.f32 %v8691, %v8915
        %v8948 = vmul.f32 %v8692, %v8916
        %v8949 = vpack.c.bf16 %v8919, %v8917
        %v8950 = vpack.c.bf16 %v8920, %v8918
        %v8951 = vpack.c.bf16 %v8923, %v8921
        %v8952 = vpack.c.bf16 %v8924, %v8922
        %v8953 = vpack.c.bf16 %v8927, %v8925
        %v8954 = vpack.c.bf16 %v8928, %v8926
        %v8955 = vpack.c.bf16 %v8931, %v8929
        %v8956 = vpack.c.bf16 %v8932, %v8930
        %v8957 = vpack.c.bf16 %v8935, %v8933
        %v8958 = vpack.c.bf16 %v8936, %v8934
        %v8959 = vpack.c.bf16 %v8939, %v8937
        %v8960 = vpack.c.bf16 %v8940, %v8938
        %v8961 = vpack.c.bf16 %v8943, %v8941
        %v8962 = vpack.c.bf16 %v8944, %v8942
        %v8963 = vpack.c.bf16 %v8947, %v8945
        %v8964 = vpack.c.bf16 %v8948, %v8946
        %s8965 = scalar_lea.vmem [#allocation9], 384
        %v8966 = vld [vmem:[%s8965] sm:$0xf]
        %v8967 = vld [vmem:[%s8965 + $0x4] sm:$0xf]
        %v8968 = vld [vmem:[%s8965 + $0x8] sm:$0xf]
        %v8969 = vld [vmem:[%s8965 + $0xc] sm:$0xf]
        %v8970 = vld [vmem:[%s8965 + $0x10] sm:$0xf]
        %v8971 = vld [vmem:[%s8965 + $0x14] sm:$0xf]
        %v8972 = vld [vmem:[%s8965 + $0x18] sm:$0xf]
        %v8973 = vld [vmem:[%s8965 + $0x1c] sm:$0xf]
        %v8974 = vld [vmem:[%s8965 + $0x20] sm:$0xf]
        %v8975 = vld [vmem:[%s8965 + $0x24] sm:$0xf]
        %v8976 = vld [vmem:[%s8965 + $0x28] sm:$0xf]
        %v8977 = vld [vmem:[%s8965 + $0x2c] sm:$0xf]
        %v8978 = vld [vmem:[%s8965 + $0x30] sm:$0xf]
        %v8979 = vld [vmem:[%s8965 + $0x34] sm:$0xf]
        %v8980 = vld [vmem:[%s8965 + $0x38] sm:$0xf]
        %v8981 = vld [vmem:[%s8965 + $0x3c] sm:$0xf]
        %v8982 = vld [vmem:[%s8965 + $0x40] sm:$0xf]
        %v8983 = vld [vmem:[%s8965 + $0x44] sm:$0xf]
        %v8984 = vld [vmem:[%s8965 + $0x48] sm:$0xf]
        %v8985 = vld [vmem:[%s8965 + $0x4c] sm:$0xf]
        %v8986 = vld [vmem:[%s8965 + $0x50] sm:$0xf]
        %v8987 = vld [vmem:[%s8965 + $0x54] sm:$0xf]
        %v8988 = vld [vmem:[%s8965 + $0x58] sm:$0xf]
        %v8989 = vld [vmem:[%s8965 + $0x5c] sm:$0xf]
        %v8990 = vld [vmem:[%s8965 + $0x60] sm:$0xf]
        %v8991 = vld [vmem:[%s8965 + $0x64] sm:$0xf]
        %v8992 = vld [vmem:[%s8965 + $0x68] sm:$0xf]
        %v8993 = vld [vmem:[%s8965 + $0x6c] sm:$0xf]
        %v8994 = vld [vmem:[%s8965 + $0x70] sm:$0xf]
        %v8995 = vld [vmem:[%s8965 + $0x74] sm:$0xf]
        %v8996 = vld [vmem:[%s8965 + $0x78] sm:$0xf]
        %v8997 = vld [vmem:[%s8965 + $0x7c] sm:$0xf]
        %s8998 = scalar_lea.vmem %s12, 3
        %v8999 = vld [vmem:[%s8998] sm:$0x1]
        %v9001 = vlaneseq
        %v9002 = vshrl.u32 %v9001, 7
        %v9003 = vsub.s32 0, %v9002
        %v9004 = vrot.slane %v8999, %v9003
        %v9038 = vunpack.c.l.b16 %v8966
        %v9039 = vunpack.c.l.b16 %v8967
        %v9040 = vunpack.c.l.b16 %v8968
        %v9041 = vunpack.c.l.b16 %v8969
        %v9042 = vunpack.c.l.b16 %v8970
        %v9043 = vunpack.c.l.b16 %v8971
        %v9044 = vunpack.c.l.b16 %v8972
        %v9045 = vunpack.c.l.b16 %v8973
        %v9046 = vunpack.c.l.b16 %v8974
        %v9047 = vunpack.c.l.b16 %v8975
        %v9048 = vunpack.c.l.b16 %v8976
        %v9049 = vunpack.c.l.b16 %v8977
        %v9050 = vunpack.c.l.b16 %v8978
        %v9051 = vunpack.c.l.b16 %v8979
        %v9052 = vunpack.c.l.b16 %v8980
        %v9053 = vunpack.c.l.b16 %v8981
        %v9054 = vunpack.c.l.b16 %v8982
        %v9055 = vunpack.c.l.b16 %v8983
        %v9056 = vunpack.c.l.b16 %v8984
        %v9057 = vunpack.c.l.b16 %v8985
        %v9058 = vunpack.c.l.b16 %v8986
        %v9059 = vunpack.c.l.b16 %v8987
        %v9060 = vunpack.c.l.b16 %v8988
        %v9061 = vunpack.c.l.b16 %v8989
        %v9062 = vunpack.c.l.b16 %v8990
        %v9063 = vunpack.c.l.b16 %v8991
        %v9064 = vunpack.c.l.b16 %v8992
        %v9065 = vunpack.c.l.b16 %v8993
        %v9066 = vunpack.c.l.b16 %v8994
        %v9067 = vunpack.c.l.b16 %v8995
        %v9068 = vunpack.c.l.b16 %v8996
        %v9069 = vunpack.c.l.b16 %v8997
        %v9070 = vpack.c.b16 %v9039, %v9038
        %v9071 = vpack.c.b16 %v9041, %v9040
        %v9072 = vpack.c.b16 %v9043, %v9042
        %v9073 = vpack.c.b16 %v9045, %v9044
        %v9074 = vpack.c.b16 %v9047, %v9046
        %v9075 = vpack.c.b16 %v9049, %v9048
        %v9076 = vpack.c.b16 %v9051, %v9050
        %v9077 = vpack.c.b16 %v9053, %v9052
        %v9078 = vpack.c.b16 %v9055, %v9054
        %v9079 = vpack.c.b16 %v9057, %v9056
        %v9080 = vpack.c.b16 %v9059, %v9058
        %v9081 = vpack.c.b16 %v9061, %v9060
        %v9082 = vpack.c.b16 %v9063, %v9062
        %v9083 = vpack.c.b16 %v9065, %v9064
        %v9084 = vpack.c.b16 %v9067, %v9066
        %v9085 = vpack.c.b16 %v9069, %v9068
        %9102 = vmatprep.subr.bf16.mxu0 0
        %9103 = vmatpush1.bf16.msra.mxu0 %v9070
        %9104 = vmatprep.subr.bf16.mxu0 0
        %9105 = vmatpush1.bf16.msra.mxu0 %v9071
        %9106 = vmatprep.subr.bf16.mxu0 0
        %9107 = vmatpush1.bf16.msra.mxu0 %v9072
        %9108 = vmatprep.subr.bf16.mxu0 0
        %9109 = vmatpush1.bf16.msra.mxu0 %v9073
        %9110 = vmatprep.subr.bf16.mxu0 0
        %9111 = vmatpush1.bf16.msra.mxu0 %v9074
        %9112 = vmatprep.subr.bf16.mxu0 0
        %9113 = vmatpush1.bf16.msra.mxu0 %v9075
        %9114 = vmatprep.subr.bf16.mxu0 0
        %9115 = vmatpush1.bf16.msra.mxu0 %v9076
        %9116 = vmatprep.subr.bf16.mxu0 0
        %9117 = vmatpush1.bf16.msra.mxu0 %v9077
        %9118 = vmatprep.subr.bf16.mxu0 0
        %9119 = vmatpush1.bf16.msra.mxu0 %v9078
        %9120 = vmatprep.subr.bf16.mxu0 0
        %9121 = vmatpush1.bf16.msra.mxu0 %v9079
        %9122 = vmatprep.subr.bf16.mxu0 0
        %9123 = vmatpush1.bf16.msra.mxu0 %v9080
        %9124 = vmatprep.subr.bf16.mxu0 0
        %9125 = vmatpush1.bf16.msra.mxu0 %v9081
        %9126 = vmatprep.subr.bf16.mxu0 0
        %9127 = vmatpush1.bf16.msra.mxu0 %v9082
        %9128 = vmatprep.subr.bf16.mxu0 0
        %9129 = vmatpush1.bf16.msra.mxu0 %v9083
        %9130 = vmatprep.subr.bf16.mxu0 0
        %9131 = vmatpush1.bf16.msra.mxu0 %v9084
        %9132 = vmatprep.subr.bf16.mxu0 0
        %9133 = vmatpush1.bf16.msra.mxu0 %v9085
        %9134 = vmatprep.mubr.bf16.mxu0 %v8950
        %9135 = vmatmul.mubr.bf16.gmra.mrb[0].mxu0 %v8949
        %v9136 = vpop.f32.mrb[0].mxu0
        %v9137 = vadd.f32 %v9004, %v9136
        %v9138 = vpop.f32.mrb[0].mxu0
        %v9139 = vpop.f32.mrb[0].mxu0
        %v9140 = vadd.f32 %v9004, %v9139
        %v9141 = vpop.f32.mrb[0].mxu0
        %9142 = vmatprep.mubr.bf16.mxu0 %v8952
        %9143 = vmatmul.mubr.bf16.gmra.mrb[0].mxu0 %v8951
        %v9144 = vpop.f32.mrb[0].mxu0
        %v9145 = vadd.f32 %v9004, %v9144
        %v9146 = vpop.f32.mrb[0].mxu0
        %v9147 = vpop.f32.mrb[0].mxu0
        %v9148 = vadd.f32 %v9004, %v9147
        %v9149 = vpop.f32.mrb[0].mxu0
        %9150 = vmatprep.mubr.bf16.mxu0 %v8954
        %9151 = vmatmul.mubr.bf16.gmra.mrb[0].mxu0 %v8953
        %v9152 = vpop.f32.mrb[0].mxu0
        %v9153 = vadd.f32 %v9004, %v9152
        %v9154 = vpop.f32.mrb[0].mxu0
        %v9155 = vpop.f32.mrb[0].mxu0
        %v9156 = vadd.f32 %v9004, %v9155
        %v9157 = vpop.f32.mrb[0].mxu0
        %9158 = vmatprep.mubr.bf16.mxu0 %v8956
        %9159 = vmatmul.mubr.bf16.gmra.mrb[0].mxu0 %v8955
        %v9160 = vpop.f32.mrb[0].mxu0
        %v9161 = vadd.f32 %v9004, %v9160
        %v9162 = vpop.f32.mrb[0].mxu0
        %v9163 = vpop.f32.mrb[0].mxu0
        %v9164 = vadd.f32 %v9004, %v9163
        %v9165 = vpop.f32.mrb[0].mxu0
        %9166 = vmatprep.mubr.bf16.mxu0 %v8958
        %9167 = vmatmul.mubr.bf16.gmra.mrb[0].mxu0 %v8957
        %v9168 = vpop.f32.mrb[0].mxu0
        %v9169 = vadd.f32 %v9004, %v9168
        %v9170 = vpop.f32.mrb[0].mxu0
        %v9171 = vpop.f32.mrb[0].mxu0
        %v9172 = vadd.f32 %v9004, %v9171
        %v9173 = vpop.f32.mrb[0].mxu0
        %9174 = vmatprep.mubr.bf16.mxu0 %v8960
        %9175 = vmatmul.mubr.bf16.gmra.mrb[0].mxu0 %v8959
        %v9176 = vpop.f32.mrb[0].mxu0
        %v9177 = vadd.f32 %v9004, %v9176
        %v9178 = vpop.f32.mrb[0].mxu0
        %v9179 = vpop.f32.mrb[0].mxu0
        %v9180 = vadd.f32 %v9004, %v9179
        %v9181 = vpop.f32.mrb[0].mxu0
        %9182 = vmatprep.mubr.bf16.mxu0 %v8962
        %9183 = vmatmul.mubr.bf16.gmra.mrb[0].mxu0 %v8961
        %v9184 = vpop.f32.mrb[0].mxu0
        %v9185 = vadd.f32 %v9004, %v9184
        %v9186 = vpop.f32.mrb[0].mxu0
        %v9187 = vpop.f32.mrb[0].mxu0
        %v9188 = vadd.f32 %v9004, %v9187
        %v9189 = vpop.f32.mrb[0].mxu0
        %9190 = vmatprep.mubr.bf16.mxu0 %v8964
        %9191 = vmatmul.mubr.bf16.gmra.mrb[0].mxu0 %v8963
        %v9192 = vpop.f32.mrb[0].mxu0
        %v9193 = vadd.f32 %v9004, %v9192
        %v9194 = vpop.f32.mrb[0].mxu0
        %v9195 = vpop.f32.mrb[0].mxu0
        %v9196 = vadd.f32 %v9004, %v9195
        %v9197 = vpop.f32.mrb[0].mxu0
        %9198 = vdwg.mxu0
        %v9199 = vadd.f32 %v8414, %v9137
        %v9200 = vadd.f32 %v8415, %v9140
        %v9201 = vadd.f32 %v8416, %v9145
        %v9202 = vadd.f32 %v8417, %v9148
        %v9203 = vadd.f32 %v8418, %v9153
        %v9204 = vadd.f32 %v8419, %v9156
        %v9205 = vadd.f32 %v8420, %v9161
        %v9206 = vadd.f32 %v8421, %v9164
        %v9207 = vadd.f32 %v8422, %v9169
        %v9208 = vadd.f32 %v8423, %v9172
        %v9209 = vadd.f32 %v8424, %v9177
        %v9210 = vadd.f32 %v8425, %v9180
        %v9211 = vadd.f32 %v8426, %v9185
        %v9212 = vadd.f32 %v8427, %v9188
        %v9213 = vadd.f32 %v8428, %v9193
        %v9214 = vadd.f32 %v8429, %v9196
        %s9215 = scalar_lea.vmem %s13, 3
        %v9216 = vld [vmem:[%s9215] sm:$0x1]
        %s9217 = scalar_lea.vmem %s14, 3
        %v9218 = vld [vmem:[%s9217] sm:$0x1]
        %9219 = vadd.xlane.f32.xlu0 %v9199
        %v9220 = vpop.xlane.xlu0 %9219
        %9221 = vadd.xlane.f32.xlu0 %v9200
        %v9222 = vpop.xlane.xlu0 %9221
        %9223 = vadd.xlane.f32.xlu0 %v9201
        %v9224 = vpop.xlane.xlu0 %9223
        %9225 = vadd.xlane.f32.xlu0 %v9202
        %v9226 = vpop.xlane.xlu0 %9225
        %9227 = vadd.xlane.f32.xlu0 %v9203
        %v9228 = vpop.xlane.xlu0 %9227
        %9229 = vadd.xlane.f32.xlu0 %v9204
        %v9230 = vpop.xlane.xlu0 %9229
        %9231 = vadd.xlane.f32.xlu0 %v9205
        %v9232 = vpop.xlane.xlu0 %9231
        %9233 = vadd.xlane.f32.xlu0 %v9206
        %v9234 = vpop.xlane.xlu0 %9233
        %9235 = vadd.xlane.f32.xlu0 %v9207
        %v9236 = vpop.xlane.xlu0 %9235
        %9237 = vadd.xlane.f32.xlu0 %v9208
        %v9238 = vpop.xlane.xlu0 %9237
        %9239 = vadd.xlane.f32.xlu0 %v9209
        %v9240 = vpop.xlane.xlu0 %9239
        %9241 = vadd.xlane.f32.xlu0 %v9210
        %v9242 = vpop.xlane.xlu0 %9241
        %9243 = vadd.xlane.f32.xlu0 %v9211
        %v9244 = vpop.xlane.xlu0 %9243
        %9245 = vadd.xlane.f32.xlu0 %v9212
        %v9246 = vpop.xlane.xlu0 %9245
        %9247 = vadd.xlane.f32.xlu0 %v9213
        %v9248 = vpop.xlane.xlu0 %9247
        %9249 = vadd.xlane.f32.xlu0 %v9214
        %v9250 = vpop.xlane.xlu0 %9249
        %v9251 = vmul.f32 %v9220, %v1617
        %v9252 = vmul.f32 %v9222, %v1617
        %v9253 = vmul.f32 %v9224, %v1617
        %v9254 = vmul.f32 %v9226, %v1617
        %v9255 = vmul.f32 %v9228, %v1617
        %v9256 = vmul.f32 %v9230, %v1617
        %v9257 = vmul.f32 %v9232, %v1617
        %v9258 = vmul.f32 %v9234, %v1617
        %v9259 = vmul.f32 %v9236, %v1617
        %v9260 = vmul.f32 %v9238, %v1617
        %v9261 = vmul.f32 %v9240, %v1617
        %v9262 = vmul.f32 %v9242, %v1617
        %v9263 = vmul.f32 %v9244, %v1617
        %v9264 = vmul.f32 %v9246, %v1617
        %v9265 = vmul.f32 %v9248, %v1617
        %v9266 = vmul.f32 %v9250, %v1617
        %v9267 = vsub.f32 %v9199, %v9251
        %v9268 = vsub.f32 %v9200, %v9252
        %v9269 = vsub.f32 %v9201, %v9253
        %v9270 = vsub.f32 %v9202, %v9254
        %v9271 = vsub.f32 %v9203, %v9255
        %v9272 = vsub.f32 %v9204, %v9256
        %v9273 = vsub.f32 %v9205, %v9257
        %v9274 = vsub.f32 %v9206, %v9258
        %v9275 = vsub.f32 %v9207, %v9259
        %v9276 = vsub.f32 %v9208, %v9260
        %v9277 = vsub.f32 %v9209, %v9261
        %v9278 = vsub.f32 %v9210, %v9262
        %v9279 = vsub.f32 %v9211, %v9263
        %v9280 = vsub.f32 %v9212, %v9264
        %v9281 = vsub.f32 %v9213, %v9265
        %v9282 = vsub.f32 %v9214, %v9266
        %v9283 = vmul.f32 %v9267, %v9267
        %v9284 = vmul.f32 %v9268, %v9268
        %v9285 = vmul.f32 %v9269, %v9269
        %v9286 = vmul.f32 %v9270, %v9270
        %v9287 = vmul.f32 %v9271, %v9271
        %v9288 = vmul.f32 %v9272, %v9272
        %v9289 = vmul.f32 %v9273, %v9273
        %v9290 = vmul.f32 %v9274, %v9274
        %v9291 = vmul.f32 %v9275, %v9275
        %v9292 = vmul.f32 %v9276, %v9276
        %v9293 = vmul.f32 %v9277, %v9277
        %v9294 = vmul.f32 %v9278, %v9278
        %v9295 = vmul.f32 %v9279, %v9279
        %v9296 = vmul.f32 %v9280, %v9280
        %v9297 = vmul.f32 %v9281, %v9281
        %v9298 = vmul.f32 %v9282, %v9282
        %9299 = vadd.xlane.f32.xlu0 %v9283
        %v9300 = vpop.xlane.xlu0 %9299
        %9301 = vadd.xlane.f32.xlu0 %v9284
        %v9302 = vpop.xlane.xlu0 %9301
        %9303 = vadd.xlane.f32.xlu0 %v9285
        %v9304 = vpop.xlane.xlu0 %9303
        %9305 = vadd.xlane.f32.xlu0 %v9286
        %v9306 = vpop.xlane.xlu0 %9305
        %9307 = vadd.xlane.f32.xlu0 %v9287
        %v9308 = vpop.xlane.xlu0 %9307
        %9309 = vadd.xlane.f32.xlu0 %v9288
        %v9310 = vpop.xlane.xlu0 %9309
        %9311 = vadd.xlane.f32.xlu0 %v9289
        %v9312 = vpop.xlane.xlu0 %9311
        %9313 = vadd.xlane.f32.xlu0 %v9290
        %v9314 = vpop.xlane.xlu0 %9313
        %9315 = vadd.xlane.f32.xlu0 %v9291
        %v9316 = vpop.xlane.xlu0 %9315
        %9317 = vadd.xlane.f32.xlu0 %v9292
        %v9318 = vpop.xlane.xlu0 %9317
        %9319 = vadd.xlane.f32.xlu0 %v9293
        %v9320 = vpop.xlane.xlu0 %9319
        %9321 = vadd.xlane.f32.xlu0 %v9294
        %v9322 = vpop.xlane.xlu0 %9321
        %9323 = vadd.xlane.f32.xlu0 %v9295
        %v9324 = vpop.xlane.xlu0 %9323
        %9325 = vadd.xlane.f32.xlu0 %v9296
        %v9326 = vpop.xlane.xlu0 %9325
        %9327 = vadd.xlane.f32.xlu0 %v9297
        %v9328 = vpop.xlane.xlu0 %9327
        %9329 = vadd.xlane.f32.xlu0 %v9298
        %v9330 = vpop.xlane.xlu0 %9329
        %v9331 = vmul.f32 %v9300, %v1617
        %v9332 = vmul.f32 %v9302, %v1617
        %v9333 = vmul.f32 %v9304, %v1617
        %v9334 = vmul.f32 %v9306, %v1617
        %v9335 = vmul.f32 %v9308, %v1617
        %v9336 = vmul.f32 %v9310, %v1617
        %v9337 = vmul.f32 %v9312, %v1617
        %v9338 = vmul.f32 %v9314, %v1617
        %v9339 = vmul.f32 %v9316, %v1617
        %v9340 = vmul.f32 %v9318, %v1617
        %v9341 = vmul.f32 %v9320, %v1617
        %v9342 = vmul.f32 %v9322, %v1617
        %v9343 = vmul.f32 %v9324, %v1617
        %v9344 = vmul.f32 %v9326, %v1617
        %v9345 = vmul.f32 %v9328, %v1617
        %v9346 = vmul.f32 %v9330, %v1617
        %v9347 = vadd.f32 %v9331, 1e-12
        %v9348 = vadd.f32 %v9332, 1e-12
        %v9349 = vadd.f32 %v9333, 1e-12
        %v9350 = vadd.f32 %v9334, 1e-12
        %v9351 = vadd.f32 %v9335, 1e-12
        %v9352 = vadd.f32 %v9336, 1e-12
        %v9353 = vadd.f32 %v9337, 1e-12
        %v9354 = vadd.f32 %v9338, 1e-12
        %v9355 = vadd.f32 %v9339, 1e-12
        %v9356 = vadd.f32 %v9340, 1e-12
        %v9357 = vadd.f32 %v9341, 1e-12
        %v9358 = vadd.f32 %v9342, 1e-12
        %v9359 = vadd.f32 %v9343, 1e-12
        %v9360 = vadd.f32 %v9344, 1e-12
        %v9361 = vadd.f32 %v9345, 1e-12
        %v9362 = vadd.f32 %v9346, 1e-12
        %v9363 = vrsqrt.pop %v9347
        %v9364 = vrsqrt.pop %v9348
        %v9365 = vrsqrt.pop %v9349
        %v9366 = vrsqrt.pop %v9350
        %v9367 = vrsqrt.pop %v9351
        %v9368 = vrsqrt.pop %v9352
        %v9369 = vrsqrt.pop %v9353
        %v9370 = vrsqrt.pop %v9354
        %v9371 = vrsqrt.pop %v9355
        %v9372 = vrsqrt.pop %v9356
        %v9373 = vrsqrt.pop %v9357
        %v9374 = vrsqrt.pop %v9358
        %v9375 = vrsqrt.pop %v9359
        %v9376 = vrsqrt.pop %v9360
        %v9377 = vrsqrt.pop %v9361
        %v9378 = vrsqrt.pop %v9362
        %v9379 = vmul.f32 %v9267, %v9363
        %v9380 = vmul.f32 %v9268, %v9364
        %v9381 = vmul.f32 %v9269, %v9365
        %v9382 = vmul.f32 %v9270, %v9366
        %v9383 = vmul.f32 %v9271, %v9367
        %v9384 = vmul.f32 %v9272, %v9368
        %v9385 = vmul.f32 %v9273, %v9369
        %v9386 = vmul.f32 %v9274, %v9370
        %v9387 = vmul.f32 %v9275, %v9371
        %v9388 = vmul.f32 %v9276, %v9372
        %v9389 = vmul.f32 %v9277, %v9373
        %v9390 = vmul.f32 %v9278, %v9374
        %v9391 = vmul.f32 %v9279, %v9375
        %v9392 = vmul.f32 %v9280, %v9376
        %v9393 = vmul.f32 %v9281, %v9377
        %v9394 = vmul.f32 %v9282, %v9378
        %v9396 = vlaneseq
        %v9397 = vshrl.u32 %v9396, 7
        %v9398 = vsub.s32 0, %v9397
        %v9399 = vrot.slane %v9216, %v9398
        %v9401 = vmul.f32 %v9379, %v9399
        %v9402 = vmul.f32 %v9380, %v9399
        %v9403 = vmul.f32 %v9381, %v9399
        %v9404 = vmul.f32 %v9382, %v9399
        %v9405 = vmul.f32 %v9383, %v9399
        %v9406 = vmul.f32 %v9384, %v9399
        %v9407 = vmul.f32 %v9385, %v9399
        %v9408 = vmul.f32 %v9386, %v9399
        %v9409 = vmul.f32 %v9387, %v9399
        %v9410 = vmul.f32 %v9388, %v9399
        %v9411 = vmul.f32 %v9389, %v9399
        %v9412 = vmul.f32 %v9390, %v9399
        %v9413 = vmul.f32 %v9391, %v9399
        %v9414 = vmul.f32 %v9392, %v9399
        %v9415 = vmul.f32 %v9393, %v9399
        %v9416 = vmul.f32 %v9394, %v9399
        %v9418 = vlaneseq
        %v9419 = vshrl.u32 %v9418, 7
        %v9420 = vsub.s32 0, %v9419
        %v9421 = vrot.slane %v9218, %v9420
        %v9423 = vadd.f32 %v9401, %v9421
        %v9424 = vadd.f32 %v9402, %v9421
        %v9425 = vadd.f32 %v9403, %v9421
        %v9426 = vadd.f32 %v9404, %v9421
        %v9427 = vadd.f32 %v9405, %v9421
        %v9428 = vadd.f32 %v9406, %v9421
        %v9429 = vadd.f32 %v9407, %v9421
        %v9430 = vadd.f32 %v9408, %v9421
        %v9431 = vadd.f32 %v9409, %v9421
        %v9432 = vadd.f32 %v9410, %v9421
        %v9433 = vadd.f32 %v9411, %v9421
        %v9434 = vadd.f32 %v9412, %v9421
        %v9435 = vadd.f32 %v9413, %v9421
        %v9436 = vadd.f32 %v9414, %v9421
        %v9437 = vadd.f32 %v9415, %v9421
        %v9438 = vadd.f32 %v9416, %v9421
        %v9439 = vadd.f32 %v7229, %v9423
        %v9440 = vadd.f32 %v7230, %v9424
        %v9441 = vadd.f32 %v7231, %v9425
        %v9442 = vadd.f32 %v7232, %v9426
        %v9443 = vadd.f32 %v7233, %v9427
        %v9444 = vadd.f32 %v7234, %v9428
        %v9445 = vadd.f32 %v7235, %v9429
        %v9446 = vadd.f32 %v7236, %v9430
        %v9447 = vadd.f32 %v7237, %v9431
        %v9448 = vadd.f32 %v7238, %v9432
        %v9449 = vadd.f32 %v7239, %v9433
        %v9450 = vadd.f32 %v7240, %v9434
        %v9451 = vadd.f32 %v7241, %v9435
        %v9452 = vadd.f32 %v7242, %v9436
        %v9453 = vadd.f32 %v7243, %v9437
        %v9454 = vadd.f32 %v7244, %v9438
        %v9455 = vmul.f32 %v9439, 0.25
        %v9456 = vmul.f32 %v9440, 0.25
        %v9457 = vmul.f32 %v9441, 0.25
        %v9458 = vmul.f32 %v9442, 0.25
        %v9459 = vmul.f32 %v9443, 0.25
        %v9460 = vmul.f32 %v9444, 0.25
        %v9461 = vmul.f32 %v9445, 0.25
        %v9462 = vmul.f32 %v9446, 0.25
        %v9463 = vmul.f32 %v9447, 0.25
        %v9464 = vmul.f32 %v9448, 0.25
        %v9465 = vmul.f32 %v9449, 0.25
        %v9466 = vmul.f32 %v9450, 0.25
        %v9467 = vmul.f32 %v9451, 0.25
        %v9468 = vmul.f32 %v9452, 0.25
        %v9469 = vmul.f32 %v9453, 0.25
        %v9470 = vmul.f32 %v9454, 0.25
        %v9471 = vld [vmem:[%s597] sm:$0x7]
        %9472 = vmatprep.subr.mxu0 0.0
        %9473 = vmatpush1.msra.mxu0 %v9455
        %9474 = vmatprep.subr.mxu0 0.0
        %9475 = vmatpush1.msra.mxu0 %v9456
        %9476 = vmatprep.subr.mxu0 0.0
        %9477 = vmatpush1.msra.mxu0 %v9457
        %9478 = vmatprep.subr.mxu0 0.0
        %9479 = vmatpush1.msra.mxu0 %v9458
        %9480 = vmatprep.subr.mxu0 0.0
        %9481 = vmatpush1.msra.mxu0 %v9459
        %9482 = vmatprep.subr.mxu0 0.0
        %9483 = vmatpush1.msra.mxu0 %v9460
        %9484 = vmatprep.subr.mxu0 0.0
        %9485 = vmatpush1.msra.mxu0 %v9461
        %9486 = vmatprep.subr.mxu0 0.0
        %9487 = vmatpush1.msra.mxu0 %v9462
        %9488 = vmatprep.subr.mxu0 0.0
        %9489 = vmatpush1.msra.mxu0 %v9463
        %9490 = vmatprep.subr.mxu0 0.0
        %9491 = vmatpush1.msra.mxu0 %v9464
        %9492 = vmatprep.subr.mxu0 0.0
        %9493 = vmatpush1.msra.mxu0 %v9465
        %9494 = vmatprep.subr.mxu0 0.0
        %9495 = vmatpush1.msra.mxu0 %v9466
        %9496 = vmatprep.subr.mxu0 0.0
        %9497 = vmatpush1.msra.mxu0 %v9467
        %9498 = vmatprep.subr.mxu0 0.0
        %9499 = vmatpush1.msra.mxu0 %v9468
        %9500 = vmatprep.subr.mxu0 0.0
        %9501 = vmatpush1.msra.mxu0 %v9469
        %9502 = vmatprep.subr.mxu0 0.0
        %9503 = vmatpush1.msra.mxu0 %v9470
        %9504 = vmatprep.subr.mxu0 0.0
        %9505 = vmatpush1.msra.mxu0 0.0
        %9506 = vmatprep.subr.mxu0 0.0
        %9507 = vmatpush1.msra.mxu0 0.0
        %9508 = vmatprep.subr.mxu0 0.0
        %9509 = vmatpush1.msra.mxu0 0.0
        %9510 = vmatprep.subr.mxu0 0.0
        %9511 = vmatpush1.msra.mxu0 0.0
        %9512 = vmatprep.subr.mxu0 0.0
        %9513 = vmatpush1.msra.mxu0 0.0
        %9514 = vmatprep.subr.mxu0 0.0
        %9515 = vmatpush1.msra.mxu0 0.0
        %9516 = vmatprep.subr.mxu0 0.0
        %9517 = vmatpush1.msra.mxu0 0.0
        %9518 = vmatprep.subr.mxu0 0.0
        %9519 = vmatpush1.msra.mxu0 0.0
        %9520 = vmatprep.subr.mxu0 0.0
        %9521 = vmatpush1.msra.mxu0 0.0
        %9522 = vmatprep.subr.mxu0 0.0
        %9523 = vmatpush1.msra.mxu0 0.0
        %9524 = vmatprep.subr.mxu0 0.0
        %9525 = vmatpush1.msra.mxu0 0.0
        %9526 = vmatprep.subr.mxu0 0.0
        %9527 = vmatpush1.msra.mxu0 0.0
        %9528 = vmatprep.subr.mxu0 0.0
        %9529 = vmatpush1.msra.mxu0 0.0
        %9530 = vmatprep.subr.mxu0 0.0
        %9531 = vmatpush1.msra.mxu0 0.0
        %9532 = vmatprep.subr.mxu0 0.0
        %9533 = vmatpush1.msra.mxu0 0.0
        %9534 = vmatprep.subr.mxu0 0.0
        %9535 = vmatpush1.msra.mxu0 0.0
        %9536 = vmatprep.mubr.f32.mxu0 0.0
        %9537 = vmatmul.mubr.f32.gmra.mrb[0].mxu0 %v9471
        %v9538 = vpop.f32.mrb[0].mxu0
        %v9539 = vadd.f32 0.0, %v9538
        %v9540 = vpop.f32.mrb[0].mxu0
        %9541 = vdwg.mxu0
        %9542 = vst [vmem:[%s601] sm:$0x7] %v9539
        %p9543 = scmp.lt.s32.totalorder %s31, 1
        %s9544 = scalar_select %p9543, %s31, 1
        %s9545 = smul.addr %s9544, 4
        %s9546 = scalar_lea.vmem %s15, %s9545
        // Predicated region
        $region101: #{tpu_custom_call.1} parent=79 // pred_check
          %p9547 = pneg %p379
        $region102: #{tpu_custom_call.1} parent=79 // pred_check_branch
          %9549 = sbr.rel (%p9547) target = $region104
        $region103: #{tpu_custom_call.1} parent=79 // pred_region
          _
        $region104: #{tpu_custom_call.1} parent=79 // pred_fallthru
          _
      $region80: #{tpu_custom_call.1} parent=5 // pred_fallthru
        _
      %p9550 = scmp.le.s32.totalorder 2, %s26
      // Predicated region
      $region105: #{tpu_custom_call.1} parent=5 // pred_check
        %p9551 = pneg %p9550
      $region106: #{tpu_custom_call.1} parent=5 // pred_check_branch
        %9553 = sbr.rel (%p9551) target = $region108
      $region107: #{tpu_custom_call.1} parent=5 // pred_region
        %s9554 = ssub.s32 %s26, 2
        // Predicated region
        $region109: #{tpu_custom_call.1} parent=107 // pred_check
          %p9555 = pneg %p385
        $region110: #{tpu_custom_call.1} parent=107 // pred_check_branch
          %9557 = sbr.rel (%p9555) target = $region112
        $region111: #{tpu_custom_call.1} parent=107 // pred_region
          %p9558 = scmp.lt.s32.totalorder %s32, 1
          %s9559 = scalar_select %p9558, %s32, 1
          %s9560 = smul.addr %s9559, 4
          %s9561 = scalar_lea.vmem %s15, %s9560
        $region112: #{tpu_custom_call.1} parent=107 // pred_fallthru
          _
      $region108: #{tpu_custom_call.1} parent=5 // pred_fallthru
        _
    $region6: #{tpu_custom_call.1} parent=1 // loop_footer
      %s30 = sadd.s32 1, %s26
    $region7: #{tpu_custom_call.1} parent=1 // loop_footer_branch
      %25 = sbr.rel target = $region3
    $region8: #{tpu_custom_call.1} parent=1 // loop_exit
      _
    %9562 = vsyncpa [#allocation3], 1
    %s9563 = scalar_lea.sflag [#allocation3], 1
    %9564 = vsyncpa %s9563, 1
    %9565 = vsyncpa [#allocation5], 1
    %9566 = vsyncpa [#allocation8], 1

</llo_original>
